<compile_context>
chip_gen: v6e
topology: v6e:2x2x1
jax: 0.10.0
libtpu: 0.0.40
codegen_flags: <defaults>
</compile_context>

<pallas_src>
import functools

import jax
import jax.numpy as jnp
from jax import lax
from jax.experimental import pallas as pl
from jax.experimental.pallas import tpu as pltpu

NUM_CLASSES = 2
CDSPRITES_CHANS, CDSPRITES_H, CDSPRITES_W = 3, 64, 64

_CONV_PADS = (1, 1, 1, 1, 0)     # kernel=4, stride=2 everywhere
_CIN_PAD = 8                     # zero-pad input channels 3 -> 8 (lane friendliness)


def _round_up(x, m):
    return (x + m - 1) // m * m


# --------------------------- Pallas kernels ------------------------------- #
def _conv_s2d_kernel(x_ref, w_ref, b_ref, o_ref, *, wb, m_out):
    """One image: 4x4/stride-2 conv as 4 quadrant matmuls on the space-to-depth
    row matrix.  x_ref: (1, R, 4C) bf16, w_ref: (4, 4C, Cout) bf16,
    b_ref: (1, Cout) f32, o_ref: (1, m_out, Cout).  f32 accumulation,
    bias + ReLU fused.  Output row m = oh*wb + ow' (ow'==wb-1 is a junk column
    the wrapper drops)."""
    cout = o_ref.shape[-1]
    acc = jnp.zeros((m_out, cout), jnp.float32)
    for di in range(2):
        for dj in range(2):
            a = x_ref[0, pl.ds(di * wb + dj, m_out), :]          # (m_out, 4C)
            acc = acc + jnp.dot(a, w_ref[2 * di + dj],
                                preferred_element_type=jnp.float32)
    out = jnp.maximum(acc + b_ref[...], 0.0)
    o_ref[0] = out.astype(o_ref.dtype)


def _conv_fc_kernel(x_ref, w_ref, b_ref, fcw_ref, fcb_ref, o_ref, *, wb):
    """Final Conv2d(128,128,4,2,0) (spatial collapses to 1x1) with the
    Linear(128 -> NUM_CLASSES) head fused into the epilogue."""
    cout = w_ref.shape[-1]
    acc = jnp.zeros((1, cout), jnp.float32)
    for di in range(2):
        for dj in range(2):
            a = x_ref[0, pl.ds(di * wb + dj, 1), :]               # (1, 4C)
            acc = acc + jnp.dot(a, w_ref[2 * di + dj],
                                preferred_element_type=jnp.float32)
    e = jnp.maximum(acc + b_ref[...], 0.0)                        # (1, 128) f32
    logits = jnp.dot(e.astype(fcw_ref.dtype), fcw_ref[...],
                     preferred_element_type=jnp.float32) + fcb_ref[...]
    o_ref[0] = logits                                             # (1, NUM_CLASSES)


# --------------------------- Pallas wrappers ------------------------------ #
def conv_s2d(x2d, wq, bias2, *, wb, m_out, out_dtype=jnp.bfloat16):
    n, r, kq = x2d.shape
    cout = wq.shape[-1]
    return pl.pallas_call(
        functools.partial(_conv_s2d_kernel, wb=wb, m_out=m_out),
        out_shape=jax.ShapeDtypeStruct((n, m_out, cout), out_dtype),
        grid=(n,),
        in_specs=[
            pl.BlockSpec((1, r, kq), lambda i: (i, 0, 0)),
            pl.BlockSpec((4, kq, cout), lambda i: (0, 0, 0)),     # weights resident
            pl.BlockSpec((1, cout), lambda i: (0, 0)),
        ],
        out_specs=pl.BlockSpec((1, m_out, cout), lambda i: (i, 0, 0)),
        compiler_params=pltpu.CompilerParams(
            dimension_semantics=("parallel",)),
    )(x2d, wq, bias2)


def conv_fc_fused(x2d, wq, bias2, fcw, fcb2, *, wb):
    n, r, kq = x2d.shape
    cout = wq.shape[-1]
    nclass = fcw.shape[-1]
    return pl.pallas_call(
        functools.partial(_conv_fc_kernel, wb=wb),
        out_shape=jax.ShapeDtypeStruct((n, 1, nclass), jnp.float32),
        grid=(n,),
        in_specs=[
            pl.BlockSpec((1, r, kq), lambda i: (i, 0, 0)),
            pl.BlockSpec((4, kq, cout), lambda i: (0, 0, 0)),
            pl.BlockSpec((1, cout), lambda i: (0, 0)),
            pl.BlockSpec((cout, nclass), lambda i: (0, 0)),
            pl.BlockSpec((1, nclass), lambda i: (0, 0)),
        ],
        out_specs=pl.BlockSpec((1, 1, nclass), lambda i: (i, 0, 0)),
        compiler_params=pltpu.CompilerParams(
            dimension_semantics=("parallel",)),
    )(x2d, wq, bias2, fcw, fcb2)


# ------------------------------ conv glue --------------------------------- #
def _s2d_rows(act, pad, r_pad):
    """NHWC activation -> padded space-to-depth row matrix (N, r_pad, 4C).
    Row index = hb*Wb + wb, channel index = pi*2C + pj*C + c, where
    padded-input pixel (2hb+pi, 2wb+pj).  ~1x activation bytes (no 4x im2col)."""
    n, h, w, c = act.shape
    if pad:
        act = jnp.pad(act, ((0, 0), (pad, pad), (pad, pad), (0, 0)))
    hb, wb = (h + 2 * pad) // 2, (w + 2 * pad) // 2
    x = act.reshape(n, hb, 2, wb, 2, c)
    x = x.transpose(0, 1, 3, 2, 4, 5).reshape(n, hb * wb, 4 * c)
    return jnp.pad(x, ((0, 0), (0, r_pad - hb * wb), (0, 0)))


# ------------------------------- the Model -------------------------------- #
def init_params(key):
    """Deterministic synthetic weights with PyTorch layouts/shapes."""
    layer_shapes = [
        (32, CDSPRITES_CHANS, 4, 4),   # Conv2d(3, 32, 4, 2, 1)
        (32, 32, 4, 4),                # Conv2d(32, 32, 4, 2, 1)
        (64, 32, 4, 4),                # Conv2d(32, 64, 4, 2, 1)
        (128, 64, 4, 4),               # Conv2d(64, 128, 4, 2, 1)
        (128, 128, 4, 4),              # Conv2d(128, 128, 4, 2, 0)
    ]
    params = {"conv_w": [], "conv_b": []}
    keys = jax.random.split(key, len(layer_shapes) + 1)
    for k, shp in zip(keys[:-1], layer_shapes):
        fan_in = shp[1] * shp[2] * shp[3]
        w = jax.random.normal(k, shp, dtype=jnp.float32) * (1.0 / jnp.sqrt(fan_in))
        b = jnp.zeros((shp[0],), dtype=jnp.float32)
        params["conv_w"].append(w)
        params["conv_b"].append(b)
    kfc = keys[-1]
    params["fc_w"] = (jax.random.normal(kfc, (NUM_CLASSES, 128), dtype=jnp.float32)
                      * (1.0 / jnp.sqrt(128.0)))
    params["fc_b"] = jnp.zeros((NUM_CLASSES,), dtype=jnp.float32)
    return params


def _quadrant_weight(w, cin_pad=None):
    """(Cout, Cin, 4, 4) -> (4, 4*Cp, Cout); quadrant q = 2*di+dj, row index
    (pi, pj, c) matches the space-to-depth channel ordering."""
    cout, cin, kh, kw = w.shape
    assert kh == 4 and kw == 4
    cp = cin if cin_pad is None else max(cin, cin_pad)
    if cp > cin:
        w = jnp.pad(w, ((0, 0), (0, cp - cin), (0, 0), (0, 0)))
    wt = jnp.transpose(w, (2, 3, 1, 0))          # (i, j, Cp, Cout)
    wr = wt.reshape(2, 2, 2, 2, cp, cout)        # (di, pi, dj, pj, Cp, Cout)
    wr = wr.transpose(0, 2, 1, 3, 4, 5)          # (di, dj, pi, pj, Cp, Cout)
    return wr.reshape(4, 4 * cp, cout)


def prepare_params(params):
    """One-time conversion to matmul-ready layouts (hoisted out of forward)."""
    wq, b2 = [], []
    for li, (w, b) in enumerate(zip(params["conv_w"], params["conv_b"])):
        cin_pad = _CIN_PAD if li == 0 else None
        wq.append(_quadrant_weight(w, cin_pad).astype(jnp.bfloat16))
        b2.append(b.reshape(1, -1).astype(jnp.float32))
    return {
        "wq": wq,
        "b2": b2,
        "fc_w": params["fc_w"].T.astype(jnp.bfloat16),           # (128, NUM_CLASSES)
        "fc_b2": params["fc_b"].reshape(1, -1).astype(jnp.float32),
    }


def forward(prep, x):
    """Matches Model.forward(x) (get_feat=False):
    x: (*pre_shape, 3, 64, 64) -> (*pre_shape, NUM_CLASSES)."""
    pre_shape = x.shape[:-3]
    h = x.reshape((-1, CDSPRITES_CHANS, CDSPRITES_H, CDSPRITES_W))
    # single NCHW -> NHWC conversion; activations stay bf16 NHWC throughout
    h = jnp.transpose(h, (0, 2, 3, 1)).astype(jnp.bfloat16)
    # zero-pad channels 3 -> 8 once (weight rows padded to match)
    h = jnp.pad(h, ((0, 0), (0, 0), (0, 0), (0, _CIN_PAD - CDSPRITES_CHANS)))

    # first four Conv2d(4,2,1) + ReLU layers
    for li in range(4):
        pad = _CONV_PADS[li]
        n, hh, ww, _ = h.shape
        hb, wb = (hh + 2 * pad) // 2, (ww + 2 * pad) // 2
        ho, wo = hb - 1, wb - 1
        m_out = _round_up(ho * wb, 8)
        r_pad = _round_up(wb + 1 + m_out, 8)
        x2d = _s2d_rows(h, pad, r_pad)
        out = conv_s2d(x2d, prep["wq"][li], prep["b2"][li], wb=wb, m_out=m_out)
        # drop padded rows + junk column, back to NHWC for the next layer
        h = out[:, :ho * wb, :].reshape(n, ho, wb, -1)[:, :, :wo, :]

    # final Conv2d(128,128,4,2,0) -> 1x1 spatial, fused with Linear(128, 2)
    pad = _CONV_PADS[4]
    n, hh, ww, _ = h.shape
    hb, wb = (hh + 2 * pad) // 2, (ww + 2 * pad) // 2     # 2, 2
    r_pad = _round_up(wb + 1 + 1, 8)
    x2d = _s2d_rows(h, pad, r_pad)
    logits = conv_fc_fused(x2d, prep["wq"][4], prep["b2"][4],
                           prep["fc_w"], prep["fc_b2"], wb=wb)    # (N, 1, 2) f32
    return logits.reshape(*pre_shape, NUM_CLASSES)


# --------------------------- pure-JAX reference --------------------------- #
def reference_forward(params, x):
    """Same dtype policy as the Pallas path (bf16 storage / MXU inputs,
    f32 accumulation)."""
    h = x.reshape((-1, CDSPRITES_CHANS, CDSPRITES_H, CDSPRITES_W))
    h = jnp.transpose(h, (0, 2, 3, 1)).astype(jnp.bfloat16)
    for li in range(5):
        w = jnp.transpose(params["conv_w"][li], (2, 3, 1, 0)).astype(jnp.bfloat16)
        p = _CONV_PADS[li]
        out = lax.conv_general_dilated(
            h, w, window_strides=(2, 2), padding=((p, p), (p, p)),
            dimension_numbers=("NHWC", "HWIO", "NHWC"),
            preferred_element_type=jnp.float32)
        out = out + params["conv_b"][li].reshape(1, 1, 1, -1)
        h = jnp.maximum(out, 0.0).astype(jnp.bfloat16)
    e = h.reshape(h.shape[0], -1)                                  # (B, 128)
    logits = jnp.dot(e, params["fc_w"].T.astype(jnp.bfloat16),
                     preferred_element_type=jnp.float32)
    return logits + params["fc_b"].reshape(1, -1)


if __name__ == "__main__":
    key = jax.random.PRNGKey(0)
    kx, kp = jax.random.split(key)
    # Batch of 2 cdsprites images (spatial size fixed by the architecture).
    x = jax.random.uniform(kx, (2, CDSPRITES_CHANS, CDSPRITES_H, CDSPRITES_W),
                           dtype=jnp.float32)
    params = init_params(kp)
    prep = prepare_params(params)          # one-time layout prep (hoisted)

    fwd = jax.jit(forward)
    out = jax.block_until_ready(fwd(prep, x))
    assert out.shape == (2, NUM_CLASSES), out.shape
    assert bool(jnp.all(jnp.isfinite(out)))

    ref = jax.block_until_ready(jax.jit(reference_forward)(params, x))
    assert bool(jnp.allclose(out, ref, rtol=5e-2, atol=5e-2)), (out, ref)
    print("KERNEL_OK")
</pallas_src>

<mosaic_0001>
module attributes {stable_mosaic.version = 11 : i64} {
  func.func @_conv_s2d_kernel(%arg0: i32, %arg1: memref<1x1096x32xbf16, #tpu.memory_space<vmem>>, %arg2: memref<4x32x32xbf16, #tpu.memory_space<vmem>>, %arg3: memref<1x32xf32, #tpu.memory_space<vmem>>, %arg4: memref<1x1056x32xbf16, #tpu.memory_space<vmem>>) attributes {dimension_semantics = [#tpu.dimension_semantics<parallel>], iteration_bounds = array<i64: 2>, scalar_prefetch = 0 : i64, scratch_operands = 0 : i64, tpu.core_type = #tpu.core_type<tc>, window_params = [{transform_indices = @transform_0, window_bounds = array<i64: 1, 1096, 32>}, {pipeline_mode = #tpu.pipeline_mode<synchronous>, transform_indices = @transform_1, window_bounds = array<i64: 4, 32, 32>}, {pipeline_mode = #tpu.pipeline_mode<synchronous>, transform_indices = @transform_2, window_bounds = array<i64: 1, 32>}, {transform_indices = @transform_3, window_bounds = array<i64: 1, 1056, 32>}]} {
    %cst = arith.constant 0.000000e+00 : f32
    %0 = vector.broadcast %cst : f32 to vector<1056x32xf32>
    %c0 = arith.constant 0 : index
    %c0_0 = arith.constant 0 : index
    %c0_1 = arith.constant 0 : index
    %1 = vector.load %arg1[%c0, %c0_0, %c0_1] : memref<1x1096x32xbf16, #tpu.memory_space<vmem>>, vector<1x1056x32xbf16>
    %2 = vector.shape_cast %1 : vector<1x1056x32xbf16> to vector<1056x32xbf16>
    %c0_2 = arith.constant 0 : index
    %c0_3 = arith.constant 0 : index
    %c0_4 = arith.constant 0 : index
    %3 = vector.load %arg2[%c0_2, %c0_3, %c0_4] : memref<4x32x32xbf16, #tpu.memory_space<vmem>>, vector<1x32x32xbf16>
    %4 = vector.shape_cast %3 : vector<1x32x32xbf16> to vector<32x32xbf16>
    %cst_5 = arith.constant dense<0.000000e+00> : vector<1056x32xf32>
    %5 = tpu.matmul %2, %4, %cst_5 {dimension_numbers = #tpu.dot_dimension_numbers<[1], [0], [0], [1], [0, 0, 1, 1], [], []>} : vector<1056x32xbf16>, vector<32x32xbf16>, vector<1056x32xf32> -> vector<1056x32xf32>
    %6 = arith.addf %0, %5 : vector<1056x32xf32>
    %c0_6 = arith.constant 0 : index
    %c1 = arith.constant 1 : index
    %c0_7 = arith.constant 0 : index
    %7 = vector.load %arg1[%c0_6, %c1, %c0_7] : memref<1x1096x32xbf16, #tpu.memory_space<vmem>>, vector<1x1056x32xbf16>
    %8 = vector.shape_cast %7 : vector<1x1056x32xbf16> to vector<1056x32xbf16>
    %c1_8 = arith.constant 1 : index
    %c0_9 = arith.constant 0 : index
    %c0_10 = arith.constant 0 : index
    %9 = vector.load %arg2[%c1_8, %c0_9, %c0_10] : memref<4x32x32xbf16, #tpu.memory_space<vmem>>, vector<1x32x32xbf16>
    %10 = vector.shape_cast %9 : vector<1x32x32xbf16> to vector<32x32xbf16>
    %cst_11 = arith.constant dense<0.000000e+00> : vector<1056x32xf32>
    %11 = tpu.matmul %8, %10, %cst_11 {dimension_numbers = #tpu.dot_dimension_numbers<[1], [0], [0], [1], [0, 0, 1, 1], [], []>} : vector<1056x32xbf16>, vector<32x32xbf16>, vector<1056x32xf32> -> vector<1056x32xf32>
    %12 = arith.addf %6, %11 : vector<1056x32xf32>
    %c0_12 = arith.constant 0 : index
    %c33 = arith.constant 33 : index
    %c0_13 = arith.constant 0 : index
    %13 = vector.load %arg1[%c0_12, %c33, %c0_13] : memref<1x1096x32xbf16, #tpu.memory_space<vmem>>, vector<1x1056x32xbf16>
    %14 = vector.shape_cast %13 : vector<1x1056x32xbf16> to vector<1056x32xbf16>
    %c2 = arith.constant 2 : index
    %c0_14 = arith.constant 0 : index
    %c0_15 = arith.constant 0 : index
    %15 = vector.load %arg2[%c2, %c0_14, %c0_15] : memref<4x32x32xbf16, #tpu.memory_space<vmem>>, vector<1x32x32xbf16>
    %16 = vector.shape_cast %15 : vector<1x32x32xbf16> to vector<32x32xbf16>
    %cst_16 = arith.constant dense<0.000000e+00> : vector<1056x32xf32>
    %17 = tpu.matmul %14, %16, %cst_16 {dimension_numbers = #tpu.dot_dimension_numbers<[1], [0], [0], [1], [0, 0, 1, 1], [], []>} : vector<1056x32xbf16>, vector<32x32xbf16>, vector<1056x32xf32> -> vector<1056x32xf32>
    %18 = arith.addf %12, %17 : vector<1056x32xf32>
    %c0_17 = arith.constant 0 : index
    %c34 = arith.constant 34 : index
    %c0_18 = arith.constant 0 : index
    %19 = vector.load %arg1[%c0_17, %c34, %c0_18] : memref<1x1096x32xbf16, #tpu.memory_space<vmem>>, vector<1x1056x32xbf16>
    %20 = vector.shape_cast %19 : vector<1x1056x32xbf16> to vector<1056x32xbf16>
    %c3 = arith.constant 3 : index
    %c0_19 = arith.constant 0 : index
    %c0_20 = arith.constant 0 : index
    %21 = vector.load %arg2[%c3, %c0_19, %c0_20] : memref<4x32x32xbf16, #tpu.memory_space<vmem>>, vector<1x32x32xbf16>
    %22 = vector.shape_cast %21 : vector<1x32x32xbf16> to vector<32x32xbf16>
    %cst_21 = arith.constant dense<0.000000e+00> : vector<1056x32xf32>
    %23 = tpu.matmul %20, %22, %cst_21 {dimension_numbers = #tpu.dot_dimension_numbers<[1], [0], [0], [1], [0, 0, 1, 1], [], []>} : vector<1056x32xbf16>, vector<32x32xbf16>, vector<1056x32xf32> -> vector<1056x32xf32>
    %24 = arith.addf %18, %23 : vector<1056x32xf32>
    %c0_22 = arith.constant 0 : index
    %c0_23 = arith.constant 0 : index
    %25 = vector.load %arg3[%c0_22, %c0_23] : memref<1x32xf32, #tpu.memory_space<vmem>>, vector<1x32xf32>
    %26 = vector.broadcast %25 : vector<1x32xf32> to vector<1056x32xf32>
    %27 = arith.addf %24, %26 : vector<1056x32xf32>
    %cst_24 = arith.constant 0.000000e+00 : f32
    %28 = vector.broadcast %cst_24 : f32 to vector<1056x32xf32>
    %29 = arith.maximumf %27, %28 : vector<1056x32xf32>
    %30 = arith.truncf %29 : vector<1056x32xf32> to vector<1056x32xbf16>
    %c0_25 = arith.constant 0 : index
    %c0_26 = arith.constant 0 : index
    %c0_27 = arith.constant 0 : index
    %31 = vector.load %arg4[%c0_25, %c0_26, %c0_27] : memref<1x1056x32xbf16, #tpu.memory_space<vmem>>, vector<1x1056x32xbf16>
    %32 = vector.shape_cast %31 : vector<1x1056x32xbf16> to vector<1056x32xbf16>
    %33 = vector.shape_cast %30 : vector<1056x32xbf16> to vector<1x1056x32xbf16>
    tpu.vector_store %arg4[%c0_25, %c0_26, %c0_27], %33 {strides = array<i32>} : memref<1x1056x32xbf16, #tpu.memory_space<vmem>>, vector<1x1056x32xbf16>,
    return
  }
  func.func @transform_0(%arg0: i32) -> (i32, i32, i32) {
    %c0_i32 = arith.constant 0 : i32
    %c0_i32_0 = arith.constant 0 : i32
    %c0_i32_1 = arith.constant 0 : i32
    return %arg0, %c0_i32, %c0_i32_0 : i32, i32, i32
  }
  func.func @transform_1(%arg0: i32) -> (i32, i32, i32) {
    %c0_i32 = arith.constant 0 : i32
    %c0_i32_0 = arith.constant 0 : i32
    %c0_i32_1 = arith.constant 0 : i32
    %c0_i32_2 = arith.constant 0 : i32
    return %c0_i32, %c0_i32_0, %c0_i32_1 : i32, i32, i32
  }
  func.func @transform_2(%arg0: i32) -> (i32, i32) {
    %c0_i32 = arith.constant 0 : i32
    %c0_i32_0 = arith.constant 0 : i32
    %c0_i32_1 = arith.constant 0 : i32
    return %c0_i32, %c0_i32_0 : i32, i32
  }
  func.func @transform_3(%arg0: i32) -> (i32, i32, i32) {
    %c0_i32 = arith.constant 0 : i32
    %c0_i32_0 = arith.constant 0 : i32
    %c0_i32_1 = arith.constant 0 : i32
    return %arg0, %c0_i32, %c0_i32_0 : i32, i32, i32
  }
}

module attributes {stable_mosaic.version = 11 : i64} {
  func.func @_conv_s2d_kernel(%arg0: i32, %arg1: memref<1x296x128xbf16, #tpu.memory_space<vmem>>, %arg2: memref<4x128x32xbf16, #tpu.memory_space<vmem>>, %arg3: memref<1x32xf32, #tpu.memory_space<vmem>>, %arg4: memref<1x272x32xbf16, #tpu.memory_space<vmem>>) attributes {dimension_semantics = [#tpu.dimension_semantics<parallel>], iteration_bounds = array<i64: 2>, scalar_prefetch = 0 : i64, scratch_operands = 0 : i64, tpu.core_type = #tpu.core_type<tc>, window_params = [{transform_indices = @transform_0, window_bounds = array<i64: 1, 296, 128>}, {pipeline_mode = #tpu.pipeline_mode<synchronous>, transform_indices = @transform_1, window_bounds = array<i64: 4, 128, 32>}, {pipeline_mode = #tpu.pipeline_mode<synchronous>, transform_indices = @transform_2, window_bounds = array<i64: 1, 32>}, {transform_indices = @transform_3, window_bounds = array<i64: 1, 272, 32>}]} {
    %cst = arith.constant 0.000000e+00 : f32
    %0 = vector.broadcast %cst : f32 to vector<272x32xf32>
    %c0 = arith.constant 0 : index
    %c0_0 = arith.constant 0 : index
    %c0_1 = arith.constant 0 : index
    %1 = vector.load %arg1[%c0, %c0_0, %c0_1] : memref<1x296x128xbf16, #tpu.memory_space<vmem>>, vector<1x272x128xbf16>
    %2 = vector.shape_cast %1 : vector<1x272x128xbf16> to vector<272x128xbf16>
    %c0_2 = arith.constant 0 : index
    %c0_3 = arith.constant 0 : index
    %c0_4 = arith.constant 0 : index
    %3 = vector.load %arg2[%c0_2, %c0_3, %c0_4] : memref<4x128x32xbf16, #tpu.memory_space<vmem>>, vector<1x128x32xbf16>
    %4 = vector.shape_cast %3 : vector<1x128x32xbf16> to vector<128x32xbf16>
    %cst_5 = arith.constant dense<0.000000e+00> : vector<272x32xf32>
    %5 = tpu.matmul %2, %4, %cst_5 {dimension_numbers = #tpu.dot_dimension_numbers<[1], [0], [0], [1], [0, 0, 1, 1], [], []>} : vector<272x128xbf16>, vector<128x32xbf16>, vector<272x32xf32> -> vector<272x32xf32>
    %6 = arith.addf %0, %5 : vector<272x32xf32>
    %c0_6 = arith.constant 0 : index
    %c1 = arith.constant 1 : index
    %c0_7 = arith.constant 0 : index
    %7 = vector.load %arg1[%c0_6, %c1, %c0_7] : memref<1x296x128xbf16, #tpu.memory_space<vmem>>, vector<1x272x128xbf16>
    %8 = vector.shape_cast %7 : vector<1x272x128xbf16> to vector<272x128xbf16>
    %c1_8 = arith.constant 1 : index
    %c0_9 = arith.constant 0 : index
    %c0_10 = arith.constant 0 : index
    %9 = vector.load %arg2[%c1_8, %c0_9, %c0_10] : memref<4x128x32xbf16, #tpu.memory_space<vmem>>, vector<1x128x32xbf16>
    %10 = vector.shape_cast %9 : vector<1x128x32xbf16> to vector<128x32xbf16>
    %cst_11 = arith.constant dense<0.000000e+00> : vector<272x32xf32>
    %11 = tpu.matmul %8, %10, %cst_11 {dimension_numbers = #tpu.dot_dimension_numbers<[1], [0], [0], [1], [0, 0, 1, 1], [], []>} : vector<272x128xbf16>, vector<128x32xbf16>, vector<272x32xf32> -> vector<272x32xf32>
    %12 = arith.addf %6, %11 : vector<272x32xf32>
    %c0_12 = arith.constant 0 : index
    %c17 = arith.constant 17 : index
    %c0_13 = arith.constant 0 : index
    %13 = vector.load %arg1[%c0_12, %c17, %c0_13] : memref<1x296x128xbf16, #tpu.memory_space<vmem>>, vector<1x272x128xbf16>
    %14 = vector.shape_cast %13 : vector<1x272x128xbf16> to vector<272x128xbf16>
    %c2 = arith.constant 2 : index
    %c0_14 = arith.constant 0 : index
    %c0_15 = arith.constant 0 : index
    %15 = vector.load %arg2[%c2, %c0_14, %c0_15] : memref<4x128x32xbf16, #tpu.memory_space<vmem>>, vector<1x128x32xbf16>
    %16 = vector.shape_cast %15 : vector<1x128x32xbf16> to vector<128x32xbf16>
    %cst_16 = arith.constant dense<0.000000e+00> : vector<272x32xf32>
    %17 = tpu.matmul %14, %16, %cst_16 {dimension_numbers = #tpu.dot_dimension_numbers<[1], [0], [0], [1], [0, 0, 1, 1], [], []>} : vector<272x128xbf16>, vector<128x32xbf16>, vector<272x32xf32> -> vector<272x32xf32>
    %18 = arith.addf %12, %17 : vector<272x32xf32>
    %c0_17 = arith.constant 0 : index
    %c18 = arith.constant 18 : index
    %c0_18 = arith.constant 0 : index
    %19 = vector.load %arg1[%c0_17, %c18, %c0_18] : memref<1x296x128xbf16, #tpu.memory_space<vmem>>, vector<1x272x128xbf16>
    %20 = vector.shape_cast %19 : vector<1x272x128xbf16> to vector<272x128xbf16>
    %c3 = arith.constant 3 : index
    %c0_19 = arith.constant 0 : index
    %c0_20 = arith.constant 0 : index
    %21 = vector.load %arg2[%c3, %c0_19, %c0_20] : memref<4x128x32xbf16, #tpu.memory_space<vmem>>, vector<1x128x32xbf16>
    %22 = vector.shape_cast %21 : vector<1x128x32xbf16> to vector<128x32xbf16>
    %cst_21 = arith.constant dense<0.000000e+00> : vector<272x32xf32>
    %23 = tpu.matmul %20, %22, %cst_21 {dimension_numbers = #tpu.dot_dimension_numbers<[1], [0], [0], [1], [0, 0, 1, 1], [], []>} : vector<272x128xbf16>, vector<128x32xbf16>, vector<272x32xf32> -> vector<272x32xf32>
    %24 = arith.addf %18, %23 : vector<272x32xf32>
    %c0_22 = arith.constant 0 : index
    %c0_23 = arith.constant 0 : index
    %25 = vector.load %arg3[%c0_22, %c0_23] : memref<1x32xf32, #tpu.memory_space<vmem>>, vector<1x32xf32>
    %26 = vector.broadcast %25 : vector<1x32xf32> to vector<272x32xf32>
    %27 = arith.addf %24, %26 : vector<272x32xf32>
    %cst_24 = arith.constant 0.000000e+00 : f32
    %28 = vector.broadcast %cst_24 : f32 to vector<272x32xf32>
    %29 = arith.maximumf %27, %28 : vector<272x32xf32>
    %30 = arith.truncf %29 : vector<272x32xf32> to vector<272x32xbf16>
    %c0_25 = arith.constant 0 : index
    %c0_26 = arith.constant 0 : index
    %c0_27 = arith.constant 0 : index
    %31 = vector.load %arg4[%c0_25, %c0_26, %c0_27] : memref<1x272x32xbf16, #tpu.memory_space<vmem>>, vector<1x272x32xbf16>
    %32 = vector.shape_cast %31 : vector<1x272x32xbf16> to vector<272x32xbf16>
    %33 = vector.shape_cast %30 : vector<272x32xbf16> to vector<1x272x32xbf16>
    tpu.vector_store %arg4[%c0_25, %c0_26, %c0_27], %33 {strides = array<i32>} : memref<1x272x32xbf16, #tpu.memory_space<vmem>>, vector<1x272x32xbf16>,
    return
  }
  func.func @transform_0(%arg0: i32) -> (i32, i32, i32) {
    %c0_i32 = arith.constant 0 : i32
    %c0_i32_0 = arith.constant 0 : i32
    %c0_i32_1 = arith.constant 0 : i32
    return %arg0, %c0_i32, %c0_i32_0 : i32, i32, i32
  }
  func.func @transform_1(%arg0: i32) -> (i32, i32, i32) {
    %c0_i32 = arith.constant 0 : i32
    %c0_i32_0 = arith.constant 0 : i32
    %c0_i32_1 = arith.constant 0 : i32
    %c0_i32_2 = arith.constant 0 : i32
    return %c0_i32, %c0_i32_0, %c0_i32_1 : i32, i32, i32
  }
  func.func @transform_2(%arg0: i32) -> (i32, i32) {
    %c0_i32 = arith.constant 0 : i32
    %c0_i32_0 = arith.constant 0 : i32
    %c0_i32_1 = arith.constant 0 : i32
    return %c0_i32, %c0_i32_0 : i32, i32
  }
  func.func @transform_3(%arg0: i32) -> (i32, i32, i32) {
    %c0_i32 = arith.constant 0 : i32
    %c0_i32_0 = arith.constant 0 : i32
    %c0_i32_1 = arith.constant 0 : i32
    return %arg0, %c0_i32, %c0_i32_0 : i32, i32, i32
  }
}

module attributes {stable_mosaic.version = 11 : i64} {
  func.func @_conv_s2d_kernel(%arg0: i32, %arg1: memref<1x88x128xbf16, #tpu.memory_space<vmem>>, %arg2: memref<4x128x64xbf16, #tpu.memory_space<vmem>>, %arg3: memref<1x64xf32, #tpu.memory_space<vmem>>, %arg4: memref<1x72x64xbf16, #tpu.memory_space<vmem>>) attributes {dimension_semantics = [#tpu.dimension_semantics<parallel>], iteration_bounds = array<i64: 2>, scalar_prefetch = 0 : i64, scratch_operands = 0 : i64, tpu.core_type = #tpu.core_type<tc>, window_params = [{transform_indices = @transform_0, window_bounds = array<i64: 1, 88, 128>}, {pipeline_mode = #tpu.pipeline_mode<synchronous>, transform_indices = @transform_1, window_bounds = array<i64: 4, 128, 64>}, {pipeline_mode = #tpu.pipeline_mode<synchronous>, transform_indices = @transform_2, window_bounds = array<i64: 1, 64>}, {transform_indices = @transform_3, window_bounds = array<i64: 1, 72, 64>}]} {
    %cst = arith.constant 0.000000e+00 : f32
    %0 = vector.broadcast %cst : f32 to vector<72x64xf32>
    %c0 = arith.constant 0 : index
    %c0_0 = arith.constant 0 : index
    %c0_1 = arith.constant 0 : index
    %1 = vector.load %arg1[%c0, %c0_0, %c0_1] : memref<1x88x128xbf16, #tpu.memory_space<vmem>>, vector<1x72x128xbf16>
    %2 = vector.shape_cast %1 : vector<1x72x128xbf16> to vector<72x128xbf16>
    %c0_2 = arith.constant 0 : index
    %c0_3 = arith.constant 0 : index
    %c0_4 = arith.constant 0 : index
    %3 = vector.load %arg2[%c0_2, %c0_3, %c0_4] : memref<4x128x64xbf16, #tpu.memory_space<vmem>>, vector<1x128x64xbf16>
    %4 = vector.shape_cast %3 : vector<1x128x64xbf16> to vector<128x64xbf16>
    %cst_5 = arith.constant dense<0.000000e+00> : vector<72x64xf32>
    %5 = tpu.matmul %2, %4, %cst_5 {dimension_numbers = #tpu.dot_dimension_numbers<[1], [0], [0], [1], [0, 0, 1, 1], [], []>} : vector<72x128xbf16>, vector<128x64xbf16>, vector<72x64xf32> -> vector<72x64xf32>
    %6 = arith.addf %0, %5 : vector<72x64xf32>
    %c0_6 = arith.constant 0 : index
    %c1 = arith.constant 1 : index
    %c0_7 = arith.constant 0 : index
    %7 = vector.load %arg1[%c0_6, %c1, %c0_7] : memref<1x88x128xbf16, #tpu.memory_space<vmem>>, vector<1x72x128xbf16>
    %8 = vector.shape_cast %7 : vector<1x72x128xbf16> to vector<72x128xbf16>
    %c1_8 = arith.constant 1 : index
    %c0_9 = arith.constant 0 : index
    %c0_10 = arith.constant 0 : index
    %9 = vector.load %arg2[%c1_8, %c0_9, %c0_10] : memref<4x128x64xbf16, #tpu.memory_space<vmem>>, vector<1x128x64xbf16>
    %10 = vector.shape_cast %9 : vector<1x128x64xbf16> to vector<128x64xbf16>
    %cst_11 = arith.constant dense<0.000000e+00> : vector<72x64xf32>
    %11 = tpu.matmul %8, %10, %cst_11 {dimension_numbers = #tpu.dot_dimension_numbers<[1], [0], [0], [1], [0, 0, 1, 1], [], []>} : vector<72x128xbf16>, vector<128x64xbf16>, vector<72x64xf32> -> vector<72x64xf32>
    %12 = arith.addf %6, %11 : vector<72x64xf32>
    %c0_12 = arith.constant 0 : index
    %c9 = arith.constant 9 : index
    %c0_13 = arith.constant 0 : index
    %13 = vector.load %arg1[%c0_12, %c9, %c0_13] : memref<1x88x128xbf16, #tpu.memory_space<vmem>>, vector<1x72x128xbf16>
    %14 = vector.shape_cast %13 : vector<1x72x128xbf16> to vector<72x128xbf16>
    %c2 = arith.constant 2 : index
    %c0_14 = arith.constant 0 : index
    %c0_15 = arith.constant 0 : index
    %15 = vector.load %arg2[%c2, %c0_14, %c0_15] : memref<4x128x64xbf16, #tpu.memory_space<vmem>>, vector<1x128x64xbf16>
    %16 = vector.shape_cast %15 : vector<1x128x64xbf16> to vector<128x64xbf16>
    %cst_16 = arith.constant dense<0.000000e+00> : vector<72x64xf32>
    %17 = tpu.matmul %14, %16, %cst_16 {dimension_numbers = #tpu.dot_dimension_numbers<[1], [0], [0], [1], [0, 0, 1, 1], [], []>} : vector<72x128xbf16>, vector<128x64xbf16>, vector<72x64xf32> -> vector<72x64xf32>
    %18 = arith.addf %12, %17 : vector<72x64xf32>
    %c0_17 = arith.constant 0 : index
    %c10 = arith.constant 10 : index
    %c0_18 = arith.constant 0 : index
    %19 = vector.load %arg1[%c0_17, %c10, %c0_18] : memref<1x88x128xbf16, #tpu.memory_space<vmem>>, vector<1x72x128xbf16>
    %20 = vector.shape_cast %19 : vector<1x72x128xbf16> to vector<72x128xbf16>
    %c3 = arith.constant 3 : index
    %c0_19 = arith.constant 0 : index
    %c0_20 = arith.constant 0 : index
    %21 = vector.load %arg2[%c3, %c0_19, %c0_20] : memref<4x128x64xbf16, #tpu.memory_space<vmem>>, vector<1x128x64xbf16>
    %22 = vector.shape_cast %21 : vector<1x128x64xbf16> to vector<128x64xbf16>
    %cst_21 = arith.constant dense<0.000000e+00> : vector<72x64xf32>
    %23 = tpu.matmul %20, %22, %cst_21 {dimension_numbers = #tpu.dot_dimension_numbers<[1], [0], [0], [1], [0, 0, 1, 1], [], []>} : vector<72x128xbf16>, vector<128x64xbf16>, vector<72x64xf32> -> vector<72x64xf32>
    %24 = arith.addf %18, %23 : vector<72x64xf32>
    %c0_22 = arith.constant 0 : index
    %c0_23 = arith.constant 0 : index
    %25 = vector.load %arg3[%c0_22, %c0_23] : memref<1x64xf32, #tpu.memory_space<vmem>>, vector<1x64xf32>
    %26 = vector.broadcast %25 : vector<1x64xf32> to vector<72x64xf32>
    %27 = arith.addf %24, %26 : vector<72x64xf32>
    %cst_24 = arith.constant 0.000000e+00 : f32
    %28 = vector.broadcast %cst_24 : f32 to vector<72x64xf32>
    %29 = arith.maximumf %27, %28 : vector<72x64xf32>
    %30 = arith.truncf %29 : vector<72x64xf32> to vector<72x64xbf16>
    %c0_25 = arith.constant 0 : index
    %c0_26 = arith.constant 0 : index
    %c0_27 = arith.constant 0 : index
    %31 = vector.load %arg4[%c0_25, %c0_26, %c0_27] : memref<1x72x64xbf16, #tpu.memory_space<vmem>>, vector<1x72x64xbf16>
    %32 = vector.shape_cast %31 : vector<1x72x64xbf16> to vector<72x64xbf16>
    %33 = vector.shape_cast %30 : vector<72x64xbf16> to vector<1x72x64xbf16>
    tpu.vector_store %arg4[%c0_25, %c0_26, %c0_27], %33 {strides = array<i32>} : memref<1x72x64xbf16, #tpu.memory_space<vmem>>, vector<1x72x64xbf16>,
    return
  }
  func.func @transform_0(%arg0: i32) -> (i32, i32, i32) {
    %c0_i32 = arith.constant 0 : i32
    %c0_i32_0 = arith.constant 0 : i32
    %c0_i32_1 = arith.constant 0 : i32
    return %arg0, %c0_i32, %c0_i32_0 : i32, i32, i32
  }
  func.func @transform_1(%arg0: i32) -> (i32, i32, i32) {
    %c0_i32 = arith.constant 0 : i32
    %c0_i32_0 = arith.constant 0 : i32
    %c0_i32_1 = arith.constant 0 : i32
    %c0_i32_2 = arith.constant 0 : i32
    return %c0_i32, %c0_i32_0, %c0_i32_1 : i32, i32, i32
  }
  func.func @transform_2(%arg0: i32) -> (i32, i32) {
    %c0_i32 = arith.constant 0 : i32
    %c0_i32_0 = arith.constant 0 : i32
    %c0_i32_1 = arith.constant 0 : i32
    return %c0_i32, %c0_i32_0 : i32, i32
  }
  func.func @transform_3(%arg0: i32) -> (i32, i32, i32) {
    %c0_i32 = arith.constant 0 : i32
    %c0_i32_0 = arith.constant 0 : i32
    %c0_i32_1 = arith.constant 0 : i32
    return %arg0, %c0_i32, %c0_i32_0 : i32, i32, i32
  }
}

module attributes {stable_mosaic.version = 11 : i64} {
  func.func @_conv_s2d_kernel(%arg0: i32, %arg1: memref<1x32x256xbf16, #tpu.memory_space<vmem>>, %arg2: memref<4x256x128xbf16, #tpu.memory_space<vmem>>, %arg3: memref<1x128xf32, #tpu.memory_space<vmem>>, %arg4: memref<1x24x128xbf16, #tpu.memory_space<vmem>>) attributes {dimension_semantics = [#tpu.dimension_semantics<parallel>], iteration_bounds = array<i64: 2>, scalar_prefetch = 0 : i64, scratch_operands = 0 : i64, tpu.core_type = #tpu.core_type<tc>, window_params = [{transform_indices = @transform_0, window_bounds = array<i64: 1, 32, 256>}, {pipeline_mode = #tpu.pipeline_mode<synchronous>, transform_indices = @transform_1, window_bounds = array<i64: 4, 256, 128>}, {pipeline_mode = #tpu.pipeline_mode<synchronous>, transform_indices = @transform_2, window_bounds = array<i64: 1, 128>}, {transform_indices = @transform_3, window_bounds = array<i64: 1, 24, 128>}]} {
    %cst = arith.constant 0.000000e+00 : f32
    %0 = vector.broadcast %cst : f32 to vector<24x128xf32>
    %c0 = arith.constant 0 : index
    %c0_0 = arith.constant 0 : index
    %c0_1 = arith.constant 0 : index
    %1 = vector.load %arg1[%c0, %c0_0, %c0_1] : memref<1x32x256xbf16, #tpu.memory_space<vmem>>, vector<1x24x256xbf16>
    %2 = vector.shape_cast %1 : vector<1x24x256xbf16> to vector<24x256xbf16>
    %c0_2 = arith.constant 0 : index
    %c0_3 = arith.constant 0 : index
    %c0_4 = arith.constant 0 : index
    %3 = vector.load %arg2[%c0_2, %c0_3, %c0_4] : memref<4x256x128xbf16, #tpu.memory_space<vmem>>, vector<1x256x128xbf16>
    %4 = vector.shape_cast %3 : vector<1x256x128xbf16> to vector<256x128xbf16>
    %cst_5 = arith.constant dense<0.000000e+00> : vector<24x128xf32>
    %5 = tpu.matmul %2, %4, %cst_5 {dimension_numbers = #tpu.dot_dimension_numbers<[1], [0], [0], [1], [0, 0, 1, 1], [], []>} : vector<24x256xbf16>, vector<256x128xbf16>, vector<24x128xf32> -> vector<24x128xf32>
    %6 = arith.addf %0, %5 : vector<24x128xf32>
    %c0_6 = arith.constant 0 : index
    %c1 = arith.constant 1 : index
    %c0_7 = arith.constant 0 : index
    %7 = vector.load %arg1[%c0_6, %c1, %c0_7] : memref<1x32x256xbf16, #tpu.memory_space<vmem>>, vector<1x24x256xbf16>
    %8 = vector.shape_cast %7 : vector<1x24x256xbf16> to vector<24x256xbf16>
    %c1_8 = arith.constant 1 : index
    %c0_9 = arith.constant 0 : index
    %c0_10 = arith.constant 0 : index
    %9 = vector.load %arg2[%c1_8, %c0_9, %c0_10] : memref<4x256x128xbf16, #tpu.memory_space<vmem>>, vector<1x256x128xbf16>
    %10 = vector.shape_cast %9 : vector<1x256x128xbf16> to vector<256x128xbf16>
    %cst_11 = arith.constant dense<0.000000e+00> : vector<24x128xf32>
    %11 = tpu.matmul %8, %10, %cst_11 {dimension_numbers = #tpu.dot_dimension_numbers<[1], [0], [0], [1], [0, 0, 1, 1], [], []>} : vector<24x256xbf16>, vector<256x128xbf16>, vector<24x128xf32> -> vector<24x128xf32>
    %12 = arith.addf %6, %11 : vector<24x128xf32>
    %c0_12 = arith.constant 0 : index
    %c5 = arith.constant 5 : index
    %c0_13 = arith.constant 0 : index
    %13 = vector.load %arg1[%c0_12, %c5, %c0_13] : memref<1x32x256xbf16, #tpu.memory_space<vmem>>, vector<1x24x256xbf16>
    %14 = vector.shape_cast %13 : vector<1x24x256xbf16> to vector<24x256xbf16>
    %c2 = arith.constant 2 : index
    %c0_14 = arith.constant 0 : index
    %c0_15 = arith.constant 0 : index
    %15 = vector.load %arg2[%c2, %c0_14, %c0_15] : memref<4x256x128xbf16, #tpu.memory_space<vmem>>, vector<1x256x128xbf16>
    %16 = vector.shape_cast %15 : vector<1x256x128xbf16> to vector<256x128xbf16>
    %cst_16 = arith.constant dense<0.000000e+00> : vector<24x128xf32>
    %17 = tpu.matmul %14, %16, %cst_16 {dimension_numbers = #tpu.dot_dimension_numbers<[1], [0], [0], [1], [0, 0, 1, 1], [], []>} : vector<24x256xbf16>, vector<256x128xbf16>, vector<24x128xf32> -> vector<24x128xf32>
    %18 = arith.addf %12, %17 : vector<24x128xf32>
    %c0_17 = arith.constant 0 : index
    %c6 = arith.constant 6 : index
    %c0_18 = arith.constant 0 : index
    %19 = vector.load %arg1[%c0_17, %c6, %c0_18] : memref<1x32x256xbf16, #tpu.memory_space<vmem>>, vector<1x24x256xbf16>
    %20 = vector.shape_cast %19 : vector<1x24x256xbf16> to vector<24x256xbf16>
    %c3 = arith.constant 3 : index
    %c0_19 = arith.constant 0 : index
    %c0_20 = arith.constant 0 : index
    %21 = vector.load %arg2[%c3, %c0_19, %c0_20] : memref<4x256x128xbf16, #tpu.memory_space<vmem>>, vector<1x256x128xbf16>
    %22 = vector.shape_cast %21 : vector<1x256x128xbf16> to vector<256x128xbf16>
    %cst_21 = arith.constant dense<0.000000e+00> : vector<24x128xf32>
    %23 = tpu.matmul %20, %22, %cst_21 {dimension_numbers = #tpu.dot_dimension_numbers<[1], [0], [0], [1], [0, 0, 1, 1], [], []>} : vector<24x256xbf16>, vector<256x128xbf16>, vector<24x128xf32> -> vector<24x128xf32>
    %24 = arith.addf %18, %23 : vector<24x128xf32>
    %c0_22 = arith.constant 0 : index
    %c0_23 = arith.constant 0 : index
    %25 = vector.load %arg3[%c0_22, %c0_23] : memref<1x128xf32, #tpu.memory_space<vmem>>, vector<1x128xf32>
    %26 = vector.broadcast %25 : vector<1x128xf32> to vector<24x128xf32>
    %27 = arith.addf %24, %26 : vector<24x128xf32>
    %cst_24 = arith.constant 0.000000e+00 : f32
    %28 = vector.broadcast %cst_24 : f32 to vector<24x128xf32>
    %29 = arith.maximumf %27, %28 : vector<24x128xf32>
    %30 = arith.truncf %29 : vector<24x128xf32> to vector<24x128xbf16>
    %c0_25 = arith.constant 0 : index
    %c0_26 = arith.constant 0 : index
    %c0_27 = arith.constant 0 : index
    %31 = vector.load %arg4[%c0_25, %c0_26, %c0_27] : memref<1x24x128xbf16, #tpu.memory_space<vmem>>, vector<1x24x128xbf16>
    %32 = vector.shape_cast %31 : vector<1x24x128xbf16> to vector<24x128xbf16>
    %33 = vector.shape_cast %30 : vector<24x128xbf16> to vector<1x24x128xbf16>
    tpu.vector_store %arg4[%c0_25, %c0_26, %c0_27], %33 {strides = array<i32>} : memref<1x24x128xbf16, #tpu.memory_space<vmem>>, vector<1x24x128xbf16>,
    return
  }
  func.func @transform_0(%arg0: i32) -> (i32, i32, i32) {
    %c0_i32 = arith.constant 0 : i32
    %c0_i32_0 = arith.constant 0 : i32
    %c0_i32_1 = arith.constant 0 : i32
    return %arg0, %c0_i32, %c0_i32_0 : i32, i32, i32
  }
  func.func @transform_1(%arg0: i32) -> (i32, i32, i32) {
    %c0_i32 = arith.constant 0 : i32
    %c0_i32_0 = arith.constant 0 : i32
    %c0_i32_1 = arith.constant 0 : i32
    %c0_i32_2 = arith.constant 0 : i32
    return %c0_i32, %c0_i32_0, %c0_i32_1 : i32, i32, i32
  }
  func.func @transform_2(%arg0: i32) -> (i32, i32) {
    %c0_i32 = arith.constant 0 : i32
    %c0_i32_0 = arith.constant 0 : i32
    %c0_i32_1 = arith.constant 0 : i32
    return %c0_i32, %c0_i32_0 : i32, i32
  }
  func.func @transform_3(%arg0: i32) -> (i32, i32, i32) {
    %c0_i32 = arith.constant 0 : i32
    %c0_i32_0 = arith.constant 0 : i32
    %c0_i32_1 = arith.constant 0 : i32
    return %arg0, %c0_i32, %c0_i32_0 : i32, i32, i32
  }
}

module attributes {stable_mosaic.version = 11 : i64} {
  func.func @_conv_fc_kernel(%arg0: i32, %arg1: memref<1x8x512xbf16, #tpu.memory_space<vmem>>, %arg2: memref<4x512x128xbf16, #tpu.memory_space<vmem>>, %arg3: memref<1x128xf32, #tpu.memory_space<vmem>>, %arg4: memref<128x2xbf16, #tpu.memory_space<vmem>>, %arg5: memref<1x2xf32, #tpu.memory_space<vmem>>, %arg6: memref<1x1x2xf32, #tpu.memory_space<vmem>>) attributes {dimension_semantics = [#tpu.dimension_semantics<parallel>], iteration_bounds = array<i64: 2>, scalar_prefetch = 0 : i64, scratch_operands = 0 : i64, tpu.core_type = #tpu.core_type<tc>, window_params = [{transform_indices = @transform_0, window_bounds = array<i64: 1, 8, 512>}, {pipeline_mode = #tpu.pipeline_mode<synchronous>, transform_indices = @transform_1, window_bounds = array<i64: 4, 512, 128>}, {pipeline_mode = #tpu.pipeline_mode<synchronous>, transform_indices = @transform_2, window_bounds = array<i64: 1, 128>}, {pipeline_mode = #tpu.pipeline_mode<synchronous>, transform_indices = @transform_3, window_bounds = array<i64: 128, 2>}, {pipeline_mode = #tpu.pipeline_mode<synchronous>, transform_indices = @transform_4, window_bounds = array<i64: 1, 2>}, {transform_indices = @transform_5, window_bounds = array<i64: 1, 1, 2>}]} {
    %cst = arith.constant 0.000000e+00 : f32
    %0 = vector.broadcast %cst : f32 to vector<1x128xf32>
    %c0 = arith.constant 0 : index
    %c0_0 = arith.constant 0 : index
    %c0_1 = arith.constant 0 : index
    %1 = vector.load %arg1[%c0, %c0_0, %c0_1] : memref<1x8x512xbf16, #tpu.memory_space<vmem>>, vector<1x1x512xbf16>
    %2 = vector.shape_cast %1 : vector<1x1x512xbf16> to vector<1x512xbf16>
    %c0_2 = arith.constant 0 : index
    %c0_3 = arith.constant 0 : index
    %c0_4 = arith.constant 0 : index
    %3 = vector.load %arg2[%c0_2, %c0_3, %c0_4] : memref<4x512x128xbf16, #tpu.memory_space<vmem>>, vector<1x512x128xbf16>
    %4 = vector.shape_cast %3 : vector<1x512x128xbf16> to vector<512x128xbf16>
    %cst_5 = arith.constant dense<0.000000e+00> : vector<1x128xf32>
    %5 = tpu.matmul %2, %4, %cst_5 {dimension_numbers = #tpu.dot_dimension_numbers<[1], [0], [0], [1], [0, 0, 1, 1], [], []>} : vector<1x512xbf16>, vector<512x128xbf16>, vector<1x128xf32> -> vector<1x128xf32>
    %6 = arith.addf %0, %5 : vector<1x128xf32>
    %c0_6 = arith.constant 0 : index
    %c1 = arith.constant 1 : index
    %c0_7 = arith.constant 0 : index
    %7 = vector.load %arg1[%c0_6, %c1, %c0_7] : memref<1x8x512xbf16, #tpu.memory_space<vmem>>, vector<1x1x512xbf16>
    %8 = vector.shape_cast %7 : vector<1x1x512xbf16> to vector<1x512xbf16>
    %c1_8 = arith.constant 1 : index
    %c0_9 = arith.constant 0 : index
    %c0_10 = arith.constant 0 : index
    %9 = vector.load %arg2[%c1_8, %c0_9, %c0_10] : memref<4x512x128xbf16, #tpu.memory_space<vmem>>, vector<1x512x128xbf16>
    %10 = vector.shape_cast %9 : vector<1x512x128xbf16> to vector<512x128xbf16>
    %cst_11 = arith.constant dense<0.000000e+00> : vector<1x128xf32>
    %11 = tpu.matmul %8, %10, %cst_11 {dimension_numbers = #tpu.dot_dimension_numbers<[1], [0], [0], [1], [0, 0, 1, 1], [], []>} : vector<1x512xbf16>, vector<512x128xbf16>, vector<1x128xf32> -> vector<1x128xf32>
    %12 = arith.addf %6, %11 : vector<1x128xf32>
    %c0_12 = arith.constant 0 : index
    %c2 = arith.constant 2 : index
    %c0_13 = arith.constant 0 : index
    %13 = vector.load %arg1[%c0_12, %c2, %c0_13] : memref<1x8x512xbf16, #tpu.memory_space<vmem>>, vector<1x1x512xbf16>
    %14 = vector.shape_cast %13 : vector<1x1x512xbf16> to vector<1x512xbf16>
    %c2_14 = arith.constant 2 : index
    %c0_15 = arith.constant 0 : index
    %c0_16 = arith.constant 0 : index
    %15 = vector.load %arg2[%c2_14, %c0_15, %c0_16] : memref<4x512x128xbf16, #tpu.memory_space<vmem>>, vector<1x512x128xbf16>
    %16 = vector.shape_cast %15 : vector<1x512x128xbf16> to vector<512x128xbf16>
    %cst_17 = arith.constant dense<0.000000e+00> : vector<1x128xf32>
    %17 = tpu.matmul %14, %16, %cst_17 {dimension_numbers = #tpu.dot_dimension_numbers<[1], [0], [0], [1], [0, 0, 1, 1], [], []>} : vector<1x512xbf16>, vector<512x128xbf16>, vector<1x128xf32> -> vector<1x128xf32>
    %18 = arith.addf %12, %17 : vector<1x128xf32>
    %c0_18 = arith.constant 0 : index
    %c3 = arith.constant 3 : index
    %c0_19 = arith.constant 0 : index
    %19 = vector.load %arg1[%c0_18, %c3, %c0_19] : memref<1x8x512xbf16, #tpu.memory_space<vmem>>, vector<1x1x512xbf16>
    %20 = vector.shape_cast %19 : vector<1x1x512xbf16> to vector<1x512xbf16>
    %c3_20 = arith.constant 3 : index
    %c0_21 = arith.constant 0 : index
    %c0_22 = arith.constant 0 : index
    %21 = vector.load %arg2[%c3_20, %c0_21, %c0_22] : memref<4x512x128xbf16, #tpu.memory_space<vmem>>, vector<1x512x128xbf16>
    %22 = vector.shape_cast %21 : vector<1x512x128xbf16> to vector<512x128xbf16>
    %cst_23 = arith.constant dense<0.000000e+00> : vector<1x128xf32>
    %23 = tpu.matmul %20, %22, %cst_23 {dimension_numbers = #tpu.dot_dimension_numbers<[1], [0], [0], [1], [0, 0, 1, 1], [], []>} : vector<1x512xbf16>, vector<512x128xbf16>, vector<1x128xf32> -> vector<1x128xf32>
    %24 = arith.addf %18, %23 : vector<1x128xf32>
    %c0_24 = arith.constant 0 : index
    %c0_25 = arith.constant 0 : index
    %25 = vector.load %arg3[%c0_24, %c0_25] : memref<1x128xf32, #tpu.memory_space<vmem>>, vector<1x128xf32>
    %26 = arith.addf %24, %25 : vector<1x128xf32>
    %cst_26 = arith.constant 0.000000e+00 : f32
    %27 = vector.broadcast %cst_26 : f32 to vector<1x128xf32>
    %28 = arith.maximumf %26, %27 : vector<1x128xf32>
    %29 = arith.truncf %28 : vector<1x128xf32> to vector<1x128xbf16>
    %c0_27 = arith.constant 0 : index
    %c0_28 = arith.constant 0 : index
    %30 = vector.load %arg4[%c0_27, %c0_28] : memref<128x2xbf16, #tpu.memory_space<vmem>>, vector<128x2xbf16>
    %cst_29 = arith.constant dense<0.000000e+00> : vector<1x2xf32>
    %31 = tpu.matmul %29, %30, %cst_29 {dimension_numbers = #tpu.dot_dimension_numbers<[1], [0], [0], [1], [0, 0, 1, 1], [], []>} : vector<1x128xbf16>, vector<128x2xbf16>, vector<1x2xf32> -> vector<1x2xf32>
    %c0_30 = arith.constant 0 : index
    %c0_31 = arith.constant 0 : index
    %32 = vector.load %arg5[%c0_30, %c0_31] : memref<1x2xf32, #tpu.memory_space<vmem>>, vector<1x2xf32>
    %33 = arith.addf %31, %32 : vector<1x2xf32>
    %c0_32 = arith.constant 0 : index
    %c0_33 = arith.constant 0 : index
    %c0_34 = arith.constant 0 : index
    %34 = vector.load %arg6[%c0_32, %c0_33, %c0_34] : memref<1x1x2xf32, #tpu.memory_space<vmem>>, vector<1x1x2xf32>
    %35 = vector.shape_cast %34 : vector<1x1x2xf32> to vector<1x2xf32>
    %36 = vector.shape_cast %33 : vector<1x2xf32> to vector<1x1x2xf32>
    tpu.vector_store %arg6[%c0_32, %c0_33, %c0_34], %36 {strides = array<i32>} : memref<1x1x2xf32, #tpu.memory_space<vmem>>, vector<1x1x2xf32>,
    return
  }
  func.func @transform_0(%arg0: i32) -> (i32, i32, i32) {
    %c0_i32 = arith.constant 0 : i32
    %c0_i32_0 = arith.constant 0 : i32
    %c0_i32_1 = arith.constant 0 : i32
    return %arg0, %c0_i32, %c0_i32_0 : i32, i32, i32
  }
  func.func @transform_1(%arg0: i32) -> (i32, i32, i32) {
    %c0_i32 = arith.constant 0 : i32
    %c0_i32_0 = arith.constant 0 : i32
    %c0_i32_1 = arith.constant 0 : i32
    %c0_i32_2 = arith.constant 0 : i32
    return %c0_i32, %c0_i32_0, %c0_i32_1 : i32, i32, i32
  }
  func.func @transform_2(%arg0: i32) -> (i32, i32) {
    %c0_i32 = arith.constant 0 : i32
    %c0_i32_0 = arith.constant 0 : i32
    %c0_i32_1 = arith.constant 0 : i32
    return %c0_i32, %c0_i32_0 : i32, i32
  }
  func.func @transform_3(%arg0: i32) -> (i32, i32) {
    %c0_i32 = arith.constant 0 : i32
    %c0_i32_0 = arith.constant 0 : i32
    %c0_i32_1 = arith.constant 0 : i32
    return %c0_i32, %c0_i32_0 : i32, i32
  }
  func.func @transform_4(%arg0: i32) -> (i32, i32) {
    %c0_i32 = arith.constant 0 : i32
    %c0_i32_0 = arith.constant 0 : i32
    %c0_i32_1 = arith.constant 0 : i32
    return %c0_i32, %c0_i32_0 : i32, i32
  }
  func.func @transform_5(%arg0: i32) -> (i32, i32, i32) {
    %c0_i32 = arith.constant 0 : i32
    %c0_i32_0 = arith.constant 0 : i32
    %c0_i32_1 = arith.constant 0 : i32
    return %arg0, %c0_i32, %c0_i32_0 : i32, i32, i32
  }
}

</mosaic_0001>

<llo_original>
// kernel: forward.5
$region0: #{forward.5}
  #allocation0 [shape = 'u32[]', space=smem, size = 0x4, offset = 0x4, fixed_abs, tag = 'smem constant byte address 0x4 - core index']
  #allocation1 [shape = 'u32[144,128]{1,0:T(1,128)}', space=vmem, size = 0x12000, scoped, tag = 'internal scratch']
  %s0 = inlined_call_operand.vmem [shape: bf16[2,1096,32], index: 0, kind: input, shape index: {}]
  %s1 = inlined_call_operand.vmem [shape: bf16[4,32,32], index: 1, kind: input, shape index: {}]
  %s2 = inlined_call_operand.vmem [shape: f32[1,32], index: 2, kind: input, shape index: {}]
  %s3 = inlined_call_operand.vmem [shape: bf16[2,1056,32], index: 3, kind: output, shape index: {}]
  %s4 = sld [smem:[#allocation0]]
  $region45: #{forward.5} parent=0
    _
  %s6 = ssub.s32 1, %s4
  %s7 = scalar_select 0, %s6, %s4
  loop: start=0, step=1, limit=4
  $region2: #{forward.5} parent=0 // loop_pre_header
    _
  $region3: #{forward.5} parent=0 // loop_header
    %s9 = sphi 0, %s13
    %p10 = scmp.ge.s32.totalorder %s9, 4
    %s19 = sphi 0, %s21
    %s22 = sphi 0, %s19
    %s23 = sphi 0, %s22
    %s39 = sphi 0, %s23
    %s43 = sphi 0, %s43
    %s45 = sphi 0, %s43
    %s46 = sphi 0, %s45
    %s60 = sphi 0, %s46
    %s64 = sphi 0, %s64
    %s66 = sphi 0, %s64
    %s67 = sphi 0, %s66
    %s81 = sphi 0, %s67
    %s87 = sphi 0, %s89
    %s90 = sphi 0, %s87
    %s91 = sphi 0, %s90
    %s107 = sphi 0, %s91
  $region4: #{forward.5} parent=0 // loop_header_branch
    %12 = sbr.rel (%p10) target = $region8
  $region5: #{forward.5} parent=0 // loop_body
    %s14 = ssub.s32 %s9, 1
    %s15 = ssub.s32 %s9, 2
    %s16 = sadd.s32 %s9, 1
    %s17 = ssub.s32 %s9, %s16
    %p18 = scmp.eq.s32.totalorder %s17, 0
    %s20 = sadd.s32 %s19, 1
    %s21 = scalar_select %p18, %s19, %s20
    %p24 = pneg %p18
    %p25 = scmp.eq.s32.totalorder %s9, 1
    %p26 = por %p24, %p25
    %p27 = scmp.ne.s32.totalorder %s19, %s22
    %p28 = scmp.eq.s32.totalorder %s9, 0
    %p29 = por %p27, %p28
    %p30 = scmp.ne.s32.totalorder %s19, %s22
    %p31 = scmp.eq.s32.totalorder %s14, 1
    %p32 = por %p30, %p31
    %p33 = scmp.ne.s32.totalorder %s22, %s23
    %p34 = scmp.eq.s32.totalorder %s14, 0
    %p35 = por %p33, %p34
    %p36 = scmp.ne.s32.totalorder %s22, %s23
    %p37 = scmp.eq.s32.totalorder %s15, 1
    %p38 = por %p36, %p37
    %p40 = scmp.ne.s32.totalorder %s23, %s39
    %p41 = scmp.eq.s32.totalorder %s15, 0
    %p42 = por %p40, %p41
    %s44 = sadd.s32 %s43, 1
    %p47 = scmp.eq.s32.totalorder %s9, 1
    %p48 = scmp.ne.s32.totalorder %s43, %s45
    %p49 = scmp.eq.s32.totalorder %s9, 0
    %p50 = por %p48, %p49
    %p51 = scmp.ne.s32.totalorder %s43, %s45
    %p52 = scmp.eq.s32.totalorder %s14, 1
    %p53 = por %p51, %p52
    %p54 = scmp.ne.s32.totalorder %s45, %s46
    %p55 = scmp.eq.s32.totalorder %s14, 0
    %p56 = por %p54, %p55
    %p57 = scmp.ne.s32.totalorder %s45, %s46
    %p58 = scmp.eq.s32.totalorder %s15, 1
    %p59 = por %p57, %p58
    %p61 = scmp.ne.s32.totalorder %s46, %s60
    %p62 = scmp.eq.s32.totalorder %s15, 0
    %p63 = por %p61, %p62
    %s65 = sadd.s32 %s64, 1
    %p68 = scmp.eq.s32.totalorder %s9, 1
    %p69 = scmp.ne.s32.totalorder %s64, %s66
    %p70 = scmp.eq.s32.totalorder %s9, 0
    %p71 = por %p69, %p70
    %p72 = scmp.ne.s32.totalorder %s64, %s66
    %p73 = scmp.eq.s32.totalorder %s14, 1
    %p74 = por %p72, %p73
    %p75 = scmp.ne.s32.totalorder %s66, %s67
    %p76 = scmp.eq.s32.totalorder %s14, 0
    %p77 = por %p75, %p76
    %p78 = scmp.ne.s32.totalorder %s66, %s67
    %p79 = scmp.eq.s32.totalorder %s15, 1
    %p80 = por %p78, %p79
    %p82 = scmp.ne.s32.totalorder %s67, %s81
    %p83 = scmp.eq.s32.totalorder %s15, 0
    %p84 = por %p82, %p83
    %s85 = ssub.s32 %s9, %s16
    %p86 = scmp.eq.s32.totalorder %s85, 0
    %s88 = sadd.s32 %s87, 1
    %s89 = scalar_select %p86, %s87, %s88
    %p92 = pneg %p86
    %p93 = scmp.eq.s32.totalorder %s9, 1
    %p94 = por %p92, %p93
    %p95 = scmp.ne.s32.totalorder %s87, %s90
    %p96 = scmp.eq.s32.totalorder %s9, 0
    %p97 = por %p95, %p96
    %p98 = scmp.ne.s32.totalorder %s87, %s90
    %p99 = scmp.eq.s32.totalorder %s14, 1
    %p100 = por %p98, %p99
    %p101 = scmp.ne.s32.totalorder %s90, %s91
    %p102 = scmp.eq.s32.totalorder %s14, 0
    %p103 = por %p101, %p102
    %p104 = scmp.ne.s32.totalorder %s90, %s91
    %p105 = scmp.eq.s32.totalorder %s15, 1
    %p106 = por %p104, %p105
    %p108 = scmp.ne.s32.totalorder %s91, %s107
    %p109 = scmp.eq.s32.totalorder %s15, 0
    %p110 = por %p108, %p109
    %p111 = scmp.le.s32.totalorder 1, %s9
    %p112 = scmp.lt.s32.totalorder %s9, 3
    %p113 = pnand %p111, %p112
    %p114 = pneg %p113
    // Predicated region
    $region9: #{forward.5} parent=5 // pred_check
      _
    $region10: #{forward.5} parent=5 // pred_check_branch
      %116 = sbr.rel (%p113) target = $region12
    $region11: #{forward.5} parent=5 // pred_region
      %s117 = ssub.s32 %s9, 1
      // Predicated region
      $region13: #{forward.5} parent=11 // pred_check
        %p118 = pneg %p56
      $region14: #{forward.5} parent=11 // pred_check_branch
        %120 = sbr.rel (%p118) target = $region16
      $region15: #{forward.5} parent=11 // pred_region
        _
      $region16: #{forward.5} parent=11 // pred_fallthru
        _
      // Predicated region
      $region17: #{forward.5} parent=11 // pred_check
        %p121 = pneg %p77
      $region18: #{forward.5} parent=11 // pred_check_branch
        %123 = sbr.rel (%p121) target = $region20
      $region19: #{forward.5} parent=11 // pred_region
        _
      $region20: #{forward.5} parent=11 // pred_fallthru
        _
    $region12: #{forward.5} parent=5 // pred_fallthru
      _
    %p124 = scmp.lt.s32.totalorder %s9, 2
    // Predicated region
    $region21: #{forward.5} parent=5 // pred_check
      %p125 = pneg %p124
    $region22: #{forward.5} parent=5 // pred_check_branch
      %127 = sbr.rel (%p125) target = $region24
    $region23: #{forward.5} parent=5 // pred_region
      // Predicated region
      $region25: #{forward.5} parent=23 // pred_check
        %p128 = pneg %p29
      $region26: #{forward.5} parent=23 // pred_check_branch
        %130 = sbr.rel (%p128) target = $region28
      $region27: #{forward.5} parent=23 // pred_region
        %p131 = scmp.lt.s32.totalorder %s9, 1
        %s132 = scalar_select %p131, %s9, 1
        %s133 = smul.addr %s132, 137
        %s134 = smul.addr %s133, 4
        %s135 = scalar_lea.vmem %s0, %s134
      $region28: #{forward.5} parent=23 // pred_fallthru
        _
    $region24: #{forward.5} parent=5 // pred_fallthru
      _
    %p136 = scmp.le.s32.totalorder 1, %s9
    %p137 = scmp.lt.s32.totalorder %s9, 3
    %p138 = pnand %p136, %p137
    %p139 = pneg %p138
    // Predicated region
    $region29: #{forward.5} parent=5 // pred_check
      _
    $region30: #{forward.5} parent=5 // pred_check_branch
      %141 = sbr.rel (%p138) target = $region32
    $region31: #{forward.5} parent=5 // pred_region
      %s142 = ssub.s32 %s9, 1
      %p143 = scmp.lt.s32.totalorder %s14, 1
      %s144 = scalar_select %p143, %s14, 1
      %s145 = smul.addr %s144, 137
      %s146 = smul.addr %s145, 4
      %s147 = scalar_lea.vmem %s0, %s146
      %p148 = pneg %p35
      %p149 = pneg %p32
      %p150 = pneg %p56
      %p151 = pneg %p53
      %p152 = pneg %p77
      %p153 = pneg %p74
      %p154 = pneg %p103
      %p155 = pneg %p100
      %p156 = scmp.lt.s32.totalorder %s14, 1
      %s157 = scalar_select %p156, %s14, 1
      %s158 = smul.addr %s157, 132
      %s159 = smul.addr %s158, 4
      %s160 = scalar_lea.vmem %s3, %s159
      %p161 = scmp.lt.s32.totalorder %s14, 1
      %s162 = scalar_select %p161, %s14, 1
      %s163 = smul.addr %s162, 137
      %s164 = smul.addr %s163, 4
      %s165 = scalar_lea.vmem %s0, %s164
      %p166 = scmp.lt.s32.totalorder %s14, 1
      %s167 = scalar_select %p166, %s14, 1
      %s168 = smul.addr %s167, 132
      %s169 = smul.addr %s168, 4
      %s170 = scalar_lea.vmem %s3, %s169
      %v172 = vld [vmem:[%s165] sm:$0xf]
      %v173 = vld [vmem:[%s165 + $0x4] sm:$0xf]
      %v174 = vld [vmem:[%s165 + $0x8] sm:$0xf]
      %v175 = vld [vmem:[%s165 + $0xc] sm:$0xf]
      %v176 = vld [vmem:[%s165 + $0x10] sm:$0xf]
      %v177 = vld [vmem:[%s165 + $0x14] sm:$0xf]
      %v178 = vld [vmem:[%s165 + $0x18] sm:$0xf]
      %v179 = vld [vmem:[%s165 + $0x1c] sm:$0xf]
      %v180 = vld [vmem:[%s165 + $0x20] sm:$0xf]
      %v181 = vld [vmem:[%s165 + $0x24] sm:$0xf]
      %v182 = vld [vmem:[%s165 + $0x28] sm:$0xf]
      %v183 = vld [vmem:[%s165 + $0x2c] sm:$0xf]
      %v184 = vld [vmem:[%s165 + $0x30] sm:$0xf]
      %v185 = vld [vmem:[%s165 + $0x34] sm:$0xf]
      %v186 = vld [vmem:[%s165 + $0x38] sm:$0xf]
      %v187 = vld [vmem:[%s165 + $0x3c] sm:$0xf]
      %v188 = vld [vmem:[%s165 + $0x40] sm:$0xf]
      %v189 = vld [vmem:[%s165 + $0x44] sm:$0xf]
      %v190 = vld [vmem:[%s165 + $0x48] sm:$0xf]
      %v191 = vld [vmem:[%s165 + $0x4c] sm:$0xf]
      %v192 = vld [vmem:[%s165 + $0x50] sm:$0xf]
      %v193 = vld [vmem:[%s165 + $0x54] sm:$0xf]
      %v194 = vld [vmem:[%s165 + $0x58] sm:$0xf]
      %v195 = vld [vmem:[%s165 + $0x5c] sm:$0xf]
      %v196 = vld [vmem:[%s165 + $0x60] sm:$0xf]
      %v197 = vld [vmem:[%s165 + $0x64] sm:$0xf]
      %v198 = vld [vmem:[%s165 + $0x68] sm:$0xf]
      %v199 = vld [vmem:[%s165 + $0x6c] sm:$0xf]
      %v200 = vld [vmem:[%s165 + $0x70] sm:$0xf]
      %v201 = vld [vmem:[%s165 + $0x74] sm:$0xf]
      %v202 = vld [vmem:[%s165 + $0x78] sm:$0xf]
      %v203 = vld [vmem:[%s165 + $0x7c] sm:$0xf]
      %v204 = vld [vmem:[%s165 + $0x80] sm:$0xf]
      %v205 = vld [vmem:[%s165 + $0x84] sm:$0xf]
      %v206 = vld [vmem:[%s165 + $0x88] sm:$0xf]
      %v207 = vld [vmem:[%s165 + $0x8c] sm:$0xf]
      %v208 = vld [vmem:[%s165 + $0x90] sm:$0xf]
      %v209 = vld [vmem:[%s165 + $0x94] sm:$0xf]
      %v210 = vld [vmem:[%s165 + $0x98] sm:$0xf]
      %v211 = vld [vmem:[%s165 + $0x9c] sm:$0xf]
      %v212 = vld [vmem:[%s165 + $0xa0] sm:$0xf]
      %v213 = vld [vmem:[%s165 + $0xa4] sm:$0xf]
      %v214 = vld [vmem:[%s165 + $0xa8] sm:$0xf]
      %v215 = vld [vmem:[%s165 + $0xac] sm:$0xf]
      %v216 = vld [vmem:[%s165 + $0xb0] sm:$0xf]
      %v217 = vld [vmem:[%s165 + $0xb4] sm:$0xf]
      %v218 = vld [vmem:[%s165 + $0xb8] sm:$0xf]
      %v219 = vld [vmem:[%s165 + $0xbc] sm:$0xf]
      %v220 = vld [vmem:[%s165 + $0xc0] sm:$0xf]
      %v221 = vld [vmem:[%s165 + $0xc4] sm:$0xf]
      %v222 = vld [vmem:[%s165 + $0xc8] sm:$0xf]
      %v223 = vld [vmem:[%s165 + $0xcc] sm:$0xf]
      %v224 = vld [vmem:[%s165 + $0xd0] sm:$0xf]
      %v225 = vld [vmem:[%s165 + $0xd4] sm:$0xf]
      %v226 = vld [vmem:[%s165 + $0xd8] sm:$0xf]
      %v227 = vld [vmem:[%s165 + $0xdc] sm:$0xf]
      %v228 = vld [vmem:[%s165 + $0xe0] sm:$0xf]
      %v229 = vld [vmem:[%s165 + $0xe4] sm:$0xf]
      %v230 = vld [vmem:[%s165 + $0xe8] sm:$0xf]
      %v231 = vld [vmem:[%s165 + $0xec] sm:$0xf]
      %v232 = vld [vmem:[%s165 + $0xf0] sm:$0xf]
      %v233 = vld [vmem:[%s165 + $0xf4] sm:$0xf]
      %v234 = vld [vmem:[%s165 + $0xf8] sm:$0xf]
      %v235 = vld [vmem:[%s165 + $0xfc] sm:$0xf]
      %v236 = vld [vmem:[%s165 + $0x100] sm:$0xf]
      %v237 = vld [vmem:[%s165 + $0x104] sm:$0xf]
      %v238 = vld [vmem:[%s165 + $0x108] sm:$0xf]
      %v239 = vld [vmem:[%s165 + $0x10c] sm:$0xf]
      %v240 = vld [vmem:[%s165 + $0x110] sm:$0xf]
      %v241 = vld [vmem:[%s165 + $0x114] sm:$0xf]
      %v242 = vld [vmem:[%s165 + $0x118] sm:$0xf]
      %v243 = vld [vmem:[%s165 + $0x11c] sm:$0xf]
      %v244 = vld [vmem:[%s165 + $0x120] sm:$0xf]
      %v245 = vld [vmem:[%s165 + $0x124] sm:$0xf]
      %v246 = vld [vmem:[%s165 + $0x128] sm:$0xf]
      %v247 = vld [vmem:[%s165 + $0x12c] sm:$0xf]
      %v248 = vld [vmem:[%s165 + $0x130] sm:$0xf]
      %v249 = vld [vmem:[%s165 + $0x134] sm:$0xf]
      %v250 = vld [vmem:[%s165 + $0x138] sm:$0xf]
      %v251 = vld [vmem:[%s165 + $0x13c] sm:$0xf]
      %v252 = vld [vmem:[%s165 + $0x140] sm:$0xf]
      %v253 = vld [vmem:[%s165 + $0x144] sm:$0xf]
      %v254 = vld [vmem:[%s165 + $0x148] sm:$0xf]
      %v255 = vld [vmem:[%s165 + $0x14c] sm:$0xf]
      %v256 = vld [vmem:[%s165 + $0x150] sm:$0xf]
      %v257 = vld [vmem:[%s165 + $0x154] sm:$0xf]
      %v258 = vld [vmem:[%s165 + $0x158] sm:$0xf]
      %v259 = vld [vmem:[%s165 + $0x15c] sm:$0xf]
      %v260 = vld [vmem:[%s165 + $0x160] sm:$0xf]
      %v261 = vld [vmem:[%s165 + $0x164] sm:$0xf]
      %v262 = vld [vmem:[%s165 + $0x168] sm:$0xf]
      %v263 = vld [vmem:[%s165 + $0x16c] sm:$0xf]
      %v264 = vld [vmem:[%s165 + $0x170] sm:$0xf]
      %v265 = vld [vmem:[%s165 + $0x174] sm:$0xf]
      %v266 = vld [vmem:[%s165 + $0x178] sm:$0xf]
      %v267 = vld [vmem:[%s165 + $0x17c] sm:$0xf]
      %v268 = vld [vmem:[%s165 + $0x180] sm:$0xf]
      %v269 = vld [vmem:[%s165 + $0x184] sm:$0xf]
      %v270 = vld [vmem:[%s165 + $0x188] sm:$0xf]
      %v271 = vld [vmem:[%s165 + $0x18c] sm:$0xf]
      %v272 = vld [vmem:[%s165 + $0x190] sm:$0xf]
      %v273 = vld [vmem:[%s165 + $0x194] sm:$0xf]
      %v274 = vld [vmem:[%s165 + $0x198] sm:$0xf]
      %v275 = vld [vmem:[%s165 + $0x19c] sm:$0xf]
      %v276 = vld [vmem:[%s165 + $0x1a0] sm:$0xf]
      %v277 = vld [vmem:[%s165 + $0x1a4] sm:$0xf]
      %v278 = vld [vmem:[%s165 + $0x1a8] sm:$0xf]
      %v279 = vld [vmem:[%s165 + $0x1ac] sm:$0xf]
      %v280 = vld [vmem:[%s165 + $0x1b0] sm:$0xf]
      %v281 = vld [vmem:[%s165 + $0x1b4] sm:$0xf]
      %v282 = vld [vmem:[%s165 + $0x1b8] sm:$0xf]
      %v283 = vld [vmem:[%s165 + $0x1bc] sm:$0xf]
      %v284 = vld [vmem:[%s165 + $0x1c0] sm:$0xf]
      %v285 = vld [vmem:[%s165 + $0x1c4] sm:$0xf]
      %v286 = vld [vmem:[%s165 + $0x1c8] sm:$0xf]
      %v287 = vld [vmem:[%s165 + $0x1cc] sm:$0xf]
      %v288 = vld [vmem:[%s165 + $0x1d0] sm:$0xf]
      %v289 = vld [vmem:[%s165 + $0x1d4] sm:$0xf]
      %v290 = vld [vmem:[%s165 + $0x1d8] sm:$0xf]
      %v291 = vld [vmem:[%s165 + $0x1dc] sm:$0xf]
      %v292 = vld [vmem:[%s165 + $0x1e0] sm:$0xf]
      %v293 = vld [vmem:[%s165 + $0x1e4] sm:$0xf]
      %v294 = vld [vmem:[%s165 + $0x1e8] sm:$0xf]
      %v295 = vld [vmem:[%s165 + $0x1ec] sm:$0xf]
      %v296 = vld [vmem:[%s165 + $0x1f0] sm:$0xf]
      %v297 = vld [vmem:[%s165 + $0x1f4] sm:$0xf]
      %v298 = vld [vmem:[%s165 + $0x1f8] sm:$0xf]
      %v299 = vld [vmem:[%s165 + $0x1fc] sm:$0xf]
      %v300 = vld [vmem:[%s165 + $0x200] sm:$0xf]
      %v301 = vld [vmem:[%s165 + $0x204] sm:$0xf]
      %v302 = vld [vmem:[%s165 + $0x208] sm:$0xf]
      %v303 = vld [vmem:[%s165 + $0x20c] sm:$0xf]
      %v304 = vld [vmem:[%s1] sm:$0xf]
      %v305 = vld [vmem:[%s1 + $0x4] sm:$0xf]
      %v306 = vld [vmem:[%s1 + $0x8] sm:$0xf]
      %v307 = vld [vmem:[%s1 + $0xc] sm:$0xf]
      %v308 = vld [vmem:[%s165 + $0x210] sm:$0x1]
      %s309 = scalar_lea.vmem %s1, 16
      %v310 = vld [vmem:[%s309] sm:$0xf]
      %v311 = vld [vmem:[%s309 + $0x4] sm:$0xf]
      %v312 = vld [vmem:[%s309 + $0x8] sm:$0xf]
      %v313 = vld [vmem:[%s309 + $0xc] sm:$0xf]
      %v447 = vunpack.c.l.b16 %v172
      %v448 = vunpack.c.l.b16 %v173
      %v449 = vunpack.c.l.b16 %v174
      %v450 = vunpack.c.l.b16 %v175
      %v451 = vunpack.c.l.b16 %v176
      %v452 = vunpack.c.l.b16 %v177
      %v453 = vunpack.c.l.b16 %v178
      %v454 = vunpack.c.l.b16 %v179
      %v455 = vunpack.c.l.b16 %v180
      %v456 = vunpack.c.l.b16 %v181
      %v457 = vunpack.c.l.b16 %v182
      %v458 = vunpack.c.l.b16 %v183
      %v459 = vunpack.c.l.b16 %v184
      %v460 = vunpack.c.l.b16 %v185
      %v461 = vunpack.c.l.b16 %v186
      %v462 = vunpack.c.l.b16 %v187
      %v463 = vunpack.c.l.b16 %v188
      %v464 = vunpack.c.l.b16 %v189
      %v465 = vunpack.c.l.b16 %v190
      %v466 = vunpack.c.l.b16 %v191
      %v467 = vunpack.c.l.b16 %v192
      %v468 = vunpack.c.l.b16 %v193
      %v469 = vunpack.c.l.b16 %v194
      %v470 = vunpack.c.l.b16 %v195
      %v471 = vunpack.c.l.b16 %v196
      %v472 = vunpack.c.l.b16 %v197
      %v473 = vunpack.c.l.b16 %v198
      %v474 = vunpack.c.l.b16 %v199
      %v475 = vunpack.c.l.b16 %v200
      %v476 = vunpack.c.l.b16 %v201
      %v477 = vunpack.c.l.b16 %v202
      %v478 = vunpack.c.l.b16 %v203
      %v479 = vunpack.c.l.b16 %v204
      %v480 = vunpack.c.l.b16 %v205
      %v481 = vunpack.c.l.b16 %v206
      %v482 = vunpack.c.l.b16 %v207
      %v483 = vunpack.c.l.b16 %v208
      %v484 = vunpack.c.l.b16 %v209
      %v485 = vunpack.c.l.b16 %v210
      %v486 = vunpack.c.l.b16 %v211
      %v487 = vunpack.c.l.b16 %v212
      %v488 = vunpack.c.l.b16 %v213
      %v489 = vunpack.c.l.b16 %v214
      %v490 = vunpack.c.l.b16 %v215
      %v491 = vunpack.c.l.b16 %v216
      %v492 = vunpack.c.l.b16 %v217
      %v493 = vunpack.c.l.b16 %v218
      %v494 = vunpack.c.l.b16 %v219
      %v495 = vunpack.c.l.b16 %v220
      %v496 = vunpack.c.l.b16 %v221
      %v497 = vunpack.c.l.b16 %v222
      %v498 = vunpack.c.l.b16 %v223
      %v499 = vunpack.c.l.b16 %v224
      %v500 = vunpack.c.l.b16 %v225
      %v501 = vunpack.c.l.b16 %v226
      %v502 = vunpack.c.l.b16 %v227
      %v503 = vunpack.c.l.b16 %v228
      %v504 = vunpack.c.l.b16 %v229
      %v505 = vunpack.c.l.b16 %v230
      %v506 = vunpack.c.l.b16 %v231
      %v507 = vunpack.c.l.b16 %v232
      %v508 = vunpack.c.l.b16 %v233
      %v509 = vunpack.c.l.b16 %v234
      %v510 = vunpack.c.l.b16 %v235
      %v511 = vunpack.c.l.b16 %v236
      %v512 = vunpack.c.l.b16 %v237
      %v513 = vunpack.c.l.b16 %v238
      %v514 = vunpack.c.l.b16 %v239
      %v515 = vunpack.c.l.b16 %v240
      %v516 = vunpack.c.l.b16 %v241
      %v517 = vunpack.c.l.b16 %v242
      %v518 = vunpack.c.l.b16 %v243
      %v519 = vunpack.c.l.b16 %v244
      %v520 = vunpack.c.l.b16 %v245
      %v521 = vunpack.c.l.b16 %v246
      %v522 = vunpack.c.l.b16 %v247
      %v523 = vunpack.c.l.b16 %v248
      %v524 = vunpack.c.l.b16 %v249
      %v525 = vunpack.c.l.b16 %v250
      %v526 = vunpack.c.l.b16 %v251
      %v527 = vunpack.c.l.b16 %v252
      %v528 = vunpack.c.l.b16 %v253
      %v529 = vunpack.c.l.b16 %v254
      %v530 = vunpack.c.l.b16 %v255
      %v531 = vunpack.c.l.b16 %v256
      %v532 = vunpack.c.l.b16 %v257
      %v533 = vunpack.c.l.b16 %v258
      %v534 = vunpack.c.l.b16 %v259
      %v535 = vunpack.c.l.b16 %v260
      %v536 = vunpack.c.l.b16 %v261
      %v537 = vunpack.c.l.b16 %v262
      %v538 = vunpack.c.l.b16 %v263
      %v539 = vunpack.c.l.b16 %v264
      %v540 = vunpack.c.l.b16 %v265
      %v541 = vunpack.c.l.b16 %v266
      %v542 = vunpack.c.l.b16 %v267
      %v543 = vunpack.c.l.b16 %v268
      %v544 = vunpack.c.l.b16 %v269
      %v545 = vunpack.c.l.b16 %v270
      %v546 = vunpack.c.l.b16 %v271
      %v547 = vunpack.c.l.b16 %v272
      %v548 = vunpack.c.l.b16 %v273
      %v549 = vunpack.c.l.b16 %v274
      %v550 = vunpack.c.l.b16 %v275
      %v551 = vunpack.c.l.b16 %v276
      %v552 = vunpack.c.l.b16 %v277
      %v553 = vunpack.c.l.b16 %v278
      %v554 = vunpack.c.l.b16 %v279
      %v555 = vunpack.c.l.b16 %v280
      %v556 = vunpack.c.l.b16 %v281
      %v557 = vunpack.c.l.b16 %v282
      %v558 = vunpack.c.l.b16 %v283
      %v559 = vunpack.c.l.b16 %v284
      %v560 = vunpack.c.l.b16 %v285
      %v561 = vunpack.c.l.b16 %v286
      %v562 = vunpack.c.l.b16 %v287
      %v563 = vunpack.c.l.b16 %v288
      %v564 = vunpack.c.l.b16 %v289
      %v565 = vunpack.c.l.b16 %v290
      %v566 = vunpack.c.l.b16 %v291
      %v567 = vunpack.c.l.b16 %v292
      %v568 = vunpack.c.l.b16 %v293
      %v569 = vunpack.c.l.b16 %v294
      %v570 = vunpack.c.l.b16 %v295
      %v571 = vunpack.c.l.b16 %v296
      %v572 = vunpack.c.l.b16 %v297
      %v573 = vunpack.c.l.b16 %v298
      %v574 = vunpack.c.l.b16 %v299
      %v575 = vunpack.c.l.b16 %v300
      %v576 = vunpack.c.l.b16 %v301
      %v577 = vunpack.c.l.b16 %v302
      %v578 = vunpack.c.l.b16 %v303
      %v579 = vunpack.c.l.b16 %v308
      %v580 = vpack.c.b16 %v448, %v447
      %v581 = vpack.c.b16 %v450, %v449
      %v582 = vpack.c.b16 %v452, %v451
      %v583 = vpack.c.b16 %v454, %v453
      %v584 = vpack.c.b16 %v456, %v455
      %v585 = vpack.c.b16 %v458, %v457
      %v586 = vpack.c.b16 %v460, %v459
      %v587 = vpack.c.b16 %v462, %v461
      %v588 = vpack.c.b16 %v464, %v463
      %v589 = vpack.c.b16 %v466, %v465
      %v590 = vpack.c.b16 %v468, %v467
      %v591 = vpack.c.b16 %v470, %v469
      %v592 = vpack.c.b16 %v472, %v471
      %v593 = vpack.c.b16 %v474, %v473
      %v594 = vpack.c.b16 %v476, %v475
      %v595 = vpack.c.b16 %v478, %v477
      %v596 = vpack.c.b16 %v480, %v479
      %v597 = vpack.c.b16 %v482, %v481
      %v598 = vpack.c.b16 %v484, %v483
      %v599 = vpack.c.b16 %v486, %v485
      %v600 = vpack.c.b16 %v488, %v487
      %v601 = vpack.c.b16 %v490, %v489
      %v602 = vpack.c.b16 %v492, %v491
      %v603 = vpack.c.b16 %v494, %v493
      %v604 = vpack.c.b16 %v496, %v495
      %v605 = vpack.c.b16 %v498, %v497
      %v606 = vpack.c.b16 %v500, %v499
      %v607 = vpack.c.b16 %v502, %v501
      %v608 = vpack.c.b16 %v504, %v503
      %v609 = vpack.c.b16 %v506, %v505
      %v610 = vpack.c.b16 %v508, %v507
      %v611 = vpack.c.b16 %v510, %v509
      %v612 = vpack.c.b16 %v512, %v511
      %v613 = vpack.c.b16 %v514, %v513
      %v614 = vpack.c.b16 %v516, %v515
      %v615 = vpack.c.b16 %v518, %v517
      %v616 = vpack.c.b16 %v520, %v519
      %v617 = vpack.c.b16 %v522, %v521
      %v618 = vpack.c.b16 %v524, %v523
      %v619 = vpack.c.b16 %v526, %v525
      %v620 = vpack.c.b16 %v528, %v527
      %v621 = vpack.c.b16 %v530, %v529
      %v622 = vpack.c.b16 %v532, %v531
      %v623 = vpack.c.b16 %v534, %v533
      %v624 = vpack.c.b16 %v536, %v535
      %v625 = vpack.c.b16 %v538, %v537
      %v626 = vpack.c.b16 %v540, %v539
      %v627 = vpack.c.b16 %v542, %v541
      %v628 = vpack.c.b16 %v544, %v543
      %v629 = vpack.c.b16 %v546, %v545
      %v630 = vpack.c.b16 %v548, %v547
      %v631 = vpack.c.b16 %v550, %v549
      %v632 = vpack.c.b16 %v552, %v551
      %v633 = vpack.c.b16 %v554, %v553
      %v634 = vpack.c.b16 %v556, %v555
      %v635 = vpack.c.b16 %v558, %v557
      %v636 = vpack.c.b16 %v560, %v559
      %v637 = vpack.c.b16 %v562, %v561
      %v638 = vpack.c.b16 %v564, %v563
      %v639 = vpack.c.b16 %v566, %v565
      %v640 = vpack.c.b16 %v568, %v567
      %v641 = vpack.c.b16 %v570, %v569
      %v642 = vpack.c.b16 %v572, %v571
      %v643 = vpack.c.b16 %v574, %v573
      %v644 = vpack.c.b16 %v576, %v575
      %v645 = vpack.c.b16 %v578, %v577
      %v646 = vpack.c.b16 %v579, %v579
      %vm647 = vsmask.f32 7424
      %v649 = vshrl.u32 %v580, 16
      %v651 = vshll.u32 %v580, 16
      %v653 = vrot.slane %v651, 1
      %v654 = vor.u32 %v649, %v653
      %v656 = vshll.u32 %v581, 16
      %v658 = vrot.slane %v656, 1
      %v659 = vsel %vm647, %v654, %v658
      %v660 = vshrl.u32 %v581, 16
      %v662 = vor.u32 %v660, %v658
      %v664 = vshll.u32 %v582, 16
      %v666 = vrot.slane %v664, 1
      %v667 = vsel %vm647, %v662, %v666
      %v668 = vshrl.u32 %v582, 16
      %v670 = vor.u32 %v668, %v666
      %v672 = vshll.u32 %v583, 16
      %v674 = vrot.slane %v672, 1
      %v675 = vsel %vm647, %v670, %v674
      %v676 = vshrl.u32 %v583, 16
      %v678 = vor.u32 %v676, %v674
      %v680 = vshll.u32 %v584, 16
      %v682 = vrot.slane %v680, 1
      %v683 = vsel %vm647, %v678, %v682
      %v684 = vshrl.u32 %v584, 16
      %v686 = vor.u32 %v684, %v682
      %v688 = vshll.u32 %v585, 16
      %v690 = vrot.slane %v688, 1
      %v691 = vsel %vm647, %v686, %v690
      %v692 = vshrl.u32 %v585, 16
      %v694 = vor.u32 %v692, %v690
      %v696 = vshll.u32 %v586, 16
      %v698 = vrot.slane %v696, 1
      %v699 = vsel %vm647, %v694, %v698
      %v700 = vshrl.u32 %v586, 16
      %v702 = vor.u32 %v700, %v698
      %v704 = vshll.u32 %v587, 16
      %v706 = vrot.slane %v704, 1
      %v707 = vsel %vm647, %v702, %v706
      %v708 = vshrl.u32 %v587, 16
      %v710 = vor.u32 %v708, %v706
      %v712 = vshll.u32 %v588, 16
      %v714 = vrot.slane %v712, 1
      %v715 = vsel %vm647, %v710, %v714
      %v716 = vshrl.u32 %v588, 16
      %v718 = vor.u32 %v716, %v714
      %v720 = vshll.u32 %v589, 16
      %v722 = vrot.slane %v720, 1
      %v723 = vsel %vm647, %v718, %v722
      %v724 = vshrl.u32 %v589, 16
      %v726 = vor.u32 %v724, %v722
      %v728 = vshll.u32 %v590, 16
      %v730 = vrot.slane %v728, 1
      %v731 = vsel %vm647, %v726, %v730
      %v732 = vshrl.u32 %v590, 16
      %v734 = vor.u32 %v732, %v730
      %v736 = vshll.u32 %v591, 16
      %v738 = vrot.slane %v736, 1
      %v739 = vsel %vm647, %v734, %v738
      %v740 = vshrl.u32 %v591, 16
      %v742 = vor.u32 %v740, %v738
      %v744 = vshll.u32 %v592, 16
      %v746 = vrot.slane %v744, 1
      %v747 = vsel %vm647, %v742, %v746
      %v748 = vshrl.u32 %v592, 16
      %v750 = vor.u32 %v748, %v746
      %v752 = vshll.u32 %v593, 16
      %v754 = vrot.slane %v752, 1
      %v755 = vsel %vm647, %v750, %v754
      %v756 = vshrl.u32 %v593, 16
      %v758 = vor.u32 %v756, %v754
      %v760 = vshll.u32 %v594, 16
      %v762 = vrot.slane %v760, 1
      %v763 = vsel %vm647, %v758, %v762
      %v764 = vshrl.u32 %v594, 16
      %v766 = vor.u32 %v764, %v762
      %v768 = vshll.u32 %v595, 16
      %v770 = vrot.slane %v768, 1
      %v771 = vsel %vm647, %v766, %v770
      %v772 = vshrl.u32 %v595, 16
      %v774 = vor.u32 %v772, %v770
      %v776 = vshll.u32 %v596, 16
      %v778 = vrot.slane %v776, 1
      %v779 = vsel %vm647, %v774, %v778
      %v780 = vshrl.u32 %v596, 16
      %v782 = vor.u32 %v780, %v778
      %v784 = vshll.u32 %v597, 16
      %v786 = vrot.slane %v784, 1
      %v787 = vsel %vm647, %v782, %v786
      %v788 = vshrl.u32 %v597, 16
      %v790 = vor.u32 %v788, %v786
      %v792 = vshll.u32 %v598, 16
      %v794 = vrot.slane %v792, 1
      %v795 = vsel %vm647, %v790, %v794
      %v796 = vshrl.u32 %v598, 16
      %v798 = vor.u32 %v796, %v794
      %v800 = vshll.u32 %v599, 16
      %v802 = vrot.slane %v800, 1
      %v803 = vsel %vm647, %v798, %v802
      %v804 = vshrl.u32 %v599, 16
      %v806 = vor.u32 %v804, %v802
      %v808 = vshll.u32 %v600, 16
      %v810 = vrot.slane %v808, 1
      %v811 = vsel %vm647, %v806, %v810
      %v812 = vshrl.u32 %v600, 16
      %v814 = vor.u32 %v812, %v810
      %v816 = vshll.u32 %v601, 16
      %v818 = vrot.slane %v816, 1
      %v819 = vsel %vm647, %v814, %v818
      %v820 = vshrl.u32 %v601, 16
      %v822 = vor.u32 %v820, %v818
      %v824 = vshll.u32 %v602, 16
      %v826 = vrot.slane %v824, 1
      %v827 = vsel %vm647, %v822, %v826
      %v828 = vshrl.u32 %v602, 16
      %v830 = vor.u32 %v828, %v826
      %v832 = vshll.u32 %v603, 16
      %v834 = vrot.slane %v832, 1
      %v835 = vsel %vm647, %v830, %v834
      %v836 = vshrl.u32 %v603, 16
      %v838 = vor.u32 %v836, %v834
      %v840 = vshll.u32 %v604, 16
      %v842 = vrot.slane %v840, 1
      %v843 = vsel %vm647, %v838, %v842
      %v844 = vshrl.u32 %v604, 16
      %v846 = vor.u32 %v844, %v842
      %v848 = vshll.u32 %v605, 16
      %v850 = vrot.slane %v848, 1
      %v851 = vsel %vm647, %v846, %v850
      %v852 = vshrl.u32 %v605, 16
      %v854 = vor.u32 %v852, %v850
      %v856 = vshll.u32 %v606, 16
      %v858 = vrot.slane %v856, 1
      %v859 = vsel %vm647, %v854, %v858
      %v860 = vshrl.u32 %v606, 16
      %v862 = vor.u32 %v860, %v858
      %v864 = vshll.u32 %v607, 16
      %v866 = vrot.slane %v864, 1
      %v867 = vsel %vm647, %v862, %v866
      %v868 = vshrl.u32 %v607, 16
      %v870 = vor.u32 %v868, %v866
      %v872 = vshll.u32 %v608, 16
      %v874 = vrot.slane %v872, 1
      %v875 = vsel %vm647, %v870, %v874
      %v876 = vshrl.u32 %v608, 16
      %v878 = vor.u32 %v876, %v874
      %v880 = vshll.u32 %v609, 16
      %v882 = vrot.slane %v880, 1
      %v883 = vsel %vm647, %v878, %v882
      %v884 = vshrl.u32 %v609, 16
      %v886 = vor.u32 %v884, %v882
      %v888 = vshll.u32 %v610, 16
      %v890 = vrot.slane %v888, 1
      %v891 = vsel %vm647, %v886, %v890
      %v892 = vshrl.u32 %v610, 16
      %v894 = vor.u32 %v892, %v890
      %v896 = vshll.u32 %v611, 16
      %v898 = vrot.slane %v896, 1
      %v899 = vsel %vm647, %v894, %v898
      %v900 = vshrl.u32 %v611, 16
      %v902 = vor.u32 %v900, %v898
      %v904 = vshll.u32 %v612, 16
      %v906 = vrot.slane %v904, 1
      %v907 = vsel %vm647, %v902, %v906
      %v908 = vshrl.u32 %v612, 16
      %v910 = vor.u32 %v908, %v906
      %v912 = vshll.u32 %v613, 16
      %v914 = vrot.slane %v912, 1
      %v915 = vsel %vm647, %v910, %v914
      %v916 = vshrl.u32 %v613, 16
      %v918 = vor.u32 %v916, %v914
      %v920 = vshll.u32 %v614, 16
      %v922 = vrot.slane %v920, 1
      %v923 = vsel %vm647, %v918, %v922
      %v924 = vshrl.u32 %v614, 16
      %v926 = vor.u32 %v924, %v922
      %v928 = vshll.u32 %v615, 16
      %v930 = vrot.slane %v928, 1
      %v931 = vsel %vm647, %v926, %v930
      %v932 = vshrl.u32 %v615, 16
      %v934 = vor.u32 %v932, %v930
      %v936 = vshll.u32 %v616, 16
      %v938 = vrot.slane %v936, 1
      %v939 = vsel %vm647, %v934, %v938
      %v940 = vshrl.u32 %v616, 16
      %v942 = vor.u32 %v940, %v938
      %v944 = vshll.u32 %v617, 16
      %v946 = vrot.slane %v944, 1
      %v947 = vsel %vm647, %v942, %v946
      %v948 = vshrl.u32 %v617, 16
      %v950 = vor.u32 %v948, %v946
      %v952 = vshll.u32 %v618, 16
      %v954 = vrot.slane %v952, 1
      %v955 = vsel %vm647, %v950, %v954
      %v956 = vshrl.u32 %v618, 16
      %v958 = vor.u32 %v956, %v954
      %v960 = vshll.u32 %v619, 16
      %v962 = vrot.slane %v960, 1
      %v963 = vsel %vm647, %v958, %v962
      %v964 = vshrl.u32 %v619, 16
      %v966 = vor.u32 %v964, %v962
      %v968 = vshll.u32 %v620, 16
      %v970 = vrot.slane %v968, 1
      %v971 = vsel %vm647, %v966, %v970
      %v972 = vshrl.u32 %v620, 16
      %v974 = vor.u32 %v972, %v970
      %v976 = vshll.u32 %v621, 16
      %v978 = vrot.slane %v976, 1
      %v979 = vsel %vm647, %v974, %v978
      %v980 = vshrl.u32 %v621, 16
      %v982 = vor.u32 %v980, %v978
      %v984 = vshll.u32 %v622, 16
      %v986 = vrot.slane %v984, 1
      %v987 = vsel %vm647, %v982, %v986
      %v988 = vshrl.u32 %v622, 16
      %v990 = vor.u32 %v988, %v986
      %v992 = vshll.u32 %v623, 16
      %v994 = vrot.slane %v992, 1
      %v995 = vsel %vm647, %v990, %v994
      %v996 = vshrl.u32 %v623, 16
      %v998 = vor.u32 %v996, %v994
      %v1000 = vshll.u32 %v624, 16
      %v1002 = vrot.slane %v1000, 1
      %v1003 = vsel %vm647, %v998, %v1002
      %v1004 = vshrl.u32 %v624, 16
      %v1006 = vor.u32 %v1004, %v1002
      %v1008 = vshll.u32 %v625, 16
      %v1010 = vrot.slane %v1008, 1
      %v1011 = vsel %vm647, %v1006, %v1010
      %v1012 = vshrl.u32 %v625, 16
      %v1014 = vor.u32 %v1012, %v1010
      %v1016 = vshll.u32 %v626, 16
      %v1018 = vrot.slane %v1016, 1
      %v1019 = vsel %vm647, %v1014, %v1018
      %v1020 = vshrl.u32 %v626, 16
      %v1022 = vor.u32 %v1020, %v1018
      %v1024 = vshll.u32 %v627, 16
      %v1026 = vrot.slane %v1024, 1
      %v1027 = vsel %vm647, %v1022, %v1026
      %v1028 = vshrl.u32 %v627, 16
      %v1030 = vor.u32 %v1028, %v1026
      %v1032 = vshll.u32 %v628, 16
      %v1034 = vrot.slane %v1032, 1
      %v1035 = vsel %vm647, %v1030, %v1034
      %v1036 = vshrl.u32 %v628, 16
      %v1038 = vor.u32 %v1036, %v1034
      %v1040 = vshll.u32 %v629, 16
      %v1042 = vrot.slane %v1040, 1
      %v1043 = vsel %vm647, %v1038, %v1042
      %v1044 = vshrl.u32 %v629, 16
      %v1046 = vor.u32 %v1044, %v1042
      %v1048 = vshll.u32 %v630, 16
      %v1050 = vrot.slane %v1048, 1
      %v1051 = vsel %vm647, %v1046, %v1050
      %v1052 = vshrl.u32 %v630, 16
      %v1054 = vor.u32 %v1052, %v1050
      %v1056 = vshll.u32 %v631, 16
      %v1058 = vrot.slane %v1056, 1
      %v1059 = vsel %vm647, %v1054, %v1058
      %v1060 = vshrl.u32 %v631, 16
      %v1062 = vor.u32 %v1060, %v1058
      %v1064 = vshll.u32 %v632, 16
      %v1066 = vrot.slane %v1064, 1
      %v1067 = vsel %vm647, %v1062, %v1066
      %v1068 = vshrl.u32 %v632, 16
      %v1070 = vor.u32 %v1068, %v1066
      %v1072 = vshll.u32 %v633, 16
      %v1074 = vrot.slane %v1072, 1
      %v1075 = vsel %vm647, %v1070, %v1074
      %v1076 = vshrl.u32 %v633, 16
      %v1078 = vor.u32 %v1076, %v1074
      %v1080 = vshll.u32 %v634, 16
      %v1082 = vrot.slane %v1080, 1
      %v1083 = vsel %vm647, %v1078, %v1082
      %v1084 = vshrl.u32 %v634, 16
      %v1086 = vor.u32 %v1084, %v1082
      %v1088 = vshll.u32 %v635, 16
      %v1090 = vrot.slane %v1088, 1
      %v1091 = vsel %vm647, %v1086, %v1090
      %v1092 = vshrl.u32 %v635, 16
      %v1094 = vor.u32 %v1092, %v1090
      %v1096 = vshll.u32 %v636, 16
      %v1098 = vrot.slane %v1096, 1
      %v1099 = vsel %vm647, %v1094, %v1098
      %v1100 = vshrl.u32 %v636, 16
      %v1102 = vor.u32 %v1100, %v1098
      %v1104 = vshll.u32 %v637, 16
      %v1106 = vrot.slane %v1104, 1
      %v1107 = vsel %vm647, %v1102, %v1106
      %v1108 = vshrl.u32 %v637, 16
      %v1110 = vor.u32 %v1108, %v1106
      %v1112 = vshll.u32 %v638, 16
      %v1114 = vrot.slane %v1112, 1
      %v1115 = vsel %vm647, %v1110, %v1114
      %v1116 = vshrl.u32 %v638, 16
      %v1118 = vor.u32 %v1116, %v1114
      %v1120 = vshll.u32 %v639, 16
      %v1122 = vrot.slane %v1120, 1
      %v1123 = vsel %vm647, %v1118, %v1122
      %v1124 = vshrl.u32 %v639, 16
      %v1126 = vor.u32 %v1124, %v1122
      %v1128 = vshll.u32 %v640, 16
      %v1130 = vrot.slane %v1128, 1
      %v1131 = vsel %vm647, %v1126, %v1130
      %v1132 = vshrl.u32 %v640, 16
      %v1134 = vor.u32 %v1132, %v1130
      %v1136 = vshll.u32 %v641, 16
      %v1138 = vrot.slane %v1136, 1
      %v1139 = vsel %vm647, %v1134, %v1138
      %v1140 = vshrl.u32 %v641, 16
      %v1142 = vor.u32 %v1140, %v1138
      %v1144 = vshll.u32 %v642, 16
      %v1146 = vrot.slane %v1144, 1
      %v1147 = vsel %vm647, %v1142, %v1146
      %v1148 = vshrl.u32 %v642, 16
      %v1150 = vor.u32 %v1148, %v1146
      %v1152 = vshll.u32 %v643, 16
      %v1154 = vrot.slane %v1152, 1
      %v1155 = vsel %vm647, %v1150, %v1154
      %v1156 = vshrl.u32 %v643, 16
      %v1158 = vor.u32 %v1156, %v1154
      %v1160 = vshll.u32 %v644, 16
      %v1162 = vrot.slane %v1160, 1
      %v1163 = vsel %vm647, %v1158, %v1162
      %v1164 = vshrl.u32 %v644, 16
      %v1166 = vor.u32 %v1164, %v1162
      %v1168 = vshll.u32 %v645, 16
      %v1170 = vrot.slane %v1168, 1
      %v1171 = vsel %vm647, %v1166, %v1170
      %v1172 = vshrl.u32 %v645, 16
      %v1174 = vor.u32 %v1172, %v1170
      %v1176 = vshll.u32 %v646, 16
      %v1178 = vrot.slane %v1176, 1
      %v1179 = vsel %vm647, %v1174, %v1178
      %v1184 = vunpack.c.l.b16 %v310
      %v1185 = vunpack.c.l.b16 %v311
      %v1186 = vunpack.c.l.b16 %v312
      %v1187 = vunpack.c.l.b16 %v313
      %v1188 = vpack.c.b16 %v1185, %v1184
      %v1189 = vpack.c.b16 %v1187, %v1186
      %vm1192 = vcmask 261120
      %v1194 = vsel %vm1192, %v659, 0
      %v1197 = vsel %vm1192, %v667, 0
      %v1200 = vsel %vm1192, %v675, 0
      %v1203 = vsel %vm1192, %v683, 0
      %v1206 = vsel %vm1192, %v691, 0
      %v1209 = vsel %vm1192, %v699, 0
      %v1212 = vsel %vm1192, %v707, 0
      %v1215 = vsel %vm1192, %v715, 0
      %v1218 = vsel %vm1192, %v723, 0
      %v1221 = vsel %vm1192, %v731, 0
      %v1224 = vsel %vm1192, %v739, 0
      %v1227 = vsel %vm1192, %v747, 0
      %v1230 = vsel %vm1192, %v755, 0
      %v1233 = vsel %vm1192, %v763, 0
      %v1236 = vsel %vm1192, %v771, 0
      %v1239 = vsel %vm1192, %v779, 0
      %v1242 = vsel %vm1192, %v787, 0
      %v1245 = vsel %vm1192, %v795, 0
      %v1248 = vsel %vm1192, %v803, 0
      %v1251 = vsel %vm1192, %v811, 0
      %v1254 = vsel %vm1192, %v819, 0
      %v1257 = vsel %vm1192, %v827, 0
      %v1260 = vsel %vm1192, %v835, 0
      %v1263 = vsel %vm1192, %v843, 0
      %v1266 = vsel %vm1192, %v851, 0
      %v1269 = vsel %vm1192, %v859, 0
      %v1272 = vsel %vm1192, %v867, 0
      %v1275 = vsel %vm1192, %v875, 0
      %v1278 = vsel %vm1192, %v883, 0
      %v1281 = vsel %vm1192, %v891, 0
      %v1284 = vsel %vm1192, %v899, 0
      %v1287 = vsel %vm1192, %v907, 0
      %v1290 = vsel %vm1192, %v915, 0
      %v1293 = vsel %vm1192, %v923, 0
      %v1296 = vsel %vm1192, %v931, 0
      %v1299 = vsel %vm1192, %v939, 0
      %v1302 = vsel %vm1192, %v947, 0
      %v1305 = vsel %vm1192, %v955, 0
      %v1308 = vsel %vm1192, %v963, 0
      %v1311 = vsel %vm1192, %v971, 0
      %v1314 = vsel %vm1192, %v979, 0
      %v1317 = vsel %vm1192, %v987, 0
      %v1320 = vsel %vm1192, %v995, 0
      %v1323 = vsel %vm1192, %v1003, 0
      %v1326 = vsel %vm1192, %v1011, 0
      %v1329 = vsel %vm1192, %v1019, 0
      %v1332 = vsel %vm1192, %v1027, 0
      %v1335 = vsel %vm1192, %v1035, 0
      %v1338 = vsel %vm1192, %v1043, 0
      %v1341 = vsel %vm1192, %v1051, 0
      %v1344 = vsel %vm1192, %v1059, 0
      %v1347 = vsel %vm1192, %v1067, 0
      %v1350 = vsel %vm1192, %v1075, 0
      %v1353 = vsel %vm1192, %v1083, 0
      %v1356 = vsel %vm1192, %v1091, 0
      %v1359 = vsel %vm1192, %v1099, 0
      %v1362 = vsel %vm1192, %v1107, 0
      %v1365 = vsel %vm1192, %v1115, 0
      %v1368 = vsel %vm1192, %v1123, 0
      %v1371 = vsel %vm1192, %v1131, 0
      %v1374 = vsel %vm1192, %v1139, 0
      %v1377 = vsel %vm1192, %v1147, 0
      %v1380 = vsel %vm1192, %v1155, 0
      %v1383 = vsel %vm1192, %v1163, 0
      %v1386 = vsel %vm1192, %v1171, 0
      %v1389 = vsel %vm1192, %v1179, 0
      %1391 = vmatprep.subr.bf16.mxu0 0
      %1392 = vmatpush1.bf16.msra.mxu0 0
      %1393 = vmatprep.subr.bf16.mxu0 0
      %1394 = vmatpush1.bf16.msra.mxu0 0
      %1395 = vmatprep.subr.bf16.mxu0 0
      %1396 = vmatpush1.bf16.msra.mxu0 0
      %1397 = vmatprep.subr.bf16.mxu0 0
      %1398 = vmatpush1.bf16.msra.mxu0 0
      %1399 = vmatprep.subr.bf16.mxu0 0
      %1400 = vmatpush1.bf16.msra.mxu0 0
      %1401 = vmatprep.subr.bf16.mxu0 0
      %1402 = vmatpush1.bf16.msra.mxu0 0
      %1403 = vmatprep.subr.bf16.mxu0 0
      %1404 = vmatpush1.bf16.msra.mxu0 %v1189
      %1405 = vmatprep.subr.bf16.mxu0 0
      %1406 = vmatpush1.bf16.msra.mxu0 %v1188
      %1407 = vmatprep.subr.bf16.mxu0 0
      %1408 = vmatpush2.bf16.msra.mxu0 0
      %1409 = vmatprep.subr.bf16.mxu0 0
      %1410 = vmatpush2.bf16.msra.mxu0 0
      %1411 = vmatprep.subr.bf16.mxu0 0
      %1412 = vmatpush2.bf16.msra.mxu0 0
      %1413 = vmatprep.subr.bf16.mxu0 0
      %1414 = vmatpush2.bf16.msra.mxu0 0
      %1415 = vmatprep.subr.bf16.mxu0 0
      %1416 = vmatpush2.bf16.msra.mxu0 0
      %1417 = vmatprep.subr.bf16.mxu0 0
      %1418 = vmatpush2.bf16.msra.mxu0 0
      %1419 = vmatprep.subr.bf16.mxu0 0
      %1420 = vmatpush2.bf16.msra.mxu0 0
      %1421 = vmatprep.subr.bf16.mxu0 0
      %1422 = vmatpush2.bf16.msra.mxu0 0
      %1423 = vmatprep.mubr.bf16.mxu0 0
      %1424 = vmatmul.mubr.bf16.gmra.mxu0 %v1194
      %v1425 = vpop.f32.mrf.mxu0
      %v1426 = vadd.f32 0.0, %v1425
      %v1427 = vpop.f32.mrf.mxu0
      %v1428 = vpop.f32.mrf.mxu0
      %v1429 = vadd.f32 0.0, %v1428
      %v1430 = vpop.f32.mrf.mxu0
      %1431 = vmatprep.mubr.bf16.mxu0 0
      %1432 = vmatmul.mubr.bf16.gmra.mxu0 %v1197
      %v1433 = vpop.f32.mrf.mxu0
      %v1434 = vadd.f32 0.0, %v1433
      %v1435 = vpop.f32.mrf.mxu0
      %v1436 = vpop.f32.mrf.mxu0
      %v1437 = vadd.f32 0.0, %v1436
      %v1438 = vpop.f32.mrf.mxu0
      %1439 = vmatprep.mubr.bf16.mxu0 0
      %1440 = vmatmul.mubr.bf16.gmra.mxu0 %v1200
      %v1441 = vpop.f32.mrf.mxu0
      %v1442 = vadd.f32 0.0, %v1441
      %v1443 = vpop.f32.mrf.mxu0
      %v1444 = vpop.f32.mrf.mxu0
      %v1445 = vadd.f32 0.0, %v1444
      %v1446 = vpop.f32.mrf.mxu0
      %1447 = vmatprep.mubr.bf16.mxu0 0
      %1448 = vmatmul.mubr.bf16.gmra.mxu0 %v1203
      %v1449 = vpop.f32.mrf.mxu0
      %v1450 = vadd.f32 0.0, %v1449
      %v1451 = vpop.f32.mrf.mxu0
      %v1452 = vpop.f32.mrf.mxu0
      %v1453 = vadd.f32 0.0, %v1452
      %v1454 = vpop.f32.mrf.mxu0
      %1455 = vmatprep.mubr.bf16.mxu0 0
      %1456 = vmatmul.mubr.bf16.gmra.mxu0 %v1206
      %v1457 = vpop.f32.mrf.mxu0
      %v1458 = vadd.f32 0.0, %v1457
      %v1459 = vpop.f32.mrf.mxu0
      %v1460 = vpop.f32.mrf.mxu0
      %v1461 = vadd.f32 0.0, %v1460
      %v1462 = vpop.f32.mrf.mxu0
      %1463 = vmatprep.mubr.bf16.mxu0 0
      %1464 = vmatmul.mubr.bf16.gmra.mxu0 %v1209
      %v1465 = vpop.f32.mrf.mxu0
      %v1466 = vadd.f32 0.0, %v1465
      %v1467 = vpop.f32.mrf.mxu0
      %v1468 = vpop.f32.mrf.mxu0
      %v1469 = vadd.f32 0.0, %v1468
      %v1470 = vpop.f32.mrf.mxu0
      %1471 = vmatprep.mubr.bf16.mxu0 0
      %1472 = vmatmul.mubr.bf16.gmra.mxu0 %v1212
      %v1473 = vpop.f32.mrf.mxu0
      %v1474 = vadd.f32 0.0, %v1473
      %v1475 = vpop.f32.mrf.mxu0
      %v1476 = vpop.f32.mrf.mxu0
      %v1477 = vadd.f32 0.0, %v1476
      %v1478 = vpop.f32.mrf.mxu0
      %1479 = vmatprep.mubr.bf16.mxu0 0
      %1480 = vmatmul.mubr.bf16.gmra.mxu0 %v1215
      %v1481 = vpop.f32.mrf.mxu0
      %v1482 = vadd.f32 0.0, %v1481
      %v1483 = vpop.f32.mrf.mxu0
      %v1484 = vpop.f32.mrf.mxu0
      %v1485 = vadd.f32 0.0, %v1484
      %v1486 = vpop.f32.mrf.mxu0
      %1487 = vmatprep.mubr.bf16.mxu0 0
      %1488 = vmatmul.mubr.bf16.gmra.mxu0 %v1218
      %v1489 = vpop.f32.mrf.mxu0
      %v1490 = vadd.f32 0.0, %v1489
      %v1491 = vpop.f32.mrf.mxu0
      %v1492 = vpop.f32.mrf.mxu0
      %v1493 = vadd.f32 0.0, %v1492
      %v1494 = vpop.f32.mrf.mxu0
      %1495 = vmatprep.mubr.bf16.mxu0 0
      %1496 = vmatmul.mubr.bf16.gmra.mxu0 %v1221
      %v1497 = vpop.f32.mrf.mxu0
      %v1498 = vadd.f32 0.0, %v1497
      %v1499 = vpop.f32.mrf.mxu0
      %v1500 = vpop.f32.mrf.mxu0
      %v1501 = vadd.f32 0.0, %v1500
      %v1502 = vpop.f32.mrf.mxu0
      %1503 = vmatprep.mubr.bf16.mxu0 0
      %1504 = vmatmul.mubr.bf16.gmra.mxu0 %v1224
      %v1505 = vpop.f32.mrf.mxu0
      %v1506 = vadd.f32 0.0, %v1505
      %v1507 = vpop.f32.mrf.mxu0
      %v1508 = vpop.f32.mrf.mxu0
      %v1509 = vadd.f32 0.0, %v1508
      %v1510 = vpop.f32.mrf.mxu0
      %1511 = vmatprep.mubr.bf16.mxu0 0
      %1512 = vmatmul.mubr.bf16.gmra.mxu0 %v1227
      %v1513 = vpop.f32.mrf.mxu0
      %v1514 = vadd.f32 0.0, %v1513
      %v1515 = vpop.f32.mrf.mxu0
      %v1516 = vpop.f32.mrf.mxu0
      %v1517 = vadd.f32 0.0, %v1516
      %v1518 = vpop.f32.mrf.mxu0
      %1519 = vmatprep.mubr.bf16.mxu0 0
      %1520 = vmatmul.mubr.bf16.gmra.mxu0 %v1230
      %v1521 = vpop.f32.mrf.mxu0
      %v1522 = vadd.f32 0.0, %v1521
      %v1523 = vpop.f32.mrf.mxu0
      %v1524 = vpop.f32.mrf.mxu0
      %v1525 = vadd.f32 0.0, %v1524
      %v1526 = vpop.f32.mrf.mxu0
      %1527 = vmatprep.mubr.bf16.mxu0 0
      %1528 = vmatmul.mubr.bf16.gmra.mxu0 %v1233
      %v1529 = vpop.f32.mrf.mxu0
      %v1530 = vadd.f32 0.0, %v1529
      %v1531 = vpop.f32.mrf.mxu0
      %v1532 = vpop.f32.mrf.mxu0
      %v1533 = vadd.f32 0.0, %v1532
      %v1534 = vpop.f32.mrf.mxu0
      %1535 = vmatprep.mubr.bf16.mxu0 0
      %1536 = vmatmul.mubr.bf16.gmra.mxu0 %v1236
      %v1537 = vpop.f32.mrf.mxu0
      %v1538 = vadd.f32 0.0, %v1537
      %v1539 = vpop.f32.mrf.mxu0
      %v1540 = vpop.f32.mrf.mxu0
      %v1541 = vadd.f32 0.0, %v1540
      %v1542 = vpop.f32.mrf.mxu0
      %1543 = vmatprep.mubr.bf16.mxu0 0
      %1544 = vmatmul.mubr.bf16.gmra.mxu0 %v1239
      %v1545 = vpop.f32.mrf.mxu0
      %v1546 = vadd.f32 0.0, %v1545
      %v1547 = vpop.f32.mrf.mxu0
      %v1548 = vpop.f32.mrf.mxu0
      %v1549 = vadd.f32 0.0, %v1548
      %v1550 = vpop.f32.mrf.mxu0
      %1551 = vmatprep.mubr.bf16.mxu0 0
      %1552 = vmatmul.mubr.bf16.gmra.mxu0 %v1242
      %v1553 = vpop.f32.mrf.mxu0
      %v1554 = vadd.f32 0.0, %v1553
      %v1555 = vpop.f32.mrf.mxu0
      %v1556 = vpop.f32.mrf.mxu0
      %v1557 = vadd.f32 0.0, %v1556
      %v1558 = vpop.f32.mrf.mxu0
      %1559 = vmatprep.mubr.bf16.mxu0 0
      %1560 = vmatmul.mubr.bf16.gmra.mxu0 %v1245
      %v1561 = vpop.f32.mrf.mxu0
      %v1562 = vadd.f32 0.0, %v1561
      %v1563 = vpop.f32.mrf.mxu0
      %v1564 = vpop.f32.mrf.mxu0
      %v1565 = vadd.f32 0.0, %v1564
      %v1566 = vpop.f32.mrf.mxu0
      %1567 = vmatprep.mubr.bf16.mxu0 0
      %1568 = vmatmul.mubr.bf16.gmra.mxu0 %v1248
      %v1569 = vpop.f32.mrf.mxu0
      %v1570 = vadd.f32 0.0, %v1569
      %v1571 = vpop.f32.mrf.mxu0
      %v1572 = vpop.f32.mrf.mxu0
      %v1573 = vadd.f32 0.0, %v1572
      %v1574 = vpop.f32.mrf.mxu0
      %1575 = vmatprep.mubr.bf16.mxu0 0
      %1576 = vmatmul.mubr.bf16.gmra.mxu0 %v1251
      %v1577 = vpop.f32.mrf.mxu0
      %v1578 = vadd.f32 0.0, %v1577
      %v1579 = vpop.f32.mrf.mxu0
      %v1580 = vpop.f32.mrf.mxu0
      %v1581 = vadd.f32 0.0, %v1580
      %v1582 = vpop.f32.mrf.mxu0
      %1583 = vmatprep.mubr.bf16.mxu0 0
      %1584 = vmatmul.mubr.bf16.gmra.mxu0 %v1254
      %v1585 = vpop.f32.mrf.mxu0
      %v1586 = vadd.f32 0.0, %v1585
      %v1587 = vpop.f32.mrf.mxu0
      %v1588 = vpop.f32.mrf.mxu0
      %v1589 = vadd.f32 0.0, %v1588
      %v1590 = vpop.f32.mrf.mxu0
      %1591 = vmatprep.mubr.bf16.mxu0 0
      %1592 = vmatmul.mubr.bf16.gmra.mxu0 %v1257
      %v1593 = vpop.f32.mrf.mxu0
      %v1594 = vadd.f32 0.0, %v1593
      %v1595 = vpop.f32.mrf.mxu0
      %v1596 = vpop.f32.mrf.mxu0
      %v1597 = vadd.f32 0.0, %v1596
      %v1598 = vpop.f32.mrf.mxu0
      %1599 = vmatprep.mubr.bf16.mxu0 0
      %1600 = vmatmul.mubr.bf16.gmra.mxu0 %v1260
      %v1601 = vpop.f32.mrf.mxu0
      %v1602 = vadd.f32 0.0, %v1601
      %v1603 = vpop.f32.mrf.mxu0
      %v1604 = vpop.f32.mrf.mxu0
      %v1605 = vadd.f32 0.0, %v1604
      %v1606 = vpop.f32.mrf.mxu0
      %1607 = vmatprep.mubr.bf16.mxu0 0
      %1608 = vmatmul.mubr.bf16.gmra.mxu0 %v1263
      %v1609 = vpop.f32.mrf.mxu0
      %v1610 = vadd.f32 0.0, %v1609
      %v1611 = vpop.f32.mrf.mxu0
      %v1612 = vpop.f32.mrf.mxu0
      %v1613 = vadd.f32 0.0, %v1612
      %v1614 = vpop.f32.mrf.mxu0
      %1615 = vmatprep.mubr.bf16.mxu0 0
      %1616 = vmatmul.mubr.bf16.gmra.mxu0 %v1266
      %v1617 = vpop.f32.mrf.mxu0
      %v1618 = vadd.f32 0.0, %v1617
      %v1619 = vpop.f32.mrf.mxu0
      %v1620 = vpop.f32.mrf.mxu0
      %v1621 = vadd.f32 0.0, %v1620
      %v1622 = vpop.f32.mrf.mxu0
      %1623 = vmatprep.mubr.bf16.mxu0 0
      %1624 = vmatmul.mubr.bf16.gmra.mxu0 %v1269
      %v1625 = vpop.f32.mrf.mxu0
      %v1626 = vadd.f32 0.0, %v1625
      %v1627 = vpop.f32.mrf.mxu0
      %v1628 = vpop.f32.mrf.mxu0
      %v1629 = vadd.f32 0.0, %v1628
      %v1630 = vpop.f32.mrf.mxu0
      %1631 = vmatprep.mubr.bf16.mxu0 0
      %1632 = vmatmul.mubr.bf16.gmra.mxu0 %v1272
      %v1633 = vpop.f32.mrf.mxu0
      %v1634 = vadd.f32 0.0, %v1633
      %v1635 = vpop.f32.mrf.mxu0
      %v1636 = vpop.f32.mrf.mxu0
      %v1637 = vadd.f32 0.0, %v1636
      %v1638 = vpop.f32.mrf.mxu0
      %1639 = vmatprep.mubr.bf16.mxu0 0
      %1640 = vmatmul.mubr.bf16.gmra.mxu0 %v1275
      %v1641 = vpop.f32.mrf.mxu0
      %v1642 = vadd.f32 0.0, %v1641
      %v1643 = vpop.f32.mrf.mxu0
      %v1644 = vpop.f32.mrf.mxu0
      %v1645 = vadd.f32 0.0, %v1644
      %v1646 = vpop.f32.mrf.mxu0
      %1647 = vmatprep.mubr.bf16.mxu0 0
      %1648 = vmatmul.mubr.bf16.gmra.mxu0 %v1278
      %v1649 = vpop.f32.mrf.mxu0
      %v1650 = vadd.f32 0.0, %v1649
      %v1651 = vpop.f32.mrf.mxu0
      %v1652 = vpop.f32.mrf.mxu0
      %v1653 = vadd.f32 0.0, %v1652
      %v1654 = vpop.f32.mrf.mxu0
      %1655 = vmatprep.mubr.bf16.mxu0 0
      %1656 = vmatmul.mubr.bf16.gmra.mxu0 %v1281
      %v1657 = vpop.f32.mrf.mxu0
      %v1658 = vadd.f32 0.0, %v1657
      %v1659 = vpop.f32.mrf.mxu0
      %v1660 = vpop.f32.mrf.mxu0
      %v1661 = vadd.f32 0.0, %v1660
      %v1662 = vpop.f32.mrf.mxu0
      %1663 = vmatprep.mubr.bf16.mxu0 0
      %1664 = vmatmul.mubr.bf16.gmra.mxu0 %v1284
      %v1665 = vpop.f32.mrf.mxu0
      %v1666 = vadd.f32 0.0, %v1665
      %v1667 = vpop.f32.mrf.mxu0
      %v1668 = vpop.f32.mrf.mxu0
      %v1669 = vadd.f32 0.0, %v1668
      %v1670 = vpop.f32.mrf.mxu0
      %1671 = vmatprep.mubr.bf16.mxu0 0
      %1672 = vmatmul.mubr.bf16.gmra.mxu0 %v1287
      %v1673 = vpop.f32.mrf.mxu0
      %v1674 = vadd.f32 0.0, %v1673
      %v1675 = vpop.f32.mrf.mxu0
      %v1676 = vpop.f32.mrf.mxu0
      %v1677 = vadd.f32 0.0, %v1676
      %v1678 = vpop.f32.mrf.mxu0
      %1679 = vmatprep.mubr.bf16.mxu0 0
      %1680 = vmatmul.mubr.bf16.gmra.mxu0 %v1290
      %v1681 = vpop.f32.mrf.mxu0
      %v1682 = vadd.f32 0.0, %v1681
      %v1683 = vpop.f32.mrf.mxu0
      %v1684 = vpop.f32.mrf.mxu0
      %v1685 = vadd.f32 0.0, %v1684
      %v1686 = vpop.f32.mrf.mxu0
      %1687 = vmatprep.mubr.bf16.mxu0 0
      %1688 = vmatmul.mubr.bf16.gmra.mxu0 %v1293
      %v1689 = vpop.f32.mrf.mxu0
      %v1690 = vadd.f32 0.0, %v1689
      %v1691 = vpop.f32.mrf.mxu0
      %v1692 = vpop.f32.mrf.mxu0
      %v1693 = vadd.f32 0.0, %v1692
      %v1694 = vpop.f32.mrf.mxu0
      %1695 = vmatprep.mubr.bf16.mxu0 0
      %1696 = vmatmul.mubr.bf16.gmra.mxu0 %v1296
      %v1697 = vpop.f32.mrf.mxu0
      %v1698 = vadd.f32 0.0, %v1697
      %v1699 = vpop.f32.mrf.mxu0
      %v1700 = vpop.f32.mrf.mxu0
      %v1701 = vadd.f32 0.0, %v1700
      %v1702 = vpop.f32.mrf.mxu0
      %1703 = vmatprep.mubr.bf16.mxu0 0
      %1704 = vmatmul.mubr.bf16.gmra.mxu0 %v1299
      %v1705 = vpop.f32.mrf.mxu0
      %v1706 = vadd.f32 0.0, %v1705
      %v1707 = vpop.f32.mrf.mxu0
      %v1708 = vpop.f32.mrf.mxu0
      %v1709 = vadd.f32 0.0, %v1708
      %v1710 = vpop.f32.mrf.mxu0
      %1711 = vmatprep.mubr.bf16.mxu0 0
      %1712 = vmatmul.mubr.bf16.gmra.mxu0 %v1302
      %v1713 = vpop.f32.mrf.mxu0
      %v1714 = vadd.f32 0.0, %v1713
      %v1715 = vpop.f32.mrf.mxu0
      %v1716 = vpop.f32.mrf.mxu0
      %v1717 = vadd.f32 0.0, %v1716
      %v1718 = vpop.f32.mrf.mxu0
      %1719 = vmatprep.mubr.bf16.mxu0 0
      %1720 = vmatmul.mubr.bf16.gmra.mxu0 %v1305
      %v1721 = vpop.f32.mrf.mxu0
      %v1722 = vadd.f32 0.0, %v1721
      %v1723 = vpop.f32.mrf.mxu0
      %v1724 = vpop.f32.mrf.mxu0
      %v1725 = vadd.f32 0.0, %v1724
      %v1726 = vpop.f32.mrf.mxu0
      %1727 = vmatprep.mubr.bf16.mxu0 0
      %1728 = vmatmul.mubr.bf16.gmra.mxu0 %v1308
      %v1729 = vpop.f32.mrf.mxu0
      %v1730 = vadd.f32 0.0, %v1729
      %v1731 = vpop.f32.mrf.mxu0
      %v1732 = vpop.f32.mrf.mxu0
      %v1733 = vadd.f32 0.0, %v1732
      %v1734 = vpop.f32.mrf.mxu0
      %1735 = vmatprep.mubr.bf16.mxu0 0
      %1736 = vmatmul.mubr.bf16.gmra.mxu0 %v1311
      %v1737 = vpop.f32.mrf.mxu0
      %v1738 = vadd.f32 0.0, %v1737
      %v1739 = vpop.f32.mrf.mxu0
      %v1740 = vpop.f32.mrf.mxu0
      %v1741 = vadd.f32 0.0, %v1740
      %v1742 = vpop.f32.mrf.mxu0
      %1743 = vmatprep.mubr.bf16.mxu0 0
      %1744 = vmatmul.mubr.bf16.gmra.mxu0 %v1314
      %v1745 = vpop.f32.mrf.mxu0
      %v1746 = vadd.f32 0.0, %v1745
      %v1747 = vpop.f32.mrf.mxu0
      %v1748 = vpop.f32.mrf.mxu0
      %v1749 = vadd.f32 0.0, %v1748
      %v1750 = vpop.f32.mrf.mxu0
      %1751 = vmatprep.mubr.bf16.mxu0 0
      %1752 = vmatmul.mubr.bf16.gmra.mxu0 %v1317
      %v1753 = vpop.f32.mrf.mxu0
      %v1754 = vadd.f32 0.0, %v1753
      %v1755 = vpop.f32.mrf.mxu0
      %v1756 = vpop.f32.mrf.mxu0
      %v1757 = vadd.f32 0.0, %v1756
      %v1758 = vpop.f32.mrf.mxu0
      %1759 = vmatprep.mubr.bf16.mxu0 0
      %1760 = vmatmul.mubr.bf16.gmra.mxu0 %v1320
      %v1761 = vpop.f32.mrf.mxu0
      %v1762 = vadd.f32 0.0, %v1761
      %v1763 = vpop.f32.mrf.mxu0
      %v1764 = vpop.f32.mrf.mxu0
      %v1765 = vadd.f32 0.0, %v1764
      %v1766 = vpop.f32.mrf.mxu0
      %1767 = vmatprep.mubr.bf16.mxu0 0
      %1768 = vmatmul.mubr.bf16.gmra.mxu0 %v1323
      %v1769 = vpop.f32.mrf.mxu0
      %v1770 = vadd.f32 0.0, %v1769
      %v1771 = vpop.f32.mrf.mxu0
      %v1772 = vpop.f32.mrf.mxu0
      %v1773 = vadd.f32 0.0, %v1772
      %v1774 = vpop.f32.mrf.mxu0
      %1775 = vmatprep.mubr.bf16.mxu0 0
      %1776 = vmatmul.mubr.bf16.gmra.mxu0 %v1326
      %v1777 = vpop.f32.mrf.mxu0
      %v1778 = vadd.f32 0.0, %v1777
      %v1779 = vpop.f32.mrf.mxu0
      %v1780 = vpop.f32.mrf.mxu0
      %v1781 = vadd.f32 0.0, %v1780
      %v1782 = vpop.f32.mrf.mxu0
      %1783 = vmatprep.mubr.bf16.mxu0 0
      %1784 = vmatmul.mubr.bf16.gmra.mxu0 %v1329
      %v1785 = vpop.f32.mrf.mxu0
      %v1786 = vadd.f32 0.0, %v1785
      %v1787 = vpop.f32.mrf.mxu0
      %v1788 = vpop.f32.mrf.mxu0
      %v1789 = vadd.f32 0.0, %v1788
      %v1790 = vpop.f32.mrf.mxu0
      %1791 = vmatprep.mubr.bf16.mxu0 0
      %1792 = vmatmul.mubr.bf16.gmra.mxu0 %v1332
      %v1793 = vpop.f32.mrf.mxu0
      %v1794 = vadd.f32 0.0, %v1793
      %v1795 = vpop.f32.mrf.mxu0
      %v1796 = vpop.f32.mrf.mxu0
      %v1797 = vadd.f32 0.0, %v1796
      %v1798 = vpop.f32.mrf.mxu0
      %1799 = vmatprep.mubr.bf16.mxu0 0
      %1800 = vmatmul.mubr.bf16.gmra.mxu0 %v1335
      %v1801 = vpop.f32.mrf.mxu0
      %v1802 = vadd.f32 0.0, %v1801
      %v1803 = vpop.f32.mrf.mxu0
      %v1804 = vpop.f32.mrf.mxu0
      %v1805 = vadd.f32 0.0, %v1804
      %v1806 = vpop.f32.mrf.mxu0
      %1807 = vmatprep.mubr.bf16.mxu0 0
      %1808 = vmatmul.mubr.bf16.gmra.mxu0 %v1338
      %v1809 = vpop.f32.mrf.mxu0
      %v1810 = vadd.f32 0.0, %v1809
      %v1811 = vpop.f32.mrf.mxu0
      %v1812 = vpop.f32.mrf.mxu0
      %v1813 = vadd.f32 0.0, %v1812
      %v1814 = vpop.f32.mrf.mxu0
      %1815 = vmatprep.mubr.bf16.mxu0 0
      %1816 = vmatmul.mubr.bf16.gmra.mxu0 %v1341
      %v1817 = vpop.f32.mrf.mxu0
      %v1818 = vadd.f32 0.0, %v1817
      %v1819 = vpop.f32.mrf.mxu0
      %v1820 = vpop.f32.mrf.mxu0
      %v1821 = vadd.f32 0.0, %v1820
      %v1822 = vpop.f32.mrf.mxu0
      %1823 = vmatprep.mubr.bf16.mxu0 0
      %1824 = vmatmul.mubr.bf16.gmra.mxu0 %v1344
      %v1825 = vpop.f32.mrf.mxu0
      %v1826 = vadd.f32 0.0, %v1825
      %v1827 = vpop.f32.mrf.mxu0
      %v1828 = vpop.f32.mrf.mxu0
      %v1829 = vadd.f32 0.0, %v1828
      %v1830 = vpop.f32.mrf.mxu0
      %1831 = vmatprep.mubr.bf16.mxu0 0
      %1832 = vmatmul.mubr.bf16.gmra.mxu0 %v1347
      %v1833 = vpop.f32.mrf.mxu0
      %v1834 = vadd.f32 0.0, %v1833
      %v1835 = vpop.f32.mrf.mxu0
      %v1836 = vpop.f32.mrf.mxu0
      %v1837 = vadd.f32 0.0, %v1836
      %v1838 = vpop.f32.mrf.mxu0
      %1839 = vmatprep.mubr.bf16.mxu0 0
      %1840 = vmatmul.mubr.bf16.gmra.mxu0 %v1350
      %v1841 = vpop.f32.mrf.mxu0
      %v1842 = vadd.f32 0.0, %v1841
      %v1843 = vpop.f32.mrf.mxu0
      %v1844 = vpop.f32.mrf.mxu0
      %v1845 = vadd.f32 0.0, %v1844
      %v1846 = vpop.f32.mrf.mxu0
      %1847 = vmatprep.mubr.bf16.mxu0 0
      %1848 = vmatmul.mubr.bf16.gmra.mxu0 %v1353
      %v1849 = vpop.f32.mrf.mxu0
      %v1850 = vadd.f32 0.0, %v1849
      %v1851 = vpop.f32.mrf.mxu0
      %v1852 = vpop.f32.mrf.mxu0
      %v1853 = vadd.f32 0.0, %v1852
      %v1854 = vpop.f32.mrf.mxu0
      %1855 = vmatprep.mubr.bf16.mxu0 0
      %1856 = vmatmul.mubr.bf16.gmra.mxu0 %v1356
      %v1857 = vpop.f32.mrf.mxu0
      %v1858 = vadd.f32 0.0, %v1857
      %v1859 = vpop.f32.mrf.mxu0
      %v1860 = vpop.f32.mrf.mxu0
      %v1861 = vadd.f32 0.0, %v1860
      %v1862 = vpop.f32.mrf.mxu0
      %1863 = vmatprep.mubr.bf16.mxu0 0
      %1864 = vmatmul.mubr.bf16.gmra.mxu0 %v1359
      %v1865 = vpop.f32.mrf.mxu0
      %v1866 = vadd.f32 0.0, %v1865
      %v1867 = vpop.f32.mrf.mxu0
      %v1868 = vpop.f32.mrf.mxu0
      %v1869 = vadd.f32 0.0, %v1868
      %v1870 = vpop.f32.mrf.mxu0
      %1871 = vmatprep.mubr.bf16.mxu0 0
      %1872 = vmatmul.mubr.bf16.gmra.mxu0 %v1362
      %v1873 = vpop.f32.mrf.mxu0
      %v1874 = vadd.f32 0.0, %v1873
      %v1875 = vpop.f32.mrf.mxu0
      %v1876 = vpop.f32.mrf.mxu0
      %v1877 = vadd.f32 0.0, %v1876
      %v1878 = vpop.f32.mrf.mxu0
      %1879 = vmatprep.mubr.bf16.mxu0 0
      %1880 = vmatmul.mubr.bf16.gmra.mxu0 %v1365
      %v1881 = vpop.f32.mrf.mxu0
      %v1882 = vadd.f32 0.0, %v1881
      %v1883 = vpop.f32.mrf.mxu0
      %v1884 = vpop.f32.mrf.mxu0
      %v1885 = vadd.f32 0.0, %v1884
      %v1886 = vpop.f32.mrf.mxu0
      %1887 = vmatprep.mubr.bf16.mxu0 0
      %1888 = vmatmul.mubr.bf16.gmra.mxu0 %v1368
      %v1889 = vpop.f32.mrf.mxu0
      %v1890 = vadd.f32 0.0, %v1889
      %v1891 = vpop.f32.mrf.mxu0
      %v1892 = vpop.f32.mrf.mxu0
      %v1893 = vadd.f32 0.0, %v1892
      %v1894 = vpop.f32.mrf.mxu0
      %1895 = vmatprep.mubr.bf16.mxu0 0
      %1896 = vmatmul.mubr.bf16.gmra.mxu0 %v1371
      %v1897 = vpop.f32.mrf.mxu0
      %v1898 = vadd.f32 0.0, %v1897
      %v1899 = vpop.f32.mrf.mxu0
      %v1900 = vpop.f32.mrf.mxu0
      %v1901 = vadd.f32 0.0, %v1900
      %v1902 = vpop.f32.mrf.mxu0
      %1903 = vmatprep.mubr.bf16.mxu0 0
      %1904 = vmatmul.mubr.bf16.gmra.mxu0 %v1374
      %v1905 = vpop.f32.mrf.mxu0
      %v1906 = vadd.f32 0.0, %v1905
      %v1907 = vpop.f32.mrf.mxu0
      %v1908 = vpop.f32.mrf.mxu0
      %v1909 = vadd.f32 0.0, %v1908
      %v1910 = vpop.f32.mrf.mxu0
      %1911 = vmatprep.mubr.bf16.mxu0 0
      %1912 = vmatmul.mubr.bf16.gmra.mxu0 %v1377
      %v1913 = vpop.f32.mrf.mxu0
      %v1914 = vadd.f32 0.0, %v1913
      %v1915 = vpop.f32.mrf.mxu0
      %v1916 = vpop.f32.mrf.mxu0
      %v1917 = vadd.f32 0.0, %v1916
      %v1918 = vpop.f32.mrf.mxu0
      %1919 = vmatprep.mubr.bf16.mxu0 0
      %1920 = vmatmul.mubr.bf16.gmra.mxu0 %v1380
      %v1921 = vpop.f32.mrf.mxu0
      %v1922 = vadd.f32 0.0, %v1921
      %v1923 = vpop.f32.mrf.mxu0
      %v1924 = vpop.f32.mrf.mxu0
      %v1925 = vadd.f32 0.0, %v1924
      %v1926 = vpop.f32.mrf.mxu0
      %1927 = vmatprep.mubr.bf16.mxu0 0
      %1928 = vmatmul.mubr.bf16.gmra.mxu0 %v1383
      %v1929 = vpop.f32.mrf.mxu0
      %v1930 = vadd.f32 0.0, %v1929
      %v1931 = vpop.f32.mrf.mxu0
      %v1932 = vpop.f32.mrf.mxu0
      %v1933 = vadd.f32 0.0, %v1932
      %v1934 = vpop.f32.mrf.mxu0
      %1935 = vmatprep.mubr.bf16.mxu0 0
      %1936 = vmatmul.mubr.bf16.gmra.mxu0 %v1386
      %v1937 = vpop.f32.mrf.mxu0
      %v1938 = vadd.f32 0.0, %v1937
      %v1939 = vpop.f32.mrf.mxu0
      %v1940 = vpop.f32.mrf.mxu0
      %v1941 = vadd.f32 0.0, %v1940
      %v1942 = vpop.f32.mrf.mxu0
      %1943 = vmatprep.mubr.bf16.mxu0 0
      %1944 = vmatmul.mubr.bf16.gmra.mxu0 %v1389
      %v1945 = vpop.f32.mrf.mxu0
      %v1946 = vadd.f32 0.0, %v1945
      %v1947 = vpop.f32.mrf.mxu0
      %v1948 = vpop.f32.mrf.mxu0
      %v1949 = vadd.f32 0.0, %v1948
      %v1950 = vpop.f32.mrf.mxu0
      %1951 = vdwg.mxu0
      %v1956 = vunpack.c.l.b16 %v304
      %v1957 = vunpack.c.l.b16 %v305
      %v1958 = vunpack.c.l.b16 %v306
      %v1959 = vunpack.c.l.b16 %v307
      %v1960 = vpack.c.b16 %v1957, %v1956
      %v1961 = vpack.c.b16 %v1959, %v1958
      %v1964 = vsel %vm1192, %v580, 0
      %v1966 = vsel %vm1192, %v581, 0
      %v1968 = vsel %vm1192, %v582, 0
      %v1970 = vsel %vm1192, %v583, 0
      %v1972 = vsel %vm1192, %v584, 0
      %v1974 = vsel %vm1192, %v585, 0
      %v1976 = vsel %vm1192, %v586, 0
      %v1978 = vsel %vm1192, %v587, 0
      %v1980 = vsel %vm1192, %v588, 0
      %v1982 = vsel %vm1192, %v589, 0
      %v1984 = vsel %vm1192, %v590, 0
      %v1986 = vsel %vm1192, %v591, 0
      %v1988 = vsel %vm1192, %v592, 0
      %v1990 = vsel %vm1192, %v593, 0
      %v1992 = vsel %vm1192, %v594, 0
      %v1994 = vsel %vm1192, %v595, 0
      %v1996 = vsel %vm1192, %v596, 0
      %v1998 = vsel %vm1192, %v597, 0
      %v2000 = vsel %vm1192, %v598, 0
      %v2002 = vsel %vm1192, %v599, 0
      %v2004 = vsel %vm1192, %v600, 0
      %v2006 = vsel %vm1192, %v601, 0
      %v2008 = vsel %vm1192, %v602, 0
      %v2010 = vsel %vm1192, %v603, 0
      %v2012 = vsel %vm1192, %v604, 0
      %v2014 = vsel %vm1192, %v605, 0
      %v2016 = vsel %vm1192, %v606, 0
      %v2018 = vsel %vm1192, %v607, 0
      %v2020 = vsel %vm1192, %v608, 0
      %v2022 = vsel %vm1192, %v609, 0
      %v2024 = vsel %vm1192, %v610, 0
      %v2026 = vsel %vm1192, %v611, 0
      %v2028 = vsel %vm1192, %v612, 0
      %v2030 = vsel %vm1192, %v613, 0
      %v2032 = vsel %vm1192, %v614, 0
      %v2034 = vsel %vm1192, %v615, 0
      %v2036 = vsel %vm1192, %v616, 0
      %v2038 = vsel %vm1192, %v617, 0
      %v2040 = vsel %vm1192, %v618, 0
      %v2042 = vsel %vm1192, %v619, 0
      %v2044 = vsel %vm1192, %v620, 0
      %v2046 = vsel %vm1192, %v621, 0
      %v2048 = vsel %vm1192, %v622, 0
      %v2050 = vsel %vm1192, %v623, 0
      %v2052 = vsel %vm1192, %v624, 0
      %v2054 = vsel %vm1192, %v625, 0
      %v2056 = vsel %vm1192, %v626, 0
      %v2058 = vsel %vm1192, %v627, 0
      %v2060 = vsel %vm1192, %v628, 0
      %v2062 = vsel %vm1192, %v629, 0
      %v2064 = vsel %vm1192, %v630, 0
      %v2066 = vsel %vm1192, %v631, 0
      %v2068 = vsel %vm1192, %v632, 0
      %v2070 = vsel %vm1192, %v633, 0
      %v2072 = vsel %vm1192, %v634, 0
      %v2074 = vsel %vm1192, %v635, 0
      %v2076 = vsel %vm1192, %v636, 0
      %v2078 = vsel %vm1192, %v637, 0
      %v2080 = vsel %vm1192, %v638, 0
      %v2082 = vsel %vm1192, %v639, 0
      %v2084 = vsel %vm1192, %v640, 0
      %v2086 = vsel %vm1192, %v641, 0
      %v2088 = vsel %vm1192, %v642, 0
      %v2090 = vsel %vm1192, %v643, 0
      %v2092 = vsel %vm1192, %v644, 0
      %v2094 = vsel %vm1192, %v645, 0
      %2096 = vmatprep.subr.bf16.mxu0 0
      %2097 = vmatpush1.bf16.msra.mxu0 0
      %2098 = vmatprep.subr.bf16.mxu0 0
      %2099 = vmatpush1.bf16.msra.mxu0 0
      %2100 = vmatprep.subr.bf16.mxu0 0
      %2101 = vmatpush1.bf16.msra.mxu0 0
      %2102 = vmatprep.subr.bf16.mxu0 0
      %2103 = vmatpush1.bf16.msra.mxu0 0
      %2104 = vmatprep.subr.bf16.mxu0 0
      %2105 = vmatpush1.bf16.msra.mxu0 0
      %2106 = vmatprep.subr.bf16.mxu0 0
      %2107 = vmatpush1.bf16.msra.mxu0 0
      %2108 = vmatprep.subr.bf16.mxu0 0
      %2109 = vmatpush1.bf16.msra.mxu0 %v1961
      %2110 = vmatprep.subr.bf16.mxu0 0
      %2111 = vmatpush1.bf16.msra.mxu0 %v1960
      %2112 = vmatprep.subr.bf16.mxu0 0
      %2113 = vmatpush2.bf16.msra.mxu0 0
      %2114 = vmatprep.subr.bf16.mxu0 0
      %2115 = vmatpush2.bf16.msra.mxu0 0
      %2116 = vmatprep.subr.bf16.mxu0 0
      %2117 = vmatpush2.bf16.msra.mxu0 0
      %2118 = vmatprep.subr.bf16.mxu0 0
      %2119 = vmatpush2.bf16.msra.mxu0 0
      %2120 = vmatprep.subr.bf16.mxu0 0
      %2121 = vmatpush2.bf16.msra.mxu0 0
      %2122 = vmatprep.subr.bf16.mxu0 0
      %2123 = vmatpush2.bf16.msra.mxu0 0
      %2124 = vmatprep.subr.bf16.mxu0 0
      %2125 = vmatpush2.bf16.msra.mxu0 0
      %2126 = vmatprep.subr.bf16.mxu0 0
      %2127 = vmatpush2.bf16.msra.mxu0 0
      %2128 = vmatprep.mubr.bf16.mxu0 0
      %2129 = vmatmul.mubr.bf16.gmra.mxu0 %v1964
      %v2130 = vpop.f32.mrf.mxu0
      %v2131 = vadd.f32 %v1426, %v2130
      %v2132 = vpop.f32.mrf.mxu0
      %v2133 = vpop.f32.mrf.mxu0
      %v2134 = vadd.f32 %v1429, %v2133
      %v2135 = vpop.f32.mrf.mxu0
      %2136 = vmatprep.mubr.bf16.mxu0 0
      %2137 = vmatmul.mubr.bf16.gmra.mxu0 %v1966
      %v2138 = vpop.f32.mrf.mxu0
      %v2139 = vadd.f32 %v1434, %v2138
      %v2140 = vpop.f32.mrf.mxu0
      %v2141 = vpop.f32.mrf.mxu0
      %v2142 = vadd.f32 %v1437, %v2141
      %v2143 = vpop.f32.mrf.mxu0
      %2144 = vmatprep.mubr.bf16.mxu0 0
      %2145 = vmatmul.mubr.bf16.gmra.mxu0 %v1968
      %v2146 = vpop.f32.mrf.mxu0
      %v2147 = vadd.f32 %v1442, %v2146
      %v2148 = vpop.f32.mrf.mxu0
      %v2149 = vpop.f32.mrf.mxu0
      %v2150 = vadd.f32 %v1445, %v2149
      %v2151 = vpop.f32.mrf.mxu0
      %2152 = vmatprep.mubr.bf16.mxu0 0
      %2153 = vmatmul.mubr.bf16.gmra.mxu0 %v1970
      %v2154 = vpop.f32.mrf.mxu0
      %v2155 = vadd.f32 %v1450, %v2154
      %v2156 = vpop.f32.mrf.mxu0
      %v2157 = vpop.f32.mrf.mxu0
      %v2158 = vadd.f32 %v1453, %v2157
      %v2159 = vpop.f32.mrf.mxu0
      %2160 = vmatprep.mubr.bf16.mxu0 0
      %2161 = vmatmul.mubr.bf16.gmra.mxu0 %v1972
      %v2162 = vpop.f32.mrf.mxu0
      %v2163 = vadd.f32 %v1458, %v2162
      %v2164 = vpop.f32.mrf.mxu0
      %v2165 = vpop.f32.mrf.mxu0
      %v2166 = vadd.f32 %v1461, %v2165
      %v2167 = vpop.f32.mrf.mxu0
      %2168 = vmatprep.mubr.bf16.mxu0 0
      %2169 = vmatmul.mubr.bf16.gmra.mxu0 %v1974
      %v2170 = vpop.f32.mrf.mxu0
      %v2171 = vadd.f32 %v1466, %v2170
      %v2172 = vpop.f32.mrf.mxu0
      %v2173 = vpop.f32.mrf.mxu0
      %v2174 = vadd.f32 %v1469, %v2173
      %v2175 = vpop.f32.mrf.mxu0
      %2176 = vmatprep.mubr.bf16.mxu0 0
      %2177 = vmatmul.mubr.bf16.gmra.mxu0 %v1976
      %v2178 = vpop.f32.mrf.mxu0
      %v2179 = vadd.f32 %v1474, %v2178
      %v2180 = vpop.f32.mrf.mxu0
      %v2181 = vpop.f32.mrf.mxu0
      %v2182 = vadd.f32 %v1477, %v2181
      %v2183 = vpop.f32.mrf.mxu0
      %2184 = vmatprep.mubr.bf16.mxu0 0
      %2185 = vmatmul.mubr.bf16.gmra.mxu0 %v1978
      %v2186 = vpop.f32.mrf.mxu0
      %v2187 = vadd.f32 %v1482, %v2186
      %v2188 = vpop.f32.mrf.mxu0
      %v2189 = vpop.f32.mrf.mxu0
      %v2190 = vadd.f32 %v1485, %v2189
      %v2191 = vpop.f32.mrf.mxu0
      %2192 = vmatprep.mubr.bf16.mxu0 0
      %2193 = vmatmul.mubr.bf16.gmra.mxu0 %v1980
      %v2194 = vpop.f32.mrf.mxu0
      %v2195 = vadd.f32 %v1490, %v2194
      %v2196 = vpop.f32.mrf.mxu0
      %v2197 = vpop.f32.mrf.mxu0
      %v2198 = vadd.f32 %v1493, %v2197
      %v2199 = vpop.f32.mrf.mxu0
      %2200 = vmatprep.mubr.bf16.mxu0 0
      %2201 = vmatmul.mubr.bf16.gmra.mxu0 %v1982
      %v2202 = vpop.f32.mrf.mxu0
      %v2203 = vadd.f32 %v1498, %v2202
      %v2204 = vpop.f32.mrf.mxu0
      %v2205 = vpop.f32.mrf.mxu0
      %v2206 = vadd.f32 %v1501, %v2205
      %v2207 = vpop.f32.mrf.mxu0
      %2208 = vmatprep.mubr.bf16.mxu0 0
      %2209 = vmatmul.mubr.bf16.gmra.mxu0 %v1984
      %v2210 = vpop.f32.mrf.mxu0
      %v2211 = vadd.f32 %v1506, %v2210
      %v2212 = vpop.f32.mrf.mxu0
      %v2213 = vpop.f32.mrf.mxu0
      %v2214 = vadd.f32 %v1509, %v2213
      %v2215 = vpop.f32.mrf.mxu0
      %2216 = vmatprep.mubr.bf16.mxu0 0
      %2217 = vmatmul.mubr.bf16.gmra.mxu0 %v1986
      %v2218 = vpop.f32.mrf.mxu0
      %v2219 = vadd.f32 %v1514, %v2218
      %v2220 = vpop.f32.mrf.mxu0
      %v2221 = vpop.f32.mrf.mxu0
      %v2222 = vadd.f32 %v1517, %v2221
      %v2223 = vpop.f32.mrf.mxu0
      %2224 = vmatprep.mubr.bf16.mxu0 0
      %2225 = vmatmul.mubr.bf16.gmra.mxu0 %v1988
      %v2226 = vpop.f32.mrf.mxu0
      %v2227 = vadd.f32 %v1522, %v2226
      %v2228 = vpop.f32.mrf.mxu0
      %v2229 = vpop.f32.mrf.mxu0
      %v2230 = vadd.f32 %v1525, %v2229
      %v2231 = vpop.f32.mrf.mxu0
      %2232 = vmatprep.mubr.bf16.mxu0 0
      %2233 = vmatmul.mubr.bf16.gmra.mxu0 %v1990
      %v2234 = vpop.f32.mrf.mxu0
      %v2235 = vadd.f32 %v1530, %v2234
      %v2236 = vpop.f32.mrf.mxu0
      %v2237 = vpop.f32.mrf.mxu0
      %v2238 = vadd.f32 %v1533, %v2237
      %v2239 = vpop.f32.mrf.mxu0
      %2240 = vmatprep.mubr.bf16.mxu0 0
      %2241 = vmatmul.mubr.bf16.gmra.mxu0 %v1992
      %v2242 = vpop.f32.mrf.mxu0
      %v2243 = vadd.f32 %v1538, %v2242
      %v2244 = vpop.f32.mrf.mxu0
      %v2245 = vpop.f32.mrf.mxu0
      %v2246 = vadd.f32 %v1541, %v2245
      %v2247 = vpop.f32.mrf.mxu0
      %2248 = vmatprep.mubr.bf16.mxu0 0
      %2249 = vmatmul.mubr.bf16.gmra.mxu0 %v1994
      %v2250 = vpop.f32.mrf.mxu0
      %v2251 = vadd.f32 %v1546, %v2250
      %v2252 = vpop.f32.mrf.mxu0
      %v2253 = vpop.f32.mrf.mxu0
      %v2254 = vadd.f32 %v1549, %v2253
      %v2255 = vpop.f32.mrf.mxu0
      %2256 = vmatprep.mubr.bf16.mxu0 0
      %2257 = vmatmul.mubr.bf16.gmra.mxu0 %v1996
      %v2258 = vpop.f32.mrf.mxu0
      %v2259 = vadd.f32 %v1554, %v2258
      %v2260 = vpop.f32.mrf.mxu0
      %v2261 = vpop.f32.mrf.mxu0
      %v2262 = vadd.f32 %v1557, %v2261
      %v2263 = vpop.f32.mrf.mxu0
      %2264 = vmatprep.mubr.bf16.mxu0 0
      %2265 = vmatmul.mubr.bf16.gmra.mxu0 %v1998
      %v2266 = vpop.f32.mrf.mxu0
      %v2267 = vadd.f32 %v1562, %v2266
      %v2268 = vpop.f32.mrf.mxu0
      %v2269 = vpop.f32.mrf.mxu0
      %v2270 = vadd.f32 %v1565, %v2269
      %v2271 = vpop.f32.mrf.mxu0
      %2272 = vmatprep.mubr.bf16.mxu0 0
      %2273 = vmatmul.mubr.bf16.gmra.mxu0 %v2000
      %v2274 = vpop.f32.mrf.mxu0
      %v2275 = vadd.f32 %v1570, %v2274
      %v2276 = vpop.f32.mrf.mxu0
      %v2277 = vpop.f32.mrf.mxu0
      %v2278 = vadd.f32 %v1573, %v2277
      %v2279 = vpop.f32.mrf.mxu0
      %2280 = vmatprep.mubr.bf16.mxu0 0
      %2281 = vmatmul.mubr.bf16.gmra.mxu0 %v2002
      %v2282 = vpop.f32.mrf.mxu0
      %v2283 = vadd.f32 %v1578, %v2282
      %v2284 = vpop.f32.mrf.mxu0
      %v2285 = vpop.f32.mrf.mxu0
      %v2286 = vadd.f32 %v1581, %v2285
      %v2287 = vpop.f32.mrf.mxu0
      %2288 = vmatprep.mubr.bf16.mxu0 0
      %2289 = vmatmul.mubr.bf16.gmra.mxu0 %v2004
      %v2290 = vpop.f32.mrf.mxu0
      %v2291 = vadd.f32 %v1586, %v2290
      %v2292 = vpop.f32.mrf.mxu0
      %v2293 = vpop.f32.mrf.mxu0
      %v2294 = vadd.f32 %v1589, %v2293
      %v2295 = vpop.f32.mrf.mxu0
      %2296 = vmatprep.mubr.bf16.mxu0 0
      %2297 = vmatmul.mubr.bf16.gmra.mxu0 %v2006
      %v2298 = vpop.f32.mrf.mxu0
      %v2299 = vadd.f32 %v1594, %v2298
      %v2300 = vpop.f32.mrf.mxu0
      %v2301 = vpop.f32.mrf.mxu0
      %v2302 = vadd.f32 %v1597, %v2301
      %v2303 = vpop.f32.mrf.mxu0
      %2304 = vmatprep.mubr.bf16.mxu0 0
      %2305 = vmatmul.mubr.bf16.gmra.mxu0 %v2008
      %v2306 = vpop.f32.mrf.mxu0
      %v2307 = vadd.f32 %v1602, %v2306
      %v2308 = vpop.f32.mrf.mxu0
      %v2309 = vpop.f32.mrf.mxu0
      %v2310 = vadd.f32 %v1605, %v2309
      %v2311 = vpop.f32.mrf.mxu0
      %2312 = vmatprep.mubr.bf16.mxu0 0
      %2313 = vmatmul.mubr.bf16.gmra.mxu0 %v2010
      %v2314 = vpop.f32.mrf.mxu0
      %v2315 = vadd.f32 %v1610, %v2314
      %v2316 = vpop.f32.mrf.mxu0
      %v2317 = vpop.f32.mrf.mxu0
      %v2318 = vadd.f32 %v1613, %v2317
      %v2319 = vpop.f32.mrf.mxu0
      %2320 = vmatprep.mubr.bf16.mxu0 0
      %2321 = vmatmul.mubr.bf16.gmra.mxu0 %v2012
      %v2322 = vpop.f32.mrf.mxu0
      %v2323 = vadd.f32 %v1618, %v2322
      %v2324 = vpop.f32.mrf.mxu0
      %v2325 = vpop.f32.mrf.mxu0
      %v2326 = vadd.f32 %v1621, %v2325
      %v2327 = vpop.f32.mrf.mxu0
      %2328 = vmatprep.mubr.bf16.mxu0 0
      %2329 = vmatmul.mubr.bf16.gmra.mxu0 %v2014
      %v2330 = vpop.f32.mrf.mxu0
      %v2331 = vadd.f32 %v1626, %v2330
      %v2332 = vpop.f32.mrf.mxu0
      %v2333 = vpop.f32.mrf.mxu0
      %v2334 = vadd.f32 %v1629, %v2333
      %v2335 = vpop.f32.mrf.mxu0
      %2336 = vmatprep.mubr.bf16.mxu0 0
      %2337 = vmatmul.mubr.bf16.gmra.mxu0 %v2016
      %v2338 = vpop.f32.mrf.mxu0
      %v2339 = vadd.f32 %v1634, %v2338
      %v2340 = vpop.f32.mrf.mxu0
      %v2341 = vpop.f32.mrf.mxu0
      %v2342 = vadd.f32 %v1637, %v2341
      %v2343 = vpop.f32.mrf.mxu0
      %2344 = vmatprep.mubr.bf16.mxu0 0
      %2345 = vmatmul.mubr.bf16.gmra.mxu0 %v2018
      %v2346 = vpop.f32.mrf.mxu0
      %v2347 = vadd.f32 %v1642, %v2346
      %v2348 = vpop.f32.mrf.mxu0
      %v2349 = vpop.f32.mrf.mxu0
      %v2350 = vadd.f32 %v1645, %v2349
      %v2351 = vpop.f32.mrf.mxu0
      %2352 = vmatprep.mubr.bf16.mxu0 0
      %2353 = vmatmul.mubr.bf16.gmra.mxu0 %v2020
      %v2354 = vpop.f32.mrf.mxu0
      %v2355 = vadd.f32 %v1650, %v2354
      %v2356 = vpop.f32.mrf.mxu0
      %v2357 = vpop.f32.mrf.mxu0
      %v2358 = vadd.f32 %v1653, %v2357
      %v2359 = vpop.f32.mrf.mxu0
      %2360 = vmatprep.mubr.bf16.mxu0 0
      %2361 = vmatmul.mubr.bf16.gmra.mxu0 %v2022
      %v2362 = vpop.f32.mrf.mxu0
      %v2363 = vadd.f32 %v1658, %v2362
      %v2364 = vpop.f32.mrf.mxu0
      %v2365 = vpop.f32.mrf.mxu0
      %v2366 = vadd.f32 %v1661, %v2365
      %v2367 = vpop.f32.mrf.mxu0
      %2368 = vmatprep.mubr.bf16.mxu0 0
      %2369 = vmatmul.mubr.bf16.gmra.mxu0 %v2024
      %v2370 = vpop.f32.mrf.mxu0
      %v2371 = vadd.f32 %v1666, %v2370
      %v2372 = vpop.f32.mrf.mxu0
      %v2373 = vpop.f32.mrf.mxu0
      %v2374 = vadd.f32 %v1669, %v2373
      %v2375 = vpop.f32.mrf.mxu0
      %2376 = vmatprep.mubr.bf16.mxu0 0
      %2377 = vmatmul.mubr.bf16.gmra.mxu0 %v2026
      %v2378 = vpop.f32.mrf.mxu0
      %v2379 = vadd.f32 %v1674, %v2378
      %v2380 = vpop.f32.mrf.mxu0
      %v2381 = vpop.f32.mrf.mxu0
      %v2382 = vadd.f32 %v1677, %v2381
      %v2383 = vpop.f32.mrf.mxu0
      %2384 = vmatprep.mubr.bf16.mxu0 0
      %2385 = vmatmul.mubr.bf16.gmra.mxu0 %v2028
      %v2386 = vpop.f32.mrf.mxu0
      %v2387 = vadd.f32 %v1682, %v2386
      %v2388 = vpop.f32.mrf.mxu0
      %v2389 = vpop.f32.mrf.mxu0
      %v2390 = vadd.f32 %v1685, %v2389
      %v2391 = vpop.f32.mrf.mxu0
      %2392 = vmatprep.mubr.bf16.mxu0 0
      %2393 = vmatmul.mubr.bf16.gmra.mxu0 %v2030
      %v2394 = vpop.f32.mrf.mxu0
      %v2395 = vadd.f32 %v1690, %v2394
      %v2396 = vpop.f32.mrf.mxu0
      %v2397 = vpop.f32.mrf.mxu0
      %v2398 = vadd.f32 %v1693, %v2397
      %v2399 = vpop.f32.mrf.mxu0
      %2400 = vmatprep.mubr.bf16.mxu0 0
      %2401 = vmatmul.mubr.bf16.gmra.mxu0 %v2032
      %v2402 = vpop.f32.mrf.mxu0
      %v2403 = vadd.f32 %v1698, %v2402
      %v2404 = vpop.f32.mrf.mxu0
      %v2405 = vpop.f32.mrf.mxu0
      %v2406 = vadd.f32 %v1701, %v2405
      %v2407 = vpop.f32.mrf.mxu0
      %2408 = vmatprep.mubr.bf16.mxu0 0
      %2409 = vmatmul.mubr.bf16.gmra.mxu0 %v2034
      %v2410 = vpop.f32.mrf.mxu0
      %v2411 = vadd.f32 %v1706, %v2410
      %v2412 = vpop.f32.mrf.mxu0
      %v2413 = vpop.f32.mrf.mxu0
      %v2414 = vadd.f32 %v1709, %v2413
      %v2415 = vpop.f32.mrf.mxu0
      %2416 = vmatprep.mubr.bf16.mxu0 0
      %2417 = vmatmul.mubr.bf16.gmra.mxu0 %v2036
      %v2418 = vpop.f32.mrf.mxu0
      %v2419 = vadd.f32 %v1714, %v2418
      %v2420 = vpop.f32.mrf.mxu0
      %v2421 = vpop.f32.mrf.mxu0
      %v2422 = vadd.f32 %v1717, %v2421
      %v2423 = vpop.f32.mrf.mxu0
      %2424 = vmatprep.mubr.bf16.mxu0 0
      %2425 = vmatmul.mubr.bf16.gmra.mxu0 %v2038
      %v2426 = vpop.f32.mrf.mxu0
      %v2427 = vadd.f32 %v1722, %v2426
      %v2428 = vpop.f32.mrf.mxu0
      %v2429 = vpop.f32.mrf.mxu0
      %v2430 = vadd.f32 %v1725, %v2429
      %v2431 = vpop.f32.mrf.mxu0
      %2432 = vmatprep.mubr.bf16.mxu0 0
      %2433 = vmatmul.mubr.bf16.gmra.mxu0 %v2040
      %v2434 = vpop.f32.mrf.mxu0
      %v2435 = vadd.f32 %v1730, %v2434
      %v2436 = vpop.f32.mrf.mxu0
      %v2437 = vpop.f32.mrf.mxu0
      %v2438 = vadd.f32 %v1733, %v2437
      %v2439 = vpop.f32.mrf.mxu0
      %2440 = vmatprep.mubr.bf16.mxu0 0
      %2441 = vmatmul.mubr.bf16.gmra.mxu0 %v2042
      %v2442 = vpop.f32.mrf.mxu0
      %v2443 = vadd.f32 %v1738, %v2442
      %v2444 = vpop.f32.mrf.mxu0
      %v2445 = vpop.f32.mrf.mxu0
      %v2446 = vadd.f32 %v1741, %v2445
      %v2447 = vpop.f32.mrf.mxu0
      %2448 = vmatprep.mubr.bf16.mxu0 0
      %2449 = vmatmul.mubr.bf16.gmra.mxu0 %v2044
      %v2450 = vpop.f32.mrf.mxu0
      %v2451 = vadd.f32 %v1746, %v2450
      %v2452 = vpop.f32.mrf.mxu0
      %v2453 = vpop.f32.mrf.mxu0
      %v2454 = vadd.f32 %v1749, %v2453
      %v2455 = vpop.f32.mrf.mxu0
      %2456 = vmatprep.mubr.bf16.mxu0 0
      %2457 = vmatmul.mubr.bf16.gmra.mxu0 %v2046
      %v2458 = vpop.f32.mrf.mxu0
      %v2459 = vadd.f32 %v1754, %v2458
      %v2460 = vpop.f32.mrf.mxu0
      %v2461 = vpop.f32.mrf.mxu0
      %v2462 = vadd.f32 %v1757, %v2461
      %v2463 = vpop.f32.mrf.mxu0
      %2464 = vmatprep.mubr.bf16.mxu0 0
      %2465 = vmatmul.mubr.bf16.gmra.mxu0 %v2048
      %v2466 = vpop.f32.mrf.mxu0
      %v2467 = vadd.f32 %v1762, %v2466
      %v2468 = vpop.f32.mrf.mxu0
      %v2469 = vpop.f32.mrf.mxu0
      %v2470 = vadd.f32 %v1765, %v2469
      %v2471 = vpop.f32.mrf.mxu0
      %2472 = vmatprep.mubr.bf16.mxu0 0
      %2473 = vmatmul.mubr.bf16.gmra.mxu0 %v2050
      %v2474 = vpop.f32.mrf.mxu0
      %v2475 = vadd.f32 %v1770, %v2474
      %v2476 = vpop.f32.mrf.mxu0
      %v2477 = vpop.f32.mrf.mxu0
      %v2478 = vadd.f32 %v1773, %v2477
      %v2479 = vpop.f32.mrf.mxu0
      %2480 = vmatprep.mubr.bf16.mxu0 0
      %2481 = vmatmul.mubr.bf16.gmra.mxu0 %v2052
      %v2482 = vpop.f32.mrf.mxu0
      %v2483 = vadd.f32 %v1778, %v2482
      %v2484 = vpop.f32.mrf.mxu0
      %v2485 = vpop.f32.mrf.mxu0
      %v2486 = vadd.f32 %v1781, %v2485
      %v2487 = vpop.f32.mrf.mxu0
      %2488 = vmatprep.mubr.bf16.mxu0 0
      %2489 = vmatmul.mubr.bf16.gmra.mxu0 %v2054
      %v2490 = vpop.f32.mrf.mxu0
      %v2491 = vadd.f32 %v1786, %v2490
      %v2492 = vpop.f32.mrf.mxu0
      %v2493 = vpop.f32.mrf.mxu0
      %v2494 = vadd.f32 %v1789, %v2493
      %v2495 = vpop.f32.mrf.mxu0
      %2496 = vmatprep.mubr.bf16.mxu0 0
      %2497 = vmatmul.mubr.bf16.gmra.mxu0 %v2056
      %v2498 = vpop.f32.mrf.mxu0
      %v2499 = vadd.f32 %v1794, %v2498
      %v2500 = vpop.f32.mrf.mxu0
      %v2501 = vpop.f32.mrf.mxu0
      %v2502 = vadd.f32 %v1797, %v2501
      %v2503 = vpop.f32.mrf.mxu0
      %2504 = vmatprep.mubr.bf16.mxu0 0
      %2505 = vmatmul.mubr.bf16.gmra.mxu0 %v2058
      %v2506 = vpop.f32.mrf.mxu0
      %v2507 = vadd.f32 %v1802, %v2506
      %v2508 = vpop.f32.mrf.mxu0
      %v2509 = vpop.f32.mrf.mxu0
      %v2510 = vadd.f32 %v1805, %v2509
      %v2511 = vpop.f32.mrf.mxu0
      %2512 = vmatprep.mubr.bf16.mxu0 0
      %2513 = vmatmul.mubr.bf16.gmra.mxu0 %v2060
      %v2514 = vpop.f32.mrf.mxu0
      %v2515 = vadd.f32 %v1810, %v2514
      %v2516 = vpop.f32.mrf.mxu0
      %v2517 = vpop.f32.mrf.mxu0
      %v2518 = vadd.f32 %v1813, %v2517
      %v2519 = vpop.f32.mrf.mxu0
      %2520 = vmatprep.mubr.bf16.mxu0 0
      %2521 = vmatmul.mubr.bf16.gmra.mxu0 %v2062
      %v2522 = vpop.f32.mrf.mxu0
      %v2523 = vadd.f32 %v1818, %v2522
      %v2524 = vpop.f32.mrf.mxu0
      %v2525 = vpop.f32.mrf.mxu0
      %v2526 = vadd.f32 %v1821, %v2525
      %v2527 = vpop.f32.mrf.mxu0
      %2528 = vmatprep.mubr.bf16.mxu0 0
      %2529 = vmatmul.mubr.bf16.gmra.mxu0 %v2064
      %v2530 = vpop.f32.mrf.mxu0
      %v2531 = vadd.f32 %v1826, %v2530
      %v2532 = vpop.f32.mrf.mxu0
      %v2533 = vpop.f32.mrf.mxu0
      %v2534 = vadd.f32 %v1829, %v2533
      %v2535 = vpop.f32.mrf.mxu0
      %2536 = vmatprep.mubr.bf16.mxu0 0
      %2537 = vmatmul.mubr.bf16.gmra.mxu0 %v2066
      %v2538 = vpop.f32.mrf.mxu0
      %v2539 = vadd.f32 %v1834, %v2538
      %v2540 = vpop.f32.mrf.mxu0
      %v2541 = vpop.f32.mrf.mxu0
      %v2542 = vadd.f32 %v1837, %v2541
      %v2543 = vpop.f32.mrf.mxu0
      %2544 = vmatprep.mubr.bf16.mxu0 0
      %2545 = vmatmul.mubr.bf16.gmra.mxu0 %v2068
      %v2546 = vpop.f32.mrf.mxu0
      %v2547 = vadd.f32 %v1842, %v2546
      %v2548 = vpop.f32.mrf.mxu0
      %v2549 = vpop.f32.mrf.mxu0
      %v2550 = vadd.f32 %v1845, %v2549
      %v2551 = vpop.f32.mrf.mxu0
      %2552 = vmatprep.mubr.bf16.mxu0 0
      %2553 = vmatmul.mubr.bf16.gmra.mxu0 %v2070
      %v2554 = vpop.f32.mrf.mxu0
      %v2555 = vadd.f32 %v1850, %v2554
      %v2556 = vpop.f32.mrf.mxu0
      %v2557 = vpop.f32.mrf.mxu0
      %v2558 = vadd.f32 %v1853, %v2557
      %v2559 = vpop.f32.mrf.mxu0
      %2560 = vmatprep.mubr.bf16.mxu0 0
      %2561 = vmatmul.mubr.bf16.gmra.mxu0 %v2072
      %v2562 = vpop.f32.mrf.mxu0
      %v2563 = vadd.f32 %v1858, %v2562
      %v2564 = vpop.f32.mrf.mxu0
      %v2565 = vpop.f32.mrf.mxu0
      %v2566 = vadd.f32 %v1861, %v2565
      %v2567 = vpop.f32.mrf.mxu0
      %2568 = vmatprep.mubr.bf16.mxu0 0
      %2569 = vmatmul.mubr.bf16.gmra.mxu0 %v2074
      %v2570 = vpop.f32.mrf.mxu0
      %v2571 = vadd.f32 %v1866, %v2570
      %v2572 = vpop.f32.mrf.mxu0
      %v2573 = vpop.f32.mrf.mxu0
      %v2574 = vadd.f32 %v1869, %v2573
      %v2575 = vpop.f32.mrf.mxu0
      %2576 = vmatprep.mubr.bf16.mxu0 0
      %2577 = vmatmul.mubr.bf16.gmra.mxu0 %v2076
      %v2578 = vpop.f32.mrf.mxu0
      %v2579 = vadd.f32 %v1874, %v2578
      %v2580 = vpop.f32.mrf.mxu0
      %v2581 = vpop.f32.mrf.mxu0
      %v2582 = vadd.f32 %v1877, %v2581
      %v2583 = vpop.f32.mrf.mxu0
      %2584 = vmatprep.mubr.bf16.mxu0 0
      %2585 = vmatmul.mubr.bf16.gmra.mxu0 %v2078
      %v2586 = vpop.f32.mrf.mxu0
      %v2587 = vadd.f32 %v1882, %v2586
      %v2588 = vpop.f32.mrf.mxu0
      %v2589 = vpop.f32.mrf.mxu0
      %v2590 = vadd.f32 %v1885, %v2589
      %v2591 = vpop.f32.mrf.mxu0
      %2592 = vmatprep.mubr.bf16.mxu0 0
      %2593 = vmatmul.mubr.bf16.gmra.mxu0 %v2080
      %v2594 = vpop.f32.mrf.mxu0
      %v2595 = vadd.f32 %v1890, %v2594
      %v2596 = vpop.f32.mrf.mxu0
      %v2597 = vpop.f32.mrf.mxu0
      %v2598 = vadd.f32 %v1893, %v2597
      %v2599 = vpop.f32.mrf.mxu0
      %2600 = vmatprep.mubr.bf16.mxu0 0
      %2601 = vmatmul.mubr.bf16.gmra.mxu0 %v2082
      %v2602 = vpop.f32.mrf.mxu0
      %v2603 = vadd.f32 %v1898, %v2602
      %v2604 = vpop.f32.mrf.mxu0
      %v2605 = vpop.f32.mrf.mxu0
      %v2606 = vadd.f32 %v1901, %v2605
      %v2607 = vpop.f32.mrf.mxu0
      %2608 = vmatprep.mubr.bf16.mxu0 0
      %2609 = vmatmul.mubr.bf16.gmra.mxu0 %v2084
      %v2610 = vpop.f32.mrf.mxu0
      %v2611 = vadd.f32 %v1906, %v2610
      %v2612 = vpop.f32.mrf.mxu0
      %v2613 = vpop.f32.mrf.mxu0
      %v2614 = vadd.f32 %v1909, %v2613
      %v2615 = vpop.f32.mrf.mxu0
      %2616 = vmatprep.mubr.bf16.mxu0 0
      %2617 = vmatmul.mubr.bf16.gmra.mxu0 %v2086
      %v2618 = vpop.f32.mrf.mxu0
      %v2619 = vadd.f32 %v1914, %v2618
      %v2620 = vpop.f32.mrf.mxu0
      %v2621 = vpop.f32.mrf.mxu0
      %v2622 = vadd.f32 %v1917, %v2621
      %v2623 = vpop.f32.mrf.mxu0
      %2624 = vmatprep.mubr.bf16.mxu0 0
      %2625 = vmatmul.mubr.bf16.gmra.mxu0 %v2088
      %v2626 = vpop.f32.mrf.mxu0
      %v2627 = vadd.f32 %v1922, %v2626
      %v2628 = vpop.f32.mrf.mxu0
      %v2629 = vpop.f32.mrf.mxu0
      %v2630 = vadd.f32 %v1925, %v2629
      %v2631 = vpop.f32.mrf.mxu0
      %2632 = vmatprep.mubr.bf16.mxu0 0
      %2633 = vmatmul.mubr.bf16.gmra.mxu0 %v2090
      %v2634 = vpop.f32.mrf.mxu0
      %v2635 = vadd.f32 %v1930, %v2634
      %v2636 = vpop.f32.mrf.mxu0
      %v2637 = vpop.f32.mrf.mxu0
      %v2638 = vadd.f32 %v1933, %v2637
      %v2639 = vpop.f32.mrf.mxu0
      %2640 = vmatprep.mubr.bf16.mxu0 0
      %2641 = vmatmul.mubr.bf16.gmra.mxu0 %v2092
      %v2642 = vpop.f32.mrf.mxu0
      %v2643 = vadd.f32 %v1938, %v2642
      %v2644 = vpop.f32.mrf.mxu0
      %v2645 = vpop.f32.mrf.mxu0
      %v2646 = vadd.f32 %v1941, %v2645
      %v2647 = vpop.f32.mrf.mxu0
      %2648 = vmatprep.mubr.bf16.mxu0 0
      %2649 = vmatmul.mubr.bf16.gmra.mxu0 %v2094
      %v2650 = vpop.f32.mrf.mxu0
      %v2651 = vadd.f32 %v1946, %v2650
      %v2652 = vpop.f32.mrf.mxu0
      %v2653 = vpop.f32.mrf.mxu0
      %v2654 = vadd.f32 %v1949, %v2653
      %v2655 = vpop.f32.mrf.mxu0
      %2656 = vdwg.mxu0
      %v2657 = vld [vmem:[%s165 + $0x10] sm:$0xf]
      %v2658 = vld [vmem:[%s165 + $0x14] sm:$0xf]
      %v2659 = vld [vmem:[%s165 + $0x18] sm:$0xf]
      %v2660 = vld [vmem:[%s165 + $0x1c] sm:$0xf]
      %v2661 = vld [vmem:[%s165 + $0x20] sm:$0xf]
      %v2662 = vld [vmem:[%s165 + $0x24] sm:$0xf]
      %v2663 = vld [vmem:[%s165 + $0x28] sm:$0xf]
      %v2664 = vld [vmem:[%s165 + $0x2c] sm:$0xf]
      %v2665 = vld [vmem:[%s165 + $0x30] sm:$0xf]
      %v2666 = vld [vmem:[%s165 + $0x34] sm:$0xf]
      %v2667 = vld [vmem:[%s165 + $0x38] sm:$0xf]
      %v2668 = vld [vmem:[%s165 + $0x3c] sm:$0xf]
      %v2669 = vld [vmem:[%s165 + $0x40] sm:$0xf]
      %v2670 = vld [vmem:[%s165 + $0x44] sm:$0xf]
      %v2671 = vld [vmem:[%s165 + $0x48] sm:$0xf]
      %v2672 = vld [vmem:[%s165 + $0x4c] sm:$0xf]
      %v2673 = vld [vmem:[%s165 + $0x50] sm:$0xf]
      %v2674 = vld [vmem:[%s165 + $0x54] sm:$0xf]
      %v2675 = vld [vmem:[%s165 + $0x58] sm:$0xf]
      %v2676 = vld [vmem:[%s165 + $0x5c] sm:$0xf]
      %v2677 = vld [vmem:[%s165 + $0x60] sm:$0xf]
      %v2678 = vld [vmem:[%s165 + $0x64] sm:$0xf]
      %v2679 = vld [vmem:[%s165 + $0x68] sm:$0xf]
      %v2680 = vld [vmem:[%s165 + $0x6c] sm:$0xf]
      %v2681 = vld [vmem:[%s165 + $0x70] sm:$0xf]
      %v2682 = vld [vmem:[%s165 + $0x74] sm:$0xf]
      %v2683 = vld [vmem:[%s165 + $0x78] sm:$0xf]
      %v2684 = vld [vmem:[%s165 + $0x7c] sm:$0xf]
      %v2685 = vld [vmem:[%s165 + $0x80] sm:$0xf]
      %v2686 = vld [vmem:[%s165 + $0x84] sm:$0xf]
      %v2687 = vld [vmem:[%s165 + $0x88] sm:$0xf]
      %v2688 = vld [vmem:[%s165 + $0x8c] sm:$0xf]
      %v2689 = vld [vmem:[%s165 + $0x90] sm:$0xf]
      %v2690 = vld [vmem:[%s165 + $0x94] sm:$0xf]
      %v2691 = vld [vmem:[%s165 + $0x98] sm:$0xf]
      %v2692 = vld [vmem:[%s165 + $0x9c] sm:$0xf]
      %v2693 = vld [vmem:[%s165 + $0xa0] sm:$0xf]
      %v2694 = vld [vmem:[%s165 + $0xa4] sm:$0xf]
      %v2695 = vld [vmem:[%s165 + $0xa8] sm:$0xf]
      %v2696 = vld [vmem:[%s165 + $0xac] sm:$0xf]
      %v2697 = vld [vmem:[%s165 + $0xb0] sm:$0xf]
      %v2698 = vld [vmem:[%s165 + $0xb4] sm:$0xf]
      %v2699 = vld [vmem:[%s165 + $0xb8] sm:$0xf]
      %v2700 = vld [vmem:[%s165 + $0xbc] sm:$0xf]
      %v2701 = vld [vmem:[%s165 + $0xc0] sm:$0xf]
      %v2702 = vld [vmem:[%s165 + $0xc4] sm:$0xf]
      %v2703 = vld [vmem:[%s165 + $0xc8] sm:$0xf]
      %v2704 = vld [vmem:[%s165 + $0xcc] sm:$0xf]
      %v2705 = vld [vmem:[%s165 + $0xd0] sm:$0xf]
      %v2706 = vld [vmem:[%s165 + $0xd4] sm:$0xf]
      %v2707 = vld [vmem:[%s165 + $0xd8] sm:$0xf]
      %v2708 = vld [vmem:[%s165 + $0xdc] sm:$0xf]
      %v2709 = vld [vmem:[%s165 + $0xe0] sm:$0xf]
      %v2710 = vld [vmem:[%s165 + $0xe4] sm:$0xf]
      %v2711 = vld [vmem:[%s165 + $0xe8] sm:$0xf]
      %v2712 = vld [vmem:[%s165 + $0xec] sm:$0xf]
      %v2713 = vld [vmem:[%s165 + $0xf0] sm:$0xf]
      %v2714 = vld [vmem:[%s165 + $0xf4] sm:$0xf]
      %v2715 = vld [vmem:[%s165 + $0xf8] sm:$0xf]
      %v2716 = vld [vmem:[%s165 + $0xfc] sm:$0xf]
      %v2717 = vld [vmem:[%s165 + $0x100] sm:$0xf]
      %v2718 = vld [vmem:[%s165 + $0x104] sm:$0xf]
      %v2719 = vld [vmem:[%s165 + $0x108] sm:$0xf]
      %v2720 = vld [vmem:[%s165 + $0x10c] sm:$0xf]
      %v2721 = vld [vmem:[%s165 + $0x110] sm:$0xf]
      %v2722 = vld [vmem:[%s165 + $0x114] sm:$0xf]
      %v2723 = vld [vmem:[%s165 + $0x118] sm:$0xf]
      %v2724 = vld [vmem:[%s165 + $0x11c] sm:$0xf]
      %v2725 = vld [vmem:[%s165 + $0x120] sm:$0xf]
      %v2726 = vld [vmem:[%s165 + $0x124] sm:$0xf]
      %v2727 = vld [vmem:[%s165 + $0x128] sm:$0xf]
      %v2728 = vld [vmem:[%s165 + $0x12c] sm:$0xf]
      %v2729 = vld [vmem:[%s165 + $0x130] sm:$0xf]
      %v2730 = vld [vmem:[%s165 + $0x134] sm:$0xf]
      %v2731 = vld [vmem:[%s165 + $0x138] sm:$0xf]
      %v2732 = vld [vmem:[%s165 + $0x13c] sm:$0xf]
      %v2733 = vld [vmem:[%s165 + $0x140] sm:$0xf]
      %v2734 = vld [vmem:[%s165 + $0x144] sm:$0xf]
      %v2735 = vld [vmem:[%s165 + $0x148] sm:$0xf]
      %v2736 = vld [vmem:[%s165 + $0x14c] sm:$0xf]
      %v2737 = vld [vmem:[%s165 + $0x150] sm:$0xf]
      %v2738 = vld [vmem:[%s165 + $0x154] sm:$0xf]
      %v2739 = vld [vmem:[%s165 + $0x158] sm:$0xf]
      %v2740 = vld [vmem:[%s165 + $0x15c] sm:$0xf]
      %v2741 = vld [vmem:[%s165 + $0x160] sm:$0xf]
      %v2742 = vld [vmem:[%s165 + $0x164] sm:$0xf]
      %v2743 = vld [vmem:[%s165 + $0x168] sm:$0xf]
      %v2744 = vld [vmem:[%s165 + $0x16c] sm:$0xf]
      %v2745 = vld [vmem:[%s165 + $0x170] sm:$0xf]
      %v2746 = vld [vmem:[%s165 + $0x174] sm:$0xf]
      %v2747 = vld [vmem:[%s165 + $0x178] sm:$0xf]
      %v2748 = vld [vmem:[%s165 + $0x17c] sm:$0xf]
      %v2749 = vld [vmem:[%s165 + $0x180] sm:$0xf]
      %v2750 = vld [vmem:[%s165 + $0x184] sm:$0xf]
      %v2751 = vld [vmem:[%s165 + $0x188] sm:$0xf]
      %v2752 = vld [vmem:[%s165 + $0x18c] sm:$0xf]
      %v2753 = vld [vmem:[%s165 + $0x190] sm:$0xf]
      %v2754 = vld [vmem:[%s165 + $0x194] sm:$0xf]
      %v2755 = vld [vmem:[%s165 + $0x198] sm:$0xf]
      %v2756 = vld [vmem:[%s165 + $0x19c] sm:$0xf]
      %v2757 = vld [vmem:[%s165 + $0x1a0] sm:$0xf]
      %v2758 = vld [vmem:[%s165 + $0x1a4] sm:$0xf]
      %v2759 = vld [vmem:[%s165 + $0x1a8] sm:$0xf]
      %v2760 = vld [vmem:[%s165 + $0x1ac] sm:$0xf]
      %v2761 = vld [vmem:[%s165 + $0x1b0] sm:$0xf]
      %v2762 = vld [vmem:[%s165 + $0x1b4] sm:$0xf]
      %v2763 = vld [vmem:[%s165 + $0x1b8] sm:$0xf]
      %v2764 = vld [vmem:[%s165 + $0x1bc] sm:$0xf]
      %v2765 = vld [vmem:[%s165 + $0x1c0] sm:$0xf]
      %v2766 = vld [vmem:[%s165 + $0x1c4] sm:$0xf]
      %v2767 = vld [vmem:[%s165 + $0x1c8] sm:$0xf]
      %v2768 = vld [vmem:[%s165 + $0x1cc] sm:$0xf]
      %v2769 = vld [vmem:[%s165 + $0x1d0] sm:$0xf]
      %v2770 = vld [vmem:[%s165 + $0x1d4] sm:$0xf]
      %v2771 = vld [vmem:[%s165 + $0x1d8] sm:$0xf]
      %v2772 = vld [vmem:[%s165 + $0x1dc] sm:$0xf]
      %v2773 = vld [vmem:[%s165 + $0x1e0] sm:$0xf]
      %v2774 = vld [vmem:[%s165 + $0x1e4] sm:$0xf]
      %v2775 = vld [vmem:[%s165 + $0x1e8] sm:$0xf]
      %v2776 = vld [vmem:[%s165 + $0x1ec] sm:$0xf]
      %v2777 = vld [vmem:[%s165 + $0x1f0] sm:$0xf]
      %v2778 = vld [vmem:[%s165 + $0x1f4] sm:$0xf]
      %v2779 = vld [vmem:[%s165 + $0x1f8] sm:$0xf]
      %v2780 = vld [vmem:[%s165 + $0x1fc] sm:$0xf]
      %v2781 = vld [vmem:[%s165 + $0x200] sm:$0xf]
      %v2782 = vld [vmem:[%s165 + $0x204] sm:$0xf]
      %v2783 = vld [vmem:[%s165 + $0x208] sm:$0xf]
      %v2784 = vld [vmem:[%s165 + $0x20c] sm:$0xf]
      %v2785 = vld [vmem:[%s165 + $0x210] sm:$0xf]
      %v2786 = vld [vmem:[%s165 + $0x214] sm:$0xf]
      %v2787 = vld [vmem:[%s165 + $0x218] sm:$0xf]
      %v2788 = vld [vmem:[%s165 + $0x21c] sm:$0xf]
      %v2789 = vld [vmem:[%s165 + $0x220] sm:$0x1]
      %s2790 = scalar_lea.vmem %s1, 32
      %v2791 = vld [vmem:[%s2790] sm:$0xf]
      %v2792 = vld [vmem:[%s2790 + $0x4] sm:$0xf]
      %v2793 = vld [vmem:[%s2790 + $0x8] sm:$0xf]
      %v2794 = vld [vmem:[%s2790 + $0xc] sm:$0xf]
      %v2928 = vunpack.c.l.b16 %v2657
      %v2929 = vunpack.c.l.b16 %v2658
      %v2930 = vunpack.c.l.b16 %v2659
      %v2931 = vunpack.c.l.b16 %v2660
      %v2932 = vunpack.c.l.b16 %v2661
      %v2933 = vunpack.c.l.b16 %v2662
      %v2934 = vunpack.c.l.b16 %v2663
      %v2935 = vunpack.c.l.b16 %v2664
      %v2936 = vunpack.c.l.b16 %v2665
      %v2937 = vunpack.c.l.b16 %v2666
      %v2938 = vunpack.c.l.b16 %v2667
      %v2939 = vunpack.c.l.b16 %v2668
      %v2940 = vunpack.c.l.b16 %v2669
      %v2941 = vunpack.c.l.b16 %v2670
      %v2942 = vunpack.c.l.b16 %v2671
      %v2943 = vunpack.c.l.b16 %v2672
      %v2944 = vunpack.c.l.b16 %v2673
      %v2945 = vunpack.c.l.b16 %v2674
      %v2946 = vunpack.c.l.b16 %v2675
      %v2947 = vunpack.c.l.b16 %v2676
      %v2948 = vunpack.c.l.b16 %v2677
      %v2949 = vunpack.c.l.b16 %v2678
      %v2950 = vunpack.c.l.b16 %v2679
      %v2951 = vunpack.c.l.b16 %v2680
      %v2952 = vunpack.c.l.b16 %v2681
      %v2953 = vunpack.c.l.b16 %v2682
      %v2954 = vunpack.c.l.b16 %v2683
      %v2955 = vunpack.c.l.b16 %v2684
      %v2956 = vunpack.c.l.b16 %v2685
      %v2957 = vunpack.c.l.b16 %v2686
      %v2958 = vunpack.c.l.b16 %v2687
      %v2959 = vunpack.c.l.b16 %v2688
      %v2960 = vunpack.c.l.b16 %v2689
      %v2961 = vunpack.c.l.b16 %v2690
      %v2962 = vunpack.c.l.b16 %v2691
      %v2963 = vunpack.c.l.b16 %v2692
      %v2964 = vunpack.c.l.b16 %v2693
      %v2965 = vunpack.c.l.b16 %v2694
      %v2966 = vunpack.c.l.b16 %v2695
      %v2967 = vunpack.c.l.b16 %v2696
      %v2968 = vunpack.c.l.b16 %v2697
      %v2969 = vunpack.c.l.b16 %v2698
      %v2970 = vunpack.c.l.b16 %v2699
      %v2971 = vunpack.c.l.b16 %v2700
      %v2972 = vunpack.c.l.b16 %v2701
      %v2973 = vunpack.c.l.b16 %v2702
      %v2974 = vunpack.c.l.b16 %v2703
      %v2975 = vunpack.c.l.b16 %v2704
      %v2976 = vunpack.c.l.b16 %v2705
      %v2977 = vunpack.c.l.b16 %v2706
      %v2978 = vunpack.c.l.b16 %v2707
      %v2979 = vunpack.c.l.b16 %v2708
      %v2980 = vunpack.c.l.b16 %v2709
      %v2981 = vunpack.c.l.b16 %v2710
      %v2982 = vunpack.c.l.b16 %v2711
      %v2983 = vunpack.c.l.b16 %v2712
      %v2984 = vunpack.c.l.b16 %v2713
      %v2985 = vunpack.c.l.b16 %v2714
      %v2986 = vunpack.c.l.b16 %v2715
      %v2987 = vunpack.c.l.b16 %v2716
      %v2988 = vunpack.c.l.b16 %v2717
      %v2989 = vunpack.c.l.b16 %v2718
      %v2990 = vunpack.c.l.b16 %v2719
      %v2991 = vunpack.c.l.b16 %v2720
      %v2992 = vunpack.c.l.b16 %v2721
      %v2993 = vunpack.c.l.b16 %v2722
      %v2994 = vunpack.c.l.b16 %v2723
      %v2995 = vunpack.c.l.b16 %v2724
      %v2996 = vunpack.c.l.b16 %v2725
      %v2997 = vunpack.c.l.b16 %v2726
      %v2998 = vunpack.c.l.b16 %v2727
      %v2999 = vunpack.c.l.b16 %v2728
      %v3000 = vunpack.c.l.b16 %v2729
      %v3001 = vunpack.c.l.b16 %v2730
      %v3002 = vunpack.c.l.b16 %v2731
      %v3003 = vunpack.c.l.b16 %v2732
      %v3004 = vunpack.c.l.b16 %v2733
      %v3005 = vunpack.c.l.b16 %v2734
      %v3006 = vunpack.c.l.b16 %v2735
      %v3007 = vunpack.c.l.b16 %v2736
      %v3008 = vunpack.c.l.b16 %v2737
      %v3009 = vunpack.c.l.b16 %v2738
      %v3010 = vunpack.c.l.b16 %v2739
      %v3011 = vunpack.c.l.b16 %v2740
      %v3012 = vunpack.c.l.b16 %v2741
      %v3013 = vunpack.c.l.b16 %v2742
      %v3014 = vunpack.c.l.b16 %v2743
      %v3015 = vunpack.c.l.b16 %v2744
      %v3016 = vunpack.c.l.b16 %v2745
      %v3017 = vunpack.c.l.b16 %v2746
      %v3018 = vunpack.c.l.b16 %v2747
      %v3019 = vunpack.c.l.b16 %v2748
      %v3020 = vunpack.c.l.b16 %v2749
      %v3021 = vunpack.c.l.b16 %v2750
      %v3022 = vunpack.c.l.b16 %v2751
      %v3023 = vunpack.c.l.b16 %v2752
      %v3024 = vunpack.c.l.b16 %v2753
      %v3025 = vunpack.c.l.b16 %v2754
      %v3026 = vunpack.c.l.b16 %v2755
      %v3027 = vunpack.c.l.b16 %v2756
      %v3028 = vunpack.c.l.b16 %v2757
      %v3029 = vunpack.c.l.b16 %v2758
      %v3030 = vunpack.c.l.b16 %v2759
      %v3031 = vunpack.c.l.b16 %v2760
      %v3032 = vunpack.c.l.b16 %v2761
      %v3033 = vunpack.c.l.b16 %v2762
      %v3034 = vunpack.c.l.b16 %v2763
      %v3035 = vunpack.c.l.b16 %v2764
      %v3036 = vunpack.c.l.b16 %v2765
      %v3037 = vunpack.c.l.b16 %v2766
      %v3038 = vunpack.c.l.b16 %v2767
      %v3039 = vunpack.c.l.b16 %v2768
      %v3040 = vunpack.c.l.b16 %v2769
      %v3041 = vunpack.c.l.b16 %v2770
      %v3042 = vunpack.c.l.b16 %v2771
      %v3043 = vunpack.c.l.b16 %v2772
      %v3044 = vunpack.c.l.b16 %v2773
      %v3045 = vunpack.c.l.b16 %v2774
      %v3046 = vunpack.c.l.b16 %v2775
      %v3047 = vunpack.c.l.b16 %v2776
      %v3048 = vunpack.c.l.b16 %v2777
      %v3049 = vunpack.c.l.b16 %v2778
      %v3050 = vunpack.c.l.b16 %v2779
      %v3051 = vunpack.c.l.b16 %v2780
      %v3052 = vunpack.c.l.b16 %v2781
      %v3053 = vunpack.c.l.b16 %v2782
      %v3054 = vunpack.c.l.b16 %v2783
      %v3055 = vunpack.c.l.b16 %v2784
      %v3056 = vunpack.c.l.b16 %v2785
      %v3057 = vunpack.c.l.b16 %v2786
      %v3058 = vunpack.c.l.b16 %v2787
      %v3059 = vunpack.c.l.b16 %v2788
      %v3060 = vunpack.c.l.b16 %v2789
      %v3061 = vpack.c.b16 %v2929, %v2928
      %v3062 = vpack.c.b16 %v2931, %v2930
      %v3063 = vpack.c.b16 %v2933, %v2932
      %v3064 = vpack.c.b16 %v2935, %v2934
      %v3065 = vpack.c.b16 %v2937, %v2936
      %v3066 = vpack.c.b16 %v2939, %v2938
      %v3067 = vpack.c.b16 %v2941, %v2940
      %v3068 = vpack.c.b16 %v2943, %v2942
      %v3069 = vpack.c.b16 %v2945, %v2944
      %v3070 = vpack.c.b16 %v2947, %v2946
      %v3071 = vpack.c.b16 %v2949, %v2948
      %v3072 = vpack.c.b16 %v2951, %v2950
      %v3073 = vpack.c.b16 %v2953, %v2952
      %v3074 = vpack.c.b16 %v2955, %v2954
      %v3075 = vpack.c.b16 %v2957, %v2956
      %v3076 = vpack.c.b16 %v2959, %v2958
      %v3077 = vpack.c.b16 %v2961, %v2960
      %v3078 = vpack.c.b16 %v2963, %v2962
      %v3079 = vpack.c.b16 %v2965, %v2964
      %v3080 = vpack.c.b16 %v2967, %v2966
      %v3081 = vpack.c.b16 %v2969, %v2968
      %v3082 = vpack.c.b16 %v2971, %v2970
      %v3083 = vpack.c.b16 %v2973, %v2972
      %v3084 = vpack.c.b16 %v2975, %v2974
      %v3085 = vpack.c.b16 %v2977, %v2976
      %v3086 = vpack.c.b16 %v2979, %v2978
      %v3087 = vpack.c.b16 %v2981, %v2980
      %v3088 = vpack.c.b16 %v2983, %v2982
      %v3089 = vpack.c.b16 %v2985, %v2984
      %v3090 = vpack.c.b16 %v2987, %v2986
      %v3091 = vpack.c.b16 %v2989, %v2988
      %v3092 = vpack.c.b16 %v2991, %v2990
      %v3093 = vpack.c.b16 %v2993, %v2992
      %v3094 = vpack.c.b16 %v2995, %v2994
      %v3095 = vpack.c.b16 %v2997, %v2996
      %v3096 = vpack.c.b16 %v2999, %v2998
      %v3097 = vpack.c.b16 %v3001, %v3000
      %v3098 = vpack.c.b16 %v3003, %v3002
      %v3099 = vpack.c.b16 %v3005, %v3004
      %v3100 = vpack.c.b16 %v3007, %v3006
      %v3101 = vpack.c.b16 %v3009, %v3008
      %v3102 = vpack.c.b16 %v3011, %v3010
      %v3103 = vpack.c.b16 %v3013, %v3012
      %v3104 = vpack.c.b16 %v3015, %v3014
      %v3105 = vpack.c.b16 %v3017, %v3016
      %v3106 = vpack.c.b16 %v3019, %v3018
      %v3107 = vpack.c.b16 %v3021, %v3020
      %v3108 = vpack.c.b16 %v3023, %v3022
      %v3109 = vpack.c.b16 %v3025, %v3024
      %v3110 = vpack.c.b16 %v3027, %v3026
      %v3111 = vpack.c.b16 %v3029, %v3028
      %v3112 = vpack.c.b16 %v3031, %v3030
      %v3113 = vpack.c.b16 %v3033, %v3032
      %v3114 = vpack.c.b16 %v3035, %v3034
      %v3115 = vpack.c.b16 %v3037, %v3036
      %v3116 = vpack.c.b16 %v3039, %v3038
      %v3117 = vpack.c.b16 %v3041, %v3040
      %v3118 = vpack.c.b16 %v3043, %v3042
      %v3119 = vpack.c.b16 %v3045, %v3044
      %v3120 = vpack.c.b16 %v3047, %v3046
      %v3121 = vpack.c.b16 %v3049, %v3048
      %v3122 = vpack.c.b16 %v3051, %v3050
      %v3123 = vpack.c.b16 %v3053, %v3052
      %v3124 = vpack.c.b16 %v3055, %v3054
      %v3125 = vpack.c.b16 %v3057, %v3056
      %v3126 = vpack.c.b16 %v3059, %v3058
      %v3127 = vpack.c.b16 %v3060, %v3060
      %v3129 = vshrl.u32 %v3061, 16
      %v3131 = vshll.u32 %v3061, 16
      %v3133 = vrot.slane %v3131, 1
      %v3134 = vor.u32 %v3129, %v3133
      %v3136 = vshll.u32 %v3062, 16
      %v3138 = vrot.slane %v3136, 1
      %v3139 = vsel %vm647, %v3134, %v3138
      %v3140 = vshrl.u32 %v3062, 16
      %v3142 = vor.u32 %v3140, %v3138
      %v3144 = vshll.u32 %v3063, 16
      %v3146 = vrot.slane %v3144, 1
      %v3147 = vsel %vm647, %v3142, %v3146
      %v3148 = vshrl.u32 %v3063, 16
      %v3150 = vor.u32 %v3148, %v3146
      %v3152 = vshll.u32 %v3064, 16
      %v3154 = vrot.slane %v3152, 1
      %v3155 = vsel %vm647, %v3150, %v3154
      %v3156 = vshrl.u32 %v3064, 16
      %v3158 = vor.u32 %v3156, %v3154
      %v3160 = vshll.u32 %v3065, 16
      %v3162 = vrot.slane %v3160, 1
      %v3163 = vsel %vm647, %v3158, %v3162
      %v3164 = vshrl.u32 %v3065, 16
      %v3166 = vor.u32 %v3164, %v3162
      %v3168 = vshll.u32 %v3066, 16
      %v3170 = vrot.slane %v3168, 1
      %v3171 = vsel %vm647, %v3166, %v3170
      %v3172 = vshrl.u32 %v3066, 16
      %v3174 = vor.u32 %v3172, %v3170
      %v3176 = vshll.u32 %v3067, 16
      %v3178 = vrot.slane %v3176, 1
      %v3179 = vsel %vm647, %v3174, %v3178
      %v3180 = vshrl.u32 %v3067, 16
      %v3182 = vor.u32 %v3180, %v3178
      %v3184 = vshll.u32 %v3068, 16
      %v3186 = vrot.slane %v3184, 1
      %v3187 = vsel %vm647, %v3182, %v3186
      %v3188 = vshrl.u32 %v3068, 16
      %v3190 = vor.u32 %v3188, %v3186
      %v3192 = vshll.u32 %v3069, 16
      %v3194 = vrot.slane %v3192, 1
      %v3195 = vsel %vm647, %v3190, %v3194
      %v3196 = vshrl.u32 %v3069, 16
      %v3198 = vor.u32 %v3196, %v3194
      %v3200 = vshll.u32 %v3070, 16
      %v3202 = vrot.slane %v3200, 1
      %v3203 = vsel %vm647, %v3198, %v3202
      %v3204 = vshrl.u32 %v3070, 16
      %v3206 = vor.u32 %v3204, %v3202
      %v3208 = vshll.u32 %v3071, 16
      %v3210 = vrot.slane %v3208, 1
      %v3211 = vsel %vm647, %v3206, %v3210
      %v3212 = vshrl.u32 %v3071, 16
      %v3214 = vor.u32 %v3212, %v3210
      %v3216 = vshll.u32 %v3072, 16
      %v3218 = vrot.slane %v3216, 1
      %v3219 = vsel %vm647, %v3214, %v3218
      %v3220 = vshrl.u32 %v3072, 16
      %v3222 = vor.u32 %v3220, %v3218
      %v3224 = vshll.u32 %v3073, 16
      %v3226 = vrot.slane %v3224, 1
      %v3227 = vsel %vm647, %v3222, %v3226
      %v3228 = vshrl.u32 %v3073, 16
      %v3230 = vor.u32 %v3228, %v3226
      %v3232 = vshll.u32 %v3074, 16
      %v3234 = vrot.slane %v3232, 1
      %v3235 = vsel %vm647, %v3230, %v3234
      %v3236 = vshrl.u32 %v3074, 16
      %v3238 = vor.u32 %v3236, %v3234
      %v3240 = vshll.u32 %v3075, 16
      %v3242 = vrot.slane %v3240, 1
      %v3243 = vsel %vm647, %v3238, %v3242
      %v3244 = vshrl.u32 %v3075, 16
      %v3246 = vor.u32 %v3244, %v3242
      %v3248 = vshll.u32 %v3076, 16
      %v3250 = vrot.slane %v3248, 1
      %v3251 = vsel %vm647, %v3246, %v3250
      %v3252 = vshrl.u32 %v3076, 16
      %v3254 = vor.u32 %v3252, %v3250
      %v3256 = vshll.u32 %v3077, 16
      %v3258 = vrot.slane %v3256, 1
      %v3259 = vsel %vm647, %v3254, %v3258
      %v3260 = vshrl.u32 %v3077, 16
      %v3262 = vor.u32 %v3260, %v3258
      %v3264 = vshll.u32 %v3078, 16
      %v3266 = vrot.slane %v3264, 1
      %v3267 = vsel %vm647, %v3262, %v3266
      %v3268 = vshrl.u32 %v3078, 16
      %v3270 = vor.u32 %v3268, %v3266
      %v3272 = vshll.u32 %v3079, 16
      %v3274 = vrot.slane %v3272, 1
      %v3275 = vsel %vm647, %v3270, %v3274
      %v3276 = vshrl.u32 %v3079, 16
      %v3278 = vor.u32 %v3276, %v3274
      %v3280 = vshll.u32 %v3080, 16
      %v3282 = vrot.slane %v3280, 1
      %v3283 = vsel %vm647, %v3278, %v3282
      %v3284 = vshrl.u32 %v3080, 16
      %v3286 = vor.u32 %v3284, %v3282
      %v3288 = vshll.u32 %v3081, 16
      %v3290 = vrot.slane %v3288, 1
      %v3291 = vsel %vm647, %v3286, %v3290
      %v3292 = vshrl.u32 %v3081, 16
      %v3294 = vor.u32 %v3292, %v3290
      %v3296 = vshll.u32 %v3082, 16
      %v3298 = vrot.slane %v3296, 1
      %v3299 = vsel %vm647, %v3294, %v3298
      %v3300 = vshrl.u32 %v3082, 16
      %v3302 = vor.u32 %v3300, %v3298
      %v3304 = vshll.u32 %v3083, 16
      %v3306 = vrot.slane %v3304, 1
      %v3307 = vsel %vm647, %v3302, %v3306
      %v3308 = vshrl.u32 %v3083, 16
      %v3310 = vor.u32 %v3308, %v3306
      %v3312 = vshll.u32 %v3084, 16
      %v3314 = vrot.slane %v3312, 1
      %v3315 = vsel %vm647, %v3310, %v3314
      %v3316 = vshrl.u32 %v3084, 16
      %v3318 = vor.u32 %v3316, %v3314
      %v3320 = vshll.u32 %v3085, 16
      %v3322 = vrot.slane %v3320, 1
      %v3323 = vsel %vm647, %v3318, %v3322
      %v3324 = vshrl.u32 %v3085, 16
      %v3326 = vor.u32 %v3324, %v3322
      %v3328 = vshll.u32 %v3086, 16
      %v3330 = vrot.slane %v3328, 1
      %v3331 = vsel %vm647, %v3326, %v3330
      %v3332 = vshrl.u32 %v3086, 16
      %v3334 = vor.u32 %v3332, %v3330
      %v3336 = vshll.u32 %v3087, 16
      %v3338 = vrot.slane %v3336, 1
      %v3339 = vsel %vm647, %v3334, %v3338
      %v3340 = vshrl.u32 %v3087, 16
      %v3342 = vor.u32 %v3340, %v3338
      %v3344 = vshll.u32 %v3088, 16
      %v3346 = vrot.slane %v3344, 1
      %v3347 = vsel %vm647, %v3342, %v3346
      %v3348 = vshrl.u32 %v3088, 16
      %v3350 = vor.u32 %v3348, %v3346
      %v3352 = vshll.u32 %v3089, 16
      %v3354 = vrot.slane %v3352, 1
      %v3355 = vsel %vm647, %v3350, %v3354
      %v3356 = vshrl.u32 %v3089, 16
      %v3358 = vor.u32 %v3356, %v3354
      %v3360 = vshll.u32 %v3090, 16
      %v3362 = vrot.slane %v3360, 1
      %v3363 = vsel %vm647, %v3358, %v3362
      %v3364 = vshrl.u32 %v3090, 16
      %v3366 = vor.u32 %v3364, %v3362
      %v3368 = vshll.u32 %v3091, 16
      %v3370 = vrot.slane %v3368, 1
      %v3371 = vsel %vm647, %v3366, %v3370
      %v3372 = vshrl.u32 %v3091, 16
      %v3374 = vor.u32 %v3372, %v3370
      %v3376 = vshll.u32 %v3092, 16
      %v3378 = vrot.slane %v3376, 1
      %v3379 = vsel %vm647, %v3374, %v3378
      %v3380 = vshrl.u32 %v3092, 16
      %v3382 = vor.u32 %v3380, %v3378
      %v3384 = vshll.u32 %v3093, 16
      %v3386 = vrot.slane %v3384, 1
      %v3387 = vsel %vm647, %v3382, %v3386
      %v3388 = vshrl.u32 %v3093, 16
      %v3390 = vor.u32 %v3388, %v3386
      %v3392 = vshll.u32 %v3094, 16
      %v3394 = vrot.slane %v3392, 1
      %v3395 = vsel %vm647, %v3390, %v3394
      %v3396 = vshrl.u32 %v3094, 16
      %v3398 = vor.u32 %v3396, %v3394
      %v3400 = vshll.u32 %v3095, 16
      %v3402 = vrot.slane %v3400, 1
      %v3403 = vsel %vm647, %v3398, %v3402
      %v3404 = vshrl.u32 %v3095, 16
      %v3406 = vor.u32 %v3404, %v3402
      %v3408 = vshll.u32 %v3096, 16
      %v3410 = vrot.slane %v3408, 1
      %v3411 = vsel %vm647, %v3406, %v3410
      %v3412 = vshrl.u32 %v3096, 16
      %v3414 = vor.u32 %v3412, %v3410
      %v3416 = vshll.u32 %v3097, 16
      %v3418 = vrot.slane %v3416, 1
      %v3419 = vsel %vm647, %v3414, %v3418
      %v3420 = vshrl.u32 %v3097, 16
      %v3422 = vor.u32 %v3420, %v3418
      %v3424 = vshll.u32 %v3098, 16
      %v3426 = vrot.slane %v3424, 1
      %v3427 = vsel %vm647, %v3422, %v3426
      %v3428 = vshrl.u32 %v3098, 16
      %v3430 = vor.u32 %v3428, %v3426
      %v3432 = vshll.u32 %v3099, 16
      %v3434 = vrot.slane %v3432, 1
      %v3435 = vsel %vm647, %v3430, %v3434
      %v3436 = vshrl.u32 %v3099, 16
      %v3438 = vor.u32 %v3436, %v3434
      %v3440 = vshll.u32 %v3100, 16
      %v3442 = vrot.slane %v3440, 1
      %v3443 = vsel %vm647, %v3438, %v3442
      %v3444 = vshrl.u32 %v3100, 16
      %v3446 = vor.u32 %v3444, %v3442
      %v3448 = vshll.u32 %v3101, 16
      %v3450 = vrot.slane %v3448, 1
      %v3451 = vsel %vm647, %v3446, %v3450
      %v3452 = vshrl.u32 %v3101, 16
      %v3454 = vor.u32 %v3452, %v3450
      %v3456 = vshll.u32 %v3102, 16
      %v3458 = vrot.slane %v3456, 1
      %v3459 = vsel %vm647, %v3454, %v3458
      %v3460 = vshrl.u32 %v3102, 16
      %v3462 = vor.u32 %v3460, %v3458
      %v3464 = vshll.u32 %v3103, 16
      %v3466 = vrot.slane %v3464, 1
      %v3467 = vsel %vm647, %v3462, %v3466
      %v3468 = vshrl.u32 %v3103, 16
      %v3470 = vor.u32 %v3468, %v3466
      %v3472 = vshll.u32 %v3104, 16
      %v3474 = vrot.slane %v3472, 1
      %v3475 = vsel %vm647, %v3470, %v3474
      %v3476 = vshrl.u32 %v3104, 16
      %v3478 = vor.u32 %v3476, %v3474
      %v3480 = vshll.u32 %v3105, 16
      %v3482 = vrot.slane %v3480, 1
      %v3483 = vsel %vm647, %v3478, %v3482
      %v3484 = vshrl.u32 %v3105, 16
      %v3486 = vor.u32 %v3484, %v3482
      %v3488 = vshll.u32 %v3106, 16
      %v3490 = vrot.slane %v3488, 1
      %v3491 = vsel %vm647, %v3486, %v3490
      %v3492 = vshrl.u32 %v3106, 16
      %v3494 = vor.u32 %v3492, %v3490
      %v3496 = vshll.u32 %v3107, 16
      %v3498 = vrot.slane %v3496, 1
      %v3499 = vsel %vm647, %v3494, %v3498
      %v3500 = vshrl.u32 %v3107, 16
      %v3502 = vor.u32 %v3500, %v3498
      %v3504 = vshll.u32 %v3108, 16
      %v3506 = vrot.slane %v3504, 1
      %v3507 = vsel %vm647, %v3502, %v3506
      %v3508 = vshrl.u32 %v3108, 16
      %v3510 = vor.u32 %v3508, %v3506
      %v3512 = vshll.u32 %v3109, 16
      %v3514 = vrot.slane %v3512, 1
      %v3515 = vsel %vm647, %v3510, %v3514
      %v3516 = vshrl.u32 %v3109, 16
      %v3518 = vor.u32 %v3516, %v3514
      %v3520 = vshll.u32 %v3110, 16
      %v3522 = vrot.slane %v3520, 1
      %v3523 = vsel %vm647, %v3518, %v3522
      %v3524 = vshrl.u32 %v3110, 16
      %v3526 = vor.u32 %v3524, %v3522
      %v3528 = vshll.u32 %v3111, 16
      %v3530 = vrot.slane %v3528, 1
      %v3531 = vsel %vm647, %v3526, %v3530
      %v3532 = vshrl.u32 %v3111, 16
      %v3534 = vor.u32 %v3532, %v3530
      %v3536 = vshll.u32 %v3112, 16
      %v3538 = vrot.slane %v3536, 1
      %v3539 = vsel %vm647, %v3534, %v3538
      %v3540 = vshrl.u32 %v3112, 16
      %v3542 = vor.u32 %v3540, %v3538
      %v3544 = vshll.u32 %v3113, 16
      %v3546 = vrot.slane %v3544, 1
      %v3547 = vsel %vm647, %v3542, %v3546
      %v3548 = vshrl.u32 %v3113, 16
      %v3550 = vor.u32 %v3548, %v3546
      %v3552 = vshll.u32 %v3114, 16
      %v3554 = vrot.slane %v3552, 1
      %v3555 = vsel %vm647, %v3550, %v3554
      %v3556 = vshrl.u32 %v3114, 16
      %v3558 = vor.u32 %v3556, %v3554
      %v3560 = vshll.u32 %v3115, 16
      %v3562 = vrot.slane %v3560, 1
      %v3563 = vsel %vm647, %v3558, %v3562
      %v3564 = vshrl.u32 %v3115, 16
      %v3566 = vor.u32 %v3564, %v3562
      %v3568 = vshll.u32 %v3116, 16
      %v3570 = vrot.slane %v3568, 1
      %v3571 = vsel %vm647, %v3566, %v3570
      %v3572 = vshrl.u32 %v3116, 16
      %v3574 = vor.u32 %v3572, %v3570
      %v3576 = vshll.u32 %v3117, 16
      %v3578 = vrot.slane %v3576, 1
      %v3579 = vsel %vm647, %v3574, %v3578
      %v3580 = vshrl.u32 %v3117, 16
      %v3582 = vor.u32 %v3580, %v3578
      %v3584 = vshll.u32 %v3118, 16
      %v3586 = vrot.slane %v3584, 1
      %v3587 = vsel %vm647, %v3582, %v3586
      %v3588 = vshrl.u32 %v3118, 16
      %v3590 = vor.u32 %v3588, %v3586
      %v3592 = vshll.u32 %v3119, 16
      %v3594 = vrot.slane %v3592, 1
      %v3595 = vsel %vm647, %v3590, %v3594
      %v3596 = vshrl.u32 %v3119, 16
      %v3598 = vor.u32 %v3596, %v3594
      %v3600 = vshll.u32 %v3120, 16
      %v3602 = vrot.slane %v3600, 1
      %v3603 = vsel %vm647, %v3598, %v3602
      %v3604 = vshrl.u32 %v3120, 16
      %v3606 = vor.u32 %v3604, %v3602
      %v3608 = vshll.u32 %v3121, 16
      %v3610 = vrot.slane %v3608, 1
      %v3611 = vsel %vm647, %v3606, %v3610
      %v3612 = vshrl.u32 %v3121, 16
      %v3614 = vor.u32 %v3612, %v3610
      %v3616 = vshll.u32 %v3122, 16
      %v3618 = vrot.slane %v3616, 1
      %v3619 = vsel %vm647, %v3614, %v3618
      %v3620 = vshrl.u32 %v3122, 16
      %v3622 = vor.u32 %v3620, %v3618
      %v3624 = vshll.u32 %v3123, 16
      %v3626 = vrot.slane %v3624, 1
      %v3627 = vsel %vm647, %v3622, %v3626
      %v3628 = vshrl.u32 %v3123, 16
      %v3630 = vor.u32 %v3628, %v3626
      %v3632 = vshll.u32 %v3124, 16
      %v3634 = vrot.slane %v3632, 1
      %v3635 = vsel %vm647, %v3630, %v3634
      %v3636 = vshrl.u32 %v3124, 16
      %v3638 = vor.u32 %v3636, %v3634
      %v3640 = vshll.u32 %v3125, 16
      %v3642 = vrot.slane %v3640, 1
      %v3643 = vsel %vm647, %v3638, %v3642
      %v3644 = vshrl.u32 %v3125, 16
      %v3646 = vor.u32 %v3644, %v3642
      %v3648 = vshll.u32 %v3126, 16
      %v3650 = vrot.slane %v3648, 1
      %v3651 = vsel %vm647, %v3646, %v3650
      %v3652 = vshrl.u32 %v3126, 16
      %v3654 = vor.u32 %v3652, %v3650
      %v3656 = vshll.u32 %v3127, 16
      %v3658 = vrot.slane %v3656, 1
      %v3659 = vsel %vm647, %v3654, %v3658
      %v3664 = vunpack.c.l.b16 %v2791
      %v3665 = vunpack.c.l.b16 %v2792
      %v3666 = vunpack.c.l.b16 %v2793
      %v3667 = vunpack.c.l.b16 %v2794
      %v3668 = vpack.c.b16 %v3665, %v3664
      %v3669 = vpack.c.b16 %v3667, %v3666
      %v3673 = vsel %vm1192, %v3139, 0
      %v3676 = vsel %vm1192, %v3147, 0
      %v3679 = vsel %vm1192, %v3155, 0
      %v3682 = vsel %vm1192, %v3163, 0
      %v3685 = vsel %vm1192, %v3171, 0
      %v3688 = vsel %vm1192, %v3179, 0
      %v3691 = vsel %vm1192, %v3187, 0
      %v3694 = vsel %vm1192, %v3195, 0
      %v3697 = vsel %vm1192, %v3203, 0
      %v3700 = vsel %vm1192, %v3211, 0
      %v3703 = vsel %vm1192, %v3219, 0
      %v3706 = vsel %vm1192, %v3227, 0
      %v3709 = vsel %vm1192, %v3235, 0
      %v3712 = vsel %vm1192, %v3243, 0
      %v3715 = vsel %vm1192, %v3251, 0
      %v3718 = vsel %vm1192, %v3259, 0
      %v3721 = vsel %vm1192, %v3267, 0
      %v3724 = vsel %vm1192, %v3275, 0
      %v3727 = vsel %vm1192, %v3283, 0
      %v3730 = vsel %vm1192, %v3291, 0
      %v3733 = vsel %vm1192, %v3299, 0
      %v3736 = vsel %vm1192, %v3307, 0
      %v3739 = vsel %vm1192, %v3315, 0
      %v3742 = vsel %vm1192, %v3323, 0
      %v3745 = vsel %vm1192, %v3331, 0
      %v3748 = vsel %vm1192, %v3339, 0
      %v3751 = vsel %vm1192, %v3347, 0
      %v3754 = vsel %vm1192, %v3355, 0
      %v3757 = vsel %vm1192, %v3363, 0
      %v3760 = vsel %vm1192, %v3371, 0
      %v3763 = vsel %vm1192, %v3379, 0
      %v3766 = vsel %vm1192, %v3387, 0
      %v3769 = vsel %vm1192, %v3395, 0
      %v3772 = vsel %vm1192, %v3403, 0
      %v3775 = vsel %vm1192, %v3411, 0
      %v3778 = vsel %vm1192, %v3419, 0
      %v3781 = vsel %vm1192, %v3427, 0
      %v3784 = vsel %vm1192, %v3435, 0
      %v3787 = vsel %vm1192, %v3443, 0
      %v3790 = vsel %vm1192, %v3451, 0
      %v3793 = vsel %vm1192, %v3459, 0
      %v3796 = vsel %vm1192, %v3467, 0
      %v3799 = vsel %vm1192, %v3475, 0
      %v3802 = vsel %vm1192, %v3483, 0
      %v3805 = vsel %vm1192, %v3491, 0
      %v3808 = vsel %vm1192, %v3499, 0
      %v3811 = vsel %vm1192, %v3507, 0
      %v3814 = vsel %vm1192, %v3515, 0
      %v3817 = vsel %vm1192, %v3523, 0
      %v3820 = vsel %vm1192, %v3531, 0
      %v3823 = vsel %vm1192, %v3539, 0
      %v3826 = vsel %vm1192, %v3547, 0
      %v3829 = vsel %vm1192, %v3555, 0
      %v3832 = vsel %vm1192, %v3563, 0
      %v3835 = vsel %vm1192, %v3571, 0
      %v3838 = vsel %vm1192, %v3579, 0
      %v3841 = vsel %vm1192, %v3587, 0
      %v3844 = vsel %vm1192, %v3595, 0
      %v3847 = vsel %vm1192, %v3603, 0
      %v3850 = vsel %vm1192, %v3611, 0
      %v3853 = vsel %vm1192, %v3619, 0
      %v3856 = vsel %vm1192, %v3627, 0
      %v3859 = vsel %vm1192, %v3635, 0
      %v3862 = vsel %vm1192, %v3643, 0
      %v3865 = vsel %vm1192, %v3651, 0
      %v3868 = vsel %vm1192, %v3659, 0
      %3870 = vmatprep.subr.bf16.mxu0 0
      %3871 = vmatpush1.bf16.msra.mxu0 0
      %3872 = vmatprep.subr.bf16.mxu0 0
      %3873 = vmatpush1.bf16.msra.mxu0 0
      %3874 = vmatprep.subr.bf16.mxu0 0
      %3875 = vmatpush1.bf16.msra.mxu0 0
      %3876 = vmatprep.subr.bf16.mxu0 0
      %3877 = vmatpush1.bf16.msra.mxu0 0
      %3878 = vmatprep.subr.bf16.mxu0 0
      %3879 = vmatpush1.bf16.msra.mxu0 0
      %3880 = vmatprep.subr.bf16.mxu0 0
      %3881 = vmatpush1.bf16.msra.mxu0 0
      %3882 = vmatprep.subr.bf16.mxu0 0
      %3883 = vmatpush1.bf16.msra.mxu0 %v3669
      %3884 = vmatprep.subr.bf16.mxu0 0
      %3885 = vmatpush1.bf16.msra.mxu0 %v3668
      %3886 = vmatprep.subr.bf16.mxu0 0
      %3887 = vmatpush2.bf16.msra.mxu0 0
      %3888 = vmatprep.subr.bf16.mxu0 0
      %3889 = vmatpush2.bf16.msra.mxu0 0
      %3890 = vmatprep.subr.bf16.mxu0 0
      %3891 = vmatpush2.bf16.msra.mxu0 0
      %3892 = vmatprep.subr.bf16.mxu0 0
      %3893 = vmatpush2.bf16.msra.mxu0 0
      %3894 = vmatprep.subr.bf16.mxu0 0
      %3895 = vmatpush2.bf16.msra.mxu0 0
      %3896 = vmatprep.subr.bf16.mxu0 0
      %3897 = vmatpush2.bf16.msra.mxu0 0
      %3898 = vmatprep.subr.bf16.mxu0 0
      %3899 = vmatpush2.bf16.msra.mxu0 0
      %3900 = vmatprep.subr.bf16.mxu0 0
      %3901 = vmatpush2.bf16.msra.mxu0 0
      %3902 = vmatprep.mubr.bf16.mxu0 0
      %3903 = vmatmul.mubr.bf16.gmra.mxu0 %v3673
      %v3904 = vpop.f32.mrf.mxu0
      %v3905 = vadd.f32 0.0, %v3904
      %v3906 = vpop.f32.mrf.mxu0
      %v3907 = vpop.f32.mrf.mxu0
      %v3908 = vadd.f32 0.0, %v3907
      %v3909 = vpop.f32.mrf.mxu0
      %3910 = vmatprep.mubr.bf16.mxu0 0
      %3911 = vmatmul.mubr.bf16.gmra.mxu0 %v3676
      %v3912 = vpop.f32.mrf.mxu0
      %v3913 = vadd.f32 0.0, %v3912
      %v3914 = vpop.f32.mrf.mxu0
      %v3915 = vpop.f32.mrf.mxu0
      %v3916 = vadd.f32 0.0, %v3915
      %v3917 = vpop.f32.mrf.mxu0
      %3918 = vmatprep.mubr.bf16.mxu0 0
      %3919 = vmatmul.mubr.bf16.gmra.mxu0 %v3679
      %v3920 = vpop.f32.mrf.mxu0
      %v3921 = vadd.f32 0.0, %v3920
      %v3922 = vpop.f32.mrf.mxu0
      %v3923 = vpop.f32.mrf.mxu0
      %v3924 = vadd.f32 0.0, %v3923
      %v3925 = vpop.f32.mrf.mxu0
      %3926 = vmatprep.mubr.bf16.mxu0 0
      %3927 = vmatmul.mubr.bf16.gmra.mxu0 %v3682
      %v3928 = vpop.f32.mrf.mxu0
      %v3929 = vadd.f32 0.0, %v3928
      %v3930 = vpop.f32.mrf.mxu0
      %v3931 = vpop.f32.mrf.mxu0
      %v3932 = vadd.f32 0.0, %v3931
      %v3933 = vpop.f32.mrf.mxu0
      %3934 = vmatprep.mubr.bf16.mxu0 0
      %3935 = vmatmul.mubr.bf16.gmra.mxu0 %v3685
      %v3936 = vpop.f32.mrf.mxu0
      %v3937 = vadd.f32 0.0, %v3936
      %v3938 = vpop.f32.mrf.mxu0
      %v3939 = vpop.f32.mrf.mxu0
      %v3940 = vadd.f32 0.0, %v3939
      %v3941 = vpop.f32.mrf.mxu0
      %3942 = vmatprep.mubr.bf16.mxu0 0
      %3943 = vmatmul.mubr.bf16.gmra.mxu0 %v3688
      %v3944 = vpop.f32.mrf.mxu0
      %v3945 = vadd.f32 0.0, %v3944
      %v3946 = vpop.f32.mrf.mxu0
      %v3947 = vpop.f32.mrf.mxu0
      %v3948 = vadd.f32 0.0, %v3947
      %v3949 = vpop.f32.mrf.mxu0
      %3950 = vmatprep.mubr.bf16.mxu0 0
      %3951 = vmatmul.mubr.bf16.gmra.mxu0 %v3691
      %v3952 = vpop.f32.mrf.mxu0
      %v3953 = vadd.f32 0.0, %v3952
      %v3954 = vpop.f32.mrf.mxu0
      %v3955 = vpop.f32.mrf.mxu0
      %v3956 = vadd.f32 0.0, %v3955
      %v3957 = vpop.f32.mrf.mxu0
      %3958 = vmatprep.mubr.bf16.mxu0 0
      %3959 = vmatmul.mubr.bf16.gmra.mxu0 %v3694
      %v3960 = vpop.f32.mrf.mxu0
      %v3961 = vadd.f32 0.0, %v3960
      %v3962 = vpop.f32.mrf.mxu0
      %v3963 = vpop.f32.mrf.mxu0
      %v3964 = vadd.f32 0.0, %v3963
      %v3965 = vpop.f32.mrf.mxu0
      %3966 = vmatprep.mubr.bf16.mxu0 0
      %3967 = vmatmul.mubr.bf16.gmra.mxu0 %v3697
      %v3968 = vpop.f32.mrf.mxu0
      %v3969 = vadd.f32 0.0, %v3968
      %v3970 = vpop.f32.mrf.mxu0
      %v3971 = vpop.f32.mrf.mxu0
      %v3972 = vadd.f32 0.0, %v3971
      %v3973 = vpop.f32.mrf.mxu0
      %3974 = vmatprep.mubr.bf16.mxu0 0
      %3975 = vmatmul.mubr.bf16.gmra.mxu0 %v3700
      %v3976 = vpop.f32.mrf.mxu0
      %v3977 = vadd.f32 0.0, %v3976
      %v3978 = vpop.f32.mrf.mxu0
      %v3979 = vpop.f32.mrf.mxu0
      %v3980 = vadd.f32 0.0, %v3979
      %v3981 = vpop.f32.mrf.mxu0
      %3982 = vmatprep.mubr.bf16.mxu0 0
      %3983 = vmatmul.mubr.bf16.gmra.mxu0 %v3703
      %v3984 = vpop.f32.mrf.mxu0
      %v3985 = vadd.f32 0.0, %v3984
      %v3986 = vpop.f32.mrf.mxu0
      %v3987 = vpop.f32.mrf.mxu0
      %v3988 = vadd.f32 0.0, %v3987
      %v3989 = vpop.f32.mrf.mxu0
      %3990 = vmatprep.mubr.bf16.mxu0 0
      %3991 = vmatmul.mubr.bf16.gmra.mxu0 %v3706
      %v3992 = vpop.f32.mrf.mxu0
      %v3993 = vadd.f32 0.0, %v3992
      %v3994 = vpop.f32.mrf.mxu0
      %v3995 = vpop.f32.mrf.mxu0
      %v3996 = vadd.f32 0.0, %v3995
      %v3997 = vpop.f32.mrf.mxu0
      %3998 = vmatprep.mubr.bf16.mxu0 0
      %3999 = vmatmul.mubr.bf16.gmra.mxu0 %v3709
      %v4000 = vpop.f32.mrf.mxu0
      %v4001 = vadd.f32 0.0, %v4000
      %v4002 = vpop.f32.mrf.mxu0
      %v4003 = vpop.f32.mrf.mxu0
      %v4004 = vadd.f32 0.0, %v4003
      %v4005 = vpop.f32.mrf.mxu0
      %4006 = vmatprep.mubr.bf16.mxu0 0
      %4007 = vmatmul.mubr.bf16.gmra.mxu0 %v3712
      %v4008 = vpop.f32.mrf.mxu0
      %v4009 = vadd.f32 0.0, %v4008
      %v4010 = vpop.f32.mrf.mxu0
      %v4011 = vpop.f32.mrf.mxu0
      %v4012 = vadd.f32 0.0, %v4011
      %v4013 = vpop.f32.mrf.mxu0
      %4014 = vmatprep.mubr.bf16.mxu0 0
      %4015 = vmatmul.mubr.bf16.gmra.mxu0 %v3715
      %v4016 = vpop.f32.mrf.mxu0
      %v4017 = vadd.f32 0.0, %v4016
      %v4018 = vpop.f32.mrf.mxu0
      %v4019 = vpop.f32.mrf.mxu0
      %v4020 = vadd.f32 0.0, %v4019
      %v4021 = vpop.f32.mrf.mxu0
      %4022 = vmatprep.mubr.bf16.mxu0 0
      %4023 = vmatmul.mubr.bf16.gmra.mxu0 %v3718
      %v4024 = vpop.f32.mrf.mxu0
      %v4025 = vadd.f32 0.0, %v4024
      %v4026 = vpop.f32.mrf.mxu0
      %v4027 = vpop.f32.mrf.mxu0
      %v4028 = vadd.f32 0.0, %v4027
      %v4029 = vpop.f32.mrf.mxu0
      %4030 = vmatprep.mubr.bf16.mxu0 0
      %4031 = vmatmul.mubr.bf16.gmra.mxu0 %v3721
      %v4032 = vpop.f32.mrf.mxu0
      %v4033 = vadd.f32 0.0, %v4032
      %v4034 = vpop.f32.mrf.mxu0
      %v4035 = vpop.f32.mrf.mxu0
      %v4036 = vadd.f32 0.0, %v4035
      %v4037 = vpop.f32.mrf.mxu0
      %4038 = vmatprep.mubr.bf16.mxu0 0
      %4039 = vmatmul.mubr.bf16.gmra.mxu0 %v3724
      %v4040 = vpop.f32.mrf.mxu0
      %v4041 = vadd.f32 0.0, %v4040
      %v4042 = vpop.f32.mrf.mxu0
      %v4043 = vpop.f32.mrf.mxu0
      %v4044 = vadd.f32 0.0, %v4043
      %v4045 = vpop.f32.mrf.mxu0
      %4046 = vmatprep.mubr.bf16.mxu0 0
      %4047 = vmatmul.mubr.bf16.gmra.mxu0 %v3727
      %v4048 = vpop.f32.mrf.mxu0
      %v4049 = vadd.f32 0.0, %v4048
      %v4050 = vpop.f32.mrf.mxu0
      %v4051 = vpop.f32.mrf.mxu0
      %v4052 = vadd.f32 0.0, %v4051
      %v4053 = vpop.f32.mrf.mxu0
      %4054 = vmatprep.mubr.bf16.mxu0 0
      %4055 = vmatmul.mubr.bf16.gmra.mxu0 %v3730
      %v4056 = vpop.f32.mrf.mxu0
      %v4057 = vadd.f32 0.0, %v4056
      %v4058 = vpop.f32.mrf.mxu0
      %v4059 = vpop.f32.mrf.mxu0
      %v4060 = vadd.f32 0.0, %v4059
      %v4061 = vpop.f32.mrf.mxu0
      %4062 = vmatprep.mubr.bf16.mxu0 0
      %4063 = vmatmul.mubr.bf16.gmra.mxu0 %v3733
      %v4064 = vpop.f32.mrf.mxu0
      %v4065 = vadd.f32 0.0, %v4064
      %v4066 = vpop.f32.mrf.mxu0
      %v4067 = vpop.f32.mrf.mxu0
      %v4068 = vadd.f32 0.0, %v4067
      %v4069 = vpop.f32.mrf.mxu0
      %4070 = vmatprep.mubr.bf16.mxu0 0
      %4071 = vmatmul.mubr.bf16.gmra.mxu0 %v3736
      %v4072 = vpop.f32.mrf.mxu0
      %v4073 = vadd.f32 0.0, %v4072
      %v4074 = vpop.f32.mrf.mxu0
      %v4075 = vpop.f32.mrf.mxu0
      %v4076 = vadd.f32 0.0, %v4075
      %v4077 = vpop.f32.mrf.mxu0
      %4078 = vmatprep.mubr.bf16.mxu0 0
      %4079 = vmatmul.mubr.bf16.gmra.mxu0 %v3739
      %v4080 = vpop.f32.mrf.mxu0
      %v4081 = vadd.f32 0.0, %v4080
      %v4082 = vpop.f32.mrf.mxu0
      %v4083 = vpop.f32.mrf.mxu0
      %v4084 = vadd.f32 0.0, %v4083
      %v4085 = vpop.f32.mrf.mxu0
      %4086 = vmatprep.mubr.bf16.mxu0 0
      %4087 = vmatmul.mubr.bf16.gmra.mxu0 %v3742
      %v4088 = vpop.f32.mrf.mxu0
      %v4089 = vadd.f32 0.0, %v4088
      %v4090 = vpop.f32.mrf.mxu0
      %v4091 = vpop.f32.mrf.mxu0
      %v4092 = vadd.f32 0.0, %v4091
      %v4093 = vpop.f32.mrf.mxu0
      %4094 = vmatprep.mubr.bf16.mxu0 0
      %4095 = vmatmul.mubr.bf16.gmra.mxu0 %v3745
      %v4096 = vpop.f32.mrf.mxu0
      %v4097 = vadd.f32 0.0, %v4096
      %v4098 = vpop.f32.mrf.mxu0
      %v4099 = vpop.f32.mrf.mxu0
      %v4100 = vadd.f32 0.0, %v4099
      %v4101 = vpop.f32.mrf.mxu0
      %4102 = vmatprep.mubr.bf16.mxu0 0
      %4103 = vmatmul.mubr.bf16.gmra.mxu0 %v3748
      %v4104 = vpop.f32.mrf.mxu0
      %v4105 = vadd.f32 0.0, %v4104
      %v4106 = vpop.f32.mrf.mxu0
      %v4107 = vpop.f32.mrf.mxu0
      %v4108 = vadd.f32 0.0, %v4107
      %v4109 = vpop.f32.mrf.mxu0
      %4110 = vmatprep.mubr.bf16.mxu0 0
      %4111 = vmatmul.mubr.bf16.gmra.mxu0 %v3751
      %v4112 = vpop.f32.mrf.mxu0
      %v4113 = vadd.f32 0.0, %v4112
      %v4114 = vpop.f32.mrf.mxu0
      %v4115 = vpop.f32.mrf.mxu0
      %v4116 = vadd.f32 0.0, %v4115
      %v4117 = vpop.f32.mrf.mxu0
      %4118 = vmatprep.mubr.bf16.mxu0 0
      %4119 = vmatmul.mubr.bf16.gmra.mxu0 %v3754
      %v4120 = vpop.f32.mrf.mxu0
      %v4121 = vadd.f32 0.0, %v4120
      %v4122 = vpop.f32.mrf.mxu0
      %v4123 = vpop.f32.mrf.mxu0
      %v4124 = vadd.f32 0.0, %v4123
      %v4125 = vpop.f32.mrf.mxu0
      %4126 = vmatprep.mubr.bf16.mxu0 0
      %4127 = vmatmul.mubr.bf16.gmra.mxu0 %v3757
      %v4128 = vpop.f32.mrf.mxu0
      %v4129 = vadd.f32 0.0, %v4128
      %v4130 = vpop.f32.mrf.mxu0
      %v4131 = vpop.f32.mrf.mxu0
      %v4132 = vadd.f32 0.0, %v4131
      %v4133 = vpop.f32.mrf.mxu0
      %4134 = vmatprep.mubr.bf16.mxu0 0
      %4135 = vmatmul.mubr.bf16.gmra.mxu0 %v3760
      %v4136 = vpop.f32.mrf.mxu0
      %v4137 = vadd.f32 0.0, %v4136
      %v4138 = vpop.f32.mrf.mxu0
      %v4139 = vpop.f32.mrf.mxu0
      %v4140 = vadd.f32 0.0, %v4139
      %v4141 = vpop.f32.mrf.mxu0
      %4142 = vmatprep.mubr.bf16.mxu0 0
      %4143 = vmatmul.mubr.bf16.gmra.mxu0 %v3763
      %v4144 = vpop.f32.mrf.mxu0
      %v4145 = vadd.f32 0.0, %v4144
      %v4146 = vpop.f32.mrf.mxu0
      %v4147 = vpop.f32.mrf.mxu0
      %v4148 = vadd.f32 0.0, %v4147
      %v4149 = vpop.f32.mrf.mxu0
      %4150 = vmatprep.mubr.bf16.mxu0 0
      %4151 = vmatmul.mubr.bf16.gmra.mxu0 %v3766
      %v4152 = vpop.f32.mrf.mxu0
      %v4153 = vadd.f32 0.0, %v4152
      %v4154 = vpop.f32.mrf.mxu0
      %v4155 = vpop.f32.mrf.mxu0
      %v4156 = vadd.f32 0.0, %v4155
      %v4157 = vpop.f32.mrf.mxu0
      %4158 = vmatprep.mubr.bf16.mxu0 0
      %4159 = vmatmul.mubr.bf16.gmra.mxu0 %v3769
      %v4160 = vpop.f32.mrf.mxu0
      %v4161 = vadd.f32 0.0, %v4160
      %v4162 = vpop.f32.mrf.mxu0
      %v4163 = vpop.f32.mrf.mxu0
      %v4164 = vadd.f32 0.0, %v4163
      %v4165 = vpop.f32.mrf.mxu0
      %4166 = vmatprep.mubr.bf16.mxu0 0
      %4167 = vmatmul.mubr.bf16.gmra.mxu0 %v3772
      %v4168 = vpop.f32.mrf.mxu0
      %v4169 = vadd.f32 0.0, %v4168
      %v4170 = vpop.f32.mrf.mxu0
      %v4171 = vpop.f32.mrf.mxu0
      %v4172 = vadd.f32 0.0, %v4171
      %v4173 = vpop.f32.mrf.mxu0
      %4174 = vmatprep.mubr.bf16.mxu0 0
      %4175 = vmatmul.mubr.bf16.gmra.mxu0 %v3775
      %v4176 = vpop.f32.mrf.mxu0
      %v4177 = vadd.f32 0.0, %v4176
      %v4178 = vpop.f32.mrf.mxu0
      %v4179 = vpop.f32.mrf.mxu0
      %v4180 = vadd.f32 0.0, %v4179
      %v4181 = vpop.f32.mrf.mxu0
      %4182 = vmatprep.mubr.bf16.mxu0 0
      %4183 = vmatmul.mubr.bf16.gmra.mxu0 %v3778
      %v4184 = vpop.f32.mrf.mxu0
      %v4185 = vadd.f32 0.0, %v4184
      %v4186 = vpop.f32.mrf.mxu0
      %v4187 = vpop.f32.mrf.mxu0
      %v4188 = vadd.f32 0.0, %v4187
      %v4189 = vpop.f32.mrf.mxu0
      %4190 = vmatprep.mubr.bf16.mxu0 0
      %4191 = vmatmul.mubr.bf16.gmra.mxu0 %v3781
      %v4192 = vpop.f32.mrf.mxu0
      %v4193 = vadd.f32 0.0, %v4192
      %v4194 = vpop.f32.mrf.mxu0
      %v4195 = vpop.f32.mrf.mxu0
      %v4196 = vadd.f32 0.0, %v4195
      %v4197 = vpop.f32.mrf.mxu0
      %4198 = vmatprep.mubr.bf16.mxu0 0
      %4199 = vmatmul.mubr.bf16.gmra.mxu0 %v3784
      %v4200 = vpop.f32.mrf.mxu0
      %v4201 = vadd.f32 0.0, %v4200
      %v4202 = vpop.f32.mrf.mxu0
      %v4203 = vpop.f32.mrf.mxu0
      %v4204 = vadd.f32 0.0, %v4203
      %v4205 = vpop.f32.mrf.mxu0
      %4206 = vmatprep.mubr.bf16.mxu0 0
      %4207 = vmatmul.mubr.bf16.gmra.mxu0 %v3787
      %v4208 = vpop.f32.mrf.mxu0
      %v4209 = vadd.f32 0.0, %v4208
      %v4210 = vpop.f32.mrf.mxu0
      %v4211 = vpop.f32.mrf.mxu0
      %v4212 = vadd.f32 0.0, %v4211
      %v4213 = vpop.f32.mrf.mxu0
      %4214 = vmatprep.mubr.bf16.mxu0 0
      %4215 = vmatmul.mubr.bf16.gmra.mxu0 %v3790
      %v4216 = vpop.f32.mrf.mxu0
      %v4217 = vadd.f32 0.0, %v4216
      %v4218 = vpop.f32.mrf.mxu0
      %v4219 = vpop.f32.mrf.mxu0
      %v4220 = vadd.f32 0.0, %v4219
      %v4221 = vpop.f32.mrf.mxu0
      %4222 = vmatprep.mubr.bf16.mxu0 0
      %4223 = vmatmul.mubr.bf16.gmra.mxu0 %v3793
      %v4224 = vpop.f32.mrf.mxu0
      %v4225 = vadd.f32 0.0, %v4224
      %v4226 = vpop.f32.mrf.mxu0
      %v4227 = vpop.f32.mrf.mxu0
      %v4228 = vadd.f32 0.0, %v4227
      %v4229 = vpop.f32.mrf.mxu0
      %4230 = vmatprep.mubr.bf16.mxu0 0
      %4231 = vmatmul.mubr.bf16.gmra.mxu0 %v3796
      %v4232 = vpop.f32.mrf.mxu0
      %v4233 = vadd.f32 0.0, %v4232
      %v4234 = vpop.f32.mrf.mxu0
      %v4235 = vpop.f32.mrf.mxu0
      %v4236 = vadd.f32 0.0, %v4235
      %v4237 = vpop.f32.mrf.mxu0
      %4238 = vmatprep.mubr.bf16.mxu0 0
      %4239 = vmatmul.mubr.bf16.gmra.mxu0 %v3799
      %v4240 = vpop.f32.mrf.mxu0
      %v4241 = vadd.f32 0.0, %v4240
      %v4242 = vpop.f32.mrf.mxu0
      %v4243 = vpop.f32.mrf.mxu0
      %v4244 = vadd.f32 0.0, %v4243
      %v4245 = vpop.f32.mrf.mxu0
      %4246 = vmatprep.mubr.bf16.mxu0 0
      %4247 = vmatmul.mubr.bf16.gmra.mxu0 %v3802
      %v4248 = vpop.f32.mrf.mxu0
      %v4249 = vadd.f32 0.0, %v4248
      %v4250 = vpop.f32.mrf.mxu0
      %v4251 = vpop.f32.mrf.mxu0
      %v4252 = vadd.f32 0.0, %v4251
      %v4253 = vpop.f32.mrf.mxu0
      %4254 = vmatprep.mubr.bf16.mxu0 0
      %4255 = vmatmul.mubr.bf16.gmra.mxu0 %v3805
      %v4256 = vpop.f32.mrf.mxu0
      %v4257 = vadd.f32 0.0, %v4256
      %v4258 = vpop.f32.mrf.mxu0
      %v4259 = vpop.f32.mrf.mxu0
      %v4260 = vadd.f32 0.0, %v4259
      %v4261 = vpop.f32.mrf.mxu0
      %4262 = vmatprep.mubr.bf16.mxu0 0
      %4263 = vmatmul.mubr.bf16.gmra.mxu0 %v3808
      %v4264 = vpop.f32.mrf.mxu0
      %v4265 = vadd.f32 0.0, %v4264
      %v4266 = vpop.f32.mrf.mxu0
      %v4267 = vpop.f32.mrf.mxu0
      %v4268 = vadd.f32 0.0, %v4267
      %v4269 = vpop.f32.mrf.mxu0
      %4270 = vmatprep.mubr.bf16.mxu0 0
      %4271 = vmatmul.mubr.bf16.gmra.mxu0 %v3811
      %v4272 = vpop.f32.mrf.mxu0
      %v4273 = vadd.f32 0.0, %v4272
      %v4274 = vpop.f32.mrf.mxu0
      %v4275 = vpop.f32.mrf.mxu0
      %v4276 = vadd.f32 0.0, %v4275
      %v4277 = vpop.f32.mrf.mxu0
      %4278 = vmatprep.mubr.bf16.mxu0 0
      %4279 = vmatmul.mubr.bf16.gmra.mxu0 %v3814
      %v4280 = vpop.f32.mrf.mxu0
      %v4281 = vadd.f32 0.0, %v4280
      %v4282 = vpop.f32.mrf.mxu0
      %v4283 = vpop.f32.mrf.mxu0
      %v4284 = vadd.f32 0.0, %v4283
      %v4285 = vpop.f32.mrf.mxu0
      %4286 = vmatprep.mubr.bf16.mxu0 0
      %4287 = vmatmul.mubr.bf16.gmra.mxu0 %v3817
      %v4288 = vpop.f32.mrf.mxu0
      %v4289 = vadd.f32 0.0, %v4288
      %v4290 = vpop.f32.mrf.mxu0
      %v4291 = vpop.f32.mrf.mxu0
      %v4292 = vadd.f32 0.0, %v4291
      %v4293 = vpop.f32.mrf.mxu0
      %4294 = vmatprep.mubr.bf16.mxu0 0
      %4295 = vmatmul.mubr.bf16.gmra.mxu0 %v3820
      %v4296 = vpop.f32.mrf.mxu0
      %v4297 = vadd.f32 0.0, %v4296
      %v4298 = vpop.f32.mrf.mxu0
      %v4299 = vpop.f32.mrf.mxu0
      %v4300 = vadd.f32 0.0, %v4299
      %v4301 = vpop.f32.mrf.mxu0
      %4302 = vmatprep.mubr.bf16.mxu0 0
      %4303 = vmatmul.mubr.bf16.gmra.mxu0 %v3823
      %v4304 = vpop.f32.mrf.mxu0
      %v4305 = vadd.f32 0.0, %v4304
      %v4306 = vpop.f32.mrf.mxu0
      %v4307 = vpop.f32.mrf.mxu0
      %v4308 = vadd.f32 0.0, %v4307
      %v4309 = vpop.f32.mrf.mxu0
      %4310 = vmatprep.mubr.bf16.mxu0 0
      %4311 = vmatmul.mubr.bf16.gmra.mxu0 %v3826
      %v4312 = vpop.f32.mrf.mxu0
      %v4313 = vadd.f32 0.0, %v4312
      %v4314 = vpop.f32.mrf.mxu0
      %v4315 = vpop.f32.mrf.mxu0
      %v4316 = vadd.f32 0.0, %v4315
      %v4317 = vpop.f32.mrf.mxu0
      %4318 = vmatprep.mubr.bf16.mxu0 0
      %4319 = vmatmul.mubr.bf16.gmra.mxu0 %v3829
      %v4320 = vpop.f32.mrf.mxu0
      %v4321 = vadd.f32 0.0, %v4320
      %v4322 = vpop.f32.mrf.mxu0
      %v4323 = vpop.f32.mrf.mxu0
      %v4324 = vadd.f32 0.0, %v4323
      %v4325 = vpop.f32.mrf.mxu0
      %4326 = vmatprep.mubr.bf16.mxu0 0
      %4327 = vmatmul.mubr.bf16.gmra.mxu0 %v3832
      %v4328 = vpop.f32.mrf.mxu0
      %v4329 = vadd.f32 0.0, %v4328
      %v4330 = vpop.f32.mrf.mxu0
      %v4331 = vpop.f32.mrf.mxu0
      %v4332 = vadd.f32 0.0, %v4331
      %v4333 = vpop.f32.mrf.mxu0
      %4334 = vmatprep.mubr.bf16.mxu0 0
      %4335 = vmatmul.mubr.bf16.gmra.mxu0 %v3835
      %v4336 = vpop.f32.mrf.mxu0
      %v4337 = vadd.f32 0.0, %v4336
      %v4338 = vpop.f32.mrf.mxu0
      %v4339 = vpop.f32.mrf.mxu0
      %v4340 = vadd.f32 0.0, %v4339
      %v4341 = vpop.f32.mrf.mxu0
      %4342 = vmatprep.mubr.bf16.mxu0 0
      %4343 = vmatmul.mubr.bf16.gmra.mxu0 %v3838
      %v4344 = vpop.f32.mrf.mxu0
      %v4345 = vadd.f32 0.0, %v4344
      %v4346 = vpop.f32.mrf.mxu0
      %v4347 = vpop.f32.mrf.mxu0
      %v4348 = vadd.f32 0.0, %v4347
      %v4349 = vpop.f32.mrf.mxu0
      %4350 = vmatprep.mubr.bf16.mxu0 0
      %4351 = vmatmul.mubr.bf16.gmra.mxu0 %v3841
      %v4352 = vpop.f32.mrf.mxu0
      %v4353 = vadd.f32 0.0, %v4352
      %v4354 = vpop.f32.mrf.mxu0
      %v4355 = vpop.f32.mrf.mxu0
      %v4356 = vadd.f32 0.0, %v4355
      %v4357 = vpop.f32.mrf.mxu0
      %4358 = vmatprep.mubr.bf16.mxu0 0
      %4359 = vmatmul.mubr.bf16.gmra.mxu0 %v3844
      %v4360 = vpop.f32.mrf.mxu0
      %v4361 = vadd.f32 0.0, %v4360
      %v4362 = vpop.f32.mrf.mxu0
      %v4363 = vpop.f32.mrf.mxu0
      %v4364 = vadd.f32 0.0, %v4363
      %v4365 = vpop.f32.mrf.mxu0
      %4366 = vmatprep.mubr.bf16.mxu0 0
      %4367 = vmatmul.mubr.bf16.gmra.mxu0 %v3847
      %v4368 = vpop.f32.mrf.mxu0
      %v4369 = vadd.f32 0.0, %v4368
      %v4370 = vpop.f32.mrf.mxu0
      %v4371 = vpop.f32.mrf.mxu0
      %v4372 = vadd.f32 0.0, %v4371
      %v4373 = vpop.f32.mrf.mxu0
      %4374 = vmatprep.mubr.bf16.mxu0 0
      %4375 = vmatmul.mubr.bf16.gmra.mxu0 %v3850
      %v4376 = vpop.f32.mrf.mxu0
      %v4377 = vadd.f32 0.0, %v4376
      %v4378 = vpop.f32.mrf.mxu0
      %v4379 = vpop.f32.mrf.mxu0
      %v4380 = vadd.f32 0.0, %v4379
      %v4381 = vpop.f32.mrf.mxu0
      %4382 = vmatprep.mubr.bf16.mxu0 0
      %4383 = vmatmul.mubr.bf16.gmra.mxu0 %v3853
      %v4384 = vpop.f32.mrf.mxu0
      %v4385 = vadd.f32 0.0, %v4384
      %v4386 = vpop.f32.mrf.mxu0
      %v4387 = vpop.f32.mrf.mxu0
      %v4388 = vadd.f32 0.0, %v4387
      %v4389 = vpop.f32.mrf.mxu0
      %4390 = vmatprep.mubr.bf16.mxu0 0
      %4391 = vmatmul.mubr.bf16.gmra.mxu0 %v3856
      %v4392 = vpop.f32.mrf.mxu0
      %v4393 = vadd.f32 0.0, %v4392
      %v4394 = vpop.f32.mrf.mxu0
      %v4395 = vpop.f32.mrf.mxu0
      %v4396 = vadd.f32 0.0, %v4395
      %v4397 = vpop.f32.mrf.mxu0
      %4398 = vmatprep.mubr.bf16.mxu0 0
      %4399 = vmatmul.mubr.bf16.gmra.mxu0 %v3859
      %v4400 = vpop.f32.mrf.mxu0
      %v4401 = vadd.f32 0.0, %v4400
      %v4402 = vpop.f32.mrf.mxu0
      %v4403 = vpop.f32.mrf.mxu0
      %v4404 = vadd.f32 0.0, %v4403
      %v4405 = vpop.f32.mrf.mxu0
      %4406 = vmatprep.mubr.bf16.mxu0 0
      %4407 = vmatmul.mubr.bf16.gmra.mxu0 %v3862
      %v4408 = vpop.f32.mrf.mxu0
      %v4409 = vadd.f32 0.0, %v4408
      %v4410 = vpop.f32.mrf.mxu0
      %v4411 = vpop.f32.mrf.mxu0
      %v4412 = vadd.f32 0.0, %v4411
      %v4413 = vpop.f32.mrf.mxu0
      %4414 = vmatprep.mubr.bf16.mxu0 0
      %4415 = vmatmul.mubr.bf16.gmra.mxu0 %v3865
      %v4416 = vpop.f32.mrf.mxu0
      %v4417 = vadd.f32 0.0, %v4416
      %v4418 = vpop.f32.mrf.mxu0
      %v4419 = vpop.f32.mrf.mxu0
      %v4420 = vadd.f32 0.0, %v4419
      %v4421 = vpop.f32.mrf.mxu0
      %4422 = vmatprep.mubr.bf16.mxu0 0
      %4423 = vmatmul.mubr.bf16.gmra.mxu0 %v3868
      %v4424 = vpop.f32.mrf.mxu0
      %v4425 = vadd.f32 0.0, %v4424
      %v4426 = vpop.f32.mrf.mxu0
      %v4427 = vpop.f32.mrf.mxu0
      %v4428 = vadd.f32 0.0, %v4427
      %v4429 = vpop.f32.mrf.mxu0
      %4430 = vdwg.mxu0
      %v4431 = vadd.f32 %v2131, %v3905
      %v4432 = vadd.f32 %v2134, %v3908
      %v4433 = vadd.f32 %v2139, %v3913
      %v4434 = vadd.f32 %v2142, %v3916
      %v4435 = vadd.f32 %v2147, %v3921
      %v4436 = vadd.f32 %v2150, %v3924
      %v4437 = vadd.f32 %v2155, %v3929
      %v4438 = vadd.f32 %v2158, %v3932
      %v4439 = vadd.f32 %v2163, %v3937
      %v4440 = vadd.f32 %v2166, %v3940
      %v4441 = vadd.f32 %v2171, %v3945
      %v4442 = vadd.f32 %v2174, %v3948
      %v4443 = vadd.f32 %v2179, %v3953
      %v4444 = vadd.f32 %v2182, %v3956
      %v4445 = vadd.f32 %v2187, %v3961
      %v4446 = vadd.f32 %v2190, %v3964
      %v4447 = vadd.f32 %v2195, %v3969
      %v4448 = vadd.f32 %v2198, %v3972
      %v4449 = vadd.f32 %v2203, %v3977
      %v4450 = vadd.f32 %v2206, %v3980
      %v4451 = vadd.f32 %v2211, %v3985
      %v4452 = vadd.f32 %v2214, %v3988
      %v4453 = vadd.f32 %v2219, %v3993
      %v4454 = vadd.f32 %v2222, %v3996
      %v4455 = vadd.f32 %v2227, %v4001
      %v4456 = vadd.f32 %v2230, %v4004
      %v4457 = vadd.f32 %v2235, %v4009
      %v4458 = vadd.f32 %v2238, %v4012
      %v4459 = vadd.f32 %v2243, %v4017
      %v4460 = vadd.f32 %v2246, %v4020
      %v4461 = vadd.f32 %v2251, %v4025
      %v4462 = vadd.f32 %v2254, %v4028
      %v4463 = vadd.f32 %v2259, %v4033
      %v4464 = vadd.f32 %v2262, %v4036
      %v4465 = vadd.f32 %v2267, %v4041
      %v4466 = vadd.f32 %v2270, %v4044
      %v4467 = vadd.f32 %v2275, %v4049
      %v4468 = vadd.f32 %v2278, %v4052
      %v4469 = vadd.f32 %v2283, %v4057
      %v4470 = vadd.f32 %v2286, %v4060
      %v4471 = vadd.f32 %v2291, %v4065
      %v4472 = vadd.f32 %v2294, %v4068
      %v4473 = vadd.f32 %v2299, %v4073
      %v4474 = vadd.f32 %v2302, %v4076
      %v4475 = vadd.f32 %v2307, %v4081
      %v4476 = vadd.f32 %v2310, %v4084
      %v4477 = vadd.f32 %v2315, %v4089
      %v4478 = vadd.f32 %v2318, %v4092
      %v4479 = vadd.f32 %v2323, %v4097
      %v4480 = vadd.f32 %v2326, %v4100
      %v4481 = vadd.f32 %v2331, %v4105
      %v4482 = vadd.f32 %v2334, %v4108
      %v4483 = vadd.f32 %v2339, %v4113
      %v4484 = vadd.f32 %v2342, %v4116
      %v4485 = vadd.f32 %v2347, %v4121
      %v4486 = vadd.f32 %v2350, %v4124
      %v4487 = vadd.f32 %v2355, %v4129
      %v4488 = vadd.f32 %v2358, %v4132
      %v4489 = vadd.f32 %v2363, %v4137
      %v4490 = vadd.f32 %v2366, %v4140
      %v4491 = vadd.f32 %v2371, %v4145
      %v4492 = vadd.f32 %v2374, %v4148
      %v4493 = vadd.f32 %v2379, %v4153
      %v4494 = vadd.f32 %v2382, %v4156
      %v4495 = vadd.f32 %v2387, %v4161
      %v4496 = vadd.f32 %v2390, %v4164
      %v4497 = vadd.f32 %v2395, %v4169
      %v4498 = vadd.f32 %v2398, %v4172
      %v4499 = vadd.f32 %v2403, %v4177
      %v4500 = vadd.f32 %v2406, %v4180
      %v4501 = vadd.f32 %v2411, %v4185
      %v4502 = vadd.f32 %v2414, %v4188
      %v4503 = vadd.f32 %v2419, %v4193
      %v4504 = vadd.f32 %v2422, %v4196
      %v4505 = vadd.f32 %v2427, %v4201
      %v4506 = vadd.f32 %v2430, %v4204
      %v4507 = vadd.f32 %v2435, %v4209
      %v4508 = vadd.f32 %v2438, %v4212
      %v4509 = vadd.f32 %v2443, %v4217
      %v4510 = vadd.f32 %v2446, %v4220
      %v4511 = vadd.f32 %v2451, %v4225
      %v4512 = vadd.f32 %v2454, %v4228
      %v4513 = vadd.f32 %v2459, %v4233
      %v4514 = vadd.f32 %v2462, %v4236
      %v4515 = vadd.f32 %v2467, %v4241
      %v4516 = vadd.f32 %v2470, %v4244
      %v4517 = vadd.f32 %v2475, %v4249
      %v4518 = vadd.f32 %v2478, %v4252
      %v4519 = vadd.f32 %v2483, %v4257
      %v4520 = vadd.f32 %v2486, %v4260
      %v4521 = vadd.f32 %v2491, %v4265
      %v4522 = vadd.f32 %v2494, %v4268
      %v4523 = vadd.f32 %v2499, %v4273
      %v4524 = vadd.f32 %v2502, %v4276
      %v4525 = vadd.f32 %v2507, %v4281
      %v4526 = vadd.f32 %v2510, %v4284
      %v4527 = vadd.f32 %v2515, %v4289
      %v4528 = vadd.f32 %v2518, %v4292
      %v4529 = vadd.f32 %v2523, %v4297
      %v4530 = vadd.f32 %v2526, %v4300
      %v4531 = vadd.f32 %v2531, %v4305
      %v4532 = vadd.f32 %v2534, %v4308
      %v4533 = vadd.f32 %v2539, %v4313
      %v4534 = vadd.f32 %v2542, %v4316
      %v4535 = vadd.f32 %v2547, %v4321
      %v4536 = vadd.f32 %v2550, %v4324
      %v4537 = vadd.f32 %v2555, %v4329
      %v4538 = vadd.f32 %v2558, %v4332
      %v4539 = vadd.f32 %v2563, %v4337
      %v4540 = vadd.f32 %v2566, %v4340
      %v4541 = vadd.f32 %v2571, %v4345
      %v4542 = vadd.f32 %v2574, %v4348
      %v4543 = vadd.f32 %v2579, %v4353
      %v4544 = vadd.f32 %v2582, %v4356
      %v4545 = vadd.f32 %v2587, %v4361
      %v4546 = vadd.f32 %v2590, %v4364
      %v4547 = vadd.f32 %v2595, %v4369
      %v4548 = vadd.f32 %v2598, %v4372
      %v4549 = vadd.f32 %v2603, %v4377
      %v4550 = vadd.f32 %v2606, %v4380
      %v4551 = vadd.f32 %v2611, %v4385
      %v4552 = vadd.f32 %v2614, %v4388
      %v4553 = vadd.f32 %v2619, %v4393
      %v4554 = vadd.f32 %v2622, %v4396
      %v4555 = vadd.f32 %v2627, %v4401
      %v4556 = vadd.f32 %v2630, %v4404
      %v4557 = vadd.f32 %v2635, %v4409
      %v4558 = vadd.f32 %v2638, %v4412
      %v4559 = vadd.f32 %v2643, %v4417
      %v4560 = vadd.f32 %v2646, %v4420
      %v4561 = vadd.f32 %v2651, %v4425
      %v4562 = vadd.f32 %v2654, %v4428
      %v4563 = vld [vmem:[%s165 + $0x10] sm:$0xe]
      %s4564 = scalar_lea.vmem %s1, 48
      %v4565 = vld [vmem:[%s4564] sm:$0xf]
      %v4566 = vld [vmem:[%s4564 + $0x4] sm:$0xf]
      %v4567 = vld [vmem:[%s4564 + $0x8] sm:$0xf]
      %v4568 = vld [vmem:[%s4564 + $0xc] sm:$0xf]
      %v4570 = vunpack.c.l.b16 %v4563
      %v4571 = vpack.c.b16 %v2929, %v4570
      %vm4572 = vcmask 1046528
      %v4573 = vrot.slane %v4571, 1
      %v4574 = vrot.slane %v3062, 1
      %v4575 = vsel %vm4572, %v4573, %v4574
      %v4576 = vrot.slane %v3063, 1
      %v4577 = vsel %vm4572, %v4574, %v4576
      %v4578 = vrot.slane %v3064, 1
      %v4579 = vsel %vm4572, %v4576, %v4578
      %v4580 = vrot.slane %v3065, 1
      %v4581 = vsel %vm4572, %v4578, %v4580
      %v4582 = vrot.slane %v3066, 1
      %v4583 = vsel %vm4572, %v4580, %v4582
      %v4584 = vrot.slane %v3067, 1
      %v4585 = vsel %vm4572, %v4582, %v4584
      %v4586 = vrot.slane %v3068, 1
      %v4587 = vsel %vm4572, %v4584, %v4586
      %v4588 = vrot.slane %v3069, 1
      %v4589 = vsel %vm4572, %v4586, %v4588
      %v4590 = vrot.slane %v3070, 1
      %v4591 = vsel %vm4572, %v4588, %v4590
      %v4592 = vrot.slane %v3071, 1
      %v4593 = vsel %vm4572, %v4590, %v4592
      %v4594 = vrot.slane %v3072, 1
      %v4595 = vsel %vm4572, %v4592, %v4594
      %v4596 = vrot.slane %v3073, 1
      %v4597 = vsel %vm4572, %v4594, %v4596
      %v4598 = vrot.slane %v3074, 1
      %v4599 = vsel %vm4572, %v4596, %v4598
      %v4600 = vrot.slane %v3075, 1
      %v4601 = vsel %vm4572, %v4598, %v4600
      %v4602 = vrot.slane %v3076, 1
      %v4603 = vsel %vm4572, %v4600, %v4602
      %v4604 = vrot.slane %v3077, 1
      %v4605 = vsel %vm4572, %v4602, %v4604
      %v4606 = vrot.slane %v3078, 1
      %v4607 = vsel %vm4572, %v4604, %v4606
      %v4608 = vrot.slane %v3079, 1
      %v4609 = vsel %vm4572, %v4606, %v4608
      %v4610 = vrot.slane %v3080, 1
      %v4611 = vsel %vm4572, %v4608, %v4610
      %v4612 = vrot.slane %v3081, 1
      %v4613 = vsel %vm4572, %v4610, %v4612
      %v4614 = vrot.slane %v3082, 1
      %v4615 = vsel %vm4572, %v4612, %v4614
      %v4616 = vrot.slane %v3083, 1
      %v4617 = vsel %vm4572, %v4614, %v4616
      %v4618 = vrot.slane %v3084, 1
      %v4619 = vsel %vm4572, %v4616, %v4618
      %v4620 = vrot.slane %v3085, 1
      %v4621 = vsel %vm4572, %v4618, %v4620
      %v4622 = vrot.slane %v3086, 1
      %v4623 = vsel %vm4572, %v4620, %v4622
      %v4624 = vrot.slane %v3087, 1
      %v4625 = vsel %vm4572, %v4622, %v4624
      %v4626 = vrot.slane %v3088, 1
      %v4627 = vsel %vm4572, %v4624, %v4626
      %v4628 = vrot.slane %v3089, 1
      %v4629 = vsel %vm4572, %v4626, %v4628
      %v4630 = vrot.slane %v3090, 1
      %v4631 = vsel %vm4572, %v4628, %v4630
      %v4632 = vrot.slane %v3091, 1
      %v4633 = vsel %vm4572, %v4630, %v4632
      %v4634 = vrot.slane %v3092, 1
      %v4635 = vsel %vm4572, %v4632, %v4634
      %v4636 = vrot.slane %v3093, 1
      %v4637 = vsel %vm4572, %v4634, %v4636
      %v4638 = vrot.slane %v3094, 1
      %v4639 = vsel %vm4572, %v4636, %v4638
      %v4640 = vrot.slane %v3095, 1
      %v4641 = vsel %vm4572, %v4638, %v4640
      %v4642 = vrot.slane %v3096, 1
      %v4643 = vsel %vm4572, %v4640, %v4642
      %v4644 = vrot.slane %v3097, 1
      %v4645 = vsel %vm4572, %v4642, %v4644
      %v4646 = vrot.slane %v3098, 1
      %v4647 = vsel %vm4572, %v4644, %v4646
      %v4648 = vrot.slane %v3099, 1
      %v4649 = vsel %vm4572, %v4646, %v4648
      %v4650 = vrot.slane %v3100, 1
      %v4651 = vsel %vm4572, %v4648, %v4650
      %v4652 = vrot.slane %v3101, 1
      %v4653 = vsel %vm4572, %v4650, %v4652
      %v4654 = vrot.slane %v3102, 1
      %v4655 = vsel %vm4572, %v4652, %v4654
      %v4656 = vrot.slane %v3103, 1
      %v4657 = vsel %vm4572, %v4654, %v4656
      %v4658 = vrot.slane %v3104, 1
      %v4659 = vsel %vm4572, %v4656, %v4658
      %v4660 = vrot.slane %v3105, 1
      %v4661 = vsel %vm4572, %v4658, %v4660
      %v4662 = vrot.slane %v3106, 1
      %v4663 = vsel %vm4572, %v4660, %v4662
      %v4664 = vrot.slane %v3107, 1
      %v4665 = vsel %vm4572, %v4662, %v4664
      %v4666 = vrot.slane %v3108, 1
      %v4667 = vsel %vm4572, %v4664, %v4666
      %v4668 = vrot.slane %v3109, 1
      %v4669 = vsel %vm4572, %v4666, %v4668
      %v4670 = vrot.slane %v3110, 1
      %v4671 = vsel %vm4572, %v4668, %v4670
      %v4672 = vrot.slane %v3111, 1
      %v4673 = vsel %vm4572, %v4670, %v4672
      %v4674 = vrot.slane %v3112, 1
      %v4675 = vsel %vm4572, %v4672, %v4674
      %v4676 = vrot.slane %v3113, 1
      %v4677 = vsel %vm4572, %v4674, %v4676
      %v4678 = vrot.slane %v3114, 1
      %v4679 = vsel %vm4572, %v4676, %v4678
      %v4680 = vrot.slane %v3115, 1
      %v4681 = vsel %vm4572, %v4678, %v4680
      %v4682 = vrot.slane %v3116, 1
      %v4683 = vsel %vm4572, %v4680, %v4682
      %v4684 = vrot.slane %v3117, 1
      %v4685 = vsel %vm4572, %v4682, %v4684
      %v4686 = vrot.slane %v3118, 1
      %v4687 = vsel %vm4572, %v4684, %v4686
      %v4688 = vrot.slane %v3119, 1
      %v4689 = vsel %vm4572, %v4686, %v4688
      %v4690 = vrot.slane %v3120, 1
      %v4691 = vsel %vm4572, %v4688, %v4690
      %v4692 = vrot.slane %v3121, 1
      %v4693 = vsel %vm4572, %v4690, %v4692
      %v4694 = vrot.slane %v3122, 1
      %v4695 = vsel %vm4572, %v4692, %v4694
      %v4696 = vrot.slane %v3123, 1
      %v4697 = vsel %vm4572, %v4694, %v4696
      %v4698 = vrot.slane %v3124, 1
      %v4699 = vsel %vm4572, %v4696, %v4698
      %v4700 = vrot.slane %v3125, 1
      %v4701 = vsel %vm4572, %v4698, %v4700
      %v4702 = vrot.slane %v3126, 1
      %v4703 = vsel %vm4572, %v4700, %v4702
      %v4704 = vrot.slane %v3127, 1
      %v4705 = vsel %vm4572, %v4702, %v4704
      %v4710 = vunpack.c.l.b16 %v4565
      %v4711 = vunpack.c.l.b16 %v4566
      %v4712 = vunpack.c.l.b16 %v4567
      %v4713 = vunpack.c.l.b16 %v4568
      %v4714 = vpack.c.b16 %v4711, %v4710
      %v4715 = vpack.c.b16 %v4713, %v4712
      %v4719 = vsel %vm1192, %v4575, 0
      %v4722 = vsel %vm1192, %v4577, 0
      %v4725 = vsel %vm1192, %v4579, 0
      %v4728 = vsel %vm1192, %v4581, 0
      %v4731 = vsel %vm1192, %v4583, 0
      %v4734 = vsel %vm1192, %v4585, 0
      %v4737 = vsel %vm1192, %v4587, 0
      %v4740 = vsel %vm1192, %v4589, 0
      %v4743 = vsel %vm1192, %v4591, 0
      %v4746 = vsel %vm1192, %v4593, 0
      %v4749 = vsel %vm1192, %v4595, 0
      %v4752 = vsel %vm1192, %v4597, 0
      %v4755 = vsel %vm1192, %v4599, 0
      %v4758 = vsel %vm1192, %v4601, 0
      %v4761 = vsel %vm1192, %v4603, 0
      %v4764 = vsel %vm1192, %v4605, 0
      %v4767 = vsel %vm1192, %v4607, 0
      %v4770 = vsel %vm1192, %v4609, 0
      %v4773 = vsel %vm1192, %v4611, 0
      %v4776 = vsel %vm1192, %v4613, 0
      %v4779 = vsel %vm1192, %v4615, 0
      %v4782 = vsel %vm1192, %v4617, 0
      %v4785 = vsel %vm1192, %v4619, 0
      %v4788 = vsel %vm1192, %v4621, 0
      %v4791 = vsel %vm1192, %v4623, 0
      %v4794 = vsel %vm1192, %v4625, 0
      %v4797 = vsel %vm1192, %v4627, 0
      %v4800 = vsel %vm1192, %v4629, 0
      %v4803 = vsel %vm1192, %v4631, 0
      %v4806 = vsel %vm1192, %v4633, 0
      %v4809 = vsel %vm1192, %v4635, 0
      %v4812 = vsel %vm1192, %v4637, 0
      %v4815 = vsel %vm1192, %v4639, 0
      %v4818 = vsel %vm1192, %v4641, 0
      %v4821 = vsel %vm1192, %v4643, 0
      %v4824 = vsel %vm1192, %v4645, 0
      %v4827 = vsel %vm1192, %v4647, 0
      %v4830 = vsel %vm1192, %v4649, 0
      %v4833 = vsel %vm1192, %v4651, 0
      %v4836 = vsel %vm1192, %v4653, 0
      %v4839 = vsel %vm1192, %v4655, 0
      %v4842 = vsel %vm1192, %v4657, 0
      %v4845 = vsel %vm1192, %v4659, 0
      %v4848 = vsel %vm1192, %v4661, 0
      %v4851 = vsel %vm1192, %v4663, 0
      %v4854 = vsel %vm1192, %v4665, 0
      %v4857 = vsel %vm1192, %v4667, 0
      %v4860 = vsel %vm1192, %v4669, 0
      %v4863 = vsel %vm1192, %v4671, 0
      %v4866 = vsel %vm1192, %v4673, 0
      %v4869 = vsel %vm1192, %v4675, 0
      %v4872 = vsel %vm1192, %v4677, 0
      %v4875 = vsel %vm1192, %v4679, 0
      %v4878 = vsel %vm1192, %v4681, 0
      %v4881 = vsel %vm1192, %v4683, 0
      %v4884 = vsel %vm1192, %v4685, 0
      %v4887 = vsel %vm1192, %v4687, 0
      %v4890 = vsel %vm1192, %v4689, 0
      %v4893 = vsel %vm1192, %v4691, 0
      %v4896 = vsel %vm1192, %v4693, 0
      %v4899 = vsel %vm1192, %v4695, 0
      %v4902 = vsel %vm1192, %v4697, 0
      %v4905 = vsel %vm1192, %v4699, 0
      %v4908 = vsel %vm1192, %v4701, 0
      %v4911 = vsel %vm1192, %v4703, 0
      %v4914 = vsel %vm1192, %v4705, 0
      %4916 = vmatprep.subr.bf16.mxu0 0
      %4917 = vmatpush1.bf16.msra.mxu0 0
      %4918 = vmatprep.subr.bf16.mxu0 0
      %4919 = vmatpush1.bf16.msra.mxu0 0
      %4920 = vmatprep.subr.bf16.mxu0 0
      %4921 = vmatpush1.bf16.msra.mxu0 0
      %4922 = vmatprep.subr.bf16.mxu0 0
      %4923 = vmatpush1.bf16.msra.mxu0 0
      %4924 = vmatprep.subr.bf16.mxu0 0
      %4925 = vmatpush1.bf16.msra.mxu0 0
      %4926 = vmatprep.subr.bf16.mxu0 0
      %4927 = vmatpush1.bf16.msra.mxu0 0
      %4928 = vmatprep.subr.bf16.mxu0 0
      %4929 = vmatpush1.bf16.msra.mxu0 %v4715
      %4930 = vmatprep.subr.bf16.mxu0 0
      %4931 = vmatpush1.bf16.msra.mxu0 %v4714
      %4932 = vmatprep.subr.bf16.mxu0 0
      %4933 = vmatpush2.bf16.msra.mxu0 0
      %4934 = vmatprep.subr.bf16.mxu0 0
      %4935 = vmatpush2.bf16.msra.mxu0 0
      %4936 = vmatprep.subr.bf16.mxu0 0
      %4937 = vmatpush2.bf16.msra.mxu0 0
      %4938 = vmatprep.subr.bf16.mxu0 0
      %4939 = vmatpush2.bf16.msra.mxu0 0
      %4940 = vmatprep.subr.bf16.mxu0 0
      %4941 = vmatpush2.bf16.msra.mxu0 0
      %4942 = vmatprep.subr.bf16.mxu0 0
      %4943 = vmatpush2.bf16.msra.mxu0 0
      %4944 = vmatprep.subr.bf16.mxu0 0
      %4945 = vmatpush2.bf16.msra.mxu0 0
      %4946 = vmatprep.subr.bf16.mxu0 0
      %4947 = vmatpush2.bf16.msra.mxu0 0
      %4948 = vmatprep.mubr.bf16.mxu0 0
      %4949 = vmatmul.mubr.bf16.gmra.mxu0 %v4719
      %v4950 = vpop.f32.mrf.mxu0
      %v4951 = vadd.f32 0.0, %v4950
      %v4952 = vpop.f32.mrf.mxu0
      %v4953 = vpop.f32.mrf.mxu0
      %v4954 = vadd.f32 0.0, %v4953
      %v4955 = vpop.f32.mrf.mxu0
      %4956 = vmatprep.mubr.bf16.mxu0 0
      %4957 = vmatmul.mubr.bf16.gmra.mxu0 %v4722
      %v4958 = vpop.f32.mrf.mxu0
      %v4959 = vadd.f32 0.0, %v4958
      %v4960 = vpop.f32.mrf.mxu0
      %v4961 = vpop.f32.mrf.mxu0
      %v4962 = vadd.f32 0.0, %v4961
      %v4963 = vpop.f32.mrf.mxu0
      %4964 = vmatprep.mubr.bf16.mxu0 0
      %4965 = vmatmul.mubr.bf16.gmra.mxu0 %v4725
      %v4966 = vpop.f32.mrf.mxu0
      %v4967 = vadd.f32 0.0, %v4966
      %v4968 = vpop.f32.mrf.mxu0
      %v4969 = vpop.f32.mrf.mxu0
      %v4970 = vadd.f32 0.0, %v4969
      %v4971 = vpop.f32.mrf.mxu0
      %4972 = vmatprep.mubr.bf16.mxu0 0
      %4973 = vmatmul.mubr.bf16.gmra.mxu0 %v4728
      %v4974 = vpop.f32.mrf.mxu0
      %v4975 = vadd.f32 0.0, %v4974
      %v4976 = vpop.f32.mrf.mxu0
      %v4977 = vpop.f32.mrf.mxu0
      %v4978 = vadd.f32 0.0, %v4977
      %v4979 = vpop.f32.mrf.mxu0
      %4980 = vmatprep.mubr.bf16.mxu0 0
      %4981 = vmatmul.mubr.bf16.gmra.mxu0 %v4731
      %v4982 = vpop.f32.mrf.mxu0
      %v4983 = vadd.f32 0.0, %v4982
      %v4984 = vpop.f32.mrf.mxu0
      %v4985 = vpop.f32.mrf.mxu0
      %v4986 = vadd.f32 0.0, %v4985
      %v4987 = vpop.f32.mrf.mxu0
      %4988 = vmatprep.mubr.bf16.mxu0 0
      %4989 = vmatmul.mubr.bf16.gmra.mxu0 %v4734
      %v4990 = vpop.f32.mrf.mxu0
      %v4991 = vadd.f32 0.0, %v4990
      %v4992 = vpop.f32.mrf.mxu0
      %v4993 = vpop.f32.mrf.mxu0
      %v4994 = vadd.f32 0.0, %v4993
      %v4995 = vpop.f32.mrf.mxu0
      %4996 = vmatprep.mubr.bf16.mxu0 0
      %4997 = vmatmul.mubr.bf16.gmra.mxu0 %v4737
      %v4998 = vpop.f32.mrf.mxu0
      %v4999 = vadd.f32 0.0, %v4998
      %v5000 = vpop.f32.mrf.mxu0
      %v5001 = vpop.f32.mrf.mxu0
      %v5002 = vadd.f32 0.0, %v5001
      %v5003 = vpop.f32.mrf.mxu0
      %5004 = vmatprep.mubr.bf16.mxu0 0
      %5005 = vmatmul.mubr.bf16.gmra.mxu0 %v4740
      %v5006 = vpop.f32.mrf.mxu0
      %v5007 = vadd.f32 0.0, %v5006
      %v5008 = vpop.f32.mrf.mxu0
      %v5009 = vpop.f32.mrf.mxu0
      %v5010 = vadd.f32 0.0, %v5009
      %v5011 = vpop.f32.mrf.mxu0
      %5012 = vmatprep.mubr.bf16.mxu0 0
      %5013 = vmatmul.mubr.bf16.gmra.mxu0 %v4743
      %v5014 = vpop.f32.mrf.mxu0
      %v5015 = vadd.f32 0.0, %v5014
      %v5016 = vpop.f32.mrf.mxu0
      %v5017 = vpop.f32.mrf.mxu0
      %v5018 = vadd.f32 0.0, %v5017
      %v5019 = vpop.f32.mrf.mxu0
      %5020 = vmatprep.mubr.bf16.mxu0 0
      %5021 = vmatmul.mubr.bf16.gmra.mxu0 %v4746
      %v5022 = vpop.f32.mrf.mxu0
      %v5023 = vadd.f32 0.0, %v5022
      %v5024 = vpop.f32.mrf.mxu0
      %v5025 = vpop.f32.mrf.mxu0
      %v5026 = vadd.f32 0.0, %v5025
      %v5027 = vpop.f32.mrf.mxu0
      %5028 = vmatprep.mubr.bf16.mxu0 0
      %5029 = vmatmul.mubr.bf16.gmra.mxu0 %v4749
      %v5030 = vpop.f32.mrf.mxu0
      %v5031 = vadd.f32 0.0, %v5030
      %v5032 = vpop.f32.mrf.mxu0
      %v5033 = vpop.f32.mrf.mxu0
      %v5034 = vadd.f32 0.0, %v5033
      %v5035 = vpop.f32.mrf.mxu0
      %5036 = vmatprep.mubr.bf16.mxu0 0
      %5037 = vmatmul.mubr.bf16.gmra.mxu0 %v4752
      %v5038 = vpop.f32.mrf.mxu0
      %v5039 = vadd.f32 0.0, %v5038
      %v5040 = vpop.f32.mrf.mxu0
      %v5041 = vpop.f32.mrf.mxu0
      %v5042 = vadd.f32 0.0, %v5041
      %v5043 = vpop.f32.mrf.mxu0
      %5044 = vmatprep.mubr.bf16.mxu0 0
      %5045 = vmatmul.mubr.bf16.gmra.mxu0 %v4755
      %v5046 = vpop.f32.mrf.mxu0
      %v5047 = vadd.f32 0.0, %v5046
      %v5048 = vpop.f32.mrf.mxu0
      %v5049 = vpop.f32.mrf.mxu0
      %v5050 = vadd.f32 0.0, %v5049
      %v5051 = vpop.f32.mrf.mxu0
      %5052 = vmatprep.mubr.bf16.mxu0 0
      %5053 = vmatmul.mubr.bf16.gmra.mxu0 %v4758
      %v5054 = vpop.f32.mrf.mxu0
      %v5055 = vadd.f32 0.0, %v5054
      %v5056 = vpop.f32.mrf.mxu0
      %v5057 = vpop.f32.mrf.mxu0
      %v5058 = vadd.f32 0.0, %v5057
      %v5059 = vpop.f32.mrf.mxu0
      %5060 = vmatprep.mubr.bf16.mxu0 0
      %5061 = vmatmul.mubr.bf16.gmra.mxu0 %v4761
      %v5062 = vpop.f32.mrf.mxu0
      %v5063 = vadd.f32 0.0, %v5062
      %v5064 = vpop.f32.mrf.mxu0
      %v5065 = vpop.f32.mrf.mxu0
      %v5066 = vadd.f32 0.0, %v5065
      %v5067 = vpop.f32.mrf.mxu0
      %5068 = vmatprep.mubr.bf16.mxu0 0
      %5069 = vmatmul.mubr.bf16.gmra.mxu0 %v4764
      %v5070 = vpop.f32.mrf.mxu0
      %v5071 = vadd.f32 0.0, %v5070
      %v5072 = vpop.f32.mrf.mxu0
      %v5073 = vpop.f32.mrf.mxu0
      %v5074 = vadd.f32 0.0, %v5073
      %v5075 = vpop.f32.mrf.mxu0
      %5076 = vmatprep.mubr.bf16.mxu0 0
      %5077 = vmatmul.mubr.bf16.gmra.mxu0 %v4767
      %v5078 = vpop.f32.mrf.mxu0
      %v5079 = vadd.f32 0.0, %v5078
      %v5080 = vpop.f32.mrf.mxu0
      %v5081 = vpop.f32.mrf.mxu0
      %v5082 = vadd.f32 0.0, %v5081
      %v5083 = vpop.f32.mrf.mxu0
      %5084 = vmatprep.mubr.bf16.mxu0 0
      %5085 = vmatmul.mubr.bf16.gmra.mxu0 %v4770
      %v5086 = vpop.f32.mrf.mxu0
      %v5087 = vadd.f32 0.0, %v5086
      %v5088 = vpop.f32.mrf.mxu0
      %v5089 = vpop.f32.mrf.mxu0
      %v5090 = vadd.f32 0.0, %v5089
      %v5091 = vpop.f32.mrf.mxu0
      %5092 = vmatprep.mubr.bf16.mxu0 0
      %5093 = vmatmul.mubr.bf16.gmra.mxu0 %v4773
      %v5094 = vpop.f32.mrf.mxu0
      %v5095 = vadd.f32 0.0, %v5094
      %v5096 = vpop.f32.mrf.mxu0
      %v5097 = vpop.f32.mrf.mxu0
      %v5098 = vadd.f32 0.0, %v5097
      %v5099 = vpop.f32.mrf.mxu0
      %5100 = vmatprep.mubr.bf16.mxu0 0
      %5101 = vmatmul.mubr.bf16.gmra.mxu0 %v4776
      %v5102 = vpop.f32.mrf.mxu0
      %v5103 = vadd.f32 0.0, %v5102
      %v5104 = vpop.f32.mrf.mxu0
      %v5105 = vpop.f32.mrf.mxu0
      %v5106 = vadd.f32 0.0, %v5105
      %v5107 = vpop.f32.mrf.mxu0
      %5108 = vmatprep.mubr.bf16.mxu0 0
      %5109 = vmatmul.mubr.bf16.gmra.mxu0 %v4779
      %v5110 = vpop.f32.mrf.mxu0
      %v5111 = vadd.f32 0.0, %v5110
      %v5112 = vpop.f32.mrf.mxu0
      %v5113 = vpop.f32.mrf.mxu0
      %v5114 = vadd.f32 0.0, %v5113
      %v5115 = vpop.f32.mrf.mxu0
      %5116 = vmatprep.mubr.bf16.mxu0 0
      %5117 = vmatmul.mubr.bf16.gmra.mxu0 %v4782
      %v5118 = vpop.f32.mrf.mxu0
      %v5119 = vadd.f32 0.0, %v5118
      %v5120 = vpop.f32.mrf.mxu0
      %v5121 = vpop.f32.mrf.mxu0
      %v5122 = vadd.f32 0.0, %v5121
      %v5123 = vpop.f32.mrf.mxu0
      %5124 = vmatprep.mubr.bf16.mxu0 0
      %5125 = vmatmul.mubr.bf16.gmra.mxu0 %v4785
      %v5126 = vpop.f32.mrf.mxu0
      %v5127 = vadd.f32 0.0, %v5126
      %v5128 = vpop.f32.mrf.mxu0
      %v5129 = vpop.f32.mrf.mxu0
      %v5130 = vadd.f32 0.0, %v5129
      %v5131 = vpop.f32.mrf.mxu0
      %5132 = vmatprep.mubr.bf16.mxu0 0
      %5133 = vmatmul.mubr.bf16.gmra.mxu0 %v4788
      %v5134 = vpop.f32.mrf.mxu0
      %v5135 = vadd.f32 0.0, %v5134
      %v5136 = vpop.f32.mrf.mxu0
      %v5137 = vpop.f32.mrf.mxu0
      %v5138 = vadd.f32 0.0, %v5137
      %v5139 = vpop.f32.mrf.mxu0
      %5140 = vmatprep.mubr.bf16.mxu0 0
      %5141 = vmatmul.mubr.bf16.gmra.mxu0 %v4791
      %v5142 = vpop.f32.mrf.mxu0
      %v5143 = vadd.f32 0.0, %v5142
      %v5144 = vpop.f32.mrf.mxu0
      %v5145 = vpop.f32.mrf.mxu0
      %v5146 = vadd.f32 0.0, %v5145
      %v5147 = vpop.f32.mrf.mxu0
      %5148 = vmatprep.mubr.bf16.mxu0 0
      %5149 = vmatmul.mubr.bf16.gmra.mxu0 %v4794
      %v5150 = vpop.f32.mrf.mxu0
      %v5151 = vadd.f32 0.0, %v5150
      %v5152 = vpop.f32.mrf.mxu0
      %v5153 = vpop.f32.mrf.mxu0
      %v5154 = vadd.f32 0.0, %v5153
      %v5155 = vpop.f32.mrf.mxu0
      %5156 = vmatprep.mubr.bf16.mxu0 0
      %5157 = vmatmul.mubr.bf16.gmra.mxu0 %v4797
      %v5158 = vpop.f32.mrf.mxu0
      %v5159 = vadd.f32 0.0, %v5158
      %v5160 = vpop.f32.mrf.mxu0
      %v5161 = vpop.f32.mrf.mxu0
      %v5162 = vadd.f32 0.0, %v5161
      %v5163 = vpop.f32.mrf.mxu0
      %5164 = vmatprep.mubr.bf16.mxu0 0
      %5165 = vmatmul.mubr.bf16.gmra.mxu0 %v4800
      %v5166 = vpop.f32.mrf.mxu0
      %v5167 = vadd.f32 0.0, %v5166
      %v5168 = vpop.f32.mrf.mxu0
      %v5169 = vpop.f32.mrf.mxu0
      %v5170 = vadd.f32 0.0, %v5169
      %v5171 = vpop.f32.mrf.mxu0
      %5172 = vmatprep.mubr.bf16.mxu0 0
      %5173 = vmatmul.mubr.bf16.gmra.mxu0 %v4803
      %v5174 = vpop.f32.mrf.mxu0
      %v5175 = vadd.f32 0.0, %v5174
      %v5176 = vpop.f32.mrf.mxu0
      %v5177 = vpop.f32.mrf.mxu0
      %v5178 = vadd.f32 0.0, %v5177
      %v5179 = vpop.f32.mrf.mxu0
      %5180 = vmatprep.mubr.bf16.mxu0 0
      %5181 = vmatmul.mubr.bf16.gmra.mxu0 %v4806
      %v5182 = vpop.f32.mrf.mxu0
      %v5183 = vadd.f32 0.0, %v5182
      %v5184 = vpop.f32.mrf.mxu0
      %v5185 = vpop.f32.mrf.mxu0
      %v5186 = vadd.f32 0.0, %v5185
      %v5187 = vpop.f32.mrf.mxu0
      %5188 = vmatprep.mubr.bf16.mxu0 0
      %5189 = vmatmul.mubr.bf16.gmra.mxu0 %v4809
      %v5190 = vpop.f32.mrf.mxu0
      %v5191 = vadd.f32 0.0, %v5190
      %v5192 = vpop.f32.mrf.mxu0
      %v5193 = vpop.f32.mrf.mxu0
      %v5194 = vadd.f32 0.0, %v5193
      %v5195 = vpop.f32.mrf.mxu0
      %5196 = vmatprep.mubr.bf16.mxu0 0
      %5197 = vmatmul.mubr.bf16.gmra.mxu0 %v4812
      %v5198 = vpop.f32.mrf.mxu0
      %v5199 = vadd.f32 0.0, %v5198
      %v5200 = vpop.f32.mrf.mxu0
      %v5201 = vpop.f32.mrf.mxu0
      %v5202 = vadd.f32 0.0, %v5201
      %v5203 = vpop.f32.mrf.mxu0
      %5204 = vmatprep.mubr.bf16.mxu0 0
      %5205 = vmatmul.mubr.bf16.gmra.mxu0 %v4815
      %v5206 = vpop.f32.mrf.mxu0
      %v5207 = vadd.f32 0.0, %v5206
      %v5208 = vpop.f32.mrf.mxu0
      %v5209 = vpop.f32.mrf.mxu0
      %v5210 = vadd.f32 0.0, %v5209
      %v5211 = vpop.f32.mrf.mxu0
      %5212 = vmatprep.mubr.bf16.mxu0 0
      %5213 = vmatmul.mubr.bf16.gmra.mxu0 %v4818
      %v5214 = vpop.f32.mrf.mxu0
      %v5215 = vadd.f32 0.0, %v5214
      %v5216 = vpop.f32.mrf.mxu0
      %v5217 = vpop.f32.mrf.mxu0
      %v5218 = vadd.f32 0.0, %v5217
      %v5219 = vpop.f32.mrf.mxu0
      %5220 = vmatprep.mubr.bf16.mxu0 0
      %5221 = vmatmul.mubr.bf16.gmra.mxu0 %v4821
      %v5222 = vpop.f32.mrf.mxu0
      %v5223 = vadd.f32 0.0, %v5222
      %v5224 = vpop.f32.mrf.mxu0
      %v5225 = vpop.f32.mrf.mxu0
      %v5226 = vadd.f32 0.0, %v5225
      %v5227 = vpop.f32.mrf.mxu0
      %5228 = vmatprep.mubr.bf16.mxu0 0
      %5229 = vmatmul.mubr.bf16.gmra.mxu0 %v4824
      %v5230 = vpop.f32.mrf.mxu0
      %v5231 = vadd.f32 0.0, %v5230
      %v5232 = vpop.f32.mrf.mxu0
      %v5233 = vpop.f32.mrf.mxu0
      %v5234 = vadd.f32 0.0, %v5233
      %v5235 = vpop.f32.mrf.mxu0
      %5236 = vmatprep.mubr.bf16.mxu0 0
      %5237 = vmatmul.mubr.bf16.gmra.mxu0 %v4827
      %v5238 = vpop.f32.mrf.mxu0
      %v5239 = vadd.f32 0.0, %v5238
      %v5240 = vpop.f32.mrf.mxu0
      %v5241 = vpop.f32.mrf.mxu0
      %v5242 = vadd.f32 0.0, %v5241
      %v5243 = vpop.f32.mrf.mxu0
      %5244 = vmatprep.mubr.bf16.mxu0 0
      %5245 = vmatmul.mubr.bf16.gmra.mxu0 %v4830
      %v5246 = vpop.f32.mrf.mxu0
      %v5247 = vadd.f32 0.0, %v5246
      %v5248 = vpop.f32.mrf.mxu0
      %v5249 = vpop.f32.mrf.mxu0
      %v5250 = vadd.f32 0.0, %v5249
      %v5251 = vpop.f32.mrf.mxu0
      %5252 = vmatprep.mubr.bf16.mxu0 0
      %5253 = vmatmul.mubr.bf16.gmra.mxu0 %v4833
      %v5254 = vpop.f32.mrf.mxu0
      %v5255 = vadd.f32 0.0, %v5254
      %v5256 = vpop.f32.mrf.mxu0
      %v5257 = vpop.f32.mrf.mxu0
      %v5258 = vadd.f32 0.0, %v5257
      %v5259 = vpop.f32.mrf.mxu0
      %5260 = vmatprep.mubr.bf16.mxu0 0
      %5261 = vmatmul.mubr.bf16.gmra.mxu0 %v4836
      %v5262 = vpop.f32.mrf.mxu0
      %v5263 = vadd.f32 0.0, %v5262
      %v5264 = vpop.f32.mrf.mxu0
      %v5265 = vpop.f32.mrf.mxu0
      %v5266 = vadd.f32 0.0, %v5265
      %v5267 = vpop.f32.mrf.mxu0
      %5268 = vmatprep.mubr.bf16.mxu0 0
      %5269 = vmatmul.mubr.bf16.gmra.mxu0 %v4839
      %v5270 = vpop.f32.mrf.mxu0
      %v5271 = vadd.f32 0.0, %v5270
      %v5272 = vpop.f32.mrf.mxu0
      %v5273 = vpop.f32.mrf.mxu0
      %v5274 = vadd.f32 0.0, %v5273
      %v5275 = vpop.f32.mrf.mxu0
      %5276 = vmatprep.mubr.bf16.mxu0 0
      %5277 = vmatmul.mubr.bf16.gmra.mxu0 %v4842
      %v5278 = vpop.f32.mrf.mxu0
      %v5279 = vadd.f32 0.0, %v5278
      %v5280 = vpop.f32.mrf.mxu0
      %v5281 = vpop.f32.mrf.mxu0
      %v5282 = vadd.f32 0.0, %v5281
      %v5283 = vpop.f32.mrf.mxu0
      %5284 = vmatprep.mubr.bf16.mxu0 0
      %5285 = vmatmul.mubr.bf16.gmra.mxu0 %v4845
      %v5286 = vpop.f32.mrf.mxu0
      %v5287 = vadd.f32 0.0, %v5286
      %v5288 = vpop.f32.mrf.mxu0
      %v5289 = vpop.f32.mrf.mxu0
      %v5290 = vadd.f32 0.0, %v5289
      %v5291 = vpop.f32.mrf.mxu0
      %5292 = vmatprep.mubr.bf16.mxu0 0
      %5293 = vmatmul.mubr.bf16.gmra.mxu0 %v4848
      %v5294 = vpop.f32.mrf.mxu0
      %v5295 = vadd.f32 0.0, %v5294
      %v5296 = vpop.f32.mrf.mxu0
      %v5297 = vpop.f32.mrf.mxu0
      %v5298 = vadd.f32 0.0, %v5297
      %v5299 = vpop.f32.mrf.mxu0
      %5300 = vmatprep.mubr.bf16.mxu0 0
      %5301 = vmatmul.mubr.bf16.gmra.mxu0 %v4851
      %v5302 = vpop.f32.mrf.mxu0
      %v5303 = vadd.f32 0.0, %v5302
      %v5304 = vpop.f32.mrf.mxu0
      %v5305 = vpop.f32.mrf.mxu0
      %v5306 = vadd.f32 0.0, %v5305
      %v5307 = vpop.f32.mrf.mxu0
      %5308 = vmatprep.mubr.bf16.mxu0 0
      %5309 = vmatmul.mubr.bf16.gmra.mxu0 %v4854
      %v5310 = vpop.f32.mrf.mxu0
      %v5311 = vadd.f32 0.0, %v5310
      %v5312 = vpop.f32.mrf.mxu0
      %v5313 = vpop.f32.mrf.mxu0
      %v5314 = vadd.f32 0.0, %v5313
      %v5315 = vpop.f32.mrf.mxu0
      %5316 = vmatprep.mubr.bf16.mxu0 0
      %5317 = vmatmul.mubr.bf16.gmra.mxu0 %v4857
      %v5318 = vpop.f32.mrf.mxu0
      %v5319 = vadd.f32 0.0, %v5318
      %v5320 = vpop.f32.mrf.mxu0
      %v5321 = vpop.f32.mrf.mxu0
      %v5322 = vadd.f32 0.0, %v5321
      %v5323 = vpop.f32.mrf.mxu0
      %5324 = vmatprep.mubr.bf16.mxu0 0
      %5325 = vmatmul.mubr.bf16.gmra.mxu0 %v4860
      %v5326 = vpop.f32.mrf.mxu0
      %v5327 = vadd.f32 0.0, %v5326
      %v5328 = vpop.f32.mrf.mxu0
      %v5329 = vpop.f32.mrf.mxu0
      %v5330 = vadd.f32 0.0, %v5329
      %v5331 = vpop.f32.mrf.mxu0
      %5332 = vmatprep.mubr.bf16.mxu0 0
      %5333 = vmatmul.mubr.bf16.gmra.mxu0 %v4863
      %v5334 = vpop.f32.mrf.mxu0
      %v5335 = vadd.f32 0.0, %v5334
      %v5336 = vpop.f32.mrf.mxu0
      %v5337 = vpop.f32.mrf.mxu0
      %v5338 = vadd.f32 0.0, %v5337
      %v5339 = vpop.f32.mrf.mxu0
      %5340 = vmatprep.mubr.bf16.mxu0 0
      %5341 = vmatmul.mubr.bf16.gmra.mxu0 %v4866
      %v5342 = vpop.f32.mrf.mxu0
      %v5343 = vadd.f32 0.0, %v5342
      %v5344 = vpop.f32.mrf.mxu0
      %v5345 = vpop.f32.mrf.mxu0
      %v5346 = vadd.f32 0.0, %v5345
      %v5347 = vpop.f32.mrf.mxu0
      %5348 = vmatprep.mubr.bf16.mxu0 0
      %5349 = vmatmul.mubr.bf16.gmra.mxu0 %v4869
      %v5350 = vpop.f32.mrf.mxu0
      %v5351 = vadd.f32 0.0, %v5350
      %v5352 = vpop.f32.mrf.mxu0
      %v5353 = vpop.f32.mrf.mxu0
      %v5354 = vadd.f32 0.0, %v5353
      %v5355 = vpop.f32.mrf.mxu0
      %5356 = vmatprep.mubr.bf16.mxu0 0
      %5357 = vmatmul.mubr.bf16.gmra.mxu0 %v4872
      %v5358 = vpop.f32.mrf.mxu0
      %v5359 = vadd.f32 0.0, %v5358
      %v5360 = vpop.f32.mrf.mxu0
      %v5361 = vpop.f32.mrf.mxu0
      %v5362 = vadd.f32 0.0, %v5361
      %v5363 = vpop.f32.mrf.mxu0
      %5364 = vmatprep.mubr.bf16.mxu0 0
      %5365 = vmatmul.mubr.bf16.gmra.mxu0 %v4875
      %v5366 = vpop.f32.mrf.mxu0
      %v5367 = vadd.f32 0.0, %v5366
      %v5368 = vpop.f32.mrf.mxu0
      %v5369 = vpop.f32.mrf.mxu0
      %v5370 = vadd.f32 0.0, %v5369
      %v5371 = vpop.f32.mrf.mxu0
      %5372 = vmatprep.mubr.bf16.mxu0 0
      %5373 = vmatmul.mubr.bf16.gmra.mxu0 %v4878
      %v5374 = vpop.f32.mrf.mxu0
      %v5375 = vadd.f32 0.0, %v5374
      %v5376 = vpop.f32.mrf.mxu0
      %v5377 = vpop.f32.mrf.mxu0
      %v5378 = vadd.f32 0.0, %v5377
      %v5379 = vpop.f32.mrf.mxu0
      %5380 = vmatprep.mubr.bf16.mxu0 0
      %5381 = vmatmul.mubr.bf16.gmra.mxu0 %v4881
      %v5382 = vpop.f32.mrf.mxu0
      %v5383 = vadd.f32 0.0, %v5382
      %v5384 = vpop.f32.mrf.mxu0
      %v5385 = vpop.f32.mrf.mxu0
      %v5386 = vadd.f32 0.0, %v5385
      %v5387 = vpop.f32.mrf.mxu0
      %5388 = vmatprep.mubr.bf16.mxu0 0
      %5389 = vmatmul.mubr.bf16.gmra.mxu0 %v4884
      %v5390 = vpop.f32.mrf.mxu0
      %v5391 = vadd.f32 0.0, %v5390
      %v5392 = vpop.f32.mrf.mxu0
      %v5393 = vpop.f32.mrf.mxu0
      %v5394 = vadd.f32 0.0, %v5393
      %v5395 = vpop.f32.mrf.mxu0
      %5396 = vmatprep.mubr.bf16.mxu0 0
      %5397 = vmatmul.mubr.bf16.gmra.mxu0 %v4887
      %v5398 = vpop.f32.mrf.mxu0
      %v5399 = vadd.f32 0.0, %v5398
      %v5400 = vpop.f32.mrf.mxu0
      %v5401 = vpop.f32.mrf.mxu0
      %v5402 = vadd.f32 0.0, %v5401
      %v5403 = vpop.f32.mrf.mxu0
      %5404 = vmatprep.mubr.bf16.mxu0 0
      %5405 = vmatmul.mubr.bf16.gmra.mxu0 %v4890
      %v5406 = vpop.f32.mrf.mxu0
      %v5407 = vadd.f32 0.0, %v5406
      %v5408 = vpop.f32.mrf.mxu0
      %v5409 = vpop.f32.mrf.mxu0
      %v5410 = vadd.f32 0.0, %v5409
      %v5411 = vpop.f32.mrf.mxu0
      %5412 = vmatprep.mubr.bf16.mxu0 0
      %5413 = vmatmul.mubr.bf16.gmra.mxu0 %v4893
      %v5414 = vpop.f32.mrf.mxu0
      %v5415 = vadd.f32 0.0, %v5414
      %v5416 = vpop.f32.mrf.mxu0
      %v5417 = vpop.f32.mrf.mxu0
      %v5418 = vadd.f32 0.0, %v5417
      %v5419 = vpop.f32.mrf.mxu0
      %5420 = vmatprep.mubr.bf16.mxu0 0
      %5421 = vmatmul.mubr.bf16.gmra.mxu0 %v4896
      %v5422 = vpop.f32.mrf.mxu0
      %v5423 = vadd.f32 0.0, %v5422
      %v5424 = vpop.f32.mrf.mxu0
      %v5425 = vpop.f32.mrf.mxu0
      %v5426 = vadd.f32 0.0, %v5425
      %v5427 = vpop.f32.mrf.mxu0
      %5428 = vmatprep.mubr.bf16.mxu0 0
      %5429 = vmatmul.mubr.bf16.gmra.mxu0 %v4899
      %v5430 = vpop.f32.mrf.mxu0
      %v5431 = vadd.f32 0.0, %v5430
      %v5432 = vpop.f32.mrf.mxu0
      %v5433 = vpop.f32.mrf.mxu0
      %v5434 = vadd.f32 0.0, %v5433
      %v5435 = vpop.f32.mrf.mxu0
      %5436 = vmatprep.mubr.bf16.mxu0 0
      %5437 = vmatmul.mubr.bf16.gmra.mxu0 %v4902
      %v5438 = vpop.f32.mrf.mxu0
      %v5439 = vadd.f32 0.0, %v5438
      %v5440 = vpop.f32.mrf.mxu0
      %v5441 = vpop.f32.mrf.mxu0
      %v5442 = vadd.f32 0.0, %v5441
      %v5443 = vpop.f32.mrf.mxu0
      %5444 = vmatprep.mubr.bf16.mxu0 0
      %5445 = vmatmul.mubr.bf16.gmra.mxu0 %v4905
      %v5446 = vpop.f32.mrf.mxu0
      %v5447 = vadd.f32 0.0, %v5446
      %v5448 = vpop.f32.mrf.mxu0
      %v5449 = vpop.f32.mrf.mxu0
      %v5450 = vadd.f32 0.0, %v5449
      %v5451 = vpop.f32.mrf.mxu0
      %5452 = vmatprep.mubr.bf16.mxu0 0
      %5453 = vmatmul.mubr.bf16.gmra.mxu0 %v4908
      %v5454 = vpop.f32.mrf.mxu0
      %v5455 = vadd.f32 0.0, %v5454
      %v5456 = vpop.f32.mrf.mxu0
      %v5457 = vpop.f32.mrf.mxu0
      %v5458 = vadd.f32 0.0, %v5457
      %v5459 = vpop.f32.mrf.mxu0
      %5460 = vmatprep.mubr.bf16.mxu0 0
      %5461 = vmatmul.mubr.bf16.gmra.mxu0 %v4911
      %v5462 = vpop.f32.mrf.mxu0
      %v5463 = vadd.f32 0.0, %v5462
      %v5464 = vpop.f32.mrf.mxu0
      %v5465 = vpop.f32.mrf.mxu0
      %v5466 = vadd.f32 0.0, %v5465
      %v5467 = vpop.f32.mrf.mxu0
      %5468 = vmatprep.mubr.bf16.mxu0 0
      %5469 = vmatmul.mubr.bf16.gmra.mxu0 %v4914
      %v5470 = vpop.f32.mrf.mxu0
      %v5471 = vadd.f32 0.0, %v5470
      %v5472 = vpop.f32.mrf.mxu0
      %v5473 = vpop.f32.mrf.mxu0
      %v5474 = vadd.f32 0.0, %v5473
      %v5475 = vpop.f32.mrf.mxu0
      %5476 = vdwg.mxu0
      %v5477 = vadd.f32 %v4431, %v4951
      %v5478 = vadd.f32 %v4432, %v4954
      %v5479 = vadd.f32 %v4433, %v4959
      %v5480 = vadd.f32 %v4434, %v4962
      %v5481 = vadd.f32 %v4435, %v4967
      %v5482 = vadd.f32 %v4436, %v4970
      %v5483 = vadd.f32 %v4437, %v4975
      %v5484 = vadd.f32 %v4438, %v4978
      %v5485 = vadd.f32 %v4439, %v4983
      %v5486 = vadd.f32 %v4440, %v4986
      %v5487 = vadd.f32 %v4441, %v4991
      %v5488 = vadd.f32 %v4442, %v4994
      %v5489 = vadd.f32 %v4443, %v4999
      %v5490 = vadd.f32 %v4444, %v5002
      %v5491 = vadd.f32 %v4445, %v5007
      %v5492 = vadd.f32 %v4446, %v5010
      %v5493 = vadd.f32 %v4447, %v5015
      %v5494 = vadd.f32 %v4448, %v5018
      %v5495 = vadd.f32 %v4449, %v5023
      %v5496 = vadd.f32 %v4450, %v5026
      %v5497 = vadd.f32 %v4451, %v5031
      %v5498 = vadd.f32 %v4452, %v5034
      %v5499 = vadd.f32 %v4453, %v5039
      %v5500 = vadd.f32 %v4454, %v5042
      %v5501 = vadd.f32 %v4455, %v5047
      %v5502 = vadd.f32 %v4456, %v5050
      %v5503 = vadd.f32 %v4457, %v5055
      %v5504 = vadd.f32 %v4458, %v5058
      %v5505 = vadd.f32 %v4459, %v5063
      %v5506 = vadd.f32 %v4460, %v5066
      %v5507 = vadd.f32 %v4461, %v5071
      %v5508 = vadd.f32 %v4462, %v5074
      %v5509 = vadd.f32 %v4463, %v5079
      %v5510 = vadd.f32 %v4464, %v5082
      %v5511 = vadd.f32 %v4465, %v5087
      %v5512 = vadd.f32 %v4466, %v5090
      %v5513 = vadd.f32 %v4467, %v5095
      %v5514 = vadd.f32 %v4468, %v5098
      %v5515 = vadd.f32 %v4469, %v5103
      %v5516 = vadd.f32 %v4470, %v5106
      %v5517 = vadd.f32 %v4471, %v5111
      %v5518 = vadd.f32 %v4472, %v5114
      %v5519 = vadd.f32 %v4473, %v5119
      %v5520 = vadd.f32 %v4474, %v5122
      %v5521 = vadd.f32 %v4475, %v5127
      %v5522 = vadd.f32 %v4476, %v5130
      %v5523 = vadd.f32 %v4477, %v5135
      %v5524 = vadd.f32 %v4478, %v5138
      %v5525 = vadd.f32 %v4479, %v5143
      %v5526 = vadd.f32 %v4480, %v5146
      %v5527 = vadd.f32 %v4481, %v5151
      %v5528 = vadd.f32 %v4482, %v5154
      %v5529 = vadd.f32 %v4483, %v5159
      %v5530 = vadd.f32 %v4484, %v5162
      %v5531 = vadd.f32 %v4485, %v5167
      %v5532 = vadd.f32 %v4486, %v5170
      %v5533 = vadd.f32 %v4487, %v5175
      %v5534 = vadd.f32 %v4488, %v5178
      %v5535 = vadd.f32 %v4489, %v5183
      %v5536 = vadd.f32 %v4490, %v5186
      %v5537 = vadd.f32 %v4491, %v5191
      %v5538 = vadd.f32 %v4492, %v5194
      %v5539 = vadd.f32 %v4493, %v5199
      %v5540 = vadd.f32 %v4494, %v5202
      %v5541 = vadd.f32 %v4495, %v5207
      %v5542 = vadd.f32 %v4496, %v5210
      %v5543 = vadd.f32 %v4497, %v5215
      %v5544 = vadd.f32 %v4498, %v5218
      %v5545 = vadd.f32 %v4499, %v5223
      %v5546 = vadd.f32 %v4500, %v5226
      %v5547 = vadd.f32 %v4501, %v5231
      %v5548 = vadd.f32 %v4502, %v5234
      %v5549 = vadd.f32 %v4503, %v5239
      %v5550 = vadd.f32 %v4504, %v5242
      %v5551 = vadd.f32 %v4505, %v5247
      %v5552 = vadd.f32 %v4506, %v5250
      %v5553 = vadd.f32 %v4507, %v5255
      %v5554 = vadd.f32 %v4508, %v5258
      %v5555 = vadd.f32 %v4509, %v5263
      %v5556 = vadd.f32 %v4510, %v5266
      %v5557 = vadd.f32 %v4511, %v5271
      %v5558 = vadd.f32 %v4512, %v5274
      %v5559 = vadd.f32 %v4513, %v5279
      %v5560 = vadd.f32 %v4514, %v5282
      %v5561 = vadd.f32 %v4515, %v5287
      %v5562 = vadd.f32 %v4516, %v5290
      %v5563 = vadd.f32 %v4517, %v5295
      %v5564 = vadd.f32 %v4518, %v5298
      %v5565 = vadd.f32 %v4519, %v5303
      %v5566 = vadd.f32 %v4520, %v5306
      %v5567 = vadd.f32 %v4521, %v5311
      %v5568 = vadd.f32 %v4522, %v5314
      %v5569 = vadd.f32 %v4523, %v5319
      %v5570 = vadd.f32 %v4524, %v5322
      %v5571 = vadd.f32 %v4525, %v5327
      %v5572 = vadd.f32 %v4526, %v5330
      %v5573 = vadd.f32 %v4527, %v5335
      %v5574 = vadd.f32 %v4528, %v5338
      %v5575 = vadd.f32 %v4529, %v5343
      %v5576 = vadd.f32 %v4530, %v5346
      %v5577 = vadd.f32 %v4531, %v5351
      %v5578 = vadd.f32 %v4532, %v5354
      %v5579 = vadd.f32 %v4533, %v5359
      %v5580 = vadd.f32 %v4534, %v5362
      %v5581 = vadd.f32 %v4535, %v5367
      %v5582 = vadd.f32 %v4536, %v5370
      %v5583 = vadd.f32 %v4537, %v5375
      %v5584 = vadd.f32 %v4538, %v5378
      %v5585 = vadd.f32 %v4539, %v5383
      %v5586 = vadd.f32 %v4540, %v5386
      %v5587 = vadd.f32 %v4541, %v5391
      %v5588 = vadd.f32 %v4542, %v5394
      %v5589 = vadd.f32 %v4543, %v5399
      %v5590 = vadd.f32 %v4544, %v5402
      %v5591 = vadd.f32 %v4545, %v5407
      %v5592 = vadd.f32 %v4546, %v5410
      %v5593 = vadd.f32 %v4547, %v5415
      %v5594 = vadd.f32 %v4548, %v5418
      %v5595 = vadd.f32 %v4549, %v5423
      %v5596 = vadd.f32 %v4550, %v5426
      %v5597 = vadd.f32 %v4551, %v5431
      %v5598 = vadd.f32 %v4552, %v5434
      %v5599 = vadd.f32 %v4553, %v5439
      %v5600 = vadd.f32 %v4554, %v5442
      %v5601 = vadd.f32 %v4555, %v5447
      %v5602 = vadd.f32 %v4556, %v5450
      %v5603 = vadd.f32 %v4557, %v5455
      %v5604 = vadd.f32 %v4558, %v5458
      %v5605 = vadd.f32 %v4559, %v5463
      %v5606 = vadd.f32 %v4560, %v5466
      %v5607 = vadd.f32 %v4561, %v5471
      %v5608 = vadd.f32 %v4562, %v5474
      %v5609 = vld [vmem:[%s2] sm:$0x1]
      %v5611 = vlaneseq
      %v5612 = vshrl.u32 %v5611, 7
      %v5613 = vsub.s32 0, %v5612
      %v5614 = vrot.slane %v5609, %v5613
      %v5616 = vadd.f32 %v5477, %v5614
      %v5617 = vadd.f32 %v5478, %v5614
      %v5618 = vadd.f32 %v5479, %v5614
      %v5619 = vadd.f32 %v5480, %v5614
      %v5620 = vadd.f32 %v5481, %v5614
      %v5621 = vadd.f32 %v5482, %v5614
      %v5622 = vadd.f32 %v5483, %v5614
      %v5623 = vadd.f32 %v5484, %v5614
      %v5624 = vadd.f32 %v5485, %v5614
      %v5625 = vadd.f32 %v5486, %v5614
      %v5626 = vadd.f32 %v5487, %v5614
      %v5627 = vadd.f32 %v5488, %v5614
      %v5628 = vadd.f32 %v5489, %v5614
      %v5629 = vadd.f32 %v5490, %v5614
      %v5630 = vadd.f32 %v5491, %v5614
      %v5631 = vadd.f32 %v5492, %v5614
      %v5632 = vadd.f32 %v5493, %v5614
      %v5633 = vadd.f32 %v5494, %v5614
      %v5634 = vadd.f32 %v5495, %v5614
      %v5635 = vadd.f32 %v5496, %v5614
      %v5636 = vadd.f32 %v5497, %v5614
      %v5637 = vadd.f32 %v5498, %v5614
      %v5638 = vadd.f32 %v5499, %v5614
      %v5639 = vadd.f32 %v5500, %v5614
      %v5640 = vadd.f32 %v5501, %v5614
      %v5641 = vadd.f32 %v5502, %v5614
      %v5642 = vadd.f32 %v5503, %v5614
      %v5643 = vadd.f32 %v5504, %v5614
      %v5644 = vadd.f32 %v5505, %v5614
      %v5645 = vadd.f32 %v5506, %v5614
      %v5646 = vadd.f32 %v5507, %v5614
      %v5647 = vadd.f32 %v5508, %v5614
      %v5648 = vadd.f32 %v5509, %v5614
      %v5649 = vadd.f32 %v5510, %v5614
      %v5650 = vadd.f32 %v5511, %v5614
      %v5651 = vadd.f32 %v5512, %v5614
      %v5652 = vadd.f32 %v5513, %v5614
      %v5653 = vadd.f32 %v5514, %v5614
      %v5654 = vadd.f32 %v5515, %v5614
      %v5655 = vadd.f32 %v5516, %v5614
      %v5656 = vadd.f32 %v5517, %v5614
      %v5657 = vadd.f32 %v5518, %v5614
      %v5658 = vadd.f32 %v5519, %v5614
      %v5659 = vadd.f32 %v5520, %v5614
      %v5660 = vadd.f32 %v5521, %v5614
      %v5661 = vadd.f32 %v5522, %v5614
      %v5662 = vadd.f32 %v5523, %v5614
      %v5663 = vadd.f32 %v5524, %v5614
      %v5664 = vadd.f32 %v5525, %v5614
      %v5665 = vadd.f32 %v5526, %v5614
      %v5666 = vadd.f32 %v5527, %v5614
      %v5667 = vadd.f32 %v5528, %v5614
      %v5668 = vadd.f32 %v5529, %v5614
      %v5669 = vadd.f32 %v5530, %v5614
      %v5670 = vadd.f32 %v5531, %v5614
      %v5671 = vadd.f32 %v5532, %v5614
      %v5672 = vadd.f32 %v5533, %v5614
      %v5673 = vadd.f32 %v5534, %v5614
      %v5674 = vadd.f32 %v5535, %v5614
      %v5675 = vadd.f32 %v5536, %v5614
      %v5676 = vadd.f32 %v5537, %v5614
      %v5677 = vadd.f32 %v5538, %v5614
      %v5678 = vadd.f32 %v5539, %v5614
      %v5679 = vadd.f32 %v5540, %v5614
      %v5680 = vadd.f32 %v5541, %v5614
      %v5681 = vadd.f32 %v5542, %v5614
      %v5682 = vadd.f32 %v5543, %v5614
      %v5683 = vadd.f32 %v5544, %v5614
      %v5684 = vadd.f32 %v5545, %v5614
      %v5685 = vadd.f32 %v5546, %v5614
      %v5686 = vadd.f32 %v5547, %v5614
      %v5687 = vadd.f32 %v5548, %v5614
      %v5688 = vadd.f32 %v5549, %v5614
      %v5689 = vadd.f32 %v5550, %v5614
      %v5690 = vadd.f32 %v5551, %v5614
      %v5691 = vadd.f32 %v5552, %v5614
      %v5692 = vadd.f32 %v5553, %v5614
      %v5693 = vadd.f32 %v5554, %v5614
      %v5694 = vadd.f32 %v5555, %v5614
      %v5695 = vadd.f32 %v5556, %v5614
      %v5696 = vadd.f32 %v5557, %v5614
      %v5697 = vadd.f32 %v5558, %v5614
      %v5698 = vadd.f32 %v5559, %v5614
      %v5699 = vadd.f32 %v5560, %v5614
      %v5700 = vadd.f32 %v5561, %v5614
      %v5701 = vadd.f32 %v5562, %v5614
      %v5702 = vadd.f32 %v5563, %v5614
      %v5703 = vadd.f32 %v5564, %v5614
      %v5704 = vadd.f32 %v5565, %v5614
      %v5705 = vadd.f32 %v5566, %v5614
      %v5706 = vadd.f32 %v5567, %v5614
      %v5707 = vadd.f32 %v5568, %v5614
      %v5708 = vadd.f32 %v5569, %v5614
      %v5709 = vadd.f32 %v5570, %v5614
      %v5710 = vadd.f32 %v5571, %v5614
      %v5711 = vadd.f32 %v5572, %v5614
      %v5712 = vadd.f32 %v5573, %v5614
      %v5713 = vadd.f32 %v5574, %v5614
      %v5714 = vadd.f32 %v5575, %v5614
      %v5715 = vadd.f32 %v5576, %v5614
      %v5716 = vadd.f32 %v5577, %v5614
      %v5717 = vadd.f32 %v5578, %v5614
      %v5718 = vadd.f32 %v5579, %v5614
      %v5719 = vadd.f32 %v5580, %v5614
      %v5720 = vadd.f32 %v5581, %v5614
      %v5721 = vadd.f32 %v5582, %v5614
      %v5722 = vadd.f32 %v5583, %v5614
      %v5723 = vadd.f32 %v5584, %v5614
      %v5724 = vadd.f32 %v5585, %v5614
      %v5725 = vadd.f32 %v5586, %v5614
      %v5726 = vadd.f32 %v5587, %v5614
      %v5727 = vadd.f32 %v5588, %v5614
      %v5728 = vadd.f32 %v5589, %v5614
      %v5729 = vadd.f32 %v5590, %v5614
      %v5730 = vadd.f32 %v5591, %v5614
      %v5731 = vadd.f32 %v5592, %v5614
      %v5732 = vadd.f32 %v5593, %v5614
      %v5733 = vadd.f32 %v5594, %v5614
      %v5734 = vadd.f32 %v5595, %v5614
      %v5735 = vadd.f32 %v5596, %v5614
      %v5736 = vadd.f32 %v5597, %v5614
      %v5737 = vadd.f32 %v5598, %v5614
      %v5738 = vadd.f32 %v5599, %v5614
      %v5739 = vadd.f32 %v5600, %v5614
      %v5740 = vadd.f32 %v5601, %v5614
      %v5741 = vadd.f32 %v5602, %v5614
      %v5742 = vadd.f32 %v5603, %v5614
      %v5743 = vadd.f32 %v5604, %v5614
      %v5744 = vadd.f32 %v5605, %v5614
      %v5745 = vadd.f32 %v5606, %v5614
      %v5746 = vadd.f32 %v5607, %v5614
      %v5747 = vadd.f32 %v5608, %v5614
      %v5748 = vmax.f32 %v5616, 0.0
      %v5749 = vmax.f32 %v5617, 0.0
      %v5750 = vmax.f32 %v5618, 0.0
      %v5751 = vmax.f32 %v5619, 0.0
      %v5752 = vmax.f32 %v5620, 0.0
      %v5753 = vmax.f32 %v5621, 0.0
      %v5754 = vmax.f32 %v5622, 0.0
      %v5755 = vmax.f32 %v5623, 0.0
      %v5756 = vmax.f32 %v5624, 0.0
      %v5757 = vmax.f32 %v5625, 0.0
      %v5758 = vmax.f32 %v5626, 0.0
      %v5759 = vmax.f32 %v5627, 0.0
      %v5760 = vmax.f32 %v5628, 0.0
      %v5761 = vmax.f32 %v5629, 0.0
      %v5762 = vmax.f32 %v5630, 0.0
      %v5763 = vmax.f32 %v5631, 0.0
      %v5764 = vmax.f32 %v5632, 0.0
      %v5765 = vmax.f32 %v5633, 0.0
      %v5766 = vmax.f32 %v5634, 0.0
      %v5767 = vmax.f32 %v5635, 0.0
      %v5768 = vmax.f32 %v5636, 0.0
      %v5769 = vmax.f32 %v5637, 0.0
      %v5770 = vmax.f32 %v5638, 0.0
      %v5771 = vmax.f32 %v5639, 0.0
      %v5772 = vmax.f32 %v5640, 0.0
      %v5773 = vmax.f32 %v5641, 0.0
      %v5774 = vmax.f32 %v5642, 0.0
      %v5775 = vmax.f32 %v5643, 0.0
      %v5776 = vmax.f32 %v5644, 0.0
      %v5777 = vmax.f32 %v5645, 0.0
      %v5778 = vmax.f32 %v5646, 0.0
      %v5779 = vmax.f32 %v5647, 0.0
      %v5780 = vmax.f32 %v5648, 0.0
      %v5781 = vmax.f32 %v5649, 0.0
      %v5782 = vmax.f32 %v5650, 0.0
      %v5783 = vmax.f32 %v5651, 0.0
      %v5784 = vmax.f32 %v5652, 0.0
      %v5785 = vmax.f32 %v5653, 0.0
      %v5786 = vmax.f32 %v5654, 0.0
      %v5787 = vmax.f32 %v5655, 0.0
      %v5788 = vmax.f32 %v5656, 0.0
      %v5789 = vmax.f32 %v5657, 0.0
      %v5790 = vmax.f32 %v5658, 0.0
      %v5791 = vmax.f32 %v5659, 0.0
      %v5792 = vmax.f32 %v5660, 0.0
      %v5793 = vmax.f32 %v5661, 0.0
      %v5794 = vmax.f32 %v5662, 0.0
      %v5795 = vmax.f32 %v5663, 0.0
      %v5796 = vmax.f32 %v5664, 0.0
      %v5797 = vmax.f32 %v5665, 0.0
      %v5798 = vmax.f32 %v5666, 0.0
      %v5799 = vmax.f32 %v5667, 0.0
      %v5800 = vmax.f32 %v5668, 0.0
      %v5801 = vmax.f32 %v5669, 0.0
      %v5802 = vmax.f32 %v5670, 0.0
      %v5803 = vmax.f32 %v5671, 0.0
      %v5804 = vmax.f32 %v5672, 0.0
      %v5805 = vmax.f32 %v5673, 0.0
      %v5806 = vmax.f32 %v5674, 0.0
      %v5807 = vmax.f32 %v5675, 0.0
      %v5808 = vmax.f32 %v5676, 0.0
      %v5809 = vmax.f32 %v5677, 0.0
      %v5810 = vmax.f32 %v5678, 0.0
      %v5811 = vmax.f32 %v5679, 0.0
      %v5812 = vmax.f32 %v5680, 0.0
      %v5813 = vmax.f32 %v5681, 0.0
      %v5814 = vmax.f32 %v5682, 0.0
      %v5815 = vmax.f32 %v5683, 0.0
      %v5816 = vmax.f32 %v5684, 0.0
      %v5817 = vmax.f32 %v5685, 0.0
      %v5818 = vmax.f32 %v5686, 0.0
      %v5819 = vmax.f32 %v5687, 0.0
      %v5820 = vmax.f32 %v5688, 0.0
      %v5821 = vmax.f32 %v5689, 0.0
      %v5822 = vmax.f32 %v5690, 0.0
      %v5823 = vmax.f32 %v5691, 0.0
      %v5824 = vmax.f32 %v5692, 0.0
      %v5825 = vmax.f32 %v5693, 0.0
      %v5826 = vmax.f32 %v5694, 0.0
      %v5827 = vmax.f32 %v5695, 0.0
      %v5828 = vmax.f32 %v5696, 0.0
      %v5829 = vmax.f32 %v5697, 0.0
      %v5830 = vmax.f32 %v5698, 0.0
      %v5831 = vmax.f32 %v5699, 0.0
      %v5832 = vmax.f32 %v5700, 0.0
      %v5833 = vmax.f32 %v5701, 0.0
      %v5834 = vmax.f32 %v5702, 0.0
      %v5835 = vmax.f32 %v5703, 0.0
      %v5836 = vmax.f32 %v5704, 0.0
      %v5837 = vmax.f32 %v5705, 0.0
      %v5838 = vmax.f32 %v5706, 0.0
      %v5839 = vmax.f32 %v5707, 0.0
      %v5840 = vmax.f32 %v5708, 0.0
      %v5841 = vmax.f32 %v5709, 0.0
      %v5842 = vmax.f32 %v5710, 0.0
      %v5843 = vmax.f32 %v5711, 0.0
      %v5844 = vmax.f32 %v5712, 0.0
      %v5845 = vmax.f32 %v5713, 0.0
      %v5846 = vmax.f32 %v5714, 0.0
      %v5847 = vmax.f32 %v5715, 0.0
      %v5848 = vmax.f32 %v5716, 0.0
      %v5849 = vmax.f32 %v5717, 0.0
      %v5850 = vmax.f32 %v5718, 0.0
      %v5851 = vmax.f32 %v5719, 0.0
      %v5852 = vmax.f32 %v5720, 0.0
      %v5853 = vmax.f32 %v5721, 0.0
      %v5854 = vmax.f32 %v5722, 0.0
      %v5855 = vmax.f32 %v5723, 0.0
      %v5856 = vmax.f32 %v5724, 0.0
      %v5857 = vmax.f32 %v5725, 0.0
      %v5858 = vmax.f32 %v5726, 0.0
      %v5859 = vmax.f32 %v5727, 0.0
      %v5860 = vmax.f32 %v5728, 0.0
      %v5861 = vmax.f32 %v5729, 0.0
      %v5862 = vmax.f32 %v5730, 0.0
      %v5863 = vmax.f32 %v5731, 0.0
      %v5864 = vmax.f32 %v5732, 0.0
      %v5865 = vmax.f32 %v5733, 0.0
      %v5866 = vmax.f32 %v5734, 0.0
      %v5867 = vmax.f32 %v5735, 0.0
      %v5868 = vmax.f32 %v5736, 0.0
      %v5869 = vmax.f32 %v5737, 0.0
      %v5870 = vmax.f32 %v5738, 0.0
      %v5871 = vmax.f32 %v5739, 0.0
      %v5872 = vmax.f32 %v5740, 0.0
      %v5873 = vmax.f32 %v5741, 0.0
      %v5874 = vmax.f32 %v5742, 0.0
      %v5875 = vmax.f32 %v5743, 0.0
      %v5876 = vmax.f32 %v5744, 0.0
      %v5877 = vmax.f32 %v5745, 0.0
      %v5878 = vmax.f32 %v5746, 0.0
      %v5879 = vmax.f32 %v5747, 0.0
      %v5880 = vpack.c.bf16 %v5749, %v5748
      %v5881 = vpack.c.bf16 %v5751, %v5750
      %v5882 = vpack.c.bf16 %v5753, %v5752
      %v5883 = vpack.c.bf16 %v5755, %v5754
      %v5884 = vpack.c.bf16 %v5757, %v5756
      %v5885 = vpack.c.bf16 %v5759, %v5758
      %v5886 = vpack.c.bf16 %v5761, %v5760
      %v5887 = vpack.c.bf16 %v5763, %v5762
      %v5888 = vpack.c.bf16 %v5765, %v5764
      %v5889 = vpack.c.bf16 %v5767, %v5766
      %v5890 = vpack.c.bf16 %v5769, %v5768
      %v5891 = vpack.c.bf16 %v5771, %v5770
      %v5892 = vpack.c.bf16 %v5773, %v5772
      %v5893 = vpack.c.bf16 %v5775, %v5774
      %v5894 = vpack.c.bf16 %v5777, %v5776
      %v5895 = vpack.c.bf16 %v5779, %v5778
      %v5896 = vpack.c.bf16 %v5781, %v5780
      %v5897 = vpack.c.bf16 %v5783, %v5782
      %v5898 = vpack.c.bf16 %v5785, %v5784
      %v5899 = vpack.c.bf16 %v5787, %v5786
      %v5900 = vpack.c.bf16 %v5789, %v5788
      %v5901 = vpack.c.bf16 %v5791, %v5790
      %v5902 = vpack.c.bf16 %v5793, %v5792
      %v5903 = vpack.c.bf16 %v5795, %v5794
      %v5904 = vpack.c.bf16 %v5797, %v5796
      %v5905 = vpack.c.bf16 %v5799, %v5798
      %v5906 = vpack.c.bf16 %v5801, %v5800
      %v5907 = vpack.c.bf16 %v5803, %v5802
      %v5908 = vpack.c.bf16 %v5805, %v5804
      %v5909 = vpack.c.bf16 %v5807, %v5806
      %v5910 = vpack.c.bf16 %v5809, %v5808
      %v5911 = vpack.c.bf16 %v5811, %v5810
      %v5912 = vpack.c.bf16 %v5813, %v5812
      %v5913 = vpack.c.bf16 %v5815, %v5814
      %v5914 = vpack.c.bf16 %v5817, %v5816
      %v5915 = vpack.c.bf16 %v5819, %v5818
      %v5916 = vpack.c.bf16 %v5821, %v5820
      %v5917 = vpack.c.bf16 %v5823, %v5822
      %v5918 = vpack.c.bf16 %v5825, %v5824
      %v5919 = vpack.c.bf16 %v5827, %v5826
      %v5920 = vpack.c.bf16 %v5829, %v5828
      %v5921 = vpack.c.bf16 %v5831, %v5830
      %v5922 = vpack.c.bf16 %v5833, %v5832
      %v5923 = vpack.c.bf16 %v5835, %v5834
      %v5924 = vpack.c.bf16 %v5837, %v5836
      %v5925 = vpack.c.bf16 %v5839, %v5838
      %v5926 = vpack.c.bf16 %v5841, %v5840
      %v5927 = vpack.c.bf16 %v5843, %v5842
      %v5928 = vpack.c.bf16 %v5845, %v5844
      %v5929 = vpack.c.bf16 %v5847, %v5846
      %v5930 = vpack.c.bf16 %v5849, %v5848
      %v5931 = vpack.c.bf16 %v5851, %v5850
      %v5932 = vpack.c.bf16 %v5853, %v5852
      %v5933 = vpack.c.bf16 %v5855, %v5854
      %v5934 = vpack.c.bf16 %v5857, %v5856
      %v5935 = vpack.c.bf16 %v5859, %v5858
      %v5936 = vpack.c.bf16 %v5861, %v5860
      %v5937 = vpack.c.bf16 %v5863, %v5862
      %v5938 = vpack.c.bf16 %v5865, %v5864
      %v5939 = vpack.c.bf16 %v5867, %v5866
      %v5940 = vpack.c.bf16 %v5869, %v5868
      %v5941 = vpack.c.bf16 %v5871, %v5870
      %v5942 = vpack.c.bf16 %v5873, %v5872
      %v5943 = vpack.c.bf16 %v5875, %v5874
      %v5944 = vpack.c.bf16 %v5877, %v5876
      %v5945 = vpack.c.bf16 %v5879, %v5878
      %v6012 = vunpack.c.l.b16 %v5880
      %v6013 = vunpack.c.h.b16 %v5880
      %v6014 = vunpack.c.l.b16 %v5881
      %v6015 = vunpack.c.h.b16 %v5881
      %v6016 = vunpack.c.l.b16 %v5882
      %v6017 = vunpack.c.h.b16 %v5882
      %v6018 = vunpack.c.l.b16 %v5883
      %v6019 = vunpack.c.h.b16 %v5883
      %v6020 = vunpack.c.l.b16 %v5884
      %v6021 = vunpack.c.h.b16 %v5884
      %v6022 = vunpack.c.l.b16 %v5885
      %v6023 = vunpack.c.h.b16 %v5885
      %v6024 = vunpack.c.l.b16 %v5886
      %v6025 = vunpack.c.h.b16 %v5886
      %v6026 = vunpack.c.l.b16 %v5887
      %v6027 = vunpack.c.h.b16 %v5887
      %v6028 = vunpack.c.l.b16 %v5888
      %v6029 = vunpack.c.h.b16 %v5888
      %v6030 = vunpack.c.l.b16 %v5889
      %v6031 = vunpack.c.h.b16 %v5889
      %v6032 = vunpack.c.l.b16 %v5890
      %v6033 = vunpack.c.h.b16 %v5890
      %v6034 = vunpack.c.l.b16 %v5891
      %v6035 = vunpack.c.h.b16 %v5891
      %v6036 = vunpack.c.l.b16 %v5892
      %v6037 = vunpack.c.h.b16 %v5892
      %v6038 = vunpack.c.l.b16 %v5893
      %v6039 = vunpack.c.h.b16 %v5893
      %v6040 = vunpack.c.l.b16 %v5894
      %v6041 = vunpack.c.h.b16 %v5894
      %v6042 = vunpack.c.l.b16 %v5895
      %v6043 = vunpack.c.h.b16 %v5895
      %v6044 = vunpack.c.l.b16 %v5896
      %v6045 = vunpack.c.h.b16 %v5896
      %v6046 = vunpack.c.l.b16 %v5897
      %v6047 = vunpack.c.h.b16 %v5897
      %v6048 = vunpack.c.l.b16 %v5898
      %v6049 = vunpack.c.h.b16 %v5898
      %v6050 = vunpack.c.l.b16 %v5899
      %v6051 = vunpack.c.h.b16 %v5899
      %v6052 = vunpack.c.l.b16 %v5900
      %v6053 = vunpack.c.h.b16 %v5900
      %v6054 = vunpack.c.l.b16 %v5901
      %v6055 = vunpack.c.h.b16 %v5901
      %v6056 = vunpack.c.l.b16 %v5902
      %v6057 = vunpack.c.h.b16 %v5902
      %v6058 = vunpack.c.l.b16 %v5903
      %v6059 = vunpack.c.h.b16 %v5903
      %v6060 = vunpack.c.l.b16 %v5904
      %v6061 = vunpack.c.h.b16 %v5904
      %v6062 = vunpack.c.l.b16 %v5905
      %v6063 = vunpack.c.h.b16 %v5905
      %v6064 = vunpack.c.l.b16 %v5906
      %v6065 = vunpack.c.h.b16 %v5906
      %v6066 = vunpack.c.l.b16 %v5907
      %v6067 = vunpack.c.h.b16 %v5907
      %v6068 = vunpack.c.l.b16 %v5908
      %v6069 = vunpack.c.h.b16 %v5908
      %v6070 = vunpack.c.l.b16 %v5909
      %v6071 = vunpack.c.h.b16 %v5909
      %v6072 = vunpack.c.l.b16 %v5910
      %v6073 = vunpack.c.h.b16 %v5910
      %v6074 = vunpack.c.l.b16 %v5911
      %v6075 = vunpack.c.h.b16 %v5911
      %v6076 = vunpack.c.l.b16 %v5912
      %v6077 = vunpack.c.h.b16 %v5912
      %v6078 = vunpack.c.l.b16 %v5913
      %v6079 = vunpack.c.h.b16 %v5913
      %v6080 = vunpack.c.l.b16 %v5914
      %v6081 = vunpack.c.h.b16 %v5914
      %v6082 = vunpack.c.l.b16 %v5915
      %v6083 = vunpack.c.h.b16 %v5915
      %v6084 = vunpack.c.l.b16 %v5916
      %v6085 = vunpack.c.h.b16 %v5916
      %v6086 = vunpack.c.l.b16 %v5917
      %v6087 = vunpack.c.h.b16 %v5917
      %v6088 = vunpack.c.l.b16 %v5918
      %v6089 = vunpack.c.h.b16 %v5918
      %v6090 = vunpack.c.l.b16 %v5919
      %v6091 = vunpack.c.h.b16 %v5919
      %v6092 = vunpack.c.l.b16 %v5920
      %v6093 = vunpack.c.h.b16 %v5920
      %v6094 = vunpack.c.l.b16 %v5921
      %v6095 = vunpack.c.h.b16 %v5921
      %v6096 = vunpack.c.l.b16 %v5922
      %v6097 = vunpack.c.h.b16 %v5922
      %v6098 = vunpack.c.l.b16 %v5923
      %v6099 = vunpack.c.h.b16 %v5923
      %v6100 = vunpack.c.l.b16 %v5924
      %v6101 = vunpack.c.h.b16 %v5924
      %v6102 = vunpack.c.l.b16 %v5925
      %v6103 = vunpack.c.h.b16 %v5925
      %v6104 = vunpack.c.l.b16 %v5926
      %v6105 = vunpack.c.h.b16 %v5926
      %v6106 = vunpack.c.l.b16 %v5927
      %v6107 = vunpack.c.h.b16 %v5927
      %v6108 = vunpack.c.l.b16 %v5928
      %v6109 = vunpack.c.h.b16 %v5928
      %v6110 = vunpack.c.l.b16 %v5929
      %v6111 = vunpack.c.h.b16 %v5929
      %v6112 = vunpack.c.l.b16 %v5930
      %v6113 = vunpack.c.h.b16 %v5930
      %v6114 = vunpack.c.l.b16 %v5931
      %v6115 = vunpack.c.h.b16 %v5931
      %v6116 = vunpack.c.l.b16 %v5932
      %v6117 = vunpack.c.h.b16 %v5932
      %v6118 = vunpack.c.l.b16 %v5933
      %v6119 = vunpack.c.h.b16 %v5933
      %v6120 = vunpack.c.l.b16 %v5934
      %v6121 = vunpack.c.h.b16 %v5934
      %v6122 = vunpack.c.l.b16 %v5935
      %v6123 = vunpack.c.h.b16 %v5935
      %v6124 = vunpack.c.l.b16 %v5936
      %v6125 = vunpack.c.h.b16 %v5936
      %v6126 = vunpack.c.l.b16 %v5937
      %v6127 = vunpack.c.h.b16 %v5937
      %v6128 = vunpack.c.l.b16 %v5938
      %v6129 = vunpack.c.h.b16 %v5938
      %v6130 = vunpack.c.l.b16 %v5939
      %v6131 = vunpack.c.h.b16 %v5939
      %v6132 = vunpack.c.l.b16 %v5940
      %v6133 = vunpack.c.h.b16 %v5940
      %v6134 = vunpack.c.l.b16 %v5941
      %v6135 = vunpack.c.h.b16 %v5941
      %v6136 = vunpack.c.l.b16 %v5942
      %v6137 = vunpack.c.h.b16 %v5942
      %v6138 = vunpack.c.l.b16 %v5943
      %v6139 = vunpack.c.h.b16 %v5943
      %v6140 = vunpack.c.l.b16 %v5944
      %v6141 = vunpack.c.h.b16 %v5944
      %v6142 = vunpack.c.l.b16 %v5945
      %v6143 = vunpack.c.h.b16 %v5945
      %v6144 = vpack.c.b16 %v6012, %v6012
      %v6145 = vpack.c.b16 %v6013, %v6013
      %v6146 = vpack.c.b16 %v6014, %v6014
      %v6147 = vpack.c.b16 %v6015, %v6015
      %v6148 = vpack.c.b16 %v6016, %v6016
      %v6149 = vpack.c.b16 %v6017, %v6017
      %v6150 = vpack.c.b16 %v6018, %v6018
      %v6151 = vpack.c.b16 %v6019, %v6019
      %v6152 = vpack.c.b16 %v6020, %v6020
      %v6153 = vpack.c.b16 %v6021, %v6021
      %v6154 = vpack.c.b16 %v6022, %v6022
      %v6155 = vpack.c.b16 %v6023, %v6023
      %v6156 = vpack.c.b16 %v6024, %v6024
      %v6157 = vpack.c.b16 %v6025, %v6025
      %v6158 = vpack.c.b16 %v6026, %v6026
      %v6159 = vpack.c.b16 %v6027, %v6027
      %v6160 = vpack.c.b16 %v6028, %v6028
      %v6161 = vpack.c.b16 %v6029, %v6029
      %v6162 = vpack.c.b16 %v6030, %v6030
      %v6163 = vpack.c.b16 %v6031, %v6031
      %v6164 = vpack.c.b16 %v6032, %v6032
      %v6165 = vpack.c.b16 %v6033, %v6033
      %v6166 = vpack.c.b16 %v6034, %v6034
      %v6167 = vpack.c.b16 %v6035, %v6035
      %v6168 = vpack.c.b16 %v6036, %v6036
      %v6169 = vpack.c.b16 %v6037, %v6037
      %v6170 = vpack.c.b16 %v6038, %v6038
      %v6171 = vpack.c.b16 %v6039, %v6039
      %v6172 = vpack.c.b16 %v6040, %v6040
      %v6173 = vpack.c.b16 %v6041, %v6041
      %v6174 = vpack.c.b16 %v6042, %v6042
      %v6175 = vpack.c.b16 %v6043, %v6043
      %v6176 = vpack.c.b16 %v6044, %v6044
      %v6177 = vpack.c.b16 %v6045, %v6045
      %v6178 = vpack.c.b16 %v6046, %v6046
      %v6179 = vpack.c.b16 %v6047, %v6047
      %v6180 = vpack.c.b16 %v6048, %v6048
      %v6181 = vpack.c.b16 %v6049, %v6049
      %v6182 = vpack.c.b16 %v6050, %v6050
      %v6183 = vpack.c.b16 %v6051, %v6051
      %v6184 = vpack.c.b16 %v6052, %v6052
      %v6185 = vpack.c.b16 %v6053, %v6053
      %v6186 = vpack.c.b16 %v6054, %v6054
      %v6187 = vpack.c.b16 %v6055, %v6055
      %v6188 = vpack.c.b16 %v6056, %v6056
      %v6189 = vpack.c.b16 %v6057, %v6057
      %v6190 = vpack.c.b16 %v6058, %v6058
      %v6191 = vpack.c.b16 %v6059, %v6059
      %v6192 = vpack.c.b16 %v6060, %v6060
      %v6193 = vpack.c.b16 %v6061, %v6061
      %v6194 = vpack.c.b16 %v6062, %v6062
      %v6195 = vpack.c.b16 %v6063, %v6063
      %v6196 = vpack.c.b16 %v6064, %v6064
      %v6197 = vpack.c.b16 %v6065, %v6065
      %v6198 = vpack.c.b16 %v6066, %v6066
      %v6199 = vpack.c.b16 %v6067, %v6067
      %v6200 = vpack.c.b16 %v6068, %v6068
      %v6201 = vpack.c.b16 %v6069, %v6069
      %v6202 = vpack.c.b16 %v6070, %v6070
      %v6203 = vpack.c.b16 %v6071, %v6071
      %v6204 = vpack.c.b16 %v6072, %v6072
      %v6205 = vpack.c.b16 %v6073, %v6073
      %v6206 = vpack.c.b16 %v6074, %v6074
      %v6207 = vpack.c.b16 %v6075, %v6075
      %v6208 = vpack.c.b16 %v6076, %v6076
      %v6209 = vpack.c.b16 %v6077, %v6077
      %v6210 = vpack.c.b16 %v6078, %v6078
      %v6211 = vpack.c.b16 %v6079, %v6079
      %v6212 = vpack.c.b16 %v6080, %v6080
      %v6213 = vpack.c.b16 %v6081, %v6081
      %v6214 = vpack.c.b16 %v6082, %v6082
      %v6215 = vpack.c.b16 %v6083, %v6083
      %v6216 = vpack.c.b16 %v6084, %v6084
      %v6217 = vpack.c.b16 %v6085, %v6085
      %v6218 = vpack.c.b16 %v6086, %v6086
      %v6219 = vpack.c.b16 %v6087, %v6087
      %v6220 = vpack.c.b16 %v6088, %v6088
      %v6221 = vpack.c.b16 %v6089, %v6089
      %v6222 = vpack.c.b16 %v6090, %v6090
      %v6223 = vpack.c.b16 %v6091, %v6091
      %v6224 = vpack.c.b16 %v6092, %v6092
      %v6225 = vpack.c.b16 %v6093, %v6093
      %v6226 = vpack.c.b16 %v6094, %v6094
      %v6227 = vpack.c.b16 %v6095, %v6095
      %v6228 = vpack.c.b16 %v6096, %v6096
      %v6229 = vpack.c.b16 %v6097, %v6097
      %v6230 = vpack.c.b16 %v6098, %v6098
      %v6231 = vpack.c.b16 %v6099, %v6099
      %v6232 = vpack.c.b16 %v6100, %v6100
      %v6233 = vpack.c.b16 %v6101, %v6101
      %v6234 = vpack.c.b16 %v6102, %v6102
      %v6235 = vpack.c.b16 %v6103, %v6103
      %v6236 = vpack.c.b16 %v6104, %v6104
      %v6237 = vpack.c.b16 %v6105, %v6105
      %v6238 = vpack.c.b16 %v6106, %v6106
      %v6239 = vpack.c.b16 %v6107, %v6107
      %v6240 = vpack.c.b16 %v6108, %v6108
      %v6241 = vpack.c.b16 %v6109, %v6109
      %v6242 = vpack.c.b16 %v6110, %v6110
      %v6243 = vpack.c.b16 %v6111, %v6111
      %v6244 = vpack.c.b16 %v6112, %v6112
      %v6245 = vpack.c.b16 %v6113, %v6113
      %v6246 = vpack.c.b16 %v6114, %v6114
      %v6247 = vpack.c.b16 %v6115, %v6115
      %v6248 = vpack.c.b16 %v6116, %v6116
      %v6249 = vpack.c.b16 %v6117, %v6117
      %v6250 = vpack.c.b16 %v6118, %v6118
      %v6251 = vpack.c.b16 %v6119, %v6119
      %v6252 = vpack.c.b16 %v6120, %v6120
      %v6253 = vpack.c.b16 %v6121, %v6121
      %v6254 = vpack.c.b16 %v6122, %v6122
      %v6255 = vpack.c.b16 %v6123, %v6123
      %v6256 = vpack.c.b16 %v6124, %v6124
      %v6257 = vpack.c.b16 %v6125, %v6125
      %v6258 = vpack.c.b16 %v6126, %v6126
      %v6259 = vpack.c.b16 %v6127, %v6127
      %v6260 = vpack.c.b16 %v6128, %v6128
      %v6261 = vpack.c.b16 %v6129, %v6129
      %v6262 = vpack.c.b16 %v6130, %v6130
      %v6263 = vpack.c.b16 %v6131, %v6131
      %v6264 = vpack.c.b16 %v6132, %v6132
      %v6265 = vpack.c.b16 %v6133, %v6133
      %v6266 = vpack.c.b16 %v6134, %v6134
      %v6267 = vpack.c.b16 %v6135, %v6135
      %v6268 = vpack.c.b16 %v6136, %v6136
      %v6269 = vpack.c.b16 %v6137, %v6137
      %v6270 = vpack.c.b16 %v6138, %v6138
      %v6271 = vpack.c.b16 %v6139, %v6139
      %v6272 = vpack.c.b16 %v6140, %v6140
      %v6273 = vpack.c.b16 %v6141, %v6141
      %v6274 = vpack.c.b16 %v6142, %v6142
      %v6275 = vpack.c.b16 %v6143, %v6143
      %vm6408 = vcmask 257024
      %6409 = vst.msk [vmem:[%s170] sm:$0xf] %vm6408, %v6144
      %6410 = vst.msk [vmem:[%s170 + $0x4] sm:$0xf] %vm6408, %v6145
      %6411 = vst.msk [vmem:[%s170 + $0x8] sm:$0xf] %vm6408, %v6146
      %6412 = vst.msk [vmem:[%s170 + $0xc] sm:$0xf] %vm6408, %v6147
      %6413 = vst.msk [vmem:[%s170 + $0x10] sm:$0xf] %vm6408, %v6148
      %6414 = vst.msk [vmem:[%s170 + $0x14] sm:$0xf] %vm6408, %v6149
      %6415 = vst.msk [vmem:[%s170 + $0x18] sm:$0xf] %vm6408, %v6150
      %6416 = vst.msk [vmem:[%s170 + $0x1c] sm:$0xf] %vm6408, %v6151
      %6417 = vst.msk [vmem:[%s170 + $0x20] sm:$0xf] %vm6408, %v6152
      %6418 = vst.msk [vmem:[%s170 + $0x24] sm:$0xf] %vm6408, %v6153
      %6419 = vst.msk [vmem:[%s170 + $0x28] sm:$0xf] %vm6408, %v6154
      %6420 = vst.msk [vmem:[%s170 + $0x2c] sm:$0xf] %vm6408, %v6155
      %6421 = vst.msk [vmem:[%s170 + $0x30] sm:$0xf] %vm6408, %v6156
      %6422 = vst.msk [vmem:[%s170 + $0x34] sm:$0xf] %vm6408, %v6157
      %6423 = vst.msk [vmem:[%s170 + $0x38] sm:$0xf] %vm6408, %v6158
      %6424 = vst.msk [vmem:[%s170 + $0x3c] sm:$0xf] %vm6408, %v6159
      %6425 = vst.msk [vmem:[%s170 + $0x40] sm:$0xf] %vm6408, %v6160
      %6426 = vst.msk [vmem:[%s170 + $0x44] sm:$0xf] %vm6408, %v6161
      %6427 = vst.msk [vmem:[%s170 + $0x48] sm:$0xf] %vm6408, %v6162
      %6428 = vst.msk [vmem:[%s170 + $0x4c] sm:$0xf] %vm6408, %v6163
      %6429 = vst.msk [vmem:[%s170 + $0x50] sm:$0xf] %vm6408, %v6164
      %6430 = vst.msk [vmem:[%s170 + $0x54] sm:$0xf] %vm6408, %v6165
      %6431 = vst.msk [vmem:[%s170 + $0x58] sm:$0xf] %vm6408, %v6166
      %6432 = vst.msk [vmem:[%s170 + $0x5c] sm:$0xf] %vm6408, %v6167
      %6433 = vst.msk [vmem:[%s170 + $0x60] sm:$0xf] %vm6408, %v6168
      %6434 = vst.msk [vmem:[%s170 + $0x64] sm:$0xf] %vm6408, %v6169
      %6435 = vst.msk [vmem:[%s170 + $0x68] sm:$0xf] %vm6408, %v6170
      %6436 = vst.msk [vmem:[%s170 + $0x6c] sm:$0xf] %vm6408, %v6171
      %6437 = vst.msk [vmem:[%s170 + $0x70] sm:$0xf] %vm6408, %v6172
      %6438 = vst.msk [vmem:[%s170 + $0x74] sm:$0xf] %vm6408, %v6173
      %6439 = vst.msk [vmem:[%s170 + $0x78] sm:$0xf] %vm6408, %v6174
      %6440 = vst.msk [vmem:[%s170 + $0x7c] sm:$0xf] %vm6408, %v6175
      %6441 = vst.msk [vmem:[%s170 + $0x80] sm:$0xf] %vm6408, %v6176
      %6442 = vst.msk [vmem:[%s170 + $0x84] sm:$0xf] %vm6408, %v6177
      %6443 = vst.msk [vmem:[%s170 + $0x88] sm:$0xf] %vm6408, %v6178
      %6444 = vst.msk [vmem:[%s170 + $0x8c] sm:$0xf] %vm6408, %v6179
      %6445 = vst.msk [vmem:[%s170 + $0x90] sm:$0xf] %vm6408, %v6180
      %6446 = vst.msk [vmem:[%s170 + $0x94] sm:$0xf] %vm6408, %v6181
      %6447 = vst.msk [vmem:[%s170 + $0x98] sm:$0xf] %vm6408, %v6182
      %6448 = vst.msk [vmem:[%s170 + $0x9c] sm:$0xf] %vm6408, %v6183
      %6449 = vst.msk [vmem:[%s170 + $0xa0] sm:$0xf] %vm6408, %v6184
      %6450 = vst.msk [vmem:[%s170 + $0xa4] sm:$0xf] %vm6408, %v6185
      %6451 = vst.msk [vmem:[%s170 + $0xa8] sm:$0xf] %vm6408, %v6186
      %6452 = vst.msk [vmem:[%s170 + $0xac] sm:$0xf] %vm6408, %v6187
      %6453 = vst.msk [vmem:[%s170 + $0xb0] sm:$0xf] %vm6408, %v6188
      %6454 = vst.msk [vmem:[%s170 + $0xb4] sm:$0xf] %vm6408, %v6189
      %6455 = vst.msk [vmem:[%s170 + $0xb8] sm:$0xf] %vm6408, %v6190
      %6456 = vst.msk [vmem:[%s170 + $0xbc] sm:$0xf] %vm6408, %v6191
      %6457 = vst.msk [vmem:[%s170 + $0xc0] sm:$0xf] %vm6408, %v6192
      %6458 = vst.msk [vmem:[%s170 + $0xc4] sm:$0xf] %vm6408, %v6193
      %6459 = vst.msk [vmem:[%s170 + $0xc8] sm:$0xf] %vm6408, %v6194
      %6460 = vst.msk [vmem:[%s170 + $0xcc] sm:$0xf] %vm6408, %v6195
      %6461 = vst.msk [vmem:[%s170 + $0xd0] sm:$0xf] %vm6408, %v6196
      %6462 = vst.msk [vmem:[%s170 + $0xd4] sm:$0xf] %vm6408, %v6197
      %6463 = vst.msk [vmem:[%s170 + $0xd8] sm:$0xf] %vm6408, %v6198
      %6464 = vst.msk [vmem:[%s170 + $0xdc] sm:$0xf] %vm6408, %v6199
      %6465 = vst.msk [vmem:[%s170 + $0xe0] sm:$0xf] %vm6408, %v6200
      %6466 = vst.msk [vmem:[%s170 + $0xe4] sm:$0xf] %vm6408, %v6201
      %6467 = vst.msk [vmem:[%s170 + $0xe8] sm:$0xf] %vm6408, %v6202
      %6468 = vst.msk [vmem:[%s170 + $0xec] sm:$0xf] %vm6408, %v6203
      %6469 = vst.msk [vmem:[%s170 + $0xf0] sm:$0xf] %vm6408, %v6204
      %6470 = vst.msk [vmem:[%s170 + $0xf4] sm:$0xf] %vm6408, %v6205
      %6471 = vst.msk [vmem:[%s170 + $0xf8] sm:$0xf] %vm6408, %v6206
      %6472 = vst.msk [vmem:[%s170 + $0xfc] sm:$0xf] %vm6408, %v6207
      %6473 = vst.msk [vmem:[%s170 + $0x100] sm:$0xf] %vm6408, %v6208
      %6474 = vst.msk [vmem:[%s170 + $0x104] sm:$0xf] %vm6408, %v6209
      %6475 = vst.msk [vmem:[%s170 + $0x108] sm:$0xf] %vm6408, %v6210
      %6476 = vst.msk [vmem:[%s170 + $0x10c] sm:$0xf] %vm6408, %v6211
      %6477 = vst.msk [vmem:[%s170 + $0x110] sm:$0xf] %vm6408, %v6212
      %6478 = vst.msk [vmem:[%s170 + $0x114] sm:$0xf] %vm6408, %v6213
      %6479 = vst.msk [vmem:[%s170 + $0x118] sm:$0xf] %vm6408, %v6214
      %6480 = vst.msk [vmem:[%s170 + $0x11c] sm:$0xf] %vm6408, %v6215
      %6481 = vst.msk [vmem:[%s170 + $0x120] sm:$0xf] %vm6408, %v6216
      %6482 = vst.msk [vmem:[%s170 + $0x124] sm:$0xf] %vm6408, %v6217
      %6483 = vst.msk [vmem:[%s170 + $0x128] sm:$0xf] %vm6408, %v6218
      %6484 = vst.msk [vmem:[%s170 + $0x12c] sm:$0xf] %vm6408, %v6219
      %6485 = vst.msk [vmem:[%s170 + $0x130] sm:$0xf] %vm6408, %v6220
      %6486 = vst.msk [vmem:[%s170 + $0x134] sm:$0xf] %vm6408, %v6221
      %6487 = vst.msk [vmem:[%s170 + $0x138] sm:$0xf] %vm6408, %v6222
      %6488 = vst.msk [vmem:[%s170 + $0x13c] sm:$0xf] %vm6408, %v6223
      %6489 = vst.msk [vmem:[%s170 + $0x140] sm:$0xf] %vm6408, %v6224
      %6490 = vst.msk [vmem:[%s170 + $0x144] sm:$0xf] %vm6408, %v6225
      %6491 = vst.msk [vmem:[%s170 + $0x148] sm:$0xf] %vm6408, %v6226
      %6492 = vst.msk [vmem:[%s170 + $0x14c] sm:$0xf] %vm6408, %v6227
      %6493 = vst.msk [vmem:[%s170 + $0x150] sm:$0xf] %vm6408, %v6228
      %6494 = vst.msk [vmem:[%s170 + $0x154] sm:$0xf] %vm6408, %v6229
      %6495 = vst.msk [vmem:[%s170 + $0x158] sm:$0xf] %vm6408, %v6230
      %6496 = vst.msk [vmem:[%s170 + $0x15c] sm:$0xf] %vm6408, %v6231
      %6497 = vst.msk [vmem:[%s170 + $0x160] sm:$0xf] %vm6408, %v6232
      %6498 = vst.msk [vmem:[%s170 + $0x164] sm:$0xf] %vm6408, %v6233
      %6499 = vst.msk [vmem:[%s170 + $0x168] sm:$0xf] %vm6408, %v6234
      %6500 = vst.msk [vmem:[%s170 + $0x16c] sm:$0xf] %vm6408, %v6235
      %6501 = vst.msk [vmem:[%s170 + $0x170] sm:$0xf] %vm6408, %v6236
      %6502 = vst.msk [vmem:[%s170 + $0x174] sm:$0xf] %vm6408, %v6237
      %6503 = vst.msk [vmem:[%s170 + $0x178] sm:$0xf] %vm6408, %v6238
      %6504 = vst.msk [vmem:[%s170 + $0x17c] sm:$0xf] %vm6408, %v6239
      %6505 = vst.msk [vmem:[%s170 + $0x180] sm:$0xf] %vm6408, %v6240
      %6506 = vst.msk [vmem:[%s170 + $0x184] sm:$0xf] %vm6408, %v6241
      %6507 = vst.msk [vmem:[%s170 + $0x188] sm:$0xf] %vm6408, %v6242
      %6508 = vst.msk [vmem:[%s170 + $0x18c] sm:$0xf] %vm6408, %v6243
      %6509 = vst.msk [vmem:[%s170 + $0x190] sm:$0xf] %vm6408, %v6244
      %6510 = vst.msk [vmem:[%s170 + $0x194] sm:$0xf] %vm6408, %v6245
      %6511 = vst.msk [vmem:[%s170 + $0x198] sm:$0xf] %vm6408, %v6246
      %6512 = vst.msk [vmem:[%s170 + $0x19c] sm:$0xf] %vm6408, %v6247
      %6513 = vst.msk [vmem:[%s170 + $0x1a0] sm:$0xf] %vm6408, %v6248
      %6514 = vst.msk [vmem:[%s170 + $0x1a4] sm:$0xf] %vm6408, %v6249
      %6515 = vst.msk [vmem:[%s170 + $0x1a8] sm:$0xf] %vm6408, %v6250
      %6516 = vst.msk [vmem:[%s170 + $0x1ac] sm:$0xf] %vm6408, %v6251
      %6517 = vst.msk [vmem:[%s170 + $0x1b0] sm:$0xf] %vm6408, %v6252
      %6518 = vst.msk [vmem:[%s170 + $0x1b4] sm:$0xf] %vm6408, %v6253
      %6519 = vst.msk [vmem:[%s170 + $0x1b8] sm:$0xf] %vm6408, %v6254
      %6520 = vst.msk [vmem:[%s170 + $0x1bc] sm:$0xf] %vm6408, %v6255
      %6521 = vst.msk [vmem:[%s170 + $0x1c0] sm:$0xf] %vm6408, %v6256
      %6522 = vst.msk [vmem:[%s170 + $0x1c4] sm:$0xf] %vm6408, %v6257
      %6523 = vst.msk [vmem:[%s170 + $0x1c8] sm:$0xf] %vm6408, %v6258
      %6524 = vst.msk [vmem:[%s170 + $0x1cc] sm:$0xf] %vm6408, %v6259
      %6525 = vst.msk [vmem:[%s170 + $0x1d0] sm:$0xf] %vm6408, %v6260
      %6526 = vst.msk [vmem:[%s170 + $0x1d4] sm:$0xf] %vm6408, %v6261
      %6527 = vst.msk [vmem:[%s170 + $0x1d8] sm:$0xf] %vm6408, %v6262
      %6528 = vst.msk [vmem:[%s170 + $0x1dc] sm:$0xf] %vm6408, %v6263
      %6529 = vst.msk [vmem:[%s170 + $0x1e0] sm:$0xf] %vm6408, %v6264
      %6530 = vst.msk [vmem:[%s170 + $0x1e4] sm:$0xf] %vm6408, %v6265
      %6531 = vst.msk [vmem:[%s170 + $0x1e8] sm:$0xf] %vm6408, %v6266
      %6532 = vst.msk [vmem:[%s170 + $0x1ec] sm:$0xf] %vm6408, %v6267
      %6533 = vst.msk [vmem:[%s170 + $0x1f0] sm:$0xf] %vm6408, %v6268
      %6534 = vst.msk [vmem:[%s170 + $0x1f4] sm:$0xf] %vm6408, %v6269
      %6535 = vst.msk [vmem:[%s170 + $0x1f8] sm:$0xf] %vm6408, %v6270
      %6536 = vst.msk [vmem:[%s170 + $0x1fc] sm:$0xf] %vm6408, %v6271
      %6537 = vst.msk [vmem:[%s170 + $0x200] sm:$0xf] %vm6408, %v6272
      %6538 = vst.msk [vmem:[%s170 + $0x204] sm:$0xf] %vm6408, %v6273
      %6539 = vst.msk [vmem:[%s170 + $0x208] sm:$0xf] %vm6408, %v6274
      %6540 = vst.msk [vmem:[%s170 + $0x20c] sm:$0xf] %vm6408, %v6275
      %p6541 = scmp.lt.s32.totalorder %s14, 1
      %s6542 = scalar_select %p6541, %s14, 1
      %s6543 = smul.addr %s6542, 132
      %s6544 = smul.addr %s6543, 4
      %s6545 = scalar_lea.vmem %s3, %s6544
      // Predicated region
      $region33: #{forward.5} parent=31 // pred_check
        %p6546 = pneg %p100
      $region34: #{forward.5} parent=31 // pred_check_branch
        %6548 = sbr.rel (%p6546) target = $region36
      $region35: #{forward.5} parent=31 // pred_region
        _
      $region36: #{forward.5} parent=31 // pred_fallthru
        _
    $region32: #{forward.5} parent=5 // pred_fallthru
      _
    %p6549 = scmp.le.s32.totalorder 2, %s9
    // Predicated region
    $region37: #{forward.5} parent=5 // pred_check
      %p6550 = pneg %p6549
    $region38: #{forward.5} parent=5 // pred_check_branch
      %6552 = sbr.rel (%p6550) target = $region40
    $region39: #{forward.5} parent=5 // pred_region
      %s6553 = ssub.s32 %s9, 2
      // Predicated region
      $region41: #{forward.5} parent=39 // pred_check
        %p6554 = pneg %p106
      $region42: #{forward.5} parent=39 // pred_check_branch
        %6556 = sbr.rel (%p6554) target = $region44
      $region43: #{forward.5} parent=39 // pred_region
        %p6557 = scmp.lt.s32.totalorder %s15, 1
        %s6558 = scalar_select %p6557, %s15, 1
        %s6559 = smul.addr %s6558, 132
        %s6560 = smul.addr %s6559, 4
        %s6561 = scalar_lea.vmem %s3, %s6560
      $region44: #{forward.5} parent=39 // pred_fallthru
        _
    $region40: #{forward.5} parent=5 // pred_fallthru
      _
  $region6: #{forward.5} parent=0 // loop_footer
    %s13 = sadd.s32 1, %s9
  $region7: #{forward.5} parent=0 // loop_footer_branch
    %8 = sbr.rel target = $region3
  $region8: #{forward.5} parent=0 // loop_exit
    _

// kernel: forward.6
$region0: #{forward.6}
  #allocation0 [shape = 'u32[]', space=smem, size = 0x4, offset = 0x4, fixed_abs, tag = 'smem constant byte address 0x4 - core index']
  #allocation1 [shape = 'u32[144,128]{1,0:T(1,128)}', space=vmem, size = 0x12000, scoped, tag = 'internal scratch']
  %s0 = inlined_call_operand.vmem [shape: bf16[2,296,128], index: 0, kind: input, shape index: {}]
  %s1 = inlined_call_operand.vmem [shape: bf16[4,128,32], index: 1, kind: input, shape index: {}]
  %s2 = inlined_call_operand.vmem [shape: f32[1,32], index: 2, kind: input, shape index: {}]
  %s3 = inlined_call_operand.vmem [shape: bf16[2,272,32], index: 3, kind: output, shape index: {}]
  %s4 = sld [smem:[#allocation0]]
  $region45: #{forward.6} parent=0
    _
  %s6 = ssub.s32 1, %s4
  %s7 = scalar_select 0, %s6, %s4
  loop: start=0, step=1, limit=4
  $region2: #{forward.6} parent=0 // loop_pre_header
    _
  $region3: #{forward.6} parent=0 // loop_header
    %s9 = sphi 0, %s13
    %p10 = scmp.ge.s32.totalorder %s9, 4
    %s19 = sphi 0, %s21
    %s22 = sphi 0, %s19
    %s23 = sphi 0, %s22
    %s39 = sphi 0, %s23
    %s43 = sphi 0, %s43
    %s45 = sphi 0, %s43
    %s46 = sphi 0, %s45
    %s60 = sphi 0, %s46
    %s64 = sphi 0, %s64
    %s66 = sphi 0, %s64
    %s67 = sphi 0, %s66
    %s81 = sphi 0, %s67
    %s87 = sphi 0, %s89
    %s90 = sphi 0, %s87
    %s91 = sphi 0, %s90
    %s107 = sphi 0, %s91
  $region4: #{forward.6} parent=0 // loop_header_branch
    %12 = sbr.rel (%p10) target = $region8
  $region5: #{forward.6} parent=0 // loop_body
    %s14 = ssub.s32 %s9, 1
    %s15 = ssub.s32 %s9, 2
    %s16 = sadd.s32 %s9, 1
    %s17 = ssub.s32 %s9, %s16
    %p18 = scmp.eq.s32.totalorder %s17, 0
    %s20 = sadd.s32 %s19, 1
    %s21 = scalar_select %p18, %s19, %s20
    %p24 = pneg %p18
    %p25 = scmp.eq.s32.totalorder %s9, 1
    %p26 = por %p24, %p25
    %p27 = scmp.ne.s32.totalorder %s19, %s22
    %p28 = scmp.eq.s32.totalorder %s9, 0
    %p29 = por %p27, %p28
    %p30 = scmp.ne.s32.totalorder %s19, %s22
    %p31 = scmp.eq.s32.totalorder %s14, 1
    %p32 = por %p30, %p31
    %p33 = scmp.ne.s32.totalorder %s22, %s23
    %p34 = scmp.eq.s32.totalorder %s14, 0
    %p35 = por %p33, %p34
    %p36 = scmp.ne.s32.totalorder %s22, %s23
    %p37 = scmp.eq.s32.totalorder %s15, 1
    %p38 = por %p36, %p37
    %p40 = scmp.ne.s32.totalorder %s23, %s39
    %p41 = scmp.eq.s32.totalorder %s15, 0
    %p42 = por %p40, %p41
    %s44 = sadd.s32 %s43, 1
    %p47 = scmp.eq.s32.totalorder %s9, 1
    %p48 = scmp.ne.s32.totalorder %s43, %s45
    %p49 = scmp.eq.s32.totalorder %s9, 0
    %p50 = por %p48, %p49
    %p51 = scmp.ne.s32.totalorder %s43, %s45
    %p52 = scmp.eq.s32.totalorder %s14, 1
    %p53 = por %p51, %p52
    %p54 = scmp.ne.s32.totalorder %s45, %s46
    %p55 = scmp.eq.s32.totalorder %s14, 0
    %p56 = por %p54, %p55
    %p57 = scmp.ne.s32.totalorder %s45, %s46
    %p58 = scmp.eq.s32.totalorder %s15, 1
    %p59 = por %p57, %p58
    %p61 = scmp.ne.s32.totalorder %s46, %s60
    %p62 = scmp.eq.s32.totalorder %s15, 0
    %p63 = por %p61, %p62
    %s65 = sadd.s32 %s64, 1
    %p68 = scmp.eq.s32.totalorder %s9, 1
    %p69 = scmp.ne.s32.totalorder %s64, %s66
    %p70 = scmp.eq.s32.totalorder %s9, 0
    %p71 = por %p69, %p70
    %p72 = scmp.ne.s32.totalorder %s64, %s66
    %p73 = scmp.eq.s32.totalorder %s14, 1
    %p74 = por %p72, %p73
    %p75 = scmp.ne.s32.totalorder %s66, %s67
    %p76 = scmp.eq.s32.totalorder %s14, 0
    %p77 = por %p75, %p76
    %p78 = scmp.ne.s32.totalorder %s66, %s67
    %p79 = scmp.eq.s32.totalorder %s15, 1
    %p80 = por %p78, %p79
    %p82 = scmp.ne.s32.totalorder %s67, %s81
    %p83 = scmp.eq.s32.totalorder %s15, 0
    %p84 = por %p82, %p83
    %s85 = ssub.s32 %s9, %s16
    %p86 = scmp.eq.s32.totalorder %s85, 0
    %s88 = sadd.s32 %s87, 1
    %s89 = scalar_select %p86, %s87, %s88
    %p92 = pneg %p86
    %p93 = scmp.eq.s32.totalorder %s9, 1
    %p94 = por %p92, %p93
    %p95 = scmp.ne.s32.totalorder %s87, %s90
    %p96 = scmp.eq.s32.totalorder %s9, 0
    %p97 = por %p95, %p96
    %p98 = scmp.ne.s32.totalorder %s87, %s90
    %p99 = scmp.eq.s32.totalorder %s14, 1
    %p100 = por %p98, %p99
    %p101 = scmp.ne.s32.totalorder %s90, %s91
    %p102 = scmp.eq.s32.totalorder %s14, 0
    %p103 = por %p101, %p102
    %p104 = scmp.ne.s32.totalorder %s90, %s91
    %p105 = scmp.eq.s32.totalorder %s15, 1
    %p106 = por %p104, %p105
    %p108 = scmp.ne.s32.totalorder %s91, %s107
    %p109 = scmp.eq.s32.totalorder %s15, 0
    %p110 = por %p108, %p109
    %p111 = scmp.le.s32.totalorder 1, %s9
    %p112 = scmp.lt.s32.totalorder %s9, 3
    %p113 = pnand %p111, %p112
    %p114 = pneg %p113
    // Predicated region
    $region9: #{forward.6} parent=5 // pred_check
      _
    $region10: #{forward.6} parent=5 // pred_check_branch
      %116 = sbr.rel (%p113) target = $region12
    $region11: #{forward.6} parent=5 // pred_region
      %s117 = ssub.s32 %s9, 1
      // Predicated region
      $region13: #{forward.6} parent=11 // pred_check
        %p118 = pneg %p56
      $region14: #{forward.6} parent=11 // pred_check_branch
        %120 = sbr.rel (%p118) target = $region16
      $region15: #{forward.6} parent=11 // pred_region
        _
      $region16: #{forward.6} parent=11 // pred_fallthru
        _
      // Predicated region
      $region17: #{forward.6} parent=11 // pred_check
        %p121 = pneg %p77
      $region18: #{forward.6} parent=11 // pred_check_branch
        %123 = sbr.rel (%p121) target = $region20
      $region19: #{forward.6} parent=11 // pred_region
        _
      $region20: #{forward.6} parent=11 // pred_fallthru
        _
    $region12: #{forward.6} parent=5 // pred_fallthru
      _
    %p124 = scmp.lt.s32.totalorder %s9, 2
    // Predicated region
    $region21: #{forward.6} parent=5 // pred_check
      %p125 = pneg %p124
    $region22: #{forward.6} parent=5 // pred_check_branch
      %127 = sbr.rel (%p125) target = $region24
    $region23: #{forward.6} parent=5 // pred_region
      // Predicated region
      $region25: #{forward.6} parent=23 // pred_check
        %p128 = pneg %p29
      $region26: #{forward.6} parent=23 // pred_check_branch
        %130 = sbr.rel (%p128) target = $region28
      $region27: #{forward.6} parent=23 // pred_region
        %p131 = scmp.lt.s32.totalorder %s9, 1
        %s132 = scalar_select %p131, %s9, 1
        %s133 = smul.addr %s132, 37
        %s134 = smul.addr %s133, 4
        %s135 = scalar_lea.vmem %s0, %s134
      $region28: #{forward.6} parent=23 // pred_fallthru
        _
    $region24: #{forward.6} parent=5 // pred_fallthru
      _
    %p136 = scmp.le.s32.totalorder 1, %s9
    %p137 = scmp.lt.s32.totalorder %s9, 3
    %p138 = pnand %p136, %p137
    %p139 = pneg %p138
    // Predicated region
    $region29: #{forward.6} parent=5 // pred_check
      _
    $region30: #{forward.6} parent=5 // pred_check_branch
      %141 = sbr.rel (%p138) target = $region32
    $region31: #{forward.6} parent=5 // pred_region
      %s142 = ssub.s32 %s9, 1
      %p143 = scmp.lt.s32.totalorder %s14, 1
      %s144 = scalar_select %p143, %s14, 1
      %s145 = smul.addr %s144, 37
      %s146 = smul.addr %s145, 4
      %s147 = scalar_lea.vmem %s0, %s146
      %p148 = pneg %p35
      %p149 = pneg %p32
      %p150 = pneg %p56
      %p151 = pneg %p53
      %p152 = pneg %p77
      %p153 = pneg %p74
      %p154 = pneg %p103
      %p155 = pneg %p100
      %p156 = scmp.lt.s32.totalorder %s14, 1
      %s157 = scalar_select %p156, %s14, 1
      %s158 = smul.addr %s157, 34
      %s159 = smul.addr %s158, 4
      %s160 = scalar_lea.vmem %s3, %s159
      %p161 = scmp.lt.s32.totalorder %s14, 1
      %s162 = scalar_select %p161, %s14, 1
      %s163 = smul.addr %s162, 37
      %s164 = smul.addr %s163, 4
      %s165 = scalar_lea.vmem %s0, %s164
      %p166 = scmp.lt.s32.totalorder %s14, 1
      %s167 = scalar_select %p166, %s14, 1
      %s168 = smul.addr %s167, 34
      %s169 = smul.addr %s168, 4
      %s170 = scalar_lea.vmem %s3, %s169
      %v172 = vld [vmem:[%s165] sm:$0xf]
      %v173 = vld [vmem:[%s165 + $0x4] sm:$0xf]
      %v174 = vld [vmem:[%s165 + $0x8] sm:$0xf]
      %v175 = vld [vmem:[%s165 + $0xc] sm:$0xf]
      %v176 = vld [vmem:[%s165 + $0x10] sm:$0xf]
      %v177 = vld [vmem:[%s165 + $0x14] sm:$0xf]
      %v178 = vld [vmem:[%s165 + $0x18] sm:$0xf]
      %v179 = vld [vmem:[%s165 + $0x1c] sm:$0xf]
      %v180 = vld [vmem:[%s165 + $0x20] sm:$0xf]
      %v181 = vld [vmem:[%s165 + $0x24] sm:$0xf]
      %v182 = vld [vmem:[%s165 + $0x28] sm:$0xf]
      %v183 = vld [vmem:[%s165 + $0x2c] sm:$0xf]
      %v184 = vld [vmem:[%s165 + $0x30] sm:$0xf]
      %v185 = vld [vmem:[%s165 + $0x34] sm:$0xf]
      %v186 = vld [vmem:[%s165 + $0x38] sm:$0xf]
      %v187 = vld [vmem:[%s165 + $0x3c] sm:$0xf]
      %v188 = vld [vmem:[%s165 + $0x40] sm:$0xf]
      %v189 = vld [vmem:[%s165 + $0x44] sm:$0xf]
      %v190 = vld [vmem:[%s165 + $0x48] sm:$0xf]
      %v191 = vld [vmem:[%s165 + $0x4c] sm:$0xf]
      %v192 = vld [vmem:[%s165 + $0x50] sm:$0xf]
      %v193 = vld [vmem:[%s165 + $0x54] sm:$0xf]
      %v194 = vld [vmem:[%s165 + $0x58] sm:$0xf]
      %v195 = vld [vmem:[%s165 + $0x5c] sm:$0xf]
      %v196 = vld [vmem:[%s165 + $0x60] sm:$0xf]
      %v197 = vld [vmem:[%s165 + $0x64] sm:$0xf]
      %v198 = vld [vmem:[%s165 + $0x68] sm:$0xf]
      %v199 = vld [vmem:[%s165 + $0x6c] sm:$0xf]
      %v200 = vld [vmem:[%s165 + $0x70] sm:$0xf]
      %v201 = vld [vmem:[%s165 + $0x74] sm:$0xf]
      %v202 = vld [vmem:[%s165 + $0x78] sm:$0xf]
      %v203 = vld [vmem:[%s165 + $0x7c] sm:$0xf]
      %v204 = vld [vmem:[%s165 + $0x80] sm:$0xf]
      %v205 = vld [vmem:[%s165 + $0x84] sm:$0xf]
      %v206 = vld [vmem:[%s1] sm:$0xf]
      %v207 = vld [vmem:[%s1 + $0x4] sm:$0xf]
      %v208 = vld [vmem:[%s1 + $0x8] sm:$0xf]
      %v209 = vld [vmem:[%s1 + $0xc] sm:$0xf]
      %v210 = vld [vmem:[%s1 + $0x10] sm:$0xf]
      %v211 = vld [vmem:[%s1 + $0x14] sm:$0xf]
      %v212 = vld [vmem:[%s1 + $0x18] sm:$0xf]
      %v213 = vld [vmem:[%s1 + $0x1c] sm:$0xf]
      %v214 = vld [vmem:[%s1 + $0x20] sm:$0xf]
      %v215 = vld [vmem:[%s1 + $0x24] sm:$0xf]
      %v216 = vld [vmem:[%s1 + $0x28] sm:$0xf]
      %v217 = vld [vmem:[%s1 + $0x2c] sm:$0xf]
      %v218 = vld [vmem:[%s1 + $0x30] sm:$0xf]
      %v219 = vld [vmem:[%s1 + $0x34] sm:$0xf]
      %v220 = vld [vmem:[%s1 + $0x38] sm:$0xf]
      %v221 = vld [vmem:[%s1 + $0x3c] sm:$0xf]
      %v222 = vld [vmem:[%s165 + $0x88] sm:$0x1]
      %s223 = scalar_lea.vmem %s1, 64
      %v224 = vld [vmem:[%s223] sm:$0xf]
      %v225 = vld [vmem:[%s223 + $0x4] sm:$0xf]
      %v226 = vld [vmem:[%s223 + $0x8] sm:$0xf]
      %v227 = vld [vmem:[%s223 + $0xc] sm:$0xf]
      %v228 = vld [vmem:[%s223 + $0x10] sm:$0xf]
      %v229 = vld [vmem:[%s223 + $0x14] sm:$0xf]
      %v230 = vld [vmem:[%s223 + $0x18] sm:$0xf]
      %v231 = vld [vmem:[%s223 + $0x1c] sm:$0xf]
      %v232 = vld [vmem:[%s223 + $0x20] sm:$0xf]
      %v233 = vld [vmem:[%s223 + $0x24] sm:$0xf]
      %v234 = vld [vmem:[%s223 + $0x28] sm:$0xf]
      %v235 = vld [vmem:[%s223 + $0x2c] sm:$0xf]
      %v236 = vld [vmem:[%s223 + $0x30] sm:$0xf]
      %v237 = vld [vmem:[%s223 + $0x34] sm:$0xf]
      %v238 = vld [vmem:[%s223 + $0x38] sm:$0xf]
      %v239 = vld [vmem:[%s223 + $0x3c] sm:$0xf]
      %v275 = vunpack.c.l.b16 %v172
      %v276 = vunpack.c.l.b16 %v173
      %v277 = vunpack.c.l.b16 %v174
      %v278 = vunpack.c.l.b16 %v175
      %v279 = vunpack.c.l.b16 %v176
      %v280 = vunpack.c.l.b16 %v177
      %v281 = vunpack.c.l.b16 %v178
      %v282 = vunpack.c.l.b16 %v179
      %v283 = vunpack.c.l.b16 %v180
      %v284 = vunpack.c.l.b16 %v181
      %v285 = vunpack.c.l.b16 %v182
      %v286 = vunpack.c.l.b16 %v183
      %v287 = vunpack.c.l.b16 %v184
      %v288 = vunpack.c.l.b16 %v185
      %v289 = vunpack.c.l.b16 %v186
      %v290 = vunpack.c.l.b16 %v187
      %v291 = vunpack.c.l.b16 %v188
      %v292 = vunpack.c.l.b16 %v189
      %v293 = vunpack.c.l.b16 %v190
      %v294 = vunpack.c.l.b16 %v191
      %v295 = vunpack.c.l.b16 %v192
      %v296 = vunpack.c.l.b16 %v193
      %v297 = vunpack.c.l.b16 %v194
      %v298 = vunpack.c.l.b16 %v195
      %v299 = vunpack.c.l.b16 %v196
      %v300 = vunpack.c.l.b16 %v197
      %v301 = vunpack.c.l.b16 %v198
      %v302 = vunpack.c.l.b16 %v199
      %v303 = vunpack.c.l.b16 %v200
      %v304 = vunpack.c.l.b16 %v201
      %v305 = vunpack.c.l.b16 %v202
      %v306 = vunpack.c.l.b16 %v203
      %v307 = vunpack.c.l.b16 %v204
      %v308 = vunpack.c.l.b16 %v205
      %v309 = vunpack.c.l.b16 %v222
      %v310 = vpack.c.b16 %v276, %v275
      %v311 = vpack.c.b16 %v278, %v277
      %v312 = vpack.c.b16 %v280, %v279
      %v313 = vpack.c.b16 %v282, %v281
      %v314 = vpack.c.b16 %v284, %v283
      %v315 = vpack.c.b16 %v286, %v285
      %v316 = vpack.c.b16 %v288, %v287
      %v317 = vpack.c.b16 %v290, %v289
      %v318 = vpack.c.b16 %v292, %v291
      %v319 = vpack.c.b16 %v294, %v293
      %v320 = vpack.c.b16 %v296, %v295
      %v321 = vpack.c.b16 %v298, %v297
      %v322 = vpack.c.b16 %v300, %v299
      %v323 = vpack.c.b16 %v302, %v301
      %v324 = vpack.c.b16 %v304, %v303
      %v325 = vpack.c.b16 %v306, %v305
      %v326 = vpack.c.b16 %v308, %v307
      %v327 = vpack.c.b16 %v309, %v309
      %vm328 = vsmask.f32 7424
      %v330 = vshrl.u32 %v310, 16
      %v332 = vshll.u32 %v310, 16
      %v334 = vrot.slane %v332, 1
      %v335 = vor.u32 %v330, %v334
      %v337 = vshll.u32 %v311, 16
      %v339 = vrot.slane %v337, 1
      %v340 = vsel %vm328, %v335, %v339
      %v341 = vshrl.u32 %v311, 16
      %v343 = vor.u32 %v341, %v339
      %v345 = vshll.u32 %v312, 16
      %v347 = vrot.slane %v345, 1
      %v348 = vsel %vm328, %v343, %v347
      %v349 = vshrl.u32 %v312, 16
      %v351 = vor.u32 %v349, %v347
      %v353 = vshll.u32 %v313, 16
      %v355 = vrot.slane %v353, 1
      %v356 = vsel %vm328, %v351, %v355
      %v357 = vshrl.u32 %v313, 16
      %v359 = vor.u32 %v357, %v355
      %v361 = vshll.u32 %v314, 16
      %v363 = vrot.slane %v361, 1
      %v364 = vsel %vm328, %v359, %v363
      %v365 = vshrl.u32 %v314, 16
      %v367 = vor.u32 %v365, %v363
      %v369 = vshll.u32 %v315, 16
      %v371 = vrot.slane %v369, 1
      %v372 = vsel %vm328, %v367, %v371
      %v373 = vshrl.u32 %v315, 16
      %v375 = vor.u32 %v373, %v371
      %v377 = vshll.u32 %v316, 16
      %v379 = vrot.slane %v377, 1
      %v380 = vsel %vm328, %v375, %v379
      %v381 = vshrl.u32 %v316, 16
      %v383 = vor.u32 %v381, %v379
      %v385 = vshll.u32 %v317, 16
      %v387 = vrot.slane %v385, 1
      %v388 = vsel %vm328, %v383, %v387
      %v389 = vshrl.u32 %v317, 16
      %v391 = vor.u32 %v389, %v387
      %v393 = vshll.u32 %v318, 16
      %v395 = vrot.slane %v393, 1
      %v396 = vsel %vm328, %v391, %v395
      %v397 = vshrl.u32 %v318, 16
      %v399 = vor.u32 %v397, %v395
      %v401 = vshll.u32 %v319, 16
      %v403 = vrot.slane %v401, 1
      %v404 = vsel %vm328, %v399, %v403
      %v405 = vshrl.u32 %v319, 16
      %v407 = vor.u32 %v405, %v403
      %v409 = vshll.u32 %v320, 16
      %v411 = vrot.slane %v409, 1
      %v412 = vsel %vm328, %v407, %v411
      %v413 = vshrl.u32 %v320, 16
      %v415 = vor.u32 %v413, %v411
      %v417 = vshll.u32 %v321, 16
      %v419 = vrot.slane %v417, 1
      %v420 = vsel %vm328, %v415, %v419
      %v421 = vshrl.u32 %v321, 16
      %v423 = vor.u32 %v421, %v419
      %v425 = vshll.u32 %v322, 16
      %v427 = vrot.slane %v425, 1
      %v428 = vsel %vm328, %v423, %v427
      %v429 = vshrl.u32 %v322, 16
      %v431 = vor.u32 %v429, %v427
      %v433 = vshll.u32 %v323, 16
      %v435 = vrot.slane %v433, 1
      %v436 = vsel %vm328, %v431, %v435
      %v437 = vshrl.u32 %v323, 16
      %v439 = vor.u32 %v437, %v435
      %v441 = vshll.u32 %v324, 16
      %v443 = vrot.slane %v441, 1
      %v444 = vsel %vm328, %v439, %v443
      %v445 = vshrl.u32 %v324, 16
      %v447 = vor.u32 %v445, %v443
      %v449 = vshll.u32 %v325, 16
      %v451 = vrot.slane %v449, 1
      %v452 = vsel %vm328, %v447, %v451
      %v453 = vshrl.u32 %v325, 16
      %v455 = vor.u32 %v453, %v451
      %v457 = vshll.u32 %v326, 16
      %v459 = vrot.slane %v457, 1
      %v460 = vsel %vm328, %v455, %v459
      %v461 = vshrl.u32 %v326, 16
      %v463 = vor.u32 %v461, %v459
      %v465 = vshll.u32 %v327, 16
      %v467 = vrot.slane %v465, 1
      %v468 = vsel %vm328, %v463, %v467
      %v502 = vunpack.c.l.b16 %v224
      %v503 = vunpack.c.l.b16 %v225
      %v504 = vunpack.c.l.b16 %v226
      %v505 = vunpack.c.l.b16 %v227
      %v506 = vunpack.c.l.b16 %v228
      %v507 = vunpack.c.l.b16 %v229
      %v508 = vunpack.c.l.b16 %v230
      %v509 = vunpack.c.l.b16 %v231
      %v510 = vunpack.c.l.b16 %v232
      %v511 = vunpack.c.l.b16 %v233
      %v512 = vunpack.c.l.b16 %v234
      %v513 = vunpack.c.l.b16 %v235
      %v514 = vunpack.c.l.b16 %v236
      %v515 = vunpack.c.l.b16 %v237
      %v516 = vunpack.c.l.b16 %v238
      %v517 = vunpack.c.l.b16 %v239
      %v518 = vpack.c.b16 %v503, %v502
      %v519 = vpack.c.b16 %v505, %v504
      %v520 = vpack.c.b16 %v507, %v506
      %v521 = vpack.c.b16 %v509, %v508
      %v522 = vpack.c.b16 %v511, %v510
      %v523 = vpack.c.b16 %v513, %v512
      %v524 = vpack.c.b16 %v515, %v514
      %v525 = vpack.c.b16 %v517, %v516
      %534 = vmatprep.subr.bf16.mxu0 0
      %535 = vmatpush1.bf16.msra.mxu0 %v525
      %536 = vmatprep.subr.bf16.mxu0 0
      %537 = vmatpush1.bf16.msra.mxu0 %v524
      %538 = vmatprep.subr.bf16.mxu0 0
      %539 = vmatpush1.bf16.msra.mxu0 %v523
      %540 = vmatprep.subr.bf16.mxu0 0
      %541 = vmatpush1.bf16.msra.mxu0 %v522
      %542 = vmatprep.subr.bf16.mxu0 0
      %543 = vmatpush1.bf16.msra.mxu0 %v521
      %544 = vmatprep.subr.bf16.mxu0 0
      %545 = vmatpush1.bf16.msra.mxu0 %v520
      %546 = vmatprep.subr.bf16.mxu0 0
      %547 = vmatpush1.bf16.msra.mxu0 %v519
      %548 = vmatprep.subr.bf16.mxu0 0
      %549 = vmatpush1.bf16.msra.mxu0 %v518
      %550 = vmatprep.subr.bf16.mxu0 0
      %551 = vmatpush2.bf16.msra.mxu0 0
      %552 = vmatprep.subr.bf16.mxu0 0
      %553 = vmatpush2.bf16.msra.mxu0 0
      %554 = vmatprep.subr.bf16.mxu0 0
      %555 = vmatpush2.bf16.msra.mxu0 0
      %556 = vmatprep.subr.bf16.mxu0 0
      %557 = vmatpush2.bf16.msra.mxu0 0
      %558 = vmatprep.subr.bf16.mxu0 0
      %559 = vmatpush2.bf16.msra.mxu0 0
      %560 = vmatprep.subr.bf16.mxu0 0
      %561 = vmatpush2.bf16.msra.mxu0 0
      %562 = vmatprep.subr.bf16.mxu0 0
      %563 = vmatpush2.bf16.msra.mxu0 0
      %564 = vmatprep.subr.bf16.mxu0 0
      %565 = vmatpush2.bf16.msra.mxu0 0
      %566 = vmatprep.mubr.bf16.mxu0 0
      %567 = vmatmul.mubr.bf16.gmra.mxu0 %v340
      %v568 = vpop.f32.mrf.mxu0
      %v569 = vadd.f32 0.0, %v568
      %v570 = vpop.f32.mrf.mxu0
      %v571 = vpop.f32.mrf.mxu0
      %v572 = vadd.f32 0.0, %v571
      %v573 = vpop.f32.mrf.mxu0
      %574 = vmatprep.mubr.bf16.mxu0 0
      %575 = vmatmul.mubr.bf16.gmra.mxu0 %v348
      %v576 = vpop.f32.mrf.mxu0
      %v577 = vadd.f32 0.0, %v576
      %v578 = vpop.f32.mrf.mxu0
      %v579 = vpop.f32.mrf.mxu0
      %v580 = vadd.f32 0.0, %v579
      %v581 = vpop.f32.mrf.mxu0
      %582 = vmatprep.mubr.bf16.mxu0 0
      %583 = vmatmul.mubr.bf16.gmra.mxu0 %v356
      %v584 = vpop.f32.mrf.mxu0
      %v585 = vadd.f32 0.0, %v584
      %v586 = vpop.f32.mrf.mxu0
      %v587 = vpop.f32.mrf.mxu0
      %v588 = vadd.f32 0.0, %v587
      %v589 = vpop.f32.mrf.mxu0
      %590 = vmatprep.mubr.bf16.mxu0 0
      %591 = vmatmul.mubr.bf16.gmra.mxu0 %v364
      %v592 = vpop.f32.mrf.mxu0
      %v593 = vadd.f32 0.0, %v592
      %v594 = vpop.f32.mrf.mxu0
      %v595 = vpop.f32.mrf.mxu0
      %v596 = vadd.f32 0.0, %v595
      %v597 = vpop.f32.mrf.mxu0
      %598 = vmatprep.mubr.bf16.mxu0 0
      %599 = vmatmul.mubr.bf16.gmra.mxu0 %v372
      %v600 = vpop.f32.mrf.mxu0
      %v601 = vadd.f32 0.0, %v600
      %v602 = vpop.f32.mrf.mxu0
      %v603 = vpop.f32.mrf.mxu0
      %v604 = vadd.f32 0.0, %v603
      %v605 = vpop.f32.mrf.mxu0
      %606 = vmatprep.mubr.bf16.mxu0 0
      %607 = vmatmul.mubr.bf16.gmra.mxu0 %v380
      %v608 = vpop.f32.mrf.mxu0
      %v609 = vadd.f32 0.0, %v608
      %v610 = vpop.f32.mrf.mxu0
      %v611 = vpop.f32.mrf.mxu0
      %v612 = vadd.f32 0.0, %v611
      %v613 = vpop.f32.mrf.mxu0
      %614 = vmatprep.mubr.bf16.mxu0 0
      %615 = vmatmul.mubr.bf16.gmra.mxu0 %v388
      %v616 = vpop.f32.mrf.mxu0
      %v617 = vadd.f32 0.0, %v616
      %v618 = vpop.f32.mrf.mxu0
      %v619 = vpop.f32.mrf.mxu0
      %v620 = vadd.f32 0.0, %v619
      %v621 = vpop.f32.mrf.mxu0
      %622 = vmatprep.mubr.bf16.mxu0 0
      %623 = vmatmul.mubr.bf16.gmra.mxu0 %v396
      %v624 = vpop.f32.mrf.mxu0
      %v625 = vadd.f32 0.0, %v624
      %v626 = vpop.f32.mrf.mxu0
      %v627 = vpop.f32.mrf.mxu0
      %v628 = vadd.f32 0.0, %v627
      %v629 = vpop.f32.mrf.mxu0
      %630 = vmatprep.mubr.bf16.mxu0 0
      %631 = vmatmul.mubr.bf16.gmra.mxu0 %v404
      %v632 = vpop.f32.mrf.mxu0
      %v633 = vadd.f32 0.0, %v632
      %v634 = vpop.f32.mrf.mxu0
      %v635 = vpop.f32.mrf.mxu0
      %v636 = vadd.f32 0.0, %v635
      %v637 = vpop.f32.mrf.mxu0
      %638 = vmatprep.mubr.bf16.mxu0 0
      %639 = vmatmul.mubr.bf16.gmra.mxu0 %v412
      %v640 = vpop.f32.mrf.mxu0
      %v641 = vadd.f32 0.0, %v640
      %v642 = vpop.f32.mrf.mxu0
      %v643 = vpop.f32.mrf.mxu0
      %v644 = vadd.f32 0.0, %v643
      %v645 = vpop.f32.mrf.mxu0
      %646 = vmatprep.mubr.bf16.mxu0 0
      %647 = vmatmul.mubr.bf16.gmra.mxu0 %v420
      %v648 = vpop.f32.mrf.mxu0
      %v649 = vadd.f32 0.0, %v648
      %v650 = vpop.f32.mrf.mxu0
      %v651 = vpop.f32.mrf.mxu0
      %v652 = vadd.f32 0.0, %v651
      %v653 = vpop.f32.mrf.mxu0
      %654 = vmatprep.mubr.bf16.mxu0 0
      %655 = vmatmul.mubr.bf16.gmra.mxu0 %v428
      %v656 = vpop.f32.mrf.mxu0
      %v657 = vadd.f32 0.0, %v656
      %v658 = vpop.f32.mrf.mxu0
      %v659 = vpop.f32.mrf.mxu0
      %v660 = vadd.f32 0.0, %v659
      %v661 = vpop.f32.mrf.mxu0
      %662 = vmatprep.mubr.bf16.mxu0 0
      %663 = vmatmul.mubr.bf16.gmra.mxu0 %v436
      %v664 = vpop.f32.mrf.mxu0
      %v665 = vadd.f32 0.0, %v664
      %v666 = vpop.f32.mrf.mxu0
      %v667 = vpop.f32.mrf.mxu0
      %v668 = vadd.f32 0.0, %v667
      %v669 = vpop.f32.mrf.mxu0
      %670 = vmatprep.mubr.bf16.mxu0 0
      %671 = vmatmul.mubr.bf16.gmra.mxu0 %v444
      %v672 = vpop.f32.mrf.mxu0
      %v673 = vadd.f32 0.0, %v672
      %v674 = vpop.f32.mrf.mxu0
      %v675 = vpop.f32.mrf.mxu0
      %v676 = vadd.f32 0.0, %v675
      %v677 = vpop.f32.mrf.mxu0
      %678 = vmatprep.mubr.bf16.mxu0 0
      %679 = vmatmul.mubr.bf16.gmra.mxu0 %v452
      %v680 = vpop.f32.mrf.mxu0
      %v681 = vadd.f32 0.0, %v680
      %v682 = vpop.f32.mrf.mxu0
      %v683 = vpop.f32.mrf.mxu0
      %v684 = vadd.f32 0.0, %v683
      %v685 = vpop.f32.mrf.mxu0
      %686 = vmatprep.mubr.bf16.mxu0 0
      %687 = vmatmul.mubr.bf16.gmra.mxu0 %v460
      %v688 = vpop.f32.mrf.mxu0
      %v689 = vadd.f32 0.0, %v688
      %v690 = vpop.f32.mrf.mxu0
      %v691 = vpop.f32.mrf.mxu0
      %v692 = vadd.f32 0.0, %v691
      %v693 = vpop.f32.mrf.mxu0
      %694 = vmatprep.mubr.bf16.mxu0 0
      %695 = vmatmul.mubr.bf16.gmra.mxu0 %v468
      %v696 = vpop.f32.mrf.mxu0
      %v697 = vadd.f32 0.0, %v696
      %v698 = vpop.f32.mrf.mxu0
      %v699 = vpop.f32.mrf.mxu0
      %v700 = vadd.f32 0.0, %v699
      %v701 = vpop.f32.mrf.mxu0
      %702 = vdwg.mxu0
      %v736 = vunpack.c.l.b16 %v206
      %v737 = vunpack.c.l.b16 %v207
      %v738 = vunpack.c.l.b16 %v208
      %v739 = vunpack.c.l.b16 %v209
      %v740 = vunpack.c.l.b16 %v210
      %v741 = vunpack.c.l.b16 %v211
      %v742 = vunpack.c.l.b16 %v212
      %v743 = vunpack.c.l.b16 %v213
      %v744 = vunpack.c.l.b16 %v214
      %v745 = vunpack.c.l.b16 %v215
      %v746 = vunpack.c.l.b16 %v216
      %v747 = vunpack.c.l.b16 %v217
      %v748 = vunpack.c.l.b16 %v218
      %v749 = vunpack.c.l.b16 %v219
      %v750 = vunpack.c.l.b16 %v220
      %v751 = vunpack.c.l.b16 %v221
      %v752 = vpack.c.b16 %v737, %v736
      %v753 = vpack.c.b16 %v739, %v738
      %v754 = vpack.c.b16 %v741, %v740
      %v755 = vpack.c.b16 %v743, %v742
      %v756 = vpack.c.b16 %v745, %v744
      %v757 = vpack.c.b16 %v747, %v746
      %v758 = vpack.c.b16 %v749, %v748
      %v759 = vpack.c.b16 %v751, %v750
      %768 = vmatprep.subr.bf16.mxu0 0
      %769 = vmatpush1.bf16.msra.mxu0 %v759
      %770 = vmatprep.subr.bf16.mxu0 0
      %771 = vmatpush1.bf16.msra.mxu0 %v758
      %772 = vmatprep.subr.bf16.mxu0 0
      %773 = vmatpush1.bf16.msra.mxu0 %v757
      %774 = vmatprep.subr.bf16.mxu0 0
      %775 = vmatpush1.bf16.msra.mxu0 %v756
      %776 = vmatprep.subr.bf16.mxu0 0
      %777 = vmatpush1.bf16.msra.mxu0 %v755
      %778 = vmatprep.subr.bf16.mxu0 0
      %779 = vmatpush1.bf16.msra.mxu0 %v754
      %780 = vmatprep.subr.bf16.mxu0 0
      %781 = vmatpush1.bf16.msra.mxu0 %v753
      %782 = vmatprep.subr.bf16.mxu0 0
      %783 = vmatpush1.bf16.msra.mxu0 %v752
      %784 = vmatprep.subr.bf16.mxu0 0
      %785 = vmatpush2.bf16.msra.mxu0 0
      %786 = vmatprep.subr.bf16.mxu0 0
      %787 = vmatpush2.bf16.msra.mxu0 0
      %788 = vmatprep.subr.bf16.mxu0 0
      %789 = vmatpush2.bf16.msra.mxu0 0
      %790 = vmatprep.subr.bf16.mxu0 0
      %791 = vmatpush2.bf16.msra.mxu0 0
      %792 = vmatprep.subr.bf16.mxu0 0
      %793 = vmatpush2.bf16.msra.mxu0 0
      %794 = vmatprep.subr.bf16.mxu0 0
      %795 = vmatpush2.bf16.msra.mxu0 0
      %796 = vmatprep.subr.bf16.mxu0 0
      %797 = vmatpush2.bf16.msra.mxu0 0
      %798 = vmatprep.subr.bf16.mxu0 0
      %799 = vmatpush2.bf16.msra.mxu0 0
      %800 = vmatprep.mubr.bf16.mxu0 0
      %801 = vmatmul.mubr.bf16.gmra.mxu0 %v310
      %v802 = vpop.f32.mrf.mxu0
      %v803 = vadd.f32 %v569, %v802
      %v804 = vpop.f32.mrf.mxu0
      %v805 = vpop.f32.mrf.mxu0
      %v806 = vadd.f32 %v572, %v805
      %v807 = vpop.f32.mrf.mxu0
      %808 = vmatprep.mubr.bf16.mxu0 0
      %809 = vmatmul.mubr.bf16.gmra.mxu0 %v311
      %v810 = vpop.f32.mrf.mxu0
      %v811 = vadd.f32 %v577, %v810
      %v812 = vpop.f32.mrf.mxu0
      %v813 = vpop.f32.mrf.mxu0
      %v814 = vadd.f32 %v580, %v813
      %v815 = vpop.f32.mrf.mxu0
      %816 = vmatprep.mubr.bf16.mxu0 0
      %817 = vmatmul.mubr.bf16.gmra.mxu0 %v312
      %v818 = vpop.f32.mrf.mxu0
      %v819 = vadd.f32 %v585, %v818
      %v820 = vpop.f32.mrf.mxu0
      %v821 = vpop.f32.mrf.mxu0
      %v822 = vadd.f32 %v588, %v821
      %v823 = vpop.f32.mrf.mxu0
      %824 = vmatprep.mubr.bf16.mxu0 0
      %825 = vmatmul.mubr.bf16.gmra.mxu0 %v313
      %v826 = vpop.f32.mrf.mxu0
      %v827 = vadd.f32 %v593, %v826
      %v828 = vpop.f32.mrf.mxu0
      %v829 = vpop.f32.mrf.mxu0
      %v830 = vadd.f32 %v596, %v829
      %v831 = vpop.f32.mrf.mxu0
      %832 = vmatprep.mubr.bf16.mxu0 0
      %833 = vmatmul.mubr.bf16.gmra.mxu0 %v314
      %v834 = vpop.f32.mrf.mxu0
      %v835 = vadd.f32 %v601, %v834
      %v836 = vpop.f32.mrf.mxu0
      %v837 = vpop.f32.mrf.mxu0
      %v838 = vadd.f32 %v604, %v837
      %v839 = vpop.f32.mrf.mxu0
      %840 = vmatprep.mubr.bf16.mxu0 0
      %841 = vmatmul.mubr.bf16.gmra.mxu0 %v315
      %v842 = vpop.f32.mrf.mxu0
      %v843 = vadd.f32 %v609, %v842
      %v844 = vpop.f32.mrf.mxu0
      %v845 = vpop.f32.mrf.mxu0
      %v846 = vadd.f32 %v612, %v845
      %v847 = vpop.f32.mrf.mxu0
      %848 = vmatprep.mubr.bf16.mxu0 0
      %849 = vmatmul.mubr.bf16.gmra.mxu0 %v316
      %v850 = vpop.f32.mrf.mxu0
      %v851 = vadd.f32 %v617, %v850
      %v852 = vpop.f32.mrf.mxu0
      %v853 = vpop.f32.mrf.mxu0
      %v854 = vadd.f32 %v620, %v853
      %v855 = vpop.f32.mrf.mxu0
      %856 = vmatprep.mubr.bf16.mxu0 0
      %857 = vmatmul.mubr.bf16.gmra.mxu0 %v317
      %v858 = vpop.f32.mrf.mxu0
      %v859 = vadd.f32 %v625, %v858
      %v860 = vpop.f32.mrf.mxu0
      %v861 = vpop.f32.mrf.mxu0
      %v862 = vadd.f32 %v628, %v861
      %v863 = vpop.f32.mrf.mxu0
      %864 = vmatprep.mubr.bf16.mxu0 0
      %865 = vmatmul.mubr.bf16.gmra.mxu0 %v318
      %v866 = vpop.f32.mrf.mxu0
      %v867 = vadd.f32 %v633, %v866
      %v868 = vpop.f32.mrf.mxu0
      %v869 = vpop.f32.mrf.mxu0
      %v870 = vadd.f32 %v636, %v869
      %v871 = vpop.f32.mrf.mxu0
      %872 = vmatprep.mubr.bf16.mxu0 0
      %873 = vmatmul.mubr.bf16.gmra.mxu0 %v319
      %v874 = vpop.f32.mrf.mxu0
      %v875 = vadd.f32 %v641, %v874
      %v876 = vpop.f32.mrf.mxu0
      %v877 = vpop.f32.mrf.mxu0
      %v878 = vadd.f32 %v644, %v877
      %v879 = vpop.f32.mrf.mxu0
      %880 = vmatprep.mubr.bf16.mxu0 0
      %881 = vmatmul.mubr.bf16.gmra.mxu0 %v320
      %v882 = vpop.f32.mrf.mxu0
      %v883 = vadd.f32 %v649, %v882
      %v884 = vpop.f32.mrf.mxu0
      %v885 = vpop.f32.mrf.mxu0
      %v886 = vadd.f32 %v652, %v885
      %v887 = vpop.f32.mrf.mxu0
      %888 = vmatprep.mubr.bf16.mxu0 0
      %889 = vmatmul.mubr.bf16.gmra.mxu0 %v321
      %v890 = vpop.f32.mrf.mxu0
      %v891 = vadd.f32 %v657, %v890
      %v892 = vpop.f32.mrf.mxu0
      %v893 = vpop.f32.mrf.mxu0
      %v894 = vadd.f32 %v660, %v893
      %v895 = vpop.f32.mrf.mxu0
      %896 = vmatprep.mubr.bf16.mxu0 0
      %897 = vmatmul.mubr.bf16.gmra.mxu0 %v322
      %v898 = vpop.f32.mrf.mxu0
      %v899 = vadd.f32 %v665, %v898
      %v900 = vpop.f32.mrf.mxu0
      %v901 = vpop.f32.mrf.mxu0
      %v902 = vadd.f32 %v668, %v901
      %v903 = vpop.f32.mrf.mxu0
      %904 = vmatprep.mubr.bf16.mxu0 0
      %905 = vmatmul.mubr.bf16.gmra.mxu0 %v323
      %v906 = vpop.f32.mrf.mxu0
      %v907 = vadd.f32 %v673, %v906
      %v908 = vpop.f32.mrf.mxu0
      %v909 = vpop.f32.mrf.mxu0
      %v910 = vadd.f32 %v676, %v909
      %v911 = vpop.f32.mrf.mxu0
      %912 = vmatprep.mubr.bf16.mxu0 0
      %913 = vmatmul.mubr.bf16.gmra.mxu0 %v324
      %v914 = vpop.f32.mrf.mxu0
      %v915 = vadd.f32 %v681, %v914
      %v916 = vpop.f32.mrf.mxu0
      %v917 = vpop.f32.mrf.mxu0
      %v918 = vadd.f32 %v684, %v917
      %v919 = vpop.f32.mrf.mxu0
      %920 = vmatprep.mubr.bf16.mxu0 0
      %921 = vmatmul.mubr.bf16.gmra.mxu0 %v325
      %v922 = vpop.f32.mrf.mxu0
      %v923 = vadd.f32 %v689, %v922
      %v924 = vpop.f32.mrf.mxu0
      %v925 = vpop.f32.mrf.mxu0
      %v926 = vadd.f32 %v692, %v925
      %v927 = vpop.f32.mrf.mxu0
      %928 = vmatprep.mubr.bf16.mxu0 0
      %929 = vmatmul.mubr.bf16.gmra.mxu0 %v326
      %v930 = vpop.f32.mrf.mxu0
      %v931 = vadd.f32 %v697, %v930
      %v932 = vpop.f32.mrf.mxu0
      %v933 = vpop.f32.mrf.mxu0
      %v934 = vadd.f32 %v700, %v933
      %v935 = vpop.f32.mrf.mxu0
      %936 = vdwg.mxu0
      %v937 = vld [vmem:[%s165 + $0x8] sm:$0xf]
      %v938 = vld [vmem:[%s165 + $0xc] sm:$0xf]
      %v939 = vld [vmem:[%s165 + $0x10] sm:$0xf]
      %v940 = vld [vmem:[%s165 + $0x14] sm:$0xf]
      %v941 = vld [vmem:[%s165 + $0x18] sm:$0xf]
      %v942 = vld [vmem:[%s165 + $0x1c] sm:$0xf]
      %v943 = vld [vmem:[%s165 + $0x20] sm:$0xf]
      %v944 = vld [vmem:[%s165 + $0x24] sm:$0xf]
      %v945 = vld [vmem:[%s165 + $0x28] sm:$0xf]
      %v946 = vld [vmem:[%s165 + $0x2c] sm:$0xf]
      %v947 = vld [vmem:[%s165 + $0x30] sm:$0xf]
      %v948 = vld [vmem:[%s165 + $0x34] sm:$0xf]
      %v949 = vld [vmem:[%s165 + $0x38] sm:$0xf]
      %v950 = vld [vmem:[%s165 + $0x3c] sm:$0xf]
      %v951 = vld [vmem:[%s165 + $0x40] sm:$0xf]
      %v952 = vld [vmem:[%s165 + $0x44] sm:$0xf]
      %v953 = vld [vmem:[%s165 + $0x48] sm:$0xf]
      %v954 = vld [vmem:[%s165 + $0x4c] sm:$0xf]
      %v955 = vld [vmem:[%s165 + $0x50] sm:$0xf]
      %v956 = vld [vmem:[%s165 + $0x54] sm:$0xf]
      %v957 = vld [vmem:[%s165 + $0x58] sm:$0xf]
      %v958 = vld [vmem:[%s165 + $0x5c] sm:$0xf]
      %v959 = vld [vmem:[%s165 + $0x60] sm:$0xf]
      %v960 = vld [vmem:[%s165 + $0x64] sm:$0xf]
      %v961 = vld [vmem:[%s165 + $0x68] sm:$0xf]
      %v962 = vld [vmem:[%s165 + $0x6c] sm:$0xf]
      %v963 = vld [vmem:[%s165 + $0x70] sm:$0xf]
      %v964 = vld [vmem:[%s165 + $0x74] sm:$0xf]
      %v965 = vld [vmem:[%s165 + $0x78] sm:$0xf]
      %v966 = vld [vmem:[%s165 + $0x7c] sm:$0xf]
      %v967 = vld [vmem:[%s165 + $0x80] sm:$0xf]
      %v968 = vld [vmem:[%s165 + $0x84] sm:$0xf]
      %v969 = vld [vmem:[%s165 + $0x88] sm:$0xf]
      %v970 = vld [vmem:[%s165 + $0x8c] sm:$0xf]
      %v971 = vld [vmem:[%s165 + $0x90] sm:$0x1]
      %s972 = scalar_lea.vmem %s1, 128
      %v973 = vld [vmem:[%s972] sm:$0xf]
      %v974 = vld [vmem:[%s972 + $0x4] sm:$0xf]
      %v975 = vld [vmem:[%s972 + $0x8] sm:$0xf]
      %v976 = vld [vmem:[%s972 + $0xc] sm:$0xf]
      %v977 = vld [vmem:[%s972 + $0x10] sm:$0xf]
      %v978 = vld [vmem:[%s972 + $0x14] sm:$0xf]
      %v979 = vld [vmem:[%s972 + $0x18] sm:$0xf]
      %v980 = vld [vmem:[%s972 + $0x1c] sm:$0xf]
      %v981 = vld [vmem:[%s972 + $0x20] sm:$0xf]
      %v982 = vld [vmem:[%s972 + $0x24] sm:$0xf]
      %v983 = vld [vmem:[%s972 + $0x28] sm:$0xf]
      %v984 = vld [vmem:[%s972 + $0x2c] sm:$0xf]
      %v985 = vld [vmem:[%s972 + $0x30] sm:$0xf]
      %v986 = vld [vmem:[%s972 + $0x34] sm:$0xf]
      %v987 = vld [vmem:[%s972 + $0x38] sm:$0xf]
      %v988 = vld [vmem:[%s972 + $0x3c] sm:$0xf]
      %v1024 = vunpack.c.l.b16 %v937
      %v1025 = vunpack.c.l.b16 %v938
      %v1026 = vunpack.c.l.b16 %v939
      %v1027 = vunpack.c.l.b16 %v940
      %v1028 = vunpack.c.l.b16 %v941
      %v1029 = vunpack.c.l.b16 %v942
      %v1030 = vunpack.c.l.b16 %v943
      %v1031 = vunpack.c.l.b16 %v944
      %v1032 = vunpack.c.l.b16 %v945
      %v1033 = vunpack.c.l.b16 %v946
      %v1034 = vunpack.c.l.b16 %v947
      %v1035 = vunpack.c.l.b16 %v948
      %v1036 = vunpack.c.l.b16 %v949
      %v1037 = vunpack.c.l.b16 %v950
      %v1038 = vunpack.c.l.b16 %v951
      %v1039 = vunpack.c.l.b16 %v952
      %v1040 = vunpack.c.l.b16 %v953
      %v1041 = vunpack.c.l.b16 %v954
      %v1042 = vunpack.c.l.b16 %v955
      %v1043 = vunpack.c.l.b16 %v956
      %v1044 = vunpack.c.l.b16 %v957
      %v1045 = vunpack.c.l.b16 %v958
      %v1046 = vunpack.c.l.b16 %v959
      %v1047 = vunpack.c.l.b16 %v960
      %v1048 = vunpack.c.l.b16 %v961
      %v1049 = vunpack.c.l.b16 %v962
      %v1050 = vunpack.c.l.b16 %v963
      %v1051 = vunpack.c.l.b16 %v964
      %v1052 = vunpack.c.l.b16 %v965
      %v1053 = vunpack.c.l.b16 %v966
      %v1054 = vunpack.c.l.b16 %v967
      %v1055 = vunpack.c.l.b16 %v968
      %v1056 = vunpack.c.l.b16 %v969
      %v1057 = vunpack.c.l.b16 %v970
      %v1058 = vunpack.c.l.b16 %v971
      %v1059 = vpack.c.b16 %v1025, %v1024
      %v1060 = vpack.c.b16 %v1027, %v1026
      %v1061 = vpack.c.b16 %v1029, %v1028
      %v1062 = vpack.c.b16 %v1031, %v1030
      %v1063 = vpack.c.b16 %v1033, %v1032
      %v1064 = vpack.c.b16 %v1035, %v1034
      %v1065 = vpack.c.b16 %v1037, %v1036
      %v1066 = vpack.c.b16 %v1039, %v1038
      %v1067 = vpack.c.b16 %v1041, %v1040
      %v1068 = vpack.c.b16 %v1043, %v1042
      %v1069 = vpack.c.b16 %v1045, %v1044
      %v1070 = vpack.c.b16 %v1047, %v1046
      %v1071 = vpack.c.b16 %v1049, %v1048
      %v1072 = vpack.c.b16 %v1051, %v1050
      %v1073 = vpack.c.b16 %v1053, %v1052
      %v1074 = vpack.c.b16 %v1055, %v1054
      %v1075 = vpack.c.b16 %v1057, %v1056
      %v1076 = vpack.c.b16 %v1058, %v1058
      %v1078 = vshrl.u32 %v1059, 16
      %v1080 = vshll.u32 %v1059, 16
      %v1082 = vrot.slane %v1080, 1
      %v1083 = vor.u32 %v1078, %v1082
      %v1085 = vshll.u32 %v1060, 16
      %v1087 = vrot.slane %v1085, 1
      %v1088 = vsel %vm328, %v1083, %v1087
      %v1089 = vshrl.u32 %v1060, 16
      %v1091 = vor.u32 %v1089, %v1087
      %v1093 = vshll.u32 %v1061, 16
      %v1095 = vrot.slane %v1093, 1
      %v1096 = vsel %vm328, %v1091, %v1095
      %v1097 = vshrl.u32 %v1061, 16
      %v1099 = vor.u32 %v1097, %v1095
      %v1101 = vshll.u32 %v1062, 16
      %v1103 = vrot.slane %v1101, 1
      %v1104 = vsel %vm328, %v1099, %v1103
      %v1105 = vshrl.u32 %v1062, 16
      %v1107 = vor.u32 %v1105, %v1103
      %v1109 = vshll.u32 %v1063, 16
      %v1111 = vrot.slane %v1109, 1
      %v1112 = vsel %vm328, %v1107, %v1111
      %v1113 = vshrl.u32 %v1063, 16
      %v1115 = vor.u32 %v1113, %v1111
      %v1117 = vshll.u32 %v1064, 16
      %v1119 = vrot.slane %v1117, 1
      %v1120 = vsel %vm328, %v1115, %v1119
      %v1121 = vshrl.u32 %v1064, 16
      %v1123 = vor.u32 %v1121, %v1119
      %v1125 = vshll.u32 %v1065, 16
      %v1127 = vrot.slane %v1125, 1
      %v1128 = vsel %vm328, %v1123, %v1127
      %v1129 = vshrl.u32 %v1065, 16
      %v1131 = vor.u32 %v1129, %v1127
      %v1133 = vshll.u32 %v1066, 16
      %v1135 = vrot.slane %v1133, 1
      %v1136 = vsel %vm328, %v1131, %v1135
      %v1137 = vshrl.u32 %v1066, 16
      %v1139 = vor.u32 %v1137, %v1135
      %v1141 = vshll.u32 %v1067, 16
      %v1143 = vrot.slane %v1141, 1
      %v1144 = vsel %vm328, %v1139, %v1143
      %v1145 = vshrl.u32 %v1067, 16
      %v1147 = vor.u32 %v1145, %v1143
      %v1149 = vshll.u32 %v1068, 16
      %v1151 = vrot.slane %v1149, 1
      %v1152 = vsel %vm328, %v1147, %v1151
      %v1153 = vshrl.u32 %v1068, 16
      %v1155 = vor.u32 %v1153, %v1151
      %v1157 = vshll.u32 %v1069, 16
      %v1159 = vrot.slane %v1157, 1
      %v1160 = vsel %vm328, %v1155, %v1159
      %v1161 = vshrl.u32 %v1069, 16
      %v1163 = vor.u32 %v1161, %v1159
      %v1165 = vshll.u32 %v1070, 16
      %v1167 = vrot.slane %v1165, 1
      %v1168 = vsel %vm328, %v1163, %v1167
      %v1169 = vshrl.u32 %v1070, 16
      %v1171 = vor.u32 %v1169, %v1167
      %v1173 = vshll.u32 %v1071, 16
      %v1175 = vrot.slane %v1173, 1
      %v1176 = vsel %vm328, %v1171, %v1175
      %v1177 = vshrl.u32 %v1071, 16
      %v1179 = vor.u32 %v1177, %v1175
      %v1181 = vshll.u32 %v1072, 16
      %v1183 = vrot.slane %v1181, 1
      %v1184 = vsel %vm328, %v1179, %v1183
      %v1185 = vshrl.u32 %v1072, 16
      %v1187 = vor.u32 %v1185, %v1183
      %v1189 = vshll.u32 %v1073, 16
      %v1191 = vrot.slane %v1189, 1
      %v1192 = vsel %vm328, %v1187, %v1191
      %v1193 = vshrl.u32 %v1073, 16
      %v1195 = vor.u32 %v1193, %v1191
      %v1197 = vshll.u32 %v1074, 16
      %v1199 = vrot.slane %v1197, 1
      %v1200 = vsel %vm328, %v1195, %v1199
      %v1201 = vshrl.u32 %v1074, 16
      %v1203 = vor.u32 %v1201, %v1199
      %v1205 = vshll.u32 %v1075, 16
      %v1207 = vrot.slane %v1205, 1
      %v1208 = vsel %vm328, %v1203, %v1207
      %v1209 = vshrl.u32 %v1075, 16
      %v1211 = vor.u32 %v1209, %v1207
      %v1213 = vshll.u32 %v1076, 16
      %v1215 = vrot.slane %v1213, 1
      %v1216 = vsel %vm328, %v1211, %v1215
      %v1250 = vunpack.c.l.b16 %v973
      %v1251 = vunpack.c.l.b16 %v974
      %v1252 = vunpack.c.l.b16 %v975
      %v1253 = vunpack.c.l.b16 %v976
      %v1254 = vunpack.c.l.b16 %v977
      %v1255 = vunpack.c.l.b16 %v978
      %v1256 = vunpack.c.l.b16 %v979
      %v1257 = vunpack.c.l.b16 %v980
      %v1258 = vunpack.c.l.b16 %v981
      %v1259 = vunpack.c.l.b16 %v982
      %v1260 = vunpack.c.l.b16 %v983
      %v1261 = vunpack.c.l.b16 %v984
      %v1262 = vunpack.c.l.b16 %v985
      %v1263 = vunpack.c.l.b16 %v986
      %v1264 = vunpack.c.l.b16 %v987
      %v1265 = vunpack.c.l.b16 %v988
      %v1266 = vpack.c.b16 %v1251, %v1250
      %v1267 = vpack.c.b16 %v1253, %v1252
      %v1268 = vpack.c.b16 %v1255, %v1254
      %v1269 = vpack.c.b16 %v1257, %v1256
      %v1270 = vpack.c.b16 %v1259, %v1258
      %v1271 = vpack.c.b16 %v1261, %v1260
      %v1272 = vpack.c.b16 %v1263, %v1262
      %v1273 = vpack.c.b16 %v1265, %v1264
      %1282 = vmatprep.subr.bf16.mxu0 0
      %1283 = vmatpush1.bf16.msra.mxu0 %v1273
      %1284 = vmatprep.subr.bf16.mxu0 0
      %1285 = vmatpush1.bf16.msra.mxu0 %v1272
      %1286 = vmatprep.subr.bf16.mxu0 0
      %1287 = vmatpush1.bf16.msra.mxu0 %v1271
      %1288 = vmatprep.subr.bf16.mxu0 0
      %1289 = vmatpush1.bf16.msra.mxu0 %v1270
      %1290 = vmatprep.subr.bf16.mxu0 0
      %1291 = vmatpush1.bf16.msra.mxu0 %v1269
      %1292 = vmatprep.subr.bf16.mxu0 0
      %1293 = vmatpush1.bf16.msra.mxu0 %v1268
      %1294 = vmatprep.subr.bf16.mxu0 0
      %1295 = vmatpush1.bf16.msra.mxu0 %v1267
      %1296 = vmatprep.subr.bf16.mxu0 0
      %1297 = vmatpush1.bf16.msra.mxu0 %v1266
      %1298 = vmatprep.subr.bf16.mxu0 0
      %1299 = vmatpush2.bf16.msra.mxu0 0
      %1300 = vmatprep.subr.bf16.mxu0 0
      %1301 = vmatpush2.bf16.msra.mxu0 0
      %1302 = vmatprep.subr.bf16.mxu0 0
      %1303 = vmatpush2.bf16.msra.mxu0 0
      %1304 = vmatprep.subr.bf16.mxu0 0
      %1305 = vmatpush2.bf16.msra.mxu0 0
      %1306 = vmatprep.subr.bf16.mxu0 0
      %1307 = vmatpush2.bf16.msra.mxu0 0
      %1308 = vmatprep.subr.bf16.mxu0 0
      %1309 = vmatpush2.bf16.msra.mxu0 0
      %1310 = vmatprep.subr.bf16.mxu0 0
      %1311 = vmatpush2.bf16.msra.mxu0 0
      %1312 = vmatprep.subr.bf16.mxu0 0
      %1313 = vmatpush2.bf16.msra.mxu0 0
      %1314 = vmatprep.mubr.bf16.mxu0 0
      %1315 = vmatmul.mubr.bf16.gmra.mxu0 %v1088
      %v1316 = vpop.f32.mrf.mxu0
      %v1317 = vadd.f32 0.0, %v1316
      %v1318 = vpop.f32.mrf.mxu0
      %v1319 = vpop.f32.mrf.mxu0
      %v1320 = vadd.f32 0.0, %v1319
      %v1321 = vpop.f32.mrf.mxu0
      %1322 = vmatprep.mubr.bf16.mxu0 0
      %1323 = vmatmul.mubr.bf16.gmra.mxu0 %v1096
      %v1324 = vpop.f32.mrf.mxu0
      %v1325 = vadd.f32 0.0, %v1324
      %v1326 = vpop.f32.mrf.mxu0
      %v1327 = vpop.f32.mrf.mxu0
      %v1328 = vadd.f32 0.0, %v1327
      %v1329 = vpop.f32.mrf.mxu0
      %1330 = vmatprep.mubr.bf16.mxu0 0
      %1331 = vmatmul.mubr.bf16.gmra.mxu0 %v1104
      %v1332 = vpop.f32.mrf.mxu0
      %v1333 = vadd.f32 0.0, %v1332
      %v1334 = vpop.f32.mrf.mxu0
      %v1335 = vpop.f32.mrf.mxu0
      %v1336 = vadd.f32 0.0, %v1335
      %v1337 = vpop.f32.mrf.mxu0
      %1338 = vmatprep.mubr.bf16.mxu0 0
      %1339 = vmatmul.mubr.bf16.gmra.mxu0 %v1112
      %v1340 = vpop.f32.mrf.mxu0
      %v1341 = vadd.f32 0.0, %v1340
      %v1342 = vpop.f32.mrf.mxu0
      %v1343 = vpop.f32.mrf.mxu0
      %v1344 = vadd.f32 0.0, %v1343
      %v1345 = vpop.f32.mrf.mxu0
      %1346 = vmatprep.mubr.bf16.mxu0 0
      %1347 = vmatmul.mubr.bf16.gmra.mxu0 %v1120
      %v1348 = vpop.f32.mrf.mxu0
      %v1349 = vadd.f32 0.0, %v1348
      %v1350 = vpop.f32.mrf.mxu0
      %v1351 = vpop.f32.mrf.mxu0
      %v1352 = vadd.f32 0.0, %v1351
      %v1353 = vpop.f32.mrf.mxu0
      %1354 = vmatprep.mubr.bf16.mxu0 0
      %1355 = vmatmul.mubr.bf16.gmra.mxu0 %v1128
      %v1356 = vpop.f32.mrf.mxu0
      %v1357 = vadd.f32 0.0, %v1356
      %v1358 = vpop.f32.mrf.mxu0
      %v1359 = vpop.f32.mrf.mxu0
      %v1360 = vadd.f32 0.0, %v1359
      %v1361 = vpop.f32.mrf.mxu0
      %1362 = vmatprep.mubr.bf16.mxu0 0
      %1363 = vmatmul.mubr.bf16.gmra.mxu0 %v1136
      %v1364 = vpop.f32.mrf.mxu0
      %v1365 = vadd.f32 0.0, %v1364
      %v1366 = vpop.f32.mrf.mxu0
      %v1367 = vpop.f32.mrf.mxu0
      %v1368 = vadd.f32 0.0, %v1367
      %v1369 = vpop.f32.mrf.mxu0
      %1370 = vmatprep.mubr.bf16.mxu0 0
      %1371 = vmatmul.mubr.bf16.gmra.mxu0 %v1144
      %v1372 = vpop.f32.mrf.mxu0
      %v1373 = vadd.f32 0.0, %v1372
      %v1374 = vpop.f32.mrf.mxu0
      %v1375 = vpop.f32.mrf.mxu0
      %v1376 = vadd.f32 0.0, %v1375
      %v1377 = vpop.f32.mrf.mxu0
      %1378 = vmatprep.mubr.bf16.mxu0 0
      %1379 = vmatmul.mubr.bf16.gmra.mxu0 %v1152
      %v1380 = vpop.f32.mrf.mxu0
      %v1381 = vadd.f32 0.0, %v1380
      %v1382 = vpop.f32.mrf.mxu0
      %v1383 = vpop.f32.mrf.mxu0
      %v1384 = vadd.f32 0.0, %v1383
      %v1385 = vpop.f32.mrf.mxu0
      %1386 = vmatprep.mubr.bf16.mxu0 0
      %1387 = vmatmul.mubr.bf16.gmra.mxu0 %v1160
      %v1388 = vpop.f32.mrf.mxu0
      %v1389 = vadd.f32 0.0, %v1388
      %v1390 = vpop.f32.mrf.mxu0
      %v1391 = vpop.f32.mrf.mxu0
      %v1392 = vadd.f32 0.0, %v1391
      %v1393 = vpop.f32.mrf.mxu0
      %1394 = vmatprep.mubr.bf16.mxu0 0
      %1395 = vmatmul.mubr.bf16.gmra.mxu0 %v1168
      %v1396 = vpop.f32.mrf.mxu0
      %v1397 = vadd.f32 0.0, %v1396
      %v1398 = vpop.f32.mrf.mxu0
      %v1399 = vpop.f32.mrf.mxu0
      %v1400 = vadd.f32 0.0, %v1399
      %v1401 = vpop.f32.mrf.mxu0
      %1402 = vmatprep.mubr.bf16.mxu0 0
      %1403 = vmatmul.mubr.bf16.gmra.mxu0 %v1176
      %v1404 = vpop.f32.mrf.mxu0
      %v1405 = vadd.f32 0.0, %v1404
      %v1406 = vpop.f32.mrf.mxu0
      %v1407 = vpop.f32.mrf.mxu0
      %v1408 = vadd.f32 0.0, %v1407
      %v1409 = vpop.f32.mrf.mxu0
      %1410 = vmatprep.mubr.bf16.mxu0 0
      %1411 = vmatmul.mubr.bf16.gmra.mxu0 %v1184
      %v1412 = vpop.f32.mrf.mxu0
      %v1413 = vadd.f32 0.0, %v1412
      %v1414 = vpop.f32.mrf.mxu0
      %v1415 = vpop.f32.mrf.mxu0
      %v1416 = vadd.f32 0.0, %v1415
      %v1417 = vpop.f32.mrf.mxu0
      %1418 = vmatprep.mubr.bf16.mxu0 0
      %1419 = vmatmul.mubr.bf16.gmra.mxu0 %v1192
      %v1420 = vpop.f32.mrf.mxu0
      %v1421 = vadd.f32 0.0, %v1420
      %v1422 = vpop.f32.mrf.mxu0
      %v1423 = vpop.f32.mrf.mxu0
      %v1424 = vadd.f32 0.0, %v1423
      %v1425 = vpop.f32.mrf.mxu0
      %1426 = vmatprep.mubr.bf16.mxu0 0
      %1427 = vmatmul.mubr.bf16.gmra.mxu0 %v1200
      %v1428 = vpop.f32.mrf.mxu0
      %v1429 = vadd.f32 0.0, %v1428
      %v1430 = vpop.f32.mrf.mxu0
      %v1431 = vpop.f32.mrf.mxu0
      %v1432 = vadd.f32 0.0, %v1431
      %v1433 = vpop.f32.mrf.mxu0
      %1434 = vmatprep.mubr.bf16.mxu0 0
      %1435 = vmatmul.mubr.bf16.gmra.mxu0 %v1208
      %v1436 = vpop.f32.mrf.mxu0
      %v1437 = vadd.f32 0.0, %v1436
      %v1438 = vpop.f32.mrf.mxu0
      %v1439 = vpop.f32.mrf.mxu0
      %v1440 = vadd.f32 0.0, %v1439
      %v1441 = vpop.f32.mrf.mxu0
      %1442 = vmatprep.mubr.bf16.mxu0 0
      %1443 = vmatmul.mubr.bf16.gmra.mxu0 %v1216
      %v1444 = vpop.f32.mrf.mxu0
      %v1445 = vadd.f32 0.0, %v1444
      %v1446 = vpop.f32.mrf.mxu0
      %v1447 = vpop.f32.mrf.mxu0
      %v1448 = vadd.f32 0.0, %v1447
      %v1449 = vpop.f32.mrf.mxu0
      %1450 = vdwg.mxu0
      %v1451 = vadd.f32 %v803, %v1317
      %v1452 = vadd.f32 %v806, %v1320
      %v1453 = vadd.f32 %v811, %v1325
      %v1454 = vadd.f32 %v814, %v1328
      %v1455 = vadd.f32 %v819, %v1333
      %v1456 = vadd.f32 %v822, %v1336
      %v1457 = vadd.f32 %v827, %v1341
      %v1458 = vadd.f32 %v830, %v1344
      %v1459 = vadd.f32 %v835, %v1349
      %v1460 = vadd.f32 %v838, %v1352
      %v1461 = vadd.f32 %v843, %v1357
      %v1462 = vadd.f32 %v846, %v1360
      %v1463 = vadd.f32 %v851, %v1365
      %v1464 = vadd.f32 %v854, %v1368
      %v1465 = vadd.f32 %v859, %v1373
      %v1466 = vadd.f32 %v862, %v1376
      %v1467 = vadd.f32 %v867, %v1381
      %v1468 = vadd.f32 %v870, %v1384
      %v1469 = vadd.f32 %v875, %v1389
      %v1470 = vadd.f32 %v878, %v1392
      %v1471 = vadd.f32 %v883, %v1397
      %v1472 = vadd.f32 %v886, %v1400
      %v1473 = vadd.f32 %v891, %v1405
      %v1474 = vadd.f32 %v894, %v1408
      %v1475 = vadd.f32 %v899, %v1413
      %v1476 = vadd.f32 %v902, %v1416
      %v1477 = vadd.f32 %v907, %v1421
      %v1478 = vadd.f32 %v910, %v1424
      %v1479 = vadd.f32 %v915, %v1429
      %v1480 = vadd.f32 %v918, %v1432
      %v1481 = vadd.f32 %v923, %v1437
      %v1482 = vadd.f32 %v926, %v1440
      %v1483 = vadd.f32 %v931, %v1445
      %v1484 = vadd.f32 %v934, %v1448
      %v1485 = vld [vmem:[%s165 + $0x8] sm:$0xe]
      %s1486 = scalar_lea.vmem %s1, 192
      %v1487 = vld [vmem:[%s1486] sm:$0xf]
      %v1488 = vld [vmem:[%s1486 + $0x4] sm:$0xf]
      %v1489 = vld [vmem:[%s1486 + $0x8] sm:$0xf]
      %v1490 = vld [vmem:[%s1486 + $0xc] sm:$0xf]
      %v1491 = vld [vmem:[%s1486 + $0x10] sm:$0xf]
      %v1492 = vld [vmem:[%s1486 + $0x14] sm:$0xf]
      %v1493 = vld [vmem:[%s1486 + $0x18] sm:$0xf]
      %v1494 = vld [vmem:[%s1486 + $0x1c] sm:$0xf]
      %v1495 = vld [vmem:[%s1486 + $0x20] sm:$0xf]
      %v1496 = vld [vmem:[%s1486 + $0x24] sm:$0xf]
      %v1497 = vld [vmem:[%s1486 + $0x28] sm:$0xf]
      %v1498 = vld [vmem:[%s1486 + $0x2c] sm:$0xf]
      %v1499 = vld [vmem:[%s1486 + $0x30] sm:$0xf]
      %v1500 = vld [vmem:[%s1486 + $0x34] sm:$0xf]
      %v1501 = vld [vmem:[%s1486 + $0x38] sm:$0xf]
      %v1502 = vld [vmem:[%s1486 + $0x3c] sm:$0xf]
      %v1504 = vunpack.c.l.b16 %v1485
      %v1505 = vpack.c.b16 %v1025, %v1504
      %vm1506 = vcmask 1046528
      %v1507 = vrot.slane %v1505, 1
      %v1508 = vrot.slane %v1060, 1
      %v1509 = vsel %vm1506, %v1507, %v1508
      %v1510 = vrot.slane %v1061, 1
      %v1511 = vsel %vm1506, %v1508, %v1510
      %v1512 = vrot.slane %v1062, 1
      %v1513 = vsel %vm1506, %v1510, %v1512
      %v1514 = vrot.slane %v1063, 1
      %v1515 = vsel %vm1506, %v1512, %v1514
      %v1516 = vrot.slane %v1064, 1
      %v1517 = vsel %vm1506, %v1514, %v1516
      %v1518 = vrot.slane %v1065, 1
      %v1519 = vsel %vm1506, %v1516, %v1518
      %v1520 = vrot.slane %v1066, 1
      %v1521 = vsel %vm1506, %v1518, %v1520
      %v1522 = vrot.slane %v1067, 1
      %v1523 = vsel %vm1506, %v1520, %v1522
      %v1524 = vrot.slane %v1068, 1
      %v1525 = vsel %vm1506, %v1522, %v1524
      %v1526 = vrot.slane %v1069, 1
      %v1527 = vsel %vm1506, %v1524, %v1526
      %v1528 = vrot.slane %v1070, 1
      %v1529 = vsel %vm1506, %v1526, %v1528
      %v1530 = vrot.slane %v1071, 1
      %v1531 = vsel %vm1506, %v1528, %v1530
      %v1532 = vrot.slane %v1072, 1
      %v1533 = vsel %vm1506, %v1530, %v1532
      %v1534 = vrot.slane %v1073, 1
      %v1535 = vsel %vm1506, %v1532, %v1534
      %v1536 = vrot.slane %v1074, 1
      %v1537 = vsel %vm1506, %v1534, %v1536
      %v1538 = vrot.slane %v1075, 1
      %v1539 = vsel %vm1506, %v1536, %v1538
      %v1540 = vrot.slane %v1076, 1
      %v1541 = vsel %vm1506, %v1538, %v1540
      %v1575 = vunpack.c.l.b16 %v1487
      %v1576 = vunpack.c.l.b16 %v1488
      %v1577 = vunpack.c.l.b16 %v1489
      %v1578 = vunpack.c.l.b16 %v1490
      %v1579 = vunpack.c.l.b16 %v1491
      %v1580 = vunpack.c.l.b16 %v1492
      %v1581 = vunpack.c.l.b16 %v1493
      %v1582 = vunpack.c.l.b16 %v1494
      %v1583 = vunpack.c.l.b16 %v1495
      %v1584 = vunpack.c.l.b16 %v1496
      %v1585 = vunpack.c.l.b16 %v1497
      %v1586 = vunpack.c.l.b16 %v1498
      %v1587 = vunpack.c.l.b16 %v1499
      %v1588 = vunpack.c.l.b16 %v1500
      %v1589 = vunpack.c.l.b16 %v1501
      %v1590 = vunpack.c.l.b16 %v1502
      %v1591 = vpack.c.b16 %v1576, %v1575
      %v1592 = vpack.c.b16 %v1578, %v1577
      %v1593 = vpack.c.b16 %v1580, %v1579
      %v1594 = vpack.c.b16 %v1582, %v1581
      %v1595 = vpack.c.b16 %v1584, %v1583
      %v1596 = vpack.c.b16 %v1586, %v1585
      %v1597 = vpack.c.b16 %v1588, %v1587
      %v1598 = vpack.c.b16 %v1590, %v1589
      %1607 = vmatprep.subr.bf16.mxu0 0
      %1608 = vmatpush1.bf16.msra.mxu0 %v1598
      %1609 = vmatprep.subr.bf16.mxu0 0
      %1610 = vmatpush1.bf16.msra.mxu0 %v1597
      %1611 = vmatprep.subr.bf16.mxu0 0
      %1612 = vmatpush1.bf16.msra.mxu0 %v1596
      %1613 = vmatprep.subr.bf16.mxu0 0
      %1614 = vmatpush1.bf16.msra.mxu0 %v1595
      %1615 = vmatprep.subr.bf16.mxu0 0
      %1616 = vmatpush1.bf16.msra.mxu0 %v1594
      %1617 = vmatprep.subr.bf16.mxu0 0
      %1618 = vmatpush1.bf16.msra.mxu0 %v1593
      %1619 = vmatprep.subr.bf16.mxu0 0
      %1620 = vmatpush1.bf16.msra.mxu0 %v1592
      %1621 = vmatprep.subr.bf16.mxu0 0
      %1622 = vmatpush1.bf16.msra.mxu0 %v1591
      %1623 = vmatprep.subr.bf16.mxu0 0
      %1624 = vmatpush2.bf16.msra.mxu0 0
      %1625 = vmatprep.subr.bf16.mxu0 0
      %1626 = vmatpush2.bf16.msra.mxu0 0
      %1627 = vmatprep.subr.bf16.mxu0 0
      %1628 = vmatpush2.bf16.msra.mxu0 0
      %1629 = vmatprep.subr.bf16.mxu0 0
      %1630 = vmatpush2.bf16.msra.mxu0 0
      %1631 = vmatprep.subr.bf16.mxu0 0
      %1632 = vmatpush2.bf16.msra.mxu0 0
      %1633 = vmatprep.subr.bf16.mxu0 0
      %1634 = vmatpush2.bf16.msra.mxu0 0
      %1635 = vmatprep.subr.bf16.mxu0 0
      %1636 = vmatpush2.bf16.msra.mxu0 0
      %1637 = vmatprep.subr.bf16.mxu0 0
      %1638 = vmatpush2.bf16.msra.mxu0 0
      %1639 = vmatprep.mubr.bf16.mxu0 0
      %1640 = vmatmul.mubr.bf16.gmra.mxu0 %v1509
      %v1641 = vpop.f32.mrf.mxu0
      %v1642 = vadd.f32 0.0, %v1641
      %v1643 = vpop.f32.mrf.mxu0
      %v1644 = vpop.f32.mrf.mxu0
      %v1645 = vadd.f32 0.0, %v1644
      %v1646 = vpop.f32.mrf.mxu0
      %1647 = vmatprep.mubr.bf16.mxu0 0
      %1648 = vmatmul.mubr.bf16.gmra.mxu0 %v1511
      %v1649 = vpop.f32.mrf.mxu0
      %v1650 = vadd.f32 0.0, %v1649
      %v1651 = vpop.f32.mrf.mxu0
      %v1652 = vpop.f32.mrf.mxu0
      %v1653 = vadd.f32 0.0, %v1652
      %v1654 = vpop.f32.mrf.mxu0
      %1655 = vmatprep.mubr.bf16.mxu0 0
      %1656 = vmatmul.mubr.bf16.gmra.mxu0 %v1513
      %v1657 = vpop.f32.mrf.mxu0
      %v1658 = vadd.f32 0.0, %v1657
      %v1659 = vpop.f32.mrf.mxu0
      %v1660 = vpop.f32.mrf.mxu0
      %v1661 = vadd.f32 0.0, %v1660
      %v1662 = vpop.f32.mrf.mxu0
      %1663 = vmatprep.mubr.bf16.mxu0 0
      %1664 = vmatmul.mubr.bf16.gmra.mxu0 %v1515
      %v1665 = vpop.f32.mrf.mxu0
      %v1666 = vadd.f32 0.0, %v1665
      %v1667 = vpop.f32.mrf.mxu0
      %v1668 = vpop.f32.mrf.mxu0
      %v1669 = vadd.f32 0.0, %v1668
      %v1670 = vpop.f32.mrf.mxu0
      %1671 = vmatprep.mubr.bf16.mxu0 0
      %1672 = vmatmul.mubr.bf16.gmra.mxu0 %v1517
      %v1673 = vpop.f32.mrf.mxu0
      %v1674 = vadd.f32 0.0, %v1673
      %v1675 = vpop.f32.mrf.mxu0
      %v1676 = vpop.f32.mrf.mxu0
      %v1677 = vadd.f32 0.0, %v1676
      %v1678 = vpop.f32.mrf.mxu0
      %1679 = vmatprep.mubr.bf16.mxu0 0
      %1680 = vmatmul.mubr.bf16.gmra.mxu0 %v1519
      %v1681 = vpop.f32.mrf.mxu0
      %v1682 = vadd.f32 0.0, %v1681
      %v1683 = vpop.f32.mrf.mxu0
      %v1684 = vpop.f32.mrf.mxu0
      %v1685 = vadd.f32 0.0, %v1684
      %v1686 = vpop.f32.mrf.mxu0
      %1687 = vmatprep.mubr.bf16.mxu0 0
      %1688 = vmatmul.mubr.bf16.gmra.mxu0 %v1521
      %v1689 = vpop.f32.mrf.mxu0
      %v1690 = vadd.f32 0.0, %v1689
      %v1691 = vpop.f32.mrf.mxu0
      %v1692 = vpop.f32.mrf.mxu0
      %v1693 = vadd.f32 0.0, %v1692
      %v1694 = vpop.f32.mrf.mxu0
      %1695 = vmatprep.mubr.bf16.mxu0 0
      %1696 = vmatmul.mubr.bf16.gmra.mxu0 %v1523
      %v1697 = vpop.f32.mrf.mxu0
      %v1698 = vadd.f32 0.0, %v1697
      %v1699 = vpop.f32.mrf.mxu0
      %v1700 = vpop.f32.mrf.mxu0
      %v1701 = vadd.f32 0.0, %v1700
      %v1702 = vpop.f32.mrf.mxu0
      %1703 = vmatprep.mubr.bf16.mxu0 0
      %1704 = vmatmul.mubr.bf16.gmra.mxu0 %v1525
      %v1705 = vpop.f32.mrf.mxu0
      %v1706 = vadd.f32 0.0, %v1705
      %v1707 = vpop.f32.mrf.mxu0
      %v1708 = vpop.f32.mrf.mxu0
      %v1709 = vadd.f32 0.0, %v1708
      %v1710 = vpop.f32.mrf.mxu0
      %1711 = vmatprep.mubr.bf16.mxu0 0
      %1712 = vmatmul.mubr.bf16.gmra.mxu0 %v1527
      %v1713 = vpop.f32.mrf.mxu0
      %v1714 = vadd.f32 0.0, %v1713
      %v1715 = vpop.f32.mrf.mxu0
      %v1716 = vpop.f32.mrf.mxu0
      %v1717 = vadd.f32 0.0, %v1716
      %v1718 = vpop.f32.mrf.mxu0
      %1719 = vmatprep.mubr.bf16.mxu0 0
      %1720 = vmatmul.mubr.bf16.gmra.mxu0 %v1529
      %v1721 = vpop.f32.mrf.mxu0
      %v1722 = vadd.f32 0.0, %v1721
      %v1723 = vpop.f32.mrf.mxu0
      %v1724 = vpop.f32.mrf.mxu0
      %v1725 = vadd.f32 0.0, %v1724
      %v1726 = vpop.f32.mrf.mxu0
      %1727 = vmatprep.mubr.bf16.mxu0 0
      %1728 = vmatmul.mubr.bf16.gmra.mxu0 %v1531
      %v1729 = vpop.f32.mrf.mxu0
      %v1730 = vadd.f32 0.0, %v1729
      %v1731 = vpop.f32.mrf.mxu0
      %v1732 = vpop.f32.mrf.mxu0
      %v1733 = vadd.f32 0.0, %v1732
      %v1734 = vpop.f32.mrf.mxu0
      %1735 = vmatprep.mubr.bf16.mxu0 0
      %1736 = vmatmul.mubr.bf16.gmra.mxu0 %v1533
      %v1737 = vpop.f32.mrf.mxu0
      %v1738 = vadd.f32 0.0, %v1737
      %v1739 = vpop.f32.mrf.mxu0
      %v1740 = vpop.f32.mrf.mxu0
      %v1741 = vadd.f32 0.0, %v1740
      %v1742 = vpop.f32.mrf.mxu0
      %1743 = vmatprep.mubr.bf16.mxu0 0
      %1744 = vmatmul.mubr.bf16.gmra.mxu0 %v1535
      %v1745 = vpop.f32.mrf.mxu0
      %v1746 = vadd.f32 0.0, %v1745
      %v1747 = vpop.f32.mrf.mxu0
      %v1748 = vpop.f32.mrf.mxu0
      %v1749 = vadd.f32 0.0, %v1748
      %v1750 = vpop.f32.mrf.mxu0
      %1751 = vmatprep.mubr.bf16.mxu0 0
      %1752 = vmatmul.mubr.bf16.gmra.mxu0 %v1537
      %v1753 = vpop.f32.mrf.mxu0
      %v1754 = vadd.f32 0.0, %v1753
      %v1755 = vpop.f32.mrf.mxu0
      %v1756 = vpop.f32.mrf.mxu0
      %v1757 = vadd.f32 0.0, %v1756
      %v1758 = vpop.f32.mrf.mxu0
      %1759 = vmatprep.mubr.bf16.mxu0 0
      %1760 = vmatmul.mubr.bf16.gmra.mxu0 %v1539
      %v1761 = vpop.f32.mrf.mxu0
      %v1762 = vadd.f32 0.0, %v1761
      %v1763 = vpop.f32.mrf.mxu0
      %v1764 = vpop.f32.mrf.mxu0
      %v1765 = vadd.f32 0.0, %v1764
      %v1766 = vpop.f32.mrf.mxu0
      %1767 = vmatprep.mubr.bf16.mxu0 0
      %1768 = vmatmul.mubr.bf16.gmra.mxu0 %v1541
      %v1769 = vpop.f32.mrf.mxu0
      %v1770 = vadd.f32 0.0, %v1769
      %v1771 = vpop.f32.mrf.mxu0
      %v1772 = vpop.f32.mrf.mxu0
      %v1773 = vadd.f32 0.0, %v1772
      %v1774 = vpop.f32.mrf.mxu0
      %1775 = vdwg.mxu0
      %v1776 = vadd.f32 %v1451, %v1642
      %v1777 = vadd.f32 %v1452, %v1645
      %v1778 = vadd.f32 %v1453, %v1650
      %v1779 = vadd.f32 %v1454, %v1653
      %v1780 = vadd.f32 %v1455, %v1658
      %v1781 = vadd.f32 %v1456, %v1661
      %v1782 = vadd.f32 %v1457, %v1666
      %v1783 = vadd.f32 %v1458, %v1669
      %v1784 = vadd.f32 %v1459, %v1674
      %v1785 = vadd.f32 %v1460, %v1677
      %v1786 = vadd.f32 %v1461, %v1682
      %v1787 = vadd.f32 %v1462, %v1685
      %v1788 = vadd.f32 %v1463, %v1690
      %v1789 = vadd.f32 %v1464, %v1693
      %v1790 = vadd.f32 %v1465, %v1698
      %v1791 = vadd.f32 %v1466, %v1701
      %v1792 = vadd.f32 %v1467, %v1706
      %v1793 = vadd.f32 %v1468, %v1709
      %v1794 = vadd.f32 %v1469, %v1714
      %v1795 = vadd.f32 %v1470, %v1717
      %v1796 = vadd.f32 %v1471, %v1722
      %v1797 = vadd.f32 %v1472, %v1725
      %v1798 = vadd.f32 %v1473, %v1730
      %v1799 = vadd.f32 %v1474, %v1733
      %v1800 = vadd.f32 %v1475, %v1738
      %v1801 = vadd.f32 %v1476, %v1741
      %v1802 = vadd.f32 %v1477, %v1746
      %v1803 = vadd.f32 %v1478, %v1749
      %v1804 = vadd.f32 %v1479, %v1754
      %v1805 = vadd.f32 %v1480, %v1757
      %v1806 = vadd.f32 %v1481, %v1762
      %v1807 = vadd.f32 %v1482, %v1765
      %v1808 = vadd.f32 %v1483, %v1770
      %v1809 = vadd.f32 %v1484, %v1773
      %v1810 = vld [vmem:[%s2] sm:$0x1]
      %v1812 = vlaneseq
      %v1813 = vshrl.u32 %v1812, 7
      %v1814 = vsub.s32 0, %v1813
      %v1815 = vrot.slane %v1810, %v1814
      %v1817 = vadd.f32 %v1776, %v1815
      %v1818 = vadd.f32 %v1777, %v1815
      %v1819 = vadd.f32 %v1778, %v1815
      %v1820 = vadd.f32 %v1779, %v1815
      %v1821 = vadd.f32 %v1780, %v1815
      %v1822 = vadd.f32 %v1781, %v1815
      %v1823 = vadd.f32 %v1782, %v1815
      %v1824 = vadd.f32 %v1783, %v1815
      %v1825 = vadd.f32 %v1784, %v1815
      %v1826 = vadd.f32 %v1785, %v1815
      %v1827 = vadd.f32 %v1786, %v1815
      %v1828 = vadd.f32 %v1787, %v1815
      %v1829 = vadd.f32 %v1788, %v1815
      %v1830 = vadd.f32 %v1789, %v1815
      %v1831 = vadd.f32 %v1790, %v1815
      %v1832 = vadd.f32 %v1791, %v1815
      %v1833 = vadd.f32 %v1792, %v1815
      %v1834 = vadd.f32 %v1793, %v1815
      %v1835 = vadd.f32 %v1794, %v1815
      %v1836 = vadd.f32 %v1795, %v1815
      %v1837 = vadd.f32 %v1796, %v1815
      %v1838 = vadd.f32 %v1797, %v1815
      %v1839 = vadd.f32 %v1798, %v1815
      %v1840 = vadd.f32 %v1799, %v1815
      %v1841 = vadd.f32 %v1800, %v1815
      %v1842 = vadd.f32 %v1801, %v1815
      %v1843 = vadd.f32 %v1802, %v1815
      %v1844 = vadd.f32 %v1803, %v1815
      %v1845 = vadd.f32 %v1804, %v1815
      %v1846 = vadd.f32 %v1805, %v1815
      %v1847 = vadd.f32 %v1806, %v1815
      %v1848 = vadd.f32 %v1807, %v1815
      %v1849 = vadd.f32 %v1808, %v1815
      %v1850 = vadd.f32 %v1809, %v1815
      %v1851 = vmax.f32 %v1817, 0.0
      %v1852 = vmax.f32 %v1818, 0.0
      %v1853 = vmax.f32 %v1819, 0.0
      %v1854 = vmax.f32 %v1820, 0.0
      %v1855 = vmax.f32 %v1821, 0.0
      %v1856 = vmax.f32 %v1822, 0.0
      %v1857 = vmax.f32 %v1823, 0.0
      %v1858 = vmax.f32 %v1824, 0.0
      %v1859 = vmax.f32 %v1825, 0.0
      %v1860 = vmax.f32 %v1826, 0.0
      %v1861 = vmax.f32 %v1827, 0.0
      %v1862 = vmax.f32 %v1828, 0.0
      %v1863 = vmax.f32 %v1829, 0.0
      %v1864 = vmax.f32 %v1830, 0.0
      %v1865 = vmax.f32 %v1831, 0.0
      %v1866 = vmax.f32 %v1832, 0.0
      %v1867 = vmax.f32 %v1833, 0.0
      %v1868 = vmax.f32 %v1834, 0.0
      %v1869 = vmax.f32 %v1835, 0.0
      %v1870 = vmax.f32 %v1836, 0.0
      %v1871 = vmax.f32 %v1837, 0.0
      %v1872 = vmax.f32 %v1838, 0.0
      %v1873 = vmax.f32 %v1839, 0.0
      %v1874 = vmax.f32 %v1840, 0.0
      %v1875 = vmax.f32 %v1841, 0.0
      %v1876 = vmax.f32 %v1842, 0.0
      %v1877 = vmax.f32 %v1843, 0.0
      %v1878 = vmax.f32 %v1844, 0.0
      %v1879 = vmax.f32 %v1845, 0.0
      %v1880 = vmax.f32 %v1846, 0.0
      %v1881 = vmax.f32 %v1847, 0.0
      %v1882 = vmax.f32 %v1848, 0.0
      %v1883 = vmax.f32 %v1849, 0.0
      %v1884 = vmax.f32 %v1850, 0.0
      %v1885 = vpack.c.bf16 %v1852, %v1851
      %v1886 = vpack.c.bf16 %v1854, %v1853
      %v1887 = vpack.c.bf16 %v1856, %v1855
      %v1888 = vpack.c.bf16 %v1858, %v1857
      %v1889 = vpack.c.bf16 %v1860, %v1859
      %v1890 = vpack.c.bf16 %v1862, %v1861
      %v1891 = vpack.c.bf16 %v1864, %v1863
      %v1892 = vpack.c.bf16 %v1866, %v1865
      %v1893 = vpack.c.bf16 %v1868, %v1867
      %v1894 = vpack.c.bf16 %v1870, %v1869
      %v1895 = vpack.c.bf16 %v1872, %v1871
      %v1896 = vpack.c.bf16 %v1874, %v1873
      %v1897 = vpack.c.bf16 %v1876, %v1875
      %v1898 = vpack.c.bf16 %v1878, %v1877
      %v1899 = vpack.c.bf16 %v1880, %v1879
      %v1900 = vpack.c.bf16 %v1882, %v1881
      %v1901 = vpack.c.bf16 %v1884, %v1883
      %v1919 = vunpack.c.l.b16 %v1885
      %v1920 = vunpack.c.h.b16 %v1885
      %v1921 = vunpack.c.l.b16 %v1886
      %v1922 = vunpack.c.h.b16 %v1886
      %v1923 = vunpack.c.l.b16 %v1887
      %v1924 = vunpack.c.h.b16 %v1887
      %v1925 = vunpack.c.l.b16 %v1888
      %v1926 = vunpack.c.h.b16 %v1888
      %v1927 = vunpack.c.l.b16 %v1889
      %v1928 = vunpack.c.h.b16 %v1889
      %v1929 = vunpack.c.l.b16 %v1890
      %v1930 = vunpack.c.h.b16 %v1890
      %v1931 = vunpack.c.l.b16 %v1891
      %v1932 = vunpack.c.h.b16 %v1891
      %v1933 = vunpack.c.l.b16 %v1892
      %v1934 = vunpack.c.h.b16 %v1892
      %v1935 = vunpack.c.l.b16 %v1893
      %v1936 = vunpack.c.h.b16 %v1893
      %v1937 = vunpack.c.l.b16 %v1894
      %v1938 = vunpack.c.h.b16 %v1894
      %v1939 = vunpack.c.l.b16 %v1895
      %v1940 = vunpack.c.h.b16 %v1895
      %v1941 = vunpack.c.l.b16 %v1896
      %v1942 = vunpack.c.h.b16 %v1896
      %v1943 = vunpack.c.l.b16 %v1897
      %v1944 = vunpack.c.h.b16 %v1897
      %v1945 = vunpack.c.l.b16 %v1898
      %v1946 = vunpack.c.h.b16 %v1898
      %v1947 = vunpack.c.l.b16 %v1899
      %v1948 = vunpack.c.h.b16 %v1899
      %v1949 = vunpack.c.l.b16 %v1900
      %v1950 = vunpack.c.h.b16 %v1900
      %v1951 = vunpack.c.l.b16 %v1901
      %v1952 = vunpack.c.h.b16 %v1901
      %v1953 = vpack.c.b16 %v1919, %v1919
      %v1954 = vpack.c.b16 %v1920, %v1920
      %v1955 = vpack.c.b16 %v1921, %v1921
      %v1956 = vpack.c.b16 %v1922, %v1922
      %v1957 = vpack.c.b16 %v1923, %v1923
      %v1958 = vpack.c.b16 %v1924, %v1924
      %v1959 = vpack.c.b16 %v1925, %v1925
      %v1960 = vpack.c.b16 %v1926, %v1926
      %v1961 = vpack.c.b16 %v1927, %v1927
      %v1962 = vpack.c.b16 %v1928, %v1928
      %v1963 = vpack.c.b16 %v1929, %v1929
      %v1964 = vpack.c.b16 %v1930, %v1930
      %v1965 = vpack.c.b16 %v1931, %v1931
      %v1966 = vpack.c.b16 %v1932, %v1932
      %v1967 = vpack.c.b16 %v1933, %v1933
      %v1968 = vpack.c.b16 %v1934, %v1934
      %v1969 = vpack.c.b16 %v1935, %v1935
      %v1970 = vpack.c.b16 %v1936, %v1936
      %v1971 = vpack.c.b16 %v1937, %v1937
      %v1972 = vpack.c.b16 %v1938, %v1938
      %v1973 = vpack.c.b16 %v1939, %v1939
      %v1974 = vpack.c.b16 %v1940, %v1940
      %v1975 = vpack.c.b16 %v1941, %v1941
      %v1976 = vpack.c.b16 %v1942, %v1942
      %v1977 = vpack.c.b16 %v1943, %v1943
      %v1978 = vpack.c.b16 %v1944, %v1944
      %v1979 = vpack.c.b16 %v1945, %v1945
      %v1980 = vpack.c.b16 %v1946, %v1946
      %v1981 = vpack.c.b16 %v1947, %v1947
      %v1982 = vpack.c.b16 %v1948, %v1948
      %v1983 = vpack.c.b16 %v1949, %v1949
      %v1984 = vpack.c.b16 %v1950, %v1950
      %v1985 = vpack.c.b16 %v1951, %v1951
      %v1986 = vpack.c.b16 %v1952, %v1952
      %vm2021 = vcmask 257024
      %2022 = vst.msk [vmem:[%s170] sm:$0xf] %vm2021, %v1953
      %2023 = vst.msk [vmem:[%s170 + $0x4] sm:$0xf] %vm2021, %v1954
      %2024 = vst.msk [vmem:[%s170 + $0x8] sm:$0xf] %vm2021, %v1955
      %2025 = vst.msk [vmem:[%s170 + $0xc] sm:$0xf] %vm2021, %v1956
      %2026 = vst.msk [vmem:[%s170 + $0x10] sm:$0xf] %vm2021, %v1957
      %2027 = vst.msk [vmem:[%s170 + $0x14] sm:$0xf] %vm2021, %v1958
      %2028 = vst.msk [vmem:[%s170 + $0x18] sm:$0xf] %vm2021, %v1959
      %2029 = vst.msk [vmem:[%s170 + $0x1c] sm:$0xf] %vm2021, %v1960
      %2030 = vst.msk [vmem:[%s170 + $0x20] sm:$0xf] %vm2021, %v1961
      %2031 = vst.msk [vmem:[%s170 + $0x24] sm:$0xf] %vm2021, %v1962
      %2032 = vst.msk [vmem:[%s170 + $0x28] sm:$0xf] %vm2021, %v1963
      %2033 = vst.msk [vmem:[%s170 + $0x2c] sm:$0xf] %vm2021, %v1964
      %2034 = vst.msk [vmem:[%s170 + $0x30] sm:$0xf] %vm2021, %v1965
      %2035 = vst.msk [vmem:[%s170 + $0x34] sm:$0xf] %vm2021, %v1966
      %2036 = vst.msk [vmem:[%s170 + $0x38] sm:$0xf] %vm2021, %v1967
      %2037 = vst.msk [vmem:[%s170 + $0x3c] sm:$0xf] %vm2021, %v1968
      %2038 = vst.msk [vmem:[%s170 + $0x40] sm:$0xf] %vm2021, %v1969
      %2039 = vst.msk [vmem:[%s170 + $0x44] sm:$0xf] %vm2021, %v1970
      %2040 = vst.msk [vmem:[%s170 + $0x48] sm:$0xf] %vm2021, %v1971
      %2041 = vst.msk [vmem:[%s170 + $0x4c] sm:$0xf] %vm2021, %v1972
      %2042 = vst.msk [vmem:[%s170 + $0x50] sm:$0xf] %vm2021, %v1973
      %2043 = vst.msk [vmem:[%s170 + $0x54] sm:$0xf] %vm2021, %v1974
      %2044 = vst.msk [vmem:[%s170 + $0x58] sm:$0xf] %vm2021, %v1975
      %2045 = vst.msk [vmem:[%s170 + $0x5c] sm:$0xf] %vm2021, %v1976
      %2046 = vst.msk [vmem:[%s170 + $0x60] sm:$0xf] %vm2021, %v1977
      %2047 = vst.msk [vmem:[%s170 + $0x64] sm:$0xf] %vm2021, %v1978
      %2048 = vst.msk [vmem:[%s170 + $0x68] sm:$0xf] %vm2021, %v1979
      %2049 = vst.msk [vmem:[%s170 + $0x6c] sm:$0xf] %vm2021, %v1980
      %2050 = vst.msk [vmem:[%s170 + $0x70] sm:$0xf] %vm2021, %v1981
      %2051 = vst.msk [vmem:[%s170 + $0x74] sm:$0xf] %vm2021, %v1982
      %2052 = vst.msk [vmem:[%s170 + $0x78] sm:$0xf] %vm2021, %v1983
      %2053 = vst.msk [vmem:[%s170 + $0x7c] sm:$0xf] %vm2021, %v1984
      %2054 = vst.msk [vmem:[%s170 + $0x80] sm:$0xf] %vm2021, %v1985
      %2055 = vst.msk [vmem:[%s170 + $0x84] sm:$0xf] %vm2021, %v1986
      %p2056 = scmp.lt.s32.totalorder %s14, 1
      %s2057 = scalar_select %p2056, %s14, 1
      %s2058 = smul.addr %s2057, 34
      %s2059 = smul.addr %s2058, 4
      %s2060 = scalar_lea.vmem %s3, %s2059
      // Predicated region
      $region33: #{forward.6} parent=31 // pred_check
        %p2061 = pneg %p100
      $region34: #{forward.6} parent=31 // pred_check_branch
        %2063 = sbr.rel (%p2061) target = $region36
      $region35: #{forward.6} parent=31 // pred_region
        _
      $region36: #{forward.6} parent=31 // pred_fallthru
        _
    $region32: #{forward.6} parent=5 // pred_fallthru
      _
    %p2064 = scmp.le.s32.totalorder 2, %s9
    // Predicated region
    $region37: #{forward.6} parent=5 // pred_check
      %p2065 = pneg %p2064
    $region38: #{forward.6} parent=5 // pred_check_branch
      %2067 = sbr.rel (%p2065) target = $region40
    $region39: #{forward.6} parent=5 // pred_region
      %s2068 = ssub.s32 %s9, 2
      // Predicated region
      $region41: #{forward.6} parent=39 // pred_check
        %p2069 = pneg %p106
      $region42: #{forward.6} parent=39 // pred_check_branch
        %2071 = sbr.rel (%p2069) target = $region44
      $region43: #{forward.6} parent=39 // pred_region
        %p2072 = scmp.lt.s32.totalorder %s15, 1
        %s2073 = scalar_select %p2072, %s15, 1
        %s2074 = smul.addr %s2073, 34
        %s2075 = smul.addr %s2074, 4
        %s2076 = scalar_lea.vmem %s3, %s2075
      $region44: #{forward.6} parent=39 // pred_fallthru
        _
    $region40: #{forward.6} parent=5 // pred_fallthru
      _
  $region6: #{forward.6} parent=0 // loop_footer
    %s13 = sadd.s32 1, %s9
  $region7: #{forward.6} parent=0 // loop_footer_branch
    %8 = sbr.rel target = $region3
  $region8: #{forward.6} parent=0 // loop_exit
    _

// kernel: forward.7
$region0: #{forward.7}
  #allocation0 [shape = 'u32[]', space=smem, size = 0x4, offset = 0x4, fixed_abs, tag = 'smem constant byte address 0x4 - core index']
  #allocation1 [shape = 'u32[144,128]{1,0:T(1,128)}', space=vmem, size = 0x12000, scoped, tag = 'internal scratch']
  %s0 = inlined_call_operand.vmem [shape: bf16[2,88,128], index: 0, kind: input, shape index: {}]
  %s1 = inlined_call_operand.vmem [shape: bf16[4,128,64], index: 1, kind: input, shape index: {}]
  %s2 = inlined_call_operand.vmem [shape: f32[1,64], index: 2, kind: input, shape index: {}]
  %s3 = inlined_call_operand.vmem [shape: bf16[2,72,64], index: 3, kind: output, shape index: {}]
  %s4 = sld [smem:[#allocation0]]
  $region45: #{forward.7} parent=0
    _
  %s6 = ssub.s32 1, %s4
  %s7 = scalar_select 0, %s6, %s4
  loop: start=0, step=1, limit=4
  $region2: #{forward.7} parent=0 // loop_pre_header
    _
  $region3: #{forward.7} parent=0 // loop_header
    %s9 = sphi 0, %s13
    %p10 = scmp.ge.s32.totalorder %s9, 4
    %s19 = sphi 0, %s21
    %s22 = sphi 0, %s19
    %s23 = sphi 0, %s22
    %s39 = sphi 0, %s23
    %s43 = sphi 0, %s43
    %s45 = sphi 0, %s43
    %s46 = sphi 0, %s45
    %s60 = sphi 0, %s46
    %s64 = sphi 0, %s64
    %s66 = sphi 0, %s64
    %s67 = sphi 0, %s66
    %s81 = sphi 0, %s67
    %s87 = sphi 0, %s89
    %s90 = sphi 0, %s87
    %s91 = sphi 0, %s90
    %s107 = sphi 0, %s91
  $region4: #{forward.7} parent=0 // loop_header_branch
    %12 = sbr.rel (%p10) target = $region8
  $region5: #{forward.7} parent=0 // loop_body
    %s14 = ssub.s32 %s9, 1
    %s15 = ssub.s32 %s9, 2
    %s16 = sadd.s32 %s9, 1
    %s17 = ssub.s32 %s9, %s16
    %p18 = scmp.eq.s32.totalorder %s17, 0
    %s20 = sadd.s32 %s19, 1
    %s21 = scalar_select %p18, %s19, %s20
    %p24 = pneg %p18
    %p25 = scmp.eq.s32.totalorder %s9, 1
    %p26 = por %p24, %p25
    %p27 = scmp.ne.s32.totalorder %s19, %s22
    %p28 = scmp.eq.s32.totalorder %s9, 0
    %p29 = por %p27, %p28
    %p30 = scmp.ne.s32.totalorder %s19, %s22
    %p31 = scmp.eq.s32.totalorder %s14, 1
    %p32 = por %p30, %p31
    %p33 = scmp.ne.s32.totalorder %s22, %s23
    %p34 = scmp.eq.s32.totalorder %s14, 0
    %p35 = por %p33, %p34
    %p36 = scmp.ne.s32.totalorder %s22, %s23
    %p37 = scmp.eq.s32.totalorder %s15, 1
    %p38 = por %p36, %p37
    %p40 = scmp.ne.s32.totalorder %s23, %s39
    %p41 = scmp.eq.s32.totalorder %s15, 0
    %p42 = por %p40, %p41
    %s44 = sadd.s32 %s43, 1
    %p47 = scmp.eq.s32.totalorder %s9, 1
    %p48 = scmp.ne.s32.totalorder %s43, %s45
    %p49 = scmp.eq.s32.totalorder %s9, 0
    %p50 = por %p48, %p49
    %p51 = scmp.ne.s32.totalorder %s43, %s45
    %p52 = scmp.eq.s32.totalorder %s14, 1
    %p53 = por %p51, %p52
    %p54 = scmp.ne.s32.totalorder %s45, %s46
    %p55 = scmp.eq.s32.totalorder %s14, 0
    %p56 = por %p54, %p55
    %p57 = scmp.ne.s32.totalorder %s45, %s46
    %p58 = scmp.eq.s32.totalorder %s15, 1
    %p59 = por %p57, %p58
    %p61 = scmp.ne.s32.totalorder %s46, %s60
    %p62 = scmp.eq.s32.totalorder %s15, 0
    %p63 = por %p61, %p62
    %s65 = sadd.s32 %s64, 1
    %p68 = scmp.eq.s32.totalorder %s9, 1
    %p69 = scmp.ne.s32.totalorder %s64, %s66
    %p70 = scmp.eq.s32.totalorder %s9, 0
    %p71 = por %p69, %p70
    %p72 = scmp.ne.s32.totalorder %s64, %s66
    %p73 = scmp.eq.s32.totalorder %s14, 1
    %p74 = por %p72, %p73
    %p75 = scmp.ne.s32.totalorder %s66, %s67
    %p76 = scmp.eq.s32.totalorder %s14, 0
    %p77 = por %p75, %p76
    %p78 = scmp.ne.s32.totalorder %s66, %s67
    %p79 = scmp.eq.s32.totalorder %s15, 1
    %p80 = por %p78, %p79
    %p82 = scmp.ne.s32.totalorder %s67, %s81
    %p83 = scmp.eq.s32.totalorder %s15, 0
    %p84 = por %p82, %p83
    %s85 = ssub.s32 %s9, %s16
    %p86 = scmp.eq.s32.totalorder %s85, 0
    %s88 = sadd.s32 %s87, 1
    %s89 = scalar_select %p86, %s87, %s88
    %p92 = pneg %p86
    %p93 = scmp.eq.s32.totalorder %s9, 1
    %p94 = por %p92, %p93
    %p95 = scmp.ne.s32.totalorder %s87, %s90
    %p96 = scmp.eq.s32.totalorder %s9, 0
    %p97 = por %p95, %p96
    %p98 = scmp.ne.s32.totalorder %s87, %s90
    %p99 = scmp.eq.s32.totalorder %s14, 1
    %p100 = por %p98, %p99
    %p101 = scmp.ne.s32.totalorder %s90, %s91
    %p102 = scmp.eq.s32.totalorder %s14, 0
    %p103 = por %p101, %p102
    %p104 = scmp.ne.s32.totalorder %s90, %s91
    %p105 = scmp.eq.s32.totalorder %s15, 1
    %p106 = por %p104, %p105
    %p108 = scmp.ne.s32.totalorder %s91, %s107
    %p109 = scmp.eq.s32.totalorder %s15, 0
    %p110 = por %p108, %p109
    %p111 = scmp.le.s32.totalorder 1, %s9
    %p112 = scmp.lt.s32.totalorder %s9, 3
    %p113 = pnand %p111, %p112
    %p114 = pneg %p113
    // Predicated region
    $region9: #{forward.7} parent=5 // pred_check
      _
    $region10: #{forward.7} parent=5 // pred_check_branch
      %116 = sbr.rel (%p113) target = $region12
    $region11: #{forward.7} parent=5 // pred_region
      %s117 = ssub.s32 %s9, 1
      // Predicated region
      $region13: #{forward.7} parent=11 // pred_check
        %p118 = pneg %p56
      $region14: #{forward.7} parent=11 // pred_check_branch
        %120 = sbr.rel (%p118) target = $region16
      $region15: #{forward.7} parent=11 // pred_region
        _
      $region16: #{forward.7} parent=11 // pred_fallthru
        _
      // Predicated region
      $region17: #{forward.7} parent=11 // pred_check
        %p121 = pneg %p77
      $region18: #{forward.7} parent=11 // pred_check_branch
        %123 = sbr.rel (%p121) target = $region20
      $region19: #{forward.7} parent=11 // pred_region
        _
      $region20: #{forward.7} parent=11 // pred_fallthru
        _
    $region12: #{forward.7} parent=5 // pred_fallthru
      _
    %p124 = scmp.lt.s32.totalorder %s9, 2
    // Predicated region
    $region21: #{forward.7} parent=5 // pred_check
      %p125 = pneg %p124
    $region22: #{forward.7} parent=5 // pred_check_branch
      %127 = sbr.rel (%p125) target = $region24
    $region23: #{forward.7} parent=5 // pred_region
      // Predicated region
      $region25: #{forward.7} parent=23 // pred_check
        %p128 = pneg %p29
      $region26: #{forward.7} parent=23 // pred_check_branch
        %130 = sbr.rel (%p128) target = $region28
      $region27: #{forward.7} parent=23 // pred_region
        %p131 = scmp.lt.s32.totalorder %s9, 1
        %s132 = scalar_select %p131, %s9, 1
        %s133 = smul.addr %s132, 11
        %s134 = smul.addr %s133, 4
        %s135 = scalar_lea.vmem %s0, %s134
      $region28: #{forward.7} parent=23 // pred_fallthru
        _
    $region24: #{forward.7} parent=5 // pred_fallthru
      _
    %p136 = scmp.le.s32.totalorder 1, %s9
    %p137 = scmp.lt.s32.totalorder %s9, 3
    %p138 = pnand %p136, %p137
    %p139 = pneg %p138
    // Predicated region
    $region29: #{forward.7} parent=5 // pred_check
      _
    $region30: #{forward.7} parent=5 // pred_check_branch
      %141 = sbr.rel (%p138) target = $region32
    $region31: #{forward.7} parent=5 // pred_region
      %s142 = ssub.s32 %s9, 1
      %p143 = scmp.lt.s32.totalorder %s14, 1
      %s144 = scalar_select %p143, %s14, 1
      %s145 = smul.addr %s144, 11
      %s146 = smul.addr %s145, 4
      %s147 = scalar_lea.vmem %s0, %s146
      %p148 = pneg %p35
      %p149 = pneg %p32
      %p150 = pneg %p56
      %p151 = pneg %p53
      %p152 = pneg %p77
      %p153 = pneg %p74
      %p154 = pneg %p103
      %p155 = pneg %p100
      %p156 = scmp.lt.s32.totalorder %s14, 1
      %s157 = scalar_select %p156, %s14, 1
      %s158 = smul.addr %s157, 9
      %s159 = smul.addr %s158, 4
      %s160 = scalar_lea.vmem %s3, %s159
      %p161 = scmp.lt.s32.totalorder %s14, 1
      %s162 = scalar_select %p161, %s14, 1
      %s163 = smul.addr %s162, 11
      %s164 = smul.addr %s163, 4
      %s165 = scalar_lea.vmem %s0, %s164
      %p166 = scmp.lt.s32.totalorder %s14, 1
      %s167 = scalar_select %p166, %s14, 1
      %s168 = smul.addr %s167, 9
      %s169 = smul.addr %s168, 4
      %s170 = scalar_lea.vmem %s3, %s169
      %v172 = vld [vmem:[%s165] sm:$0xf]
      %v173 = vld [vmem:[%s165 + $0x4] sm:$0xf]
      %v174 = vld [vmem:[%s165 + $0x8] sm:$0xf]
      %v175 = vld [vmem:[%s165 + $0xc] sm:$0xf]
      %v176 = vld [vmem:[%s165 + $0x10] sm:$0xf]
      %v177 = vld [vmem:[%s165 + $0x14] sm:$0xf]
      %v178 = vld [vmem:[%s165 + $0x18] sm:$0xf]
      %v179 = vld [vmem:[%s165 + $0x1c] sm:$0xf]
      %v180 = vld [vmem:[%s165 + $0x20] sm:$0xf]
      %v181 = vld [vmem:[%s1] sm:$0xf]
      %v182 = vld [vmem:[%s1 + $0x4] sm:$0xf]
      %v183 = vld [vmem:[%s1 + $0x8] sm:$0xf]
      %v184 = vld [vmem:[%s1 + $0xc] sm:$0xf]
      %v185 = vld [vmem:[%s1 + $0x10] sm:$0xf]
      %v186 = vld [vmem:[%s1 + $0x14] sm:$0xf]
      %v187 = vld [vmem:[%s1 + $0x18] sm:$0xf]
      %v188 = vld [vmem:[%s1 + $0x1c] sm:$0xf]
      %v189 = vld [vmem:[%s1 + $0x20] sm:$0xf]
      %v190 = vld [vmem:[%s1 + $0x24] sm:$0xf]
      %v191 = vld [vmem:[%s1 + $0x28] sm:$0xf]
      %v192 = vld [vmem:[%s1 + $0x2c] sm:$0xf]
      %v193 = vld [vmem:[%s1 + $0x30] sm:$0xf]
      %v194 = vld [vmem:[%s1 + $0x34] sm:$0xf]
      %v195 = vld [vmem:[%s1 + $0x38] sm:$0xf]
      %v196 = vld [vmem:[%s1 + $0x3c] sm:$0xf]
      %v197 = vld [vmem:[%s165 + $0x24] sm:$0x1]
      %s198 = scalar_lea.vmem %s1, 64
      %v199 = vld [vmem:[%s198] sm:$0xf]
      %v200 = vld [vmem:[%s198 + $0x4] sm:$0xf]
      %v201 = vld [vmem:[%s198 + $0x8] sm:$0xf]
      %v202 = vld [vmem:[%s198 + $0xc] sm:$0xf]
      %v203 = vld [vmem:[%s198 + $0x10] sm:$0xf]
      %v204 = vld [vmem:[%s198 + $0x14] sm:$0xf]
      %v205 = vld [vmem:[%s198 + $0x18] sm:$0xf]
      %v206 = vld [vmem:[%s198 + $0x1c] sm:$0xf]
      %v207 = vld [vmem:[%s198 + $0x20] sm:$0xf]
      %v208 = vld [vmem:[%s198 + $0x24] sm:$0xf]
      %v209 = vld [vmem:[%s198 + $0x28] sm:$0xf]
      %v210 = vld [vmem:[%s198 + $0x2c] sm:$0xf]
      %v211 = vld [vmem:[%s198 + $0x30] sm:$0xf]
      %v212 = vld [vmem:[%s198 + $0x34] sm:$0xf]
      %v213 = vld [vmem:[%s198 + $0x38] sm:$0xf]
      %v214 = vld [vmem:[%s198 + $0x3c] sm:$0xf]
      %v225 = vunpack.c.l.b16 %v172
      %v226 = vunpack.c.l.b16 %v173
      %v227 = vunpack.c.l.b16 %v174
      %v228 = vunpack.c.l.b16 %v175
      %v229 = vunpack.c.l.b16 %v176
      %v230 = vunpack.c.l.b16 %v177
      %v231 = vunpack.c.l.b16 %v178
      %v232 = vunpack.c.l.b16 %v179
      %v233 = vunpack.c.l.b16 %v180
      %v234 = vunpack.c.l.b16 %v197
      %v235 = vpack.c.b16 %v226, %v225
      %v236 = vpack.c.b16 %v228, %v227
      %v237 = vpack.c.b16 %v230, %v229
      %v238 = vpack.c.b16 %v232, %v231
      %v239 = vpack.c.b16 %v234, %v233
      %vm240 = vsmask.f32 7424
      %v242 = vshrl.u32 %v235, 16
      %v244 = vshll.u32 %v235, 16
      %v246 = vrot.slane %v244, 1
      %v247 = vor.u32 %v242, %v246
      %v249 = vshll.u32 %v236, 16
      %v251 = vrot.slane %v249, 1
      %v252 = vsel %vm240, %v247, %v251
      %v253 = vshrl.u32 %v236, 16
      %v255 = vor.u32 %v253, %v251
      %v257 = vshll.u32 %v237, 16
      %v259 = vrot.slane %v257, 1
      %v260 = vsel %vm240, %v255, %v259
      %v261 = vshrl.u32 %v237, 16
      %v263 = vor.u32 %v261, %v259
      %v265 = vshll.u32 %v238, 16
      %v267 = vrot.slane %v265, 1
      %v268 = vsel %vm240, %v263, %v267
      %v269 = vshrl.u32 %v238, 16
      %v271 = vor.u32 %v269, %v267
      %v273 = vshll.u32 %v239, 16
      %v275 = vrot.slane %v273, 1
      %v276 = vsel %vm240, %v271, %v275
      %v277 = vshrl.u32 %v239, 16
      %v279 = vor.u32 %v277, %v275
      %v301 = vunpack.c.l.b16 %v199
      %v302 = vunpack.c.l.b16 %v200
      %v303 = vunpack.c.l.b16 %v201
      %v304 = vunpack.c.l.b16 %v202
      %v305 = vunpack.c.l.b16 %v203
      %v306 = vunpack.c.l.b16 %v204
      %v307 = vunpack.c.l.b16 %v205
      %v308 = vunpack.c.l.b16 %v206
      %v309 = vunpack.c.l.b16 %v207
      %v310 = vunpack.c.l.b16 %v208
      %v311 = vunpack.c.l.b16 %v209
      %v312 = vunpack.c.l.b16 %v210
      %v313 = vunpack.c.l.b16 %v211
      %v314 = vunpack.c.l.b16 %v212
      %v315 = vunpack.c.l.b16 %v213
      %v316 = vunpack.c.l.b16 %v214
      %v317 = vpack.c.b16 %v302, %v301
      %v318 = vpack.c.b16 %v304, %v303
      %v319 = vpack.c.b16 %v306, %v305
      %v320 = vpack.c.b16 %v308, %v307
      %v321 = vpack.c.b16 %v310, %v309
      %v322 = vpack.c.b16 %v312, %v311
      %v323 = vpack.c.b16 %v314, %v313
      %v324 = vpack.c.b16 %v316, %v315
      %333 = vmatprep.subr.bf16.mxu0 0
      %334 = vmatpush1.bf16.msra.mxu0 %v324
      %335 = vmatprep.subr.bf16.mxu0 0
      %336 = vmatpush1.bf16.msra.mxu0 %v323
      %337 = vmatprep.subr.bf16.mxu0 0
      %338 = vmatpush1.bf16.msra.mxu0 %v322
      %339 = vmatprep.subr.bf16.mxu0 0
      %340 = vmatpush1.bf16.msra.mxu0 %v321
      %341 = vmatprep.subr.bf16.mxu0 0
      %342 = vmatpush1.bf16.msra.mxu0 %v320
      %343 = vmatprep.subr.bf16.mxu0 0
      %344 = vmatpush1.bf16.msra.mxu0 %v319
      %345 = vmatprep.subr.bf16.mxu0 0
      %346 = vmatpush1.bf16.msra.mxu0 %v318
      %347 = vmatprep.subr.bf16.mxu0 0
      %348 = vmatpush1.bf16.msra.mxu0 %v317
      %349 = vmatprep.subr.bf16.mxu0 0
      %350 = vmatpush2.bf16.msra.mxu0 0
      %351 = vmatprep.subr.bf16.mxu0 0
      %352 = vmatpush2.bf16.msra.mxu0 0
      %353 = vmatprep.subr.bf16.mxu0 0
      %354 = vmatpush2.bf16.msra.mxu0 0
      %355 = vmatprep.subr.bf16.mxu0 0
      %356 = vmatpush2.bf16.msra.mxu0 0
      %357 = vmatprep.subr.bf16.mxu0 0
      %358 = vmatpush2.bf16.msra.mxu0 0
      %359 = vmatprep.subr.bf16.mxu0 0
      %360 = vmatpush2.bf16.msra.mxu0 0
      %361 = vmatprep.subr.bf16.mxu0 0
      %362 = vmatpush2.bf16.msra.mxu0 0
      %363 = vmatprep.subr.bf16.mxu0 0
      %364 = vmatpush2.bf16.msra.mxu0 0
      %365 = vmatprep.mubr.bf16.mxu0 0
      %366 = vmatmul.mubr.bf16.gmra.mxu0 %v252
      %v367 = vpop.f32.mrf.mxu0
      %v368 = vadd.f32 0.0, %v367
      %v369 = vpop.f32.mrf.mxu0
      %v370 = vpop.f32.mrf.mxu0
      %v371 = vadd.f32 0.0, %v370
      %v372 = vpop.f32.mrf.mxu0
      %373 = vmatprep.mubr.bf16.mxu0 0
      %374 = vmatmul.mubr.bf16.gmra.mxu0 %v260
      %v375 = vpop.f32.mrf.mxu0
      %v376 = vadd.f32 0.0, %v375
      %v377 = vpop.f32.mrf.mxu0
      %v378 = vpop.f32.mrf.mxu0
      %v379 = vadd.f32 0.0, %v378
      %v380 = vpop.f32.mrf.mxu0
      %381 = vmatprep.mubr.bf16.mxu0 0
      %382 = vmatmul.mubr.bf16.gmra.mxu0 %v268
      %v383 = vpop.f32.mrf.mxu0
      %v384 = vadd.f32 0.0, %v383
      %v385 = vpop.f32.mrf.mxu0
      %v386 = vpop.f32.mrf.mxu0
      %v387 = vadd.f32 0.0, %v386
      %v388 = vpop.f32.mrf.mxu0
      %389 = vmatprep.mubr.bf16.mxu0 0
      %390 = vmatmul.mubr.bf16.gmra.mxu0 %v276
      %v391 = vpop.f32.mrf.mxu0
      %v392 = vadd.f32 0.0, %v391
      %v393 = vpop.f32.mrf.mxu0
      %v394 = vpop.f32.mrf.mxu0
      %v395 = vadd.f32 0.0, %v394
      %v396 = vpop.f32.mrf.mxu0
      %397 = vmatprep.mubr.bf16.mxu0 0
      %398 = vmatmul.mubr.bf16.gmra.mxu0 %v279
      %v399 = vpop.f32.mrf.mxu0
      %v400 = vadd.f32 0.0, %v399
      %v401 = vpop.f32.mrf.mxu0
      %v402 = vpop.f32.mrf.mxu0
      %v403 = vpop.f32.mrf.mxu0
      %404 = vdwg.mxu0
      %v405 = vpack.c.b16 %v233, %v233
      %v427 = vunpack.c.l.b16 %v181
      %v428 = vunpack.c.l.b16 %v182
      %v429 = vunpack.c.l.b16 %v183
      %v430 = vunpack.c.l.b16 %v184
      %v431 = vunpack.c.l.b16 %v185
      %v432 = vunpack.c.l.b16 %v186
      %v433 = vunpack.c.l.b16 %v187
      %v434 = vunpack.c.l.b16 %v188
      %v435 = vunpack.c.l.b16 %v189
      %v436 = vunpack.c.l.b16 %v190
      %v437 = vunpack.c.l.b16 %v191
      %v438 = vunpack.c.l.b16 %v192
      %v439 = vunpack.c.l.b16 %v193
      %v440 = vunpack.c.l.b16 %v194
      %v441 = vunpack.c.l.b16 %v195
      %v442 = vunpack.c.l.b16 %v196
      %v443 = vpack.c.b16 %v428, %v427
      %v444 = vpack.c.b16 %v430, %v429
      %v445 = vpack.c.b16 %v432, %v431
      %v446 = vpack.c.b16 %v434, %v433
      %v447 = vpack.c.b16 %v436, %v435
      %v448 = vpack.c.b16 %v438, %v437
      %v449 = vpack.c.b16 %v440, %v439
      %v450 = vpack.c.b16 %v442, %v441
      %459 = vmatprep.subr.bf16.mxu0 0
      %460 = vmatpush1.bf16.msra.mxu0 %v450
      %461 = vmatprep.subr.bf16.mxu0 0
      %462 = vmatpush1.bf16.msra.mxu0 %v449
      %463 = vmatprep.subr.bf16.mxu0 0
      %464 = vmatpush1.bf16.msra.mxu0 %v448
      %465 = vmatprep.subr.bf16.mxu0 0
      %466 = vmatpush1.bf16.msra.mxu0 %v447
      %467 = vmatprep.subr.bf16.mxu0 0
      %468 = vmatpush1.bf16.msra.mxu0 %v446
      %469 = vmatprep.subr.bf16.mxu0 0
      %470 = vmatpush1.bf16.msra.mxu0 %v445
      %471 = vmatprep.subr.bf16.mxu0 0
      %472 = vmatpush1.bf16.msra.mxu0 %v444
      %473 = vmatprep.subr.bf16.mxu0 0
      %474 = vmatpush1.bf16.msra.mxu0 %v443
      %475 = vmatprep.subr.bf16.mxu0 0
      %476 = vmatpush2.bf16.msra.mxu0 0
      %477 = vmatprep.subr.bf16.mxu0 0
      %478 = vmatpush2.bf16.msra.mxu0 0
      %479 = vmatprep.subr.bf16.mxu0 0
      %480 = vmatpush2.bf16.msra.mxu0 0
      %481 = vmatprep.subr.bf16.mxu0 0
      %482 = vmatpush2.bf16.msra.mxu0 0
      %483 = vmatprep.subr.bf16.mxu0 0
      %484 = vmatpush2.bf16.msra.mxu0 0
      %485 = vmatprep.subr.bf16.mxu0 0
      %486 = vmatpush2.bf16.msra.mxu0 0
      %487 = vmatprep.subr.bf16.mxu0 0
      %488 = vmatpush2.bf16.msra.mxu0 0
      %489 = vmatprep.subr.bf16.mxu0 0
      %490 = vmatpush2.bf16.msra.mxu0 0
      %491 = vmatprep.mubr.bf16.mxu0 0
      %492 = vmatmul.mubr.bf16.gmra.mxu0 %v235
      %v493 = vpop.f32.mrf.mxu0
      %v494 = vadd.f32 %v368, %v493
      %v495 = vpop.f32.mrf.mxu0
      %v496 = vpop.f32.mrf.mxu0
      %v497 = vadd.f32 %v371, %v496
      %v498 = vpop.f32.mrf.mxu0
      %499 = vmatprep.mubr.bf16.mxu0 0
      %500 = vmatmul.mubr.bf16.gmra.mxu0 %v236
      %v501 = vpop.f32.mrf.mxu0
      %v502 = vadd.f32 %v376, %v501
      %v503 = vpop.f32.mrf.mxu0
      %v504 = vpop.f32.mrf.mxu0
      %v505 = vadd.f32 %v379, %v504
      %v506 = vpop.f32.mrf.mxu0
      %507 = vmatprep.mubr.bf16.mxu0 0
      %508 = vmatmul.mubr.bf16.gmra.mxu0 %v237
      %v509 = vpop.f32.mrf.mxu0
      %v510 = vadd.f32 %v384, %v509
      %v511 = vpop.f32.mrf.mxu0
      %v512 = vpop.f32.mrf.mxu0
      %v513 = vadd.f32 %v387, %v512
      %v514 = vpop.f32.mrf.mxu0
      %515 = vmatprep.mubr.bf16.mxu0 0
      %516 = vmatmul.mubr.bf16.gmra.mxu0 %v238
      %v517 = vpop.f32.mrf.mxu0
      %v518 = vadd.f32 %v392, %v517
      %v519 = vpop.f32.mrf.mxu0
      %v520 = vpop.f32.mrf.mxu0
      %v521 = vadd.f32 %v395, %v520
      %v522 = vpop.f32.mrf.mxu0
      %523 = vmatprep.mubr.bf16.mxu0 0
      %524 = vmatmul.mubr.bf16.gmra.mxu0 %v405
      %v525 = vpop.f32.mrf.mxu0
      %v526 = vadd.f32 %v400, %v525
      %v527 = vpop.f32.mrf.mxu0
      %v528 = vpop.f32.mrf.mxu0
      %v529 = vpop.f32.mrf.mxu0
      %530 = vdwg.mxu0
      %v531 = vld [vmem:[%s165 + $0x4] sm:$0xf]
      %v532 = vld [vmem:[%s165 + $0x8] sm:$0xf]
      %v533 = vld [vmem:[%s165 + $0xc] sm:$0xf]
      %v534 = vld [vmem:[%s165 + $0x10] sm:$0xf]
      %v535 = vld [vmem:[%s165 + $0x14] sm:$0xf]
      %v536 = vld [vmem:[%s165 + $0x18] sm:$0xf]
      %v537 = vld [vmem:[%s165 + $0x1c] sm:$0xf]
      %v538 = vld [vmem:[%s165 + $0x20] sm:$0xf]
      %v539 = vld [vmem:[%s165 + $0x24] sm:$0xf]
      %v540 = vld [vmem:[%s165 + $0x28] sm:$0x1]
      %s541 = scalar_lea.vmem %s1, 128
      %v542 = vld [vmem:[%s541] sm:$0xf]
      %v543 = vld [vmem:[%s541 + $0x4] sm:$0xf]
      %v544 = vld [vmem:[%s541 + $0x8] sm:$0xf]
      %v545 = vld [vmem:[%s541 + $0xc] sm:$0xf]
      %v546 = vld [vmem:[%s541 + $0x10] sm:$0xf]
      %v547 = vld [vmem:[%s541 + $0x14] sm:$0xf]
      %v548 = vld [vmem:[%s541 + $0x18] sm:$0xf]
      %v549 = vld [vmem:[%s541 + $0x1c] sm:$0xf]
      %v550 = vld [vmem:[%s541 + $0x20] sm:$0xf]
      %v551 = vld [vmem:[%s541 + $0x24] sm:$0xf]
      %v552 = vld [vmem:[%s541 + $0x28] sm:$0xf]
      %v553 = vld [vmem:[%s541 + $0x2c] sm:$0xf]
      %v554 = vld [vmem:[%s541 + $0x30] sm:$0xf]
      %v555 = vld [vmem:[%s541 + $0x34] sm:$0xf]
      %v556 = vld [vmem:[%s541 + $0x38] sm:$0xf]
      %v557 = vld [vmem:[%s541 + $0x3c] sm:$0xf]
      %v568 = vunpack.c.l.b16 %v531
      %v569 = vunpack.c.l.b16 %v532
      %v570 = vunpack.c.l.b16 %v533
      %v571 = vunpack.c.l.b16 %v534
      %v572 = vunpack.c.l.b16 %v535
      %v573 = vunpack.c.l.b16 %v536
      %v574 = vunpack.c.l.b16 %v537
      %v575 = vunpack.c.l.b16 %v538
      %v576 = vunpack.c.l.b16 %v539
      %v577 = vunpack.c.l.b16 %v540
      %v578 = vpack.c.b16 %v569, %v568
      %v579 = vpack.c.b16 %v571, %v570
      %v580 = vpack.c.b16 %v573, %v572
      %v581 = vpack.c.b16 %v575, %v574
      %v582 = vpack.c.b16 %v577, %v576
      %v584 = vshrl.u32 %v578, 16
      %v586 = vshll.u32 %v578, 16
      %v588 = vrot.slane %v586, 1
      %v589 = vor.u32 %v584, %v588
      %v591 = vshll.u32 %v579, 16
      %v593 = vrot.slane %v591, 1
      %v594 = vsel %vm240, %v589, %v593
      %v595 = vshrl.u32 %v579, 16
      %v597 = vor.u32 %v595, %v593
      %v599 = vshll.u32 %v580, 16
      %v601 = vrot.slane %v599, 1
      %v602 = vsel %vm240, %v597, %v601
      %v603 = vshrl.u32 %v580, 16
      %v605 = vor.u32 %v603, %v601
      %v607 = vshll.u32 %v581, 16
      %v609 = vrot.slane %v607, 1
      %v610 = vsel %vm240, %v605, %v609
      %v611 = vshrl.u32 %v581, 16
      %v613 = vor.u32 %v611, %v609
      %v615 = vshll.u32 %v582, 16
      %v617 = vrot.slane %v615, 1
      %v618 = vsel %vm240, %v613, %v617
      %v619 = vshrl.u32 %v582, 16
      %v621 = vor.u32 %v619, %v617
      %v643 = vunpack.c.l.b16 %v542
      %v644 = vunpack.c.l.b16 %v543
      %v645 = vunpack.c.l.b16 %v544
      %v646 = vunpack.c.l.b16 %v545
      %v647 = vunpack.c.l.b16 %v546
      %v648 = vunpack.c.l.b16 %v547
      %v649 = vunpack.c.l.b16 %v548
      %v650 = vunpack.c.l.b16 %v549
      %v651 = vunpack.c.l.b16 %v550
      %v652 = vunpack.c.l.b16 %v551
      %v653 = vunpack.c.l.b16 %v552
      %v654 = vunpack.c.l.b16 %v553
      %v655 = vunpack.c.l.b16 %v554
      %v656 = vunpack.c.l.b16 %v555
      %v657 = vunpack.c.l.b16 %v556
      %v658 = vunpack.c.l.b16 %v557
      %v659 = vpack.c.b16 %v644, %v643
      %v660 = vpack.c.b16 %v646, %v645
      %v661 = vpack.c.b16 %v648, %v647
      %v662 = vpack.c.b16 %v650, %v649
      %v663 = vpack.c.b16 %v652, %v651
      %v664 = vpack.c.b16 %v654, %v653
      %v665 = vpack.c.b16 %v656, %v655
      %v666 = vpack.c.b16 %v658, %v657
      %675 = vmatprep.subr.bf16.mxu0 0
      %676 = vmatpush1.bf16.msra.mxu0 %v666
      %677 = vmatprep.subr.bf16.mxu0 0
      %678 = vmatpush1.bf16.msra.mxu0 %v665
      %679 = vmatprep.subr.bf16.mxu0 0
      %680 = vmatpush1.bf16.msra.mxu0 %v664
      %681 = vmatprep.subr.bf16.mxu0 0
      %682 = vmatpush1.bf16.msra.mxu0 %v663
      %683 = vmatprep.subr.bf16.mxu0 0
      %684 = vmatpush1.bf16.msra.mxu0 %v662
      %685 = vmatprep.subr.bf16.mxu0 0
      %686 = vmatpush1.bf16.msra.mxu0 %v661
      %687 = vmatprep.subr.bf16.mxu0 0
      %688 = vmatpush1.bf16.msra.mxu0 %v660
      %689 = vmatprep.subr.bf16.mxu0 0
      %690 = vmatpush1.bf16.msra.mxu0 %v659
      %691 = vmatprep.subr.bf16.mxu0 0
      %692 = vmatpush2.bf16.msra.mxu0 0
      %693 = vmatprep.subr.bf16.mxu0 0
      %694 = vmatpush2.bf16.msra.mxu0 0
      %695 = vmatprep.subr.bf16.mxu0 0
      %696 = vmatpush2.bf16.msra.mxu0 0
      %697 = vmatprep.subr.bf16.mxu0 0
      %698 = vmatpush2.bf16.msra.mxu0 0
      %699 = vmatprep.subr.bf16.mxu0 0
      %700 = vmatpush2.bf16.msra.mxu0 0
      %701 = vmatprep.subr.bf16.mxu0 0
      %702 = vmatpush2.bf16.msra.mxu0 0
      %703 = vmatprep.subr.bf16.mxu0 0
      %704 = vmatpush2.bf16.msra.mxu0 0
      %705 = vmatprep.subr.bf16.mxu0 0
      %706 = vmatpush2.bf16.msra.mxu0 0
      %707 = vmatprep.mubr.bf16.mxu0 0
      %708 = vmatmul.mubr.bf16.gmra.mxu0 %v594
      %v709 = vpop.f32.mrf.mxu0
      %v710 = vadd.f32 0.0, %v709
      %v711 = vpop.f32.mrf.mxu0
      %v712 = vpop.f32.mrf.mxu0
      %v713 = vadd.f32 0.0, %v712
      %v714 = vpop.f32.mrf.mxu0
      %715 = vmatprep.mubr.bf16.mxu0 0
      %716 = vmatmul.mubr.bf16.gmra.mxu0 %v602
      %v717 = vpop.f32.mrf.mxu0
      %v718 = vadd.f32 0.0, %v717
      %v719 = vpop.f32.mrf.mxu0
      %v720 = vpop.f32.mrf.mxu0
      %v721 = vadd.f32 0.0, %v720
      %v722 = vpop.f32.mrf.mxu0
      %723 = vmatprep.mubr.bf16.mxu0 0
      %724 = vmatmul.mubr.bf16.gmra.mxu0 %v610
      %v725 = vpop.f32.mrf.mxu0
      %v726 = vadd.f32 0.0, %v725
      %v727 = vpop.f32.mrf.mxu0
      %v728 = vpop.f32.mrf.mxu0
      %v729 = vadd.f32 0.0, %v728
      %v730 = vpop.f32.mrf.mxu0
      %731 = vmatprep.mubr.bf16.mxu0 0
      %732 = vmatmul.mubr.bf16.gmra.mxu0 %v618
      %v733 = vpop.f32.mrf.mxu0
      %v734 = vadd.f32 0.0, %v733
      %v735 = vpop.f32.mrf.mxu0
      %v736 = vpop.f32.mrf.mxu0
      %v737 = vadd.f32 0.0, %v736
      %v738 = vpop.f32.mrf.mxu0
      %739 = vmatprep.mubr.bf16.mxu0 0
      %740 = vmatmul.mubr.bf16.gmra.mxu0 %v621
      %v741 = vpop.f32.mrf.mxu0
      %v742 = vadd.f32 0.0, %v741
      %v743 = vpop.f32.mrf.mxu0
      %v744 = vpop.f32.mrf.mxu0
      %v745 = vpop.f32.mrf.mxu0
      %746 = vdwg.mxu0
      %v747 = vadd.f32 %v494, %v710
      %v748 = vadd.f32 %v497, %v713
      %v749 = vadd.f32 %v502, %v718
      %v750 = vadd.f32 %v505, %v721
      %v751 = vadd.f32 %v510, %v726
      %v752 = vadd.f32 %v513, %v729
      %v753 = vadd.f32 %v518, %v734
      %v754 = vadd.f32 %v521, %v737
      %v755 = vadd.f32 %v526, %v742
      %v756 = vld [vmem:[%s165 + $0x4] sm:$0xe]
      %s757 = scalar_lea.vmem %s1, 192
      %v758 = vld [vmem:[%s757] sm:$0xf]
      %v759 = vld [vmem:[%s757 + $0x4] sm:$0xf]
      %v760 = vld [vmem:[%s757 + $0x8] sm:$0xf]
      %v761 = vld [vmem:[%s757 + $0xc] sm:$0xf]
      %v762 = vld [vmem:[%s757 + $0x10] sm:$0xf]
      %v763 = vld [vmem:[%s757 + $0x14] sm:$0xf]
      %v764 = vld [vmem:[%s757 + $0x18] sm:$0xf]
      %v765 = vld [vmem:[%s757 + $0x1c] sm:$0xf]
      %v766 = vld [vmem:[%s757 + $0x20] sm:$0xf]
      %v767 = vld [vmem:[%s757 + $0x24] sm:$0xf]
      %v768 = vld [vmem:[%s757 + $0x28] sm:$0xf]
      %v769 = vld [vmem:[%s757 + $0x2c] sm:$0xf]
      %v770 = vld [vmem:[%s757 + $0x30] sm:$0xf]
      %v771 = vld [vmem:[%s757 + $0x34] sm:$0xf]
      %v772 = vld [vmem:[%s757 + $0x38] sm:$0xf]
      %v773 = vld [vmem:[%s757 + $0x3c] sm:$0xf]
      %v775 = vunpack.c.l.b16 %v756
      %v776 = vpack.c.b16 %v569, %v775
      %vm777 = vcmask 1046528
      %v778 = vrot.slane %v776, 1
      %v779 = vrot.slane %v579, 1
      %v780 = vsel %vm777, %v778, %v779
      %v781 = vrot.slane %v580, 1
      %v782 = vsel %vm777, %v779, %v781
      %v783 = vrot.slane %v581, 1
      %v784 = vsel %vm777, %v781, %v783
      %v785 = vrot.slane %v582, 1
      %v786 = vsel %vm777, %v783, %v785
      %v808 = vunpack.c.l.b16 %v758
      %v809 = vunpack.c.l.b16 %v759
      %v810 = vunpack.c.l.b16 %v760
      %v811 = vunpack.c.l.b16 %v761
      %v812 = vunpack.c.l.b16 %v762
      %v813 = vunpack.c.l.b16 %v763
      %v814 = vunpack.c.l.b16 %v764
      %v815 = vunpack.c.l.b16 %v765
      %v816 = vunpack.c.l.b16 %v766
      %v817 = vunpack.c.l.b16 %v767
      %v818 = vunpack.c.l.b16 %v768
      %v819 = vunpack.c.l.b16 %v769
      %v820 = vunpack.c.l.b16 %v770
      %v821 = vunpack.c.l.b16 %v771
      %v822 = vunpack.c.l.b16 %v772
      %v823 = vunpack.c.l.b16 %v773
      %v824 = vpack.c.b16 %v809, %v808
      %v825 = vpack.c.b16 %v811, %v810
      %v826 = vpack.c.b16 %v813, %v812
      %v827 = vpack.c.b16 %v815, %v814
      %v828 = vpack.c.b16 %v817, %v816
      %v829 = vpack.c.b16 %v819, %v818
      %v830 = vpack.c.b16 %v821, %v820
      %v831 = vpack.c.b16 %v823, %v822
      %840 = vmatprep.subr.bf16.mxu0 0
      %841 = vmatpush1.bf16.msra.mxu0 %v831
      %842 = vmatprep.subr.bf16.mxu0 0
      %843 = vmatpush1.bf16.msra.mxu0 %v830
      %844 = vmatprep.subr.bf16.mxu0 0
      %845 = vmatpush1.bf16.msra.mxu0 %v829
      %846 = vmatprep.subr.bf16.mxu0 0
      %847 = vmatpush1.bf16.msra.mxu0 %v828
      %848 = vmatprep.subr.bf16.mxu0 0
      %849 = vmatpush1.bf16.msra.mxu0 %v827
      %850 = vmatprep.subr.bf16.mxu0 0
      %851 = vmatpush1.bf16.msra.mxu0 %v826
      %852 = vmatprep.subr.bf16.mxu0 0
      %853 = vmatpush1.bf16.msra.mxu0 %v825
      %854 = vmatprep.subr.bf16.mxu0 0
      %855 = vmatpush1.bf16.msra.mxu0 %v824
      %856 = vmatprep.subr.bf16.mxu0 0
      %857 = vmatpush2.bf16.msra.mxu0 0
      %858 = vmatprep.subr.bf16.mxu0 0
      %859 = vmatpush2.bf16.msra.mxu0 0
      %860 = vmatprep.subr.bf16.mxu0 0
      %861 = vmatpush2.bf16.msra.mxu0 0
      %862 = vmatprep.subr.bf16.mxu0 0
      %863 = vmatpush2.bf16.msra.mxu0 0
      %864 = vmatprep.subr.bf16.mxu0 0
      %865 = vmatpush2.bf16.msra.mxu0 0
      %866 = vmatprep.subr.bf16.mxu0 0
      %867 = vmatpush2.bf16.msra.mxu0 0
      %868 = vmatprep.subr.bf16.mxu0 0
      %869 = vmatpush2.bf16.msra.mxu0 0
      %870 = vmatprep.subr.bf16.mxu0 0
      %871 = vmatpush2.bf16.msra.mxu0 0
      %872 = vmatprep.mubr.bf16.mxu0 0
      %873 = vmatmul.mubr.bf16.gmra.mxu0 %v780
      %v874 = vpop.f32.mrf.mxu0
      %v875 = vadd.f32 0.0, %v874
      %v876 = vpop.f32.mrf.mxu0
      %v877 = vpop.f32.mrf.mxu0
      %v878 = vadd.f32 0.0, %v877
      %v879 = vpop.f32.mrf.mxu0
      %880 = vmatprep.mubr.bf16.mxu0 0
      %881 = vmatmul.mubr.bf16.gmra.mxu0 %v782
      %v882 = vpop.f32.mrf.mxu0
      %v883 = vadd.f32 0.0, %v882
      %v884 = vpop.f32.mrf.mxu0
      %v885 = vpop.f32.mrf.mxu0
      %v886 = vadd.f32 0.0, %v885
      %v887 = vpop.f32.mrf.mxu0
      %888 = vmatprep.mubr.bf16.mxu0 0
      %889 = vmatmul.mubr.bf16.gmra.mxu0 %v784
      %v890 = vpop.f32.mrf.mxu0
      %v891 = vadd.f32 0.0, %v890
      %v892 = vpop.f32.mrf.mxu0
      %v893 = vpop.f32.mrf.mxu0
      %v894 = vadd.f32 0.0, %v893
      %v895 = vpop.f32.mrf.mxu0
      %896 = vmatprep.mubr.bf16.mxu0 0
      %897 = vmatmul.mubr.bf16.gmra.mxu0 %v786
      %v898 = vpop.f32.mrf.mxu0
      %v899 = vadd.f32 0.0, %v898
      %v900 = vpop.f32.mrf.mxu0
      %v901 = vpop.f32.mrf.mxu0
      %v902 = vadd.f32 0.0, %v901
      %v903 = vpop.f32.mrf.mxu0
      %904 = vmatprep.mubr.bf16.mxu0 0
      %905 = vmatmul.mubr.bf16.gmra.mxu0 %v785
      %v906 = vpop.f32.mrf.mxu0
      %v907 = vadd.f32 0.0, %v906
      %v908 = vpop.f32.mrf.mxu0
      %v909 = vpop.f32.mrf.mxu0
      %v910 = vpop.f32.mrf.mxu0
      %911 = vdwg.mxu0
      %v912 = vadd.f32 %v747, %v875
      %v913 = vadd.f32 %v748, %v878
      %v914 = vadd.f32 %v749, %v883
      %v915 = vadd.f32 %v750, %v886
      %v916 = vadd.f32 %v751, %v891
      %v917 = vadd.f32 %v752, %v894
      %v918 = vadd.f32 %v753, %v899
      %v919 = vadd.f32 %v754, %v902
      %v920 = vadd.f32 %v755, %v907
      %v921 = vld [vmem:[%s2] sm:$0x1]
      %v923 = vlaneseq
      %v924 = vshrl.u32 %v923, 7
      %v925 = vsub.s32 0, %v924
      %v926 = vrot.slane %v921, %v925
      %v928 = vadd.f32 %v912, %v926
      %v929 = vadd.f32 %v913, %v926
      %v930 = vadd.f32 %v914, %v926
      %v931 = vadd.f32 %v915, %v926
      %v932 = vadd.f32 %v916, %v926
      %v933 = vadd.f32 %v917, %v926
      %v934 = vadd.f32 %v918, %v926
      %v935 = vadd.f32 %v919, %v926
      %v936 = vadd.f32 %v920, %v926
      %v937 = vmax.f32 %v928, 0.0
      %v938 = vmax.f32 %v929, 0.0
      %v939 = vmax.f32 %v930, 0.0
      %v940 = vmax.f32 %v931, 0.0
      %v941 = vmax.f32 %v932, 0.0
      %v942 = vmax.f32 %v933, 0.0
      %v943 = vmax.f32 %v934, 0.0
      %v944 = vmax.f32 %v935, 0.0
      %v945 = vmax.f32 %v936, 0.0
      %v946 = vpack.c.bf16 %v938, %v937
      %v947 = vpack.c.bf16 %v940, %v939
      %v948 = vpack.c.bf16 %v942, %v941
      %v949 = vpack.c.bf16 %v944, %v943
      %v950 = vpack.c.bf16 %v945, %v945
      %v956 = vunpack.c.l.b16 %v946
      %v957 = vunpack.c.h.b16 %v946
      %v958 = vunpack.c.l.b16 %v947
      %v959 = vunpack.c.h.b16 %v947
      %v960 = vunpack.c.l.b16 %v948
      %v961 = vunpack.c.h.b16 %v948
      %v962 = vunpack.c.l.b16 %v949
      %v963 = vunpack.c.h.b16 %v949
      %v964 = vunpack.c.l.b16 %v950
      %v965 = vpack.c.b16 %v956, %v956
      %v966 = vpack.c.b16 %v957, %v957
      %v967 = vpack.c.b16 %v958, %v958
      %v968 = vpack.c.b16 %v959, %v959
      %v969 = vpack.c.b16 %v960, %v960
      %v970 = vpack.c.b16 %v961, %v961
      %v971 = vpack.c.b16 %v962, %v962
      %v972 = vpack.c.b16 %v963, %v963
      %v973 = vpack.c.b16 %v964, %v964
      %vm983 = vcmask 519168
      %984 = vst.msk [vmem:[%s170] sm:$0xf] %vm983, %v965
      %985 = vst.msk [vmem:[%s170 + $0x4] sm:$0xf] %vm983, %v966
      %986 = vst.msk [vmem:[%s170 + $0x8] sm:$0xf] %vm983, %v967
      %987 = vst.msk [vmem:[%s170 + $0xc] sm:$0xf] %vm983, %v968
      %988 = vst.msk [vmem:[%s170 + $0x10] sm:$0xf] %vm983, %v969
      %989 = vst.msk [vmem:[%s170 + $0x14] sm:$0xf] %vm983, %v970
      %990 = vst.msk [vmem:[%s170 + $0x18] sm:$0xf] %vm983, %v971
      %991 = vst.msk [vmem:[%s170 + $0x1c] sm:$0xf] %vm983, %v972
      %992 = vst.msk [vmem:[%s170 + $0x20] sm:$0xf] %vm983, %v973
      %p993 = scmp.lt.s32.totalorder %s14, 1
      %s994 = scalar_select %p993, %s14, 1
      %s995 = smul.addr %s994, 9
      %s996 = smul.addr %s995, 4
      %s997 = scalar_lea.vmem %s3, %s996
      // Predicated region
      $region33: #{forward.7} parent=31 // pred_check
        %p998 = pneg %p100
      $region34: #{forward.7} parent=31 // pred_check_branch
        %1000 = sbr.rel (%p998) target = $region36
      $region35: #{forward.7} parent=31 // pred_region
        _
      $region36: #{forward.7} parent=31 // pred_fallthru
        _
    $region32: #{forward.7} parent=5 // pred_fallthru
      _
    %p1001 = scmp.le.s32.totalorder 2, %s9
    // Predicated region
    $region37: #{forward.7} parent=5 // pred_check
      %p1002 = pneg %p1001
    $region38: #{forward.7} parent=5 // pred_check_branch
      %1004 = sbr.rel (%p1002) target = $region40
    $region39: #{forward.7} parent=5 // pred_region
      %s1005 = ssub.s32 %s9, 2
      // Predicated region
      $region41: #{forward.7} parent=39 // pred_check
        %p1006 = pneg %p106
      $region42: #{forward.7} parent=39 // pred_check_branch
        %1008 = sbr.rel (%p1006) target = $region44
      $region43: #{forward.7} parent=39 // pred_region
        %p1009 = scmp.lt.s32.totalorder %s15, 1
        %s1010 = scalar_select %p1009, %s15, 1
        %s1011 = smul.addr %s1010, 9
        %s1012 = smul.addr %s1011, 4
        %s1013 = scalar_lea.vmem %s3, %s1012
      $region44: #{forward.7} parent=39 // pred_fallthru
        _
    $region40: #{forward.7} parent=5 // pred_fallthru
      _
  $region6: #{forward.7} parent=0 // loop_footer
    %s13 = sadd.s32 1, %s9
  $region7: #{forward.7} parent=0 // loop_footer_branch
    %8 = sbr.rel target = $region3
  $region8: #{forward.7} parent=0 // loop_exit
    _

// kernel: forward.8
$region0: #{forward.8}
  #allocation0 [shape = 'u32[]', space=smem, size = 0x4, offset = 0x4, fixed_abs, tag = 'smem constant byte address 0x4 - core index']
  #allocation1 [shape = 'u32[144,128]{1,0:T(1,128)}', space=vmem, size = 0x12000, scoped, tag = 'internal scratch']
  %s0 = inlined_call_operand.vmem [shape: bf16[2,32,256], index: 0, kind: input, shape index: {}]
  %s1 = inlined_call_operand.vmem [shape: bf16[4,256,128], index: 1, kind: input, shape index: {}]
  %s2 = inlined_call_operand.vmem [shape: f32[1,128], index: 2, kind: input, shape index: {}]
  %s3 = inlined_call_operand.vmem [shape: bf16[2,24,128], index: 3, kind: output, shape index: {}]
  %s4 = sld [smem:[#allocation0]]
  $region45: #{forward.8} parent=0
    _
  %s6 = ssub.s32 1, %s4
  %s7 = scalar_select 0, %s6, %s4
  loop: start=0, step=1, limit=4
  $region2: #{forward.8} parent=0 // loop_pre_header
    _
  $region3: #{forward.8} parent=0 // loop_header
    %s9 = sphi 0, %s13
    %p10 = scmp.ge.s32.totalorder %s9, 4
    %s19 = sphi 0, %s21
    %s22 = sphi 0, %s19
    %s23 = sphi 0, %s22
    %s39 = sphi 0, %s23
    %s43 = sphi 0, %s43
    %s45 = sphi 0, %s43
    %s46 = sphi 0, %s45
    %s60 = sphi 0, %s46
    %s64 = sphi 0, %s64
    %s66 = sphi 0, %s64
    %s67 = sphi 0, %s66
    %s81 = sphi 0, %s67
    %s87 = sphi 0, %s89
    %s90 = sphi 0, %s87
    %s91 = sphi 0, %s90
    %s107 = sphi 0, %s91
  $region4: #{forward.8} parent=0 // loop_header_branch
    %12 = sbr.rel (%p10) target = $region8
  $region5: #{forward.8} parent=0 // loop_body
    %s14 = ssub.s32 %s9, 1
    %s15 = ssub.s32 %s9, 2
    %s16 = sadd.s32 %s9, 1
    %s17 = ssub.s32 %s9, %s16
    %p18 = scmp.eq.s32.totalorder %s17, 0
    %s20 = sadd.s32 %s19, 1
    %s21 = scalar_select %p18, %s19, %s20
    %p24 = pneg %p18
    %p25 = scmp.eq.s32.totalorder %s9, 1
    %p26 = por %p24, %p25
    %p27 = scmp.ne.s32.totalorder %s19, %s22
    %p28 = scmp.eq.s32.totalorder %s9, 0
    %p29 = por %p27, %p28
    %p30 = scmp.ne.s32.totalorder %s19, %s22
    %p31 = scmp.eq.s32.totalorder %s14, 1
    %p32 = por %p30, %p31
    %p33 = scmp.ne.s32.totalorder %s22, %s23
    %p34 = scmp.eq.s32.totalorder %s14, 0
    %p35 = por %p33, %p34
    %p36 = scmp.ne.s32.totalorder %s22, %s23
    %p37 = scmp.eq.s32.totalorder %s15, 1
    %p38 = por %p36, %p37
    %p40 = scmp.ne.s32.totalorder %s23, %s39
    %p41 = scmp.eq.s32.totalorder %s15, 0
    %p42 = por %p40, %p41
    %s44 = sadd.s32 %s43, 1
    %p47 = scmp.eq.s32.totalorder %s9, 1
    %p48 = scmp.ne.s32.totalorder %s43, %s45
    %p49 = scmp.eq.s32.totalorder %s9, 0
    %p50 = por %p48, %p49
    %p51 = scmp.ne.s32.totalorder %s43, %s45
    %p52 = scmp.eq.s32.totalorder %s14, 1
    %p53 = por %p51, %p52
    %p54 = scmp.ne.s32.totalorder %s45, %s46
    %p55 = scmp.eq.s32.totalorder %s14, 0
    %p56 = por %p54, %p55
    %p57 = scmp.ne.s32.totalorder %s45, %s46
    %p58 = scmp.eq.s32.totalorder %s15, 1
    %p59 = por %p57, %p58
    %p61 = scmp.ne.s32.totalorder %s46, %s60
    %p62 = scmp.eq.s32.totalorder %s15, 0
    %p63 = por %p61, %p62
    %s65 = sadd.s32 %s64, 1
    %p68 = scmp.eq.s32.totalorder %s9, 1
    %p69 = scmp.ne.s32.totalorder %s64, %s66
    %p70 = scmp.eq.s32.totalorder %s9, 0
    %p71 = por %p69, %p70
    %p72 = scmp.ne.s32.totalorder %s64, %s66
    %p73 = scmp.eq.s32.totalorder %s14, 1
    %p74 = por %p72, %p73
    %p75 = scmp.ne.s32.totalorder %s66, %s67
    %p76 = scmp.eq.s32.totalorder %s14, 0
    %p77 = por %p75, %p76
    %p78 = scmp.ne.s32.totalorder %s66, %s67
    %p79 = scmp.eq.s32.totalorder %s15, 1
    %p80 = por %p78, %p79
    %p82 = scmp.ne.s32.totalorder %s67, %s81
    %p83 = scmp.eq.s32.totalorder %s15, 0
    %p84 = por %p82, %p83
    %s85 = ssub.s32 %s9, %s16
    %p86 = scmp.eq.s32.totalorder %s85, 0
    %s88 = sadd.s32 %s87, 1
    %s89 = scalar_select %p86, %s87, %s88
    %p92 = pneg %p86
    %p93 = scmp.eq.s32.totalorder %s9, 1
    %p94 = por %p92, %p93
    %p95 = scmp.ne.s32.totalorder %s87, %s90
    %p96 = scmp.eq.s32.totalorder %s9, 0
    %p97 = por %p95, %p96
    %p98 = scmp.ne.s32.totalorder %s87, %s90
    %p99 = scmp.eq.s32.totalorder %s14, 1
    %p100 = por %p98, %p99
    %p101 = scmp.ne.s32.totalorder %s90, %s91
    %p102 = scmp.eq.s32.totalorder %s14, 0
    %p103 = por %p101, %p102
    %p104 = scmp.ne.s32.totalorder %s90, %s91
    %p105 = scmp.eq.s32.totalorder %s15, 1
    %p106 = por %p104, %p105
    %p108 = scmp.ne.s32.totalorder %s91, %s107
    %p109 = scmp.eq.s32.totalorder %s15, 0
    %p110 = por %p108, %p109
    %p111 = scmp.le.s32.totalorder 1, %s9
    %p112 = scmp.lt.s32.totalorder %s9, 3
    %p113 = pnand %p111, %p112
    %p114 = pneg %p113
    // Predicated region
    $region9: #{forward.8} parent=5 // pred_check
      _
    $region10: #{forward.8} parent=5 // pred_check_branch
      %116 = sbr.rel (%p113) target = $region12
    $region11: #{forward.8} parent=5 // pred_region
      %s117 = ssub.s32 %s9, 1
      // Predicated region
      $region13: #{forward.8} parent=11 // pred_check
        %p118 = pneg %p56
      $region14: #{forward.8} parent=11 // pred_check_branch
        %120 = sbr.rel (%p118) target = $region16
      $region15: #{forward.8} parent=11 // pred_region
        _
      $region16: #{forward.8} parent=11 // pred_fallthru
        _
      // Predicated region
      $region17: #{forward.8} parent=11 // pred_check
        %p121 = pneg %p77
      $region18: #{forward.8} parent=11 // pred_check_branch
        %123 = sbr.rel (%p121) target = $region20
      $region19: #{forward.8} parent=11 // pred_region
        _
      $region20: #{forward.8} parent=11 // pred_fallthru
        _
    $region12: #{forward.8} parent=5 // pred_fallthru
      _
    %p124 = scmp.lt.s32.totalorder %s9, 2
    // Predicated region
    $region21: #{forward.8} parent=5 // pred_check
      %p125 = pneg %p124
    $region22: #{forward.8} parent=5 // pred_check_branch
      %127 = sbr.rel (%p125) target = $region24
    $region23: #{forward.8} parent=5 // pred_region
      // Predicated region
      $region25: #{forward.8} parent=23 // pred_check
        %p128 = pneg %p29
      $region26: #{forward.8} parent=23 // pred_check_branch
        %130 = sbr.rel (%p128) target = $region28
      $region27: #{forward.8} parent=23 // pred_region
        %p131 = scmp.lt.s32.totalorder %s9, 1
        %s132 = scalar_select %p131, %s9, 1
        %s133 = smul.addr %s132, 8
        %s134 = smul.addr %s133, 4
        %s135 = scalar_lea.vmem %s0, %s134
      $region28: #{forward.8} parent=23 // pred_fallthru
        _
    $region24: #{forward.8} parent=5 // pred_fallthru
      _
    %p136 = scmp.le.s32.totalorder 1, %s9
    %p137 = scmp.lt.s32.totalorder %s9, 3
    %p138 = pnand %p136, %p137
    %p139 = pneg %p138
    // Predicated region
    $region29: #{forward.8} parent=5 // pred_check
      _
    $region30: #{forward.8} parent=5 // pred_check_branch
      %141 = sbr.rel (%p138) target = $region32
    $region31: #{forward.8} parent=5 // pred_region
      %s142 = ssub.s32 %s9, 1
      %p143 = scmp.lt.s32.totalorder %s14, 1
      %s144 = scalar_select %p143, %s14, 1
      %s145 = smul.addr %s144, 8
      %s146 = smul.addr %s145, 4
      %s147 = scalar_lea.vmem %s0, %s146
      %p148 = pneg %p35
      %p149 = pneg %p32
      %p150 = pneg %p56
      %p151 = pneg %p53
      %p152 = pneg %p77
      %p153 = pneg %p74
      %p154 = pneg %p103
      %p155 = pneg %p100
      %p156 = scmp.lt.s32.totalorder %s14, 1
      %s157 = scalar_select %p156, %s14, 1
      %s158 = smul.addr %s157, 3
      %s159 = smul.addr %s158, 4
      %s160 = scalar_lea.vmem %s3, %s159
      %p161 = scmp.lt.s32.totalorder %s14, 1
      %s162 = scalar_select %p161, %s14, 1
      %s163 = smul.addr %s162, 8
      %s164 = smul.addr %s163, 4
      %s165 = scalar_lea.vmem %s0, %s164
      %p166 = scmp.lt.s32.totalorder %s14, 1
      %s167 = scalar_select %p166, %s14, 1
      %s168 = smul.addr %s167, 3
      %s169 = smul.addr %s168, 4
      %s170 = scalar_lea.vmem %s3, %s169
      %v172 = vld [vmem:[%s165] sm:$0xff]
      %v173 = vld [vmem:[%s165 + $0x8] sm:$0xff]
      %v174 = vld [vmem:[%s165 + $0x10] sm:$0xff]
      %v175 = vld [vmem:[%s1] sm:$0xf]
      %v176 = vld [vmem:[%s1 + $0x4] sm:$0xf]
      %v177 = vld [vmem:[%s1 + $0x8] sm:$0xf]
      %v178 = vld [vmem:[%s1 + $0xc] sm:$0xf]
      %v179 = vld [vmem:[%s1 + $0x10] sm:$0xf]
      %v180 = vld [vmem:[%s1 + $0x14] sm:$0xf]
      %v181 = vld [vmem:[%s1 + $0x18] sm:$0xf]
      %v182 = vld [vmem:[%s1 + $0x1c] sm:$0xf]
      %v183 = vld [vmem:[%s1 + $0x20] sm:$0xf]
      %v184 = vld [vmem:[%s1 + $0x24] sm:$0xf]
      %v185 = vld [vmem:[%s1 + $0x28] sm:$0xf]
      %v186 = vld [vmem:[%s1 + $0x2c] sm:$0xf]
      %v187 = vld [vmem:[%s1 + $0x30] sm:$0xf]
      %v188 = vld [vmem:[%s1 + $0x34] sm:$0xf]
      %v189 = vld [vmem:[%s1 + $0x38] sm:$0xf]
      %v190 = vld [vmem:[%s1 + $0x3c] sm:$0xf]
      %v191 = vld [vmem:[%s1 + $0x40] sm:$0xf]
      %v192 = vld [vmem:[%s1 + $0x44] sm:$0xf]
      %v193 = vld [vmem:[%s1 + $0x48] sm:$0xf]
      %v194 = vld [vmem:[%s1 + $0x4c] sm:$0xf]
      %v195 = vld [vmem:[%s1 + $0x50] sm:$0xf]
      %v196 = vld [vmem:[%s1 + $0x54] sm:$0xf]
      %v197 = vld [vmem:[%s1 + $0x58] sm:$0xf]
      %v198 = vld [vmem:[%s1 + $0x5c] sm:$0xf]
      %v199 = vld [vmem:[%s1 + $0x60] sm:$0xf]
      %v200 = vld [vmem:[%s1 + $0x64] sm:$0xf]
      %v201 = vld [vmem:[%s1 + $0x68] sm:$0xf]
      %v202 = vld [vmem:[%s1 + $0x6c] sm:$0xf]
      %v203 = vld [vmem:[%s1 + $0x70] sm:$0xf]
      %v204 = vld [vmem:[%s1 + $0x74] sm:$0xf]
      %v205 = vld [vmem:[%s1 + $0x78] sm:$0xf]
      %v206 = vld [vmem:[%s1 + $0x7c] sm:$0xf]
      %v207 = vld [vmem:[%s165] sm:$0xff]
      %v208 = vld [vmem:[%s165 + $0x8] sm:$0xff]
      %v209 = vld [vmem:[%s165 + $0x10] sm:$0xff]
      %v210 = vld [vmem:[%s165 + $0x18] sm:$0x11]
      %s211 = scalar_lea.vmem %s1, 128
      %v212 = vld [vmem:[%s211] sm:$0xf]
      %v213 = vld [vmem:[%s211 + $0x4] sm:$0xf]
      %v214 = vld [vmem:[%s211 + $0x8] sm:$0xf]
      %v215 = vld [vmem:[%s211 + $0xc] sm:$0xf]
      %v216 = vld [vmem:[%s211 + $0x10] sm:$0xf]
      %v217 = vld [vmem:[%s211 + $0x14] sm:$0xf]
      %v218 = vld [vmem:[%s211 + $0x18] sm:$0xf]
      %v219 = vld [vmem:[%s211 + $0x1c] sm:$0xf]
      %v220 = vld [vmem:[%s211 + $0x20] sm:$0xf]
      %v221 = vld [vmem:[%s211 + $0x24] sm:$0xf]
      %v222 = vld [vmem:[%s211 + $0x28] sm:$0xf]
      %v223 = vld [vmem:[%s211 + $0x2c] sm:$0xf]
      %v224 = vld [vmem:[%s211 + $0x30] sm:$0xf]
      %v225 = vld [vmem:[%s211 + $0x34] sm:$0xf]
      %v226 = vld [vmem:[%s211 + $0x38] sm:$0xf]
      %v227 = vld [vmem:[%s211 + $0x3c] sm:$0xf]
      %v228 = vld [vmem:[%s211 + $0x40] sm:$0xf]
      %v229 = vld [vmem:[%s211 + $0x44] sm:$0xf]
      %v230 = vld [vmem:[%s211 + $0x48] sm:$0xf]
      %v231 = vld [vmem:[%s211 + $0x4c] sm:$0xf]
      %v232 = vld [vmem:[%s211 + $0x50] sm:$0xf]
      %v233 = vld [vmem:[%s211 + $0x54] sm:$0xf]
      %v234 = vld [vmem:[%s211 + $0x58] sm:$0xf]
      %v235 = vld [vmem:[%s211 + $0x5c] sm:$0xf]
      %v236 = vld [vmem:[%s211 + $0x60] sm:$0xf]
      %v237 = vld [vmem:[%s211 + $0x64] sm:$0xf]
      %v238 = vld [vmem:[%s211 + $0x68] sm:$0xf]
      %v239 = vld [vmem:[%s211 + $0x6c] sm:$0xf]
      %v240 = vld [vmem:[%s211 + $0x70] sm:$0xf]
      %v241 = vld [vmem:[%s211 + $0x74] sm:$0xf]
      %v242 = vld [vmem:[%s211 + $0x78] sm:$0xf]
      %v243 = vld [vmem:[%s211 + $0x7c] sm:$0xf]
      %v248 = vunpack.c.l.b16 %v207
      %v249 = vunpack.c.h.b16 %v207
      %v250 = vunpack.c.l.b16 %v208
      %v251 = vunpack.c.h.b16 %v208
      %v252 = vunpack.c.l.b16 %v209
      %v253 = vunpack.c.h.b16 %v209
      %v254 = vunpack.c.l.b16 %v210
      %v255 = vunpack.c.h.b16 %v210
      %v256 = vpack.c.b16 %v250, %v248
      %v257 = vpack.c.b16 %v251, %v249
      %v258 = vpack.c.b16 %v254, %v252
      %v259 = vpack.c.b16 %v255, %v253
      %vm260 = vsmask.f32 7424
      %v262 = vshrl.u32 %v256, 16
      %v264 = vshll.u32 %v256, 16
      %v266 = vrot.slane %v264, 1
      %v267 = vor.u32 %v262, %v266
      %v269 = vshll.u32 %v258, 16
      %v271 = vrot.slane %v269, 1
      %v272 = vsel %vm260, %v267, %v271
      %v274 = vshrl.u32 %v257, 16
      %v276 = vshll.u32 %v257, 16
      %v278 = vrot.slane %v276, 1
      %v279 = vor.u32 %v274, %v278
      %v281 = vshll.u32 %v259, 16
      %v283 = vrot.slane %v281, 1
      %v284 = vsel %vm260, %v279, %v283
      %v285 = vshrl.u32 %v258, 16
      %v287 = vor.u32 %v285, %v271
      %v288 = vshrl.u32 %v259, 16
      %v290 = vor.u32 %v288, %v283
      %v327 = vunpack.c.l.b16 %v212
      %v328 = vunpack.c.l.b16 %v213
      %v329 = vunpack.c.l.b16 %v214
      %v330 = vunpack.c.l.b16 %v215
      %v331 = vunpack.c.l.b16 %v216
      %v332 = vunpack.c.l.b16 %v217
      %v333 = vunpack.c.l.b16 %v218
      %v334 = vunpack.c.l.b16 %v219
      %v335 = vunpack.c.l.b16 %v220
      %v336 = vunpack.c.l.b16 %v221
      %v337 = vunpack.c.l.b16 %v222
      %v338 = vunpack.c.l.b16 %v223
      %v339 = vunpack.c.l.b16 %v224
      %v340 = vunpack.c.l.b16 %v225
      %v341 = vunpack.c.l.b16 %v226
      %v342 = vunpack.c.l.b16 %v227
      %v343 = vunpack.c.l.b16 %v228
      %v344 = vunpack.c.l.b16 %v229
      %v345 = vunpack.c.l.b16 %v230
      %v346 = vunpack.c.l.b16 %v231
      %v347 = vunpack.c.l.b16 %v232
      %v348 = vunpack.c.l.b16 %v233
      %v349 = vunpack.c.l.b16 %v234
      %v350 = vunpack.c.l.b16 %v235
      %v351 = vunpack.c.l.b16 %v236
      %v352 = vunpack.c.l.b16 %v237
      %v353 = vunpack.c.l.b16 %v238
      %v354 = vunpack.c.l.b16 %v239
      %v355 = vunpack.c.l.b16 %v240
      %v356 = vunpack.c.l.b16 %v241
      %v357 = vunpack.c.l.b16 %v242
      %v358 = vunpack.c.l.b16 %v243
      %v359 = vpack.c.b16 %v328, %v327
      %v360 = vpack.c.b16 %v330, %v329
      %v361 = vpack.c.b16 %v332, %v331
      %v362 = vpack.c.b16 %v334, %v333
      %v363 = vpack.c.b16 %v336, %v335
      %v364 = vpack.c.b16 %v338, %v337
      %v365 = vpack.c.b16 %v340, %v339
      %v366 = vpack.c.b16 %v342, %v341
      %v367 = vpack.c.b16 %v344, %v343
      %v368 = vpack.c.b16 %v346, %v345
      %v369 = vpack.c.b16 %v348, %v347
      %v370 = vpack.c.b16 %v350, %v349
      %v371 = vpack.c.b16 %v352, %v351
      %v372 = vpack.c.b16 %v354, %v353
      %v373 = vpack.c.b16 %v356, %v355
      %v374 = vpack.c.b16 %v358, %v357
      %391 = vmatprep.subr.bf16.mxu0 0
      %392 = vmatpush1.bf16.msra.mxu0 %v366
      %393 = vmatprep.subr.bf16.mxu0 0
      %394 = vmatpush1.bf16.msra.mxu0 %v365
      %395 = vmatprep.subr.bf16.mxu0 0
      %396 = vmatpush1.bf16.msra.mxu0 %v364
      %397 = vmatprep.subr.bf16.mxu0 0
      %398 = vmatpush1.bf16.msra.mxu0 %v363
      %399 = vmatprep.subr.bf16.mxu0 0
      %400 = vmatpush1.bf16.msra.mxu0 %v362
      %401 = vmatprep.subr.bf16.mxu0 0
      %402 = vmatpush1.bf16.msra.mxu0 %v361
      %403 = vmatprep.subr.bf16.mxu0 0
      %404 = vmatpush1.bf16.msra.mxu0 %v360
      %405 = vmatprep.subr.bf16.mxu0 0
      %406 = vmatpush1.bf16.msra.mxu0 %v359
      %407 = vmatprep.subr.bf16.mxu0 0
      %408 = vmatpush2.bf16.msra.mxu0 %v374
      %409 = vmatprep.subr.bf16.mxu0 0
      %410 = vmatpush2.bf16.msra.mxu0 %v373
      %411 = vmatprep.subr.bf16.mxu0 0
      %412 = vmatpush2.bf16.msra.mxu0 %v372
      %413 = vmatprep.subr.bf16.mxu0 0
      %414 = vmatpush2.bf16.msra.mxu0 %v371
      %415 = vmatprep.subr.bf16.mxu0 0
      %416 = vmatpush2.bf16.msra.mxu0 %v370
      %417 = vmatprep.subr.bf16.mxu0 0
      %418 = vmatpush2.bf16.msra.mxu0 %v369
      %419 = vmatprep.subr.bf16.mxu0 0
      %420 = vmatpush2.bf16.msra.mxu0 %v368
      %421 = vmatprep.subr.bf16.mxu0 0
      %422 = vmatpush2.bf16.msra.mxu0 %v367
      %423 = vmatprep.mubr.bf16.mxu0 %v284
      %424 = vmatmul.mubr.bf16.gmra.mxu0 %v272
      %v425 = vpop.f32.mrf.mxu0
      %v426 = vadd.f32 0.0, %v425
      %v427 = vpop.f32.mrf.mxu0
      %v428 = vpop.f32.mrf.mxu0
      %v429 = vadd.f32 0.0, %v428
      %v430 = vpop.f32.mrf.mxu0
      %431 = vmatprep.mubr.bf16.mxu0 %v290
      %432 = vmatmul.mubr.bf16.gmra.mxu0 %v287
      %v433 = vpop.f32.mrf.mxu0
      %v434 = vadd.f32 0.0, %v433
      %v435 = vpop.f32.mrf.mxu0
      %v436 = vpop.f32.mrf.mxu0
      %v437 = vpop.f32.mrf.mxu0
      %438 = vdwg.mxu0
      %v442 = vunpack.c.l.b16 %v172
      %v443 = vunpack.c.h.b16 %v172
      %v444 = vunpack.c.l.b16 %v173
      %v445 = vunpack.c.h.b16 %v173
      %v446 = vunpack.c.l.b16 %v174
      %v447 = vunpack.c.h.b16 %v174
      %v448 = vpack.c.b16 %v444, %v442
      %v449 = vpack.c.b16 %v445, %v443
      %v450 = vpack.c.b16 %v446, %v446
      %v451 = vpack.c.b16 %v447, %v447
      %v488 = vunpack.c.l.b16 %v175
      %v489 = vunpack.c.l.b16 %v176
      %v490 = vunpack.c.l.b16 %v177
      %v491 = vunpack.c.l.b16 %v178
      %v492 = vunpack.c.l.b16 %v179
      %v493 = vunpack.c.l.b16 %v180
      %v494 = vunpack.c.l.b16 %v181
      %v495 = vunpack.c.l.b16 %v182
      %v496 = vunpack.c.l.b16 %v183
      %v497 = vunpack.c.l.b16 %v184
      %v498 = vunpack.c.l.b16 %v185
      %v499 = vunpack.c.l.b16 %v186
      %v500 = vunpack.c.l.b16 %v187
      %v501 = vunpack.c.l.b16 %v188
      %v502 = vunpack.c.l.b16 %v189
      %v503 = vunpack.c.l.b16 %v190
      %v504 = vunpack.c.l.b16 %v191
      %v505 = vunpack.c.l.b16 %v192
      %v506 = vunpack.c.l.b16 %v193
      %v507 = vunpack.c.l.b16 %v194
      %v508 = vunpack.c.l.b16 %v195
      %v509 = vunpack.c.l.b16 %v196
      %v510 = vunpack.c.l.b16 %v197
      %v511 = vunpack.c.l.b16 %v198
      %v512 = vunpack.c.l.b16 %v199
      %v513 = vunpack.c.l.b16 %v200
      %v514 = vunpack.c.l.b16 %v201
      %v515 = vunpack.c.l.b16 %v202
      %v516 = vunpack.c.l.b16 %v203
      %v517 = vunpack.c.l.b16 %v204
      %v518 = vunpack.c.l.b16 %v205
      %v519 = vunpack.c.l.b16 %v206
      %v520 = vpack.c.b16 %v489, %v488
      %v521 = vpack.c.b16 %v491, %v490
      %v522 = vpack.c.b16 %v493, %v492
      %v523 = vpack.c.b16 %v495, %v494
      %v524 = vpack.c.b16 %v497, %v496
      %v525 = vpack.c.b16 %v499, %v498
      %v526 = vpack.c.b16 %v501, %v500
      %v527 = vpack.c.b16 %v503, %v502
      %v528 = vpack.c.b16 %v505, %v504
      %v529 = vpack.c.b16 %v507, %v506
      %v530 = vpack.c.b16 %v509, %v508
      %v531 = vpack.c.b16 %v511, %v510
      %v532 = vpack.c.b16 %v513, %v512
      %v533 = vpack.c.b16 %v515, %v514
      %v534 = vpack.c.b16 %v517, %v516
      %v535 = vpack.c.b16 %v519, %v518
      %552 = vmatprep.subr.bf16.mxu0 0
      %553 = vmatpush1.bf16.msra.mxu0 %v527
      %554 = vmatprep.subr.bf16.mxu0 0
      %555 = vmatpush1.bf16.msra.mxu0 %v526
      %556 = vmatprep.subr.bf16.mxu0 0
      %557 = vmatpush1.bf16.msra.mxu0 %v525
      %558 = vmatprep.subr.bf16.mxu0 0
      %559 = vmatpush1.bf16.msra.mxu0 %v524
      %560 = vmatprep.subr.bf16.mxu0 0
      %561 = vmatpush1.bf16.msra.mxu0 %v523
      %562 = vmatprep.subr.bf16.mxu0 0
      %563 = vmatpush1.bf16.msra.mxu0 %v522
      %564 = vmatprep.subr.bf16.mxu0 0
      %565 = vmatpush1.bf16.msra.mxu0 %v521
      %566 = vmatprep.subr.bf16.mxu0 0
      %567 = vmatpush1.bf16.msra.mxu0 %v520
      %568 = vmatprep.subr.bf16.mxu0 0
      %569 = vmatpush2.bf16.msra.mxu0 %v535
      %570 = vmatprep.subr.bf16.mxu0 0
      %571 = vmatpush2.bf16.msra.mxu0 %v534
      %572 = vmatprep.subr.bf16.mxu0 0
      %573 = vmatpush2.bf16.msra.mxu0 %v533
      %574 = vmatprep.subr.bf16.mxu0 0
      %575 = vmatpush2.bf16.msra.mxu0 %v532
      %576 = vmatprep.subr.bf16.mxu0 0
      %577 = vmatpush2.bf16.msra.mxu0 %v531
      %578 = vmatprep.subr.bf16.mxu0 0
      %579 = vmatpush2.bf16.msra.mxu0 %v530
      %580 = vmatprep.subr.bf16.mxu0 0
      %581 = vmatpush2.bf16.msra.mxu0 %v529
      %582 = vmatprep.subr.bf16.mxu0 0
      %583 = vmatpush2.bf16.msra.mxu0 %v528
      %584 = vmatprep.mubr.bf16.mxu0 %v449
      %585 = vmatmul.mubr.bf16.gmra.mxu0 %v448
      %v586 = vpop.f32.mrf.mxu0
      %v587 = vadd.f32 %v426, %v586
      %v588 = vpop.f32.mrf.mxu0
      %v589 = vpop.f32.mrf.mxu0
      %v590 = vadd.f32 %v429, %v589
      %v591 = vpop.f32.mrf.mxu0
      %592 = vmatprep.mubr.bf16.mxu0 %v451
      %593 = vmatmul.mubr.bf16.gmra.mxu0 %v450
      %v594 = vpop.f32.mrf.mxu0
      %v595 = vadd.f32 %v434, %v594
      %v596 = vpop.f32.mrf.mxu0
      %v597 = vpop.f32.mrf.mxu0
      %v598 = vpop.f32.mrf.mxu0
      %599 = vdwg.mxu0
      %v600 = vld [vmem:[%s165] sm:$0xcc]
      %v601 = vld [vmem:[%s165 + $0x18] sm:$0x77]
      %s602 = scalar_lea.vmem %s1, 256
      %v603 = vld [vmem:[%s602] sm:$0xf]
      %v604 = vld [vmem:[%s602 + $0x4] sm:$0xf]
      %v605 = vld [vmem:[%s602 + $0x8] sm:$0xf]
      %v606 = vld [vmem:[%s602 + $0xc] sm:$0xf]
      %v607 = vld [vmem:[%s602 + $0x10] sm:$0xf]
      %v608 = vld [vmem:[%s602 + $0x14] sm:$0xf]
      %v609 = vld [vmem:[%s602 + $0x18] sm:$0xf]
      %v610 = vld [vmem:[%s602 + $0x1c] sm:$0xf]
      %v611 = vld [vmem:[%s602 + $0x20] sm:$0xf]
      %v612 = vld [vmem:[%s602 + $0x24] sm:$0xf]
      %v613 = vld [vmem:[%s602 + $0x28] sm:$0xf]
      %v614 = vld [vmem:[%s602 + $0x2c] sm:$0xf]
      %v615 = vld [vmem:[%s602 + $0x30] sm:$0xf]
      %v616 = vld [vmem:[%s602 + $0x34] sm:$0xf]
      %v617 = vld [vmem:[%s602 + $0x38] sm:$0xf]
      %v618 = vld [vmem:[%s602 + $0x3c] sm:$0xf]
      %v619 = vld [vmem:[%s602 + $0x40] sm:$0xf]
      %v620 = vld [vmem:[%s602 + $0x44] sm:$0xf]
      %v621 = vld [vmem:[%s602 + $0x48] sm:$0xf]
      %v622 = vld [vmem:[%s602 + $0x4c] sm:$0xf]
      %v623 = vld [vmem:[%s602 + $0x50] sm:$0xf]
      %v624 = vld [vmem:[%s602 + $0x54] sm:$0xf]
      %v625 = vld [vmem:[%s602 + $0x58] sm:$0xf]
      %v626 = vld [vmem:[%s602 + $0x5c] sm:$0xf]
      %v627 = vld [vmem:[%s602 + $0x60] sm:$0xf]
      %v628 = vld [vmem:[%s602 + $0x64] sm:$0xf]
      %v629 = vld [vmem:[%s602 + $0x68] sm:$0xf]
      %v630 = vld [vmem:[%s602 + $0x6c] sm:$0xf]
      %v631 = vld [vmem:[%s602 + $0x70] sm:$0xf]
      %v632 = vld [vmem:[%s602 + $0x74] sm:$0xf]
      %v633 = vld [vmem:[%s602 + $0x78] sm:$0xf]
      %v634 = vld [vmem:[%s602 + $0x7c] sm:$0xf]
      %v637 = vunpack.c.l.b16 %v600
      %v638 = vunpack.c.h.b16 %v600
      %v639 = vunpack.c.l.b16 %v601
      %v640 = vunpack.c.h.b16 %v601
      %v641 = vpack.c.b16 %v250, %v637
      %v642 = vpack.c.b16 %v251, %v638
      %v643 = vpack.c.b16 %v639, %v252
      %v644 = vpack.c.b16 %v640, %v253
      %vm645 = vsmask.f32 5376
      %v647 = vshrl.u32 %v641, 16
      %v649 = vrot.slane %v647, 2
      %v650 = vshll.u32 %v641, 16
      %v652 = vrot.slane %v650, 3
      %v653 = vor.u32 %v649, %v652
      %v655 = vshrl.u32 %v643, 16
      %v657 = vrot.slane %v655, 2
      %v658 = vshll.u32 %v643, 16
      %v660 = vrot.slane %v658, 3
      %v661 = vor.u32 %v657, %v660
      %v662 = vsel %vm645, %v653, %v661
      %v664 = vshrl.u32 %v642, 16
      %v666 = vrot.slane %v664, 2
      %v667 = vshll.u32 %v642, 16
      %v669 = vrot.slane %v667, 3
      %v670 = vor.u32 %v666, %v669
      %v672 = vshrl.u32 %v644, 16
      %v674 = vrot.slane %v672, 2
      %v675 = vshll.u32 %v644, 16
      %v677 = vrot.slane %v675, 3
      %v678 = vor.u32 %v674, %v677
      %v679 = vsel %vm645, %v670, %v678
      %v716 = vunpack.c.l.b16 %v603
      %v717 = vunpack.c.l.b16 %v604
      %v718 = vunpack.c.l.b16 %v605
      %v719 = vunpack.c.l.b16 %v606
      %v720 = vunpack.c.l.b16 %v607
      %v721 = vunpack.c.l.b16 %v608
      %v722 = vunpack.c.l.b16 %v609
      %v723 = vunpack.c.l.b16 %v610
      %v724 = vunpack.c.l.b16 %v611
      %v725 = vunpack.c.l.b16 %v612
      %v726 = vunpack.c.l.b16 %v613
      %v727 = vunpack.c.l.b16 %v614
      %v728 = vunpack.c.l.b16 %v615
      %v729 = vunpack.c.l.b16 %v616
      %v730 = vunpack.c.l.b16 %v617
      %v731 = vunpack.c.l.b16 %v618
      %v732 = vunpack.c.l.b16 %v619
      %v733 = vunpack.c.l.b16 %v620
      %v734 = vunpack.c.l.b16 %v621
      %v735 = vunpack.c.l.b16 %v622
      %v736 = vunpack.c.l.b16 %v623
      %v737 = vunpack.c.l.b16 %v624
      %v738 = vunpack.c.l.b16 %v625
      %v739 = vunpack.c.l.b16 %v626
      %v740 = vunpack.c.l.b16 %v627
      %v741 = vunpack.c.l.b16 %v628
      %v742 = vunpack.c.l.b16 %v629
      %v743 = vunpack.c.l.b16 %v630
      %v744 = vunpack.c.l.b16 %v631
      %v745 = vunpack.c.l.b16 %v632
      %v746 = vunpack.c.l.b16 %v633
      %v747 = vunpack.c.l.b16 %v634
      %v748 = vpack.c.b16 %v717, %v716
      %v749 = vpack.c.b16 %v719, %v718
      %v750 = vpack.c.b16 %v721, %v720
      %v751 = vpack.c.b16 %v723, %v722
      %v752 = vpack.c.b16 %v725, %v724
      %v753 = vpack.c.b16 %v727, %v726
      %v754 = vpack.c.b16 %v729, %v728
      %v755 = vpack.c.b16 %v731, %v730
      %v756 = vpack.c.b16 %v733, %v732
      %v757 = vpack.c.b16 %v735, %v734
      %v758 = vpack.c.b16 %v737, %v736
      %v759 = vpack.c.b16 %v739, %v738
      %v760 = vpack.c.b16 %v741, %v740
      %v761 = vpack.c.b16 %v743, %v742
      %v762 = vpack.c.b16 %v745, %v744
      %v763 = vpack.c.b16 %v747, %v746
      %780 = vmatprep.subr.bf16.mxu0 0
      %781 = vmatpush1.bf16.msra.mxu0 %v755
      %782 = vmatprep.subr.bf16.mxu0 0
      %783 = vmatpush1.bf16.msra.mxu0 %v754
      %784 = vmatprep.subr.bf16.mxu0 0
      %785 = vmatpush1.bf16.msra.mxu0 %v753
      %786 = vmatprep.subr.bf16.mxu0 0
      %787 = vmatpush1.bf16.msra.mxu0 %v752
      %788 = vmatprep.subr.bf16.mxu0 0
      %789 = vmatpush1.bf16.msra.mxu0 %v751
      %790 = vmatprep.subr.bf16.mxu0 0
      %791 = vmatpush1.bf16.msra.mxu0 %v750
      %792 = vmatprep.subr.bf16.mxu0 0
      %793 = vmatpush1.bf16.msra.mxu0 %v749
      %794 = vmatprep.subr.bf16.mxu0 0
      %795 = vmatpush1.bf16.msra.mxu0 %v748
      %796 = vmatprep.subr.bf16.mxu0 0
      %797 = vmatpush2.bf16.msra.mxu0 %v763
      %798 = vmatprep.subr.bf16.mxu0 0
      %799 = vmatpush2.bf16.msra.mxu0 %v762
      %800 = vmatprep.subr.bf16.mxu0 0
      %801 = vmatpush2.bf16.msra.mxu0 %v761
      %802 = vmatprep.subr.bf16.mxu0 0
      %803 = vmatpush2.bf16.msra.mxu0 %v760
      %804 = vmatprep.subr.bf16.mxu0 0
      %805 = vmatpush2.bf16.msra.mxu0 %v759
      %806 = vmatprep.subr.bf16.mxu0 0
      %807 = vmatpush2.bf16.msra.mxu0 %v758
      %808 = vmatprep.subr.bf16.mxu0 0
      %809 = vmatpush2.bf16.msra.mxu0 %v757
      %810 = vmatprep.subr.bf16.mxu0 0
      %811 = vmatpush2.bf16.msra.mxu0 %v756
      %812 = vmatprep.mubr.bf16.mxu0 %v679
      %813 = vmatmul.mubr.bf16.gmra.mxu0 %v662
      %v814 = vpop.f32.mrf.mxu0
      %v815 = vadd.f32 0.0, %v814
      %v816 = vpop.f32.mrf.mxu0
      %v817 = vpop.f32.mrf.mxu0
      %v818 = vadd.f32 0.0, %v817
      %v819 = vpop.f32.mrf.mxu0
      %820 = vmatprep.mubr.bf16.mxu0 %v678
      %821 = vmatmul.mubr.bf16.gmra.mxu0 %v661
      %v822 = vpop.f32.mrf.mxu0
      %v823 = vadd.f32 0.0, %v822
      %v824 = vpop.f32.mrf.mxu0
      %v825 = vpop.f32.mrf.mxu0
      %v826 = vpop.f32.mrf.mxu0
      %827 = vdwg.mxu0
      %v828 = vadd.f32 %v587, %v815
      %v829 = vadd.f32 %v590, %v818
      %v830 = vadd.f32 %v595, %v823
      %v831 = vld [vmem:[%s165] sm:$0x88]
      %s832 = scalar_lea.vmem %s1, 384
      %v833 = vld [vmem:[%s832] sm:$0xf]
      %v834 = vld [vmem:[%s832 + $0x4] sm:$0xf]
      %v835 = vld [vmem:[%s832 + $0x8] sm:$0xf]
      %v836 = vld [vmem:[%s832 + $0xc] sm:$0xf]
      %v837 = vld [vmem:[%s832 + $0x10] sm:$0xf]
      %v838 = vld [vmem:[%s832 + $0x14] sm:$0xf]
      %v839 = vld [vmem:[%s832 + $0x18] sm:$0xf]
      %v840 = vld [vmem:[%s832 + $0x1c] sm:$0xf]
      %v841 = vld [vmem:[%s832 + $0x20] sm:$0xf]
      %v842 = vld [vmem:[%s832 + $0x24] sm:$0xf]
      %v843 = vld [vmem:[%s832 + $0x28] sm:$0xf]
      %v844 = vld [vmem:[%s832 + $0x2c] sm:$0xf]
      %v845 = vld [vmem:[%s832 + $0x30] sm:$0xf]
      %v846 = vld [vmem:[%s832 + $0x34] sm:$0xf]
      %v847 = vld [vmem:[%s832 + $0x38] sm:$0xf]
      %v848 = vld [vmem:[%s832 + $0x3c] sm:$0xf]
      %v849 = vld [vmem:[%s832 + $0x40] sm:$0xf]
      %v850 = vld [vmem:[%s832 + $0x44] sm:$0xf]
      %v851 = vld [vmem:[%s832 + $0x48] sm:$0xf]
      %v852 = vld [vmem:[%s832 + $0x4c] sm:$0xf]
      %v853 = vld [vmem:[%s832 + $0x50] sm:$0xf]
      %v854 = vld [vmem:[%s832 + $0x54] sm:$0xf]
      %v855 = vld [vmem:[%s832 + $0x58] sm:$0xf]
      %v856 = vld [vmem:[%s832 + $0x5c] sm:$0xf]
      %v857 = vld [vmem:[%s832 + $0x60] sm:$0xf]
      %v858 = vld [vmem:[%s832 + $0x64] sm:$0xf]
      %v859 = vld [vmem:[%s832 + $0x68] sm:$0xf]
      %v860 = vld [vmem:[%s832 + $0x6c] sm:$0xf]
      %v861 = vld [vmem:[%s832 + $0x70] sm:$0xf]
      %v862 = vld [vmem:[%s832 + $0x74] sm:$0xf]
      %v863 = vld [vmem:[%s832 + $0x78] sm:$0xf]
      %v864 = vld [vmem:[%s832 + $0x7c] sm:$0xf]
      %v866 = vunpack.c.l.b16 %v831
      %v867 = vunpack.c.h.b16 %v831
      %v868 = vpack.c.b16 %v250, %v866
      %v869 = vpack.c.b16 %v251, %v867
      %vm870 = vcmask 1044480
      %v871 = vrot.slane %v868, 3
      %v872 = vrot.slane %v643, 3
      %v873 = vsel %vm870, %v871, %v872
      %v874 = vrot.slane %v869, 3
      %v875 = vrot.slane %v644, 3
      %v876 = vsel %vm870, %v874, %v875
      %v913 = vunpack.c.l.b16 %v833
      %v914 = vunpack.c.l.b16 %v834
      %v915 = vunpack.c.l.b16 %v835
      %v916 = vunpack.c.l.b16 %v836
      %v917 = vunpack.c.l.b16 %v837
      %v918 = vunpack.c.l.b16 %v838
      %v919 = vunpack.c.l.b16 %v839
      %v920 = vunpack.c.l.b16 %v840
      %v921 = vunpack.c.l.b16 %v841
      %v922 = vunpack.c.l.b16 %v842
      %v923 = vunpack.c.l.b16 %v843
      %v924 = vunpack.c.l.b16 %v844
      %v925 = vunpack.c.l.b16 %v845
      %v926 = vunpack.c.l.b16 %v846
      %v927 = vunpack.c.l.b16 %v847
      %v928 = vunpack.c.l.b16 %v848
      %v929 = vunpack.c.l.b16 %v849
      %v930 = vunpack.c.l.b16 %v850
      %v931 = vunpack.c.l.b16 %v851
      %v932 = vunpack.c.l.b16 %v852
      %v933 = vunpack.c.l.b16 %v853
      %v934 = vunpack.c.l.b16 %v854
      %v935 = vunpack.c.l.b16 %v855
      %v936 = vunpack.c.l.b16 %v856
      %v937 = vunpack.c.l.b16 %v857
      %v938 = vunpack.c.l.b16 %v858
      %v939 = vunpack.c.l.b16 %v859
      %v940 = vunpack.c.l.b16 %v860
      %v941 = vunpack.c.l.b16 %v861
      %v942 = vunpack.c.l.b16 %v862
      %v943 = vunpack.c.l.b16 %v863
      %v944 = vunpack.c.l.b16 %v864
      %v945 = vpack.c.b16 %v914, %v913
      %v946 = vpack.c.b16 %v916, %v915
      %v947 = vpack.c.b16 %v918, %v917
      %v948 = vpack.c.b16 %v920, %v919
      %v949 = vpack.c.b16 %v922, %v921
      %v950 = vpack.c.b16 %v924, %v923
      %v951 = vpack.c.b16 %v926, %v925
      %v952 = vpack.c.b16 %v928, %v927
      %v953 = vpack.c.b16 %v930, %v929
      %v954 = vpack.c.b16 %v932, %v931
      %v955 = vpack.c.b16 %v934, %v933
      %v956 = vpack.c.b16 %v936, %v935
      %v957 = vpack.c.b16 %v938, %v937
      %v958 = vpack.c.b16 %v940, %v939
      %v959 = vpack.c.b16 %v942, %v941
      %v960 = vpack.c.b16 %v944, %v943
      %977 = vmatprep.subr.bf16.mxu0 0
      %978 = vmatpush1.bf16.msra.mxu0 %v952
      %979 = vmatprep.subr.bf16.mxu0 0
      %980 = vmatpush1.bf16.msra.mxu0 %v951
      %981 = vmatprep.subr.bf16.mxu0 0
      %982 = vmatpush1.bf16.msra.mxu0 %v950
      %983 = vmatprep.subr.bf16.mxu0 0
      %984 = vmatpush1.bf16.msra.mxu0 %v949
      %985 = vmatprep.subr.bf16.mxu0 0
      %986 = vmatpush1.bf16.msra.mxu0 %v948
      %987 = vmatprep.subr.bf16.mxu0 0
      %988 = vmatpush1.bf16.msra.mxu0 %v947
      %989 = vmatprep.subr.bf16.mxu0 0
      %990 = vmatpush1.bf16.msra.mxu0 %v946
      %991 = vmatprep.subr.bf16.mxu0 0
      %992 = vmatpush1.bf16.msra.mxu0 %v945
      %993 = vmatprep.subr.bf16.mxu0 0
      %994 = vmatpush2.bf16.msra.mxu0 %v960
      %995 = vmatprep.subr.bf16.mxu0 0
      %996 = vmatpush2.bf16.msra.mxu0 %v959
      %997 = vmatprep.subr.bf16.mxu0 0
      %998 = vmatpush2.bf16.msra.mxu0 %v958
      %999 = vmatprep.subr.bf16.mxu0 0
      %1000 = vmatpush2.bf16.msra.mxu0 %v957
      %1001 = vmatprep.subr.bf16.mxu0 0
      %1002 = vmatpush2.bf16.msra.mxu0 %v956
      %1003 = vmatprep.subr.bf16.mxu0 0
      %1004 = vmatpush2.bf16.msra.mxu0 %v955
      %1005 = vmatprep.subr.bf16.mxu0 0
      %1006 = vmatpush2.bf16.msra.mxu0 %v954
      %1007 = vmatprep.subr.bf16.mxu0 0
      %1008 = vmatpush2.bf16.msra.mxu0 %v953
      %1009 = vmatprep.mubr.bf16.mxu0 %v876
      %1010 = vmatmul.mubr.bf16.gmra.mxu0 %v873
      %v1011 = vpop.f32.mrf.mxu0
      %v1012 = vadd.f32 0.0, %v1011
      %v1013 = vpop.f32.mrf.mxu0
      %v1014 = vpop.f32.mrf.mxu0
      %v1015 = vadd.f32 0.0, %v1014
      %v1016 = vpop.f32.mrf.mxu0
      %1017 = vmatprep.mubr.bf16.mxu0 %v875
      %1018 = vmatmul.mubr.bf16.gmra.mxu0 %v872
      %v1019 = vpop.f32.mrf.mxu0
      %v1020 = vadd.f32 0.0, %v1019
      %v1021 = vpop.f32.mrf.mxu0
      %v1022 = vpop.f32.mrf.mxu0
      %v1023 = vpop.f32.mrf.mxu0
      %1024 = vdwg.mxu0
      %v1025 = vadd.f32 %v828, %v1012
      %v1026 = vadd.f32 %v829, %v1015
      %v1027 = vadd.f32 %v830, %v1020
      %v1028 = vld [vmem:[%s2] sm:$0x1]
      %v1030 = vlaneseq
      %v1031 = vshrl.u32 %v1030, 7
      %v1032 = vsub.s32 0, %v1031
      %v1033 = vrot.slane %v1028, %v1032
      %v1035 = vadd.f32 %v1025, %v1033
      %v1036 = vadd.f32 %v1026, %v1033
      %v1037 = vadd.f32 %v1027, %v1033
      %v1038 = vmax.f32 %v1035, 0.0
      %v1039 = vmax.f32 %v1036, 0.0
      %v1040 = vmax.f32 %v1037, 0.0
      %v1041 = vpack.c.bf16 %v1039, %v1038
      %v1042 = vpack.c.bf16 %v1040, %v1040
      %v1045 = vunpack.c.l.b16 %v1041
      %v1046 = vunpack.c.h.b16 %v1041
      %v1047 = vunpack.c.l.b16 %v1042
      %v1048 = vpack.c.b16 %v1045, %v1045
      %v1049 = vpack.c.b16 %v1046, %v1046
      %v1050 = vpack.c.b16 %v1047, %v1047
      %1054 = vst [vmem:[%s170] sm:$0xf] %v1048
      %1055 = vst [vmem:[%s170 + $0x4] sm:$0xf] %v1049
      %1056 = vst [vmem:[%s170 + $0x8] sm:$0xf] %v1050
      %p1057 = scmp.lt.s32.totalorder %s14, 1
      %s1058 = scalar_select %p1057, %s14, 1
      %s1059 = smul.addr %s1058, 3
      %s1060 = smul.addr %s1059, 4
      %s1061 = scalar_lea.vmem %s3, %s1060
      // Predicated region
      $region33: #{forward.8} parent=31 // pred_check
        %p1062 = pneg %p100
      $region34: #{forward.8} parent=31 // pred_check_branch
        %1064 = sbr.rel (%p1062) target = $region36
      $region35: #{forward.8} parent=31 // pred_region
        _
      $region36: #{forward.8} parent=31 // pred_fallthru
        _
    $region32: #{forward.8} parent=5 // pred_fallthru
      _
    %p1065 = scmp.le.s32.totalorder 2, %s9
    // Predicated region
    $region37: #{forward.8} parent=5 // pred_check
      %p1066 = pneg %p1065
    $region38: #{forward.8} parent=5 // pred_check_branch
      %1068 = sbr.rel (%p1066) target = $region40
    $region39: #{forward.8} parent=5 // pred_region
      %s1069 = ssub.s32 %s9, 2
      // Predicated region
      $region41: #{forward.8} parent=39 // pred_check
        %p1070 = pneg %p106
      $region42: #{forward.8} parent=39 // pred_check_branch
        %1072 = sbr.rel (%p1070) target = $region44
      $region43: #{forward.8} parent=39 // pred_region
        %p1073 = scmp.lt.s32.totalorder %s15, 1
        %s1074 = scalar_select %p1073, %s15, 1
        %s1075 = smul.addr %s1074, 3
        %s1076 = smul.addr %s1075, 4
        %s1077 = scalar_lea.vmem %s3, %s1076
      $region44: #{forward.8} parent=39 // pred_fallthru
        _
    $region40: #{forward.8} parent=5 // pred_fallthru
      _
  $region6: #{forward.8} parent=0 // loop_footer
    %s13 = sadd.s32 1, %s9
  $region7: #{forward.8} parent=0 // loop_footer_branch
    %8 = sbr.rel target = $region3
  $region8: #{forward.8} parent=0 // loop_exit
    _

// kernel: forward.9
$region0: #{forward.9}
  #allocation0 [shape = 'u32[]', space=smem, size = 0x4, offset = 0x4, fixed_abs, tag = 'smem constant byte address 0x4 - core index']
  #allocation1 [shape = 'u32[144,128]{1,0:T(1,128)}', space=vmem, size = 0x12000, scoped, tag = 'internal scratch']
  %s0 = inlined_call_operand.vmem [shape: bf16[2,8,512], index: 0, kind: input, shape index: {}]
  %s1 = inlined_call_operand.vmem [shape: bf16[4,512,128], index: 1, kind: input, shape index: {}]
  %s2 = inlined_call_operand.vmem [shape: f32[1,128], index: 2, kind: input, shape index: {}]
  %s3 = inlined_call_operand.vmem [shape: bf16[128,2], index: 3, kind: input, shape index: {}]
  %s4 = inlined_call_operand.vmem [shape: f32[1,2], index: 4, kind: input, shape index: {}]
  %s5 = inlined_call_operand.hbm [shape: f32[2,1,2], index: 5, kind: output, shape index: {}]
  %s6 = sld [smem:[#allocation0]]
  $region53: #{forward.9} parent=0
    _
  %s8 = ssub.s32 1, %s6
  %s9 = scalar_select 0, %s8, %s6
  $region1: #{forward.9} parent=0
    #allocation2 [shape = 'u8[1024]{0}', space=vmem, size = 0x400, scoped, tag = 'output window, operand 0']
    #allocation3 [shape = 's32[2]{0}', space=sflag, size = 0x8, scoped, tag = 'scoped memory for forward.9']
    %10 = vsyncpa [#allocation3], 0
    %s11 = scalar_lea.sflag [#allocation3], 1
    %12 = vsyncpa %s11, 0
    loop: start=0, step=1, limit=4
    $region2: #{forward.9} parent=1 // loop_pre_header
      _
    $region3: #{forward.9} parent=1 // loop_header
      %s14 = sphi 0, %s18
      %p15 = scmp.ge.s32.totalorder %s14, 4
      %s24 = sphi 0, %s26
      %s27 = sphi 0, %s24
      %s28 = sphi 0, %s27
      %s44 = sphi 0, %s28
      %s48 = sphi 0, %s48
      %s50 = sphi 0, %s48
      %s51 = sphi 0, %s50
      %s65 = sphi 0, %s51
      %s69 = sphi 0, %s69
      %s71 = sphi 0, %s69
      %s72 = sphi 0, %s71
      %s86 = sphi 0, %s72
      %s90 = sphi 0, %s90
      %s92 = sphi 0, %s90
      %s93 = sphi 0, %s92
      %s107 = sphi 0, %s93
      %s111 = sphi 0, %s111
      %s113 = sphi 0, %s111
      %s114 = sphi 0, %s113
      %s128 = sphi 0, %s114
      %s134 = sphi 0, %s136
      %s137 = sphi 0, %s134
      %s138 = sphi 0, %s137
      %s154 = sphi 0, %s138
    $region4: #{forward.9} parent=1 // loop_header_branch
      %17 = sbr.rel (%p15) target = $region8
    $region5: #{forward.9} parent=1 // loop_body
      %s19 = ssub.s32 %s14, 1
      %s20 = ssub.s32 %s14, 2
      %s21 = sadd.s32 %s14, 1
      %s22 = ssub.s32 %s14, %s21
      %p23 = scmp.eq.s32.totalorder %s22, 0
      %s25 = sadd.s32 %s24, 1
      %s26 = scalar_select %p23, %s24, %s25
      %p29 = pneg %p23
      %p30 = scmp.eq.s32.totalorder %s14, 1
      %p31 = por %p29, %p30
      %p32 = scmp.ne.s32.totalorder %s24, %s27
      %p33 = scmp.eq.s32.totalorder %s14, 0
      %p34 = por %p32, %p33
      %p35 = scmp.ne.s32.totalorder %s24, %s27
      %p36 = scmp.eq.s32.totalorder %s19, 1
      %p37 = por %p35, %p36
      %p38 = scmp.ne.s32.totalorder %s27, %s28
      %p39 = scmp.eq.s32.totalorder %s19, 0
      %p40 = por %p38, %p39
      %p41 = scmp.ne.s32.totalorder %s27, %s28
      %p42 = scmp.eq.s32.totalorder %s20, 1
      %p43 = por %p41, %p42
      %p45 = scmp.ne.s32.totalorder %s28, %s44
      %p46 = scmp.eq.s32.totalorder %s20, 0
      %p47 = por %p45, %p46
      %s49 = sadd.s32 %s48, 1
      %p52 = scmp.eq.s32.totalorder %s14, 1
      %p53 = scmp.ne.s32.totalorder %s48, %s50
      %p54 = scmp.eq.s32.totalorder %s14, 0
      %p55 = por %p53, %p54
      %p56 = scmp.ne.s32.totalorder %s48, %s50
      %p57 = scmp.eq.s32.totalorder %s19, 1
      %p58 = por %p56, %p57
      %p59 = scmp.ne.s32.totalorder %s50, %s51
      %p60 = scmp.eq.s32.totalorder %s19, 0
      %p61 = por %p59, %p60
      %p62 = scmp.ne.s32.totalorder %s50, %s51
      %p63 = scmp.eq.s32.totalorder %s20, 1
      %p64 = por %p62, %p63
      %p66 = scmp.ne.s32.totalorder %s51, %s65
      %p67 = scmp.eq.s32.totalorder %s20, 0
      %p68 = por %p66, %p67
      %s70 = sadd.s32 %s69, 1
      %p73 = scmp.eq.s32.totalorder %s14, 1
      %p74 = scmp.ne.s32.totalorder %s69, %s71
      %p75 = scmp.eq.s32.totalorder %s14, 0
      %p76 = por %p74, %p75
      %p77 = scmp.ne.s32.totalorder %s69, %s71
      %p78 = scmp.eq.s32.totalorder %s19, 1
      %p79 = por %p77, %p78
      %p80 = scmp.ne.s32.totalorder %s71, %s72
      %p81 = scmp.eq.s32.totalorder %s19, 0
      %p82 = por %p80, %p81
      %p83 = scmp.ne.s32.totalorder %s71, %s72
      %p84 = scmp.eq.s32.totalorder %s20, 1
      %p85 = por %p83, %p84
      %p87 = scmp.ne.s32.totalorder %s72, %s86
      %p88 = scmp.eq.s32.totalorder %s20, 0
      %p89 = por %p87, %p88
      %s91 = sadd.s32 %s90, 1
      %p94 = scmp.eq.s32.totalorder %s14, 1
      %p95 = scmp.ne.s32.totalorder %s90, %s92
      %p96 = scmp.eq.s32.totalorder %s14, 0
      %p97 = por %p95, %p96
      %p98 = scmp.ne.s32.totalorder %s90, %s92
      %p99 = scmp.eq.s32.totalorder %s19, 1
      %p100 = por %p98, %p99
      %p101 = scmp.ne.s32.totalorder %s92, %s93
      %p102 = scmp.eq.s32.totalorder %s19, 0
      %p103 = por %p101, %p102
      %p104 = scmp.ne.s32.totalorder %s92, %s93
      %p105 = scmp.eq.s32.totalorder %s20, 1
      %p106 = por %p104, %p105
      %p108 = scmp.ne.s32.totalorder %s93, %s107
      %p109 = scmp.eq.s32.totalorder %s20, 0
      %p110 = por %p108, %p109
      %s112 = sadd.s32 %s111, 1
      %p115 = scmp.eq.s32.totalorder %s14, 1
      %p116 = scmp.ne.s32.totalorder %s111, %s113
      %p117 = scmp.eq.s32.totalorder %s14, 0
      %p118 = por %p116, %p117
      %p119 = scmp.ne.s32.totalorder %s111, %s113
      %p120 = scmp.eq.s32.totalorder %s19, 1
      %p121 = por %p119, %p120
      %p122 = scmp.ne.s32.totalorder %s113, %s114
      %p123 = scmp.eq.s32.totalorder %s19, 0
      %p124 = por %p122, %p123
      %p125 = scmp.ne.s32.totalorder %s113, %s114
      %p126 = scmp.eq.s32.totalorder %s20, 1
      %p127 = por %p125, %p126
      %p129 = scmp.ne.s32.totalorder %s114, %s128
      %p130 = scmp.eq.s32.totalorder %s20, 0
      %p131 = por %p129, %p130
      %s132 = ssub.s32 %s14, %s21
      %p133 = scmp.eq.s32.totalorder %s132, 0
      %s135 = sadd.s32 %s134, 1
      %s136 = scalar_select %p133, %s134, %s135
      %p139 = pneg %p133
      %p140 = scmp.eq.s32.totalorder %s14, 1
      %p141 = por %p139, %p140
      %p142 = scmp.ne.s32.totalorder %s134, %s137
      %p143 = scmp.eq.s32.totalorder %s14, 0
      %p144 = por %p142, %p143
      %p145 = scmp.ne.s32.totalorder %s134, %s137
      %p146 = scmp.eq.s32.totalorder %s19, 1
      %p147 = por %p145, %p146
      %p148 = scmp.ne.s32.totalorder %s137, %s138
      %p149 = scmp.eq.s32.totalorder %s19, 0
      %p150 = por %p148, %p149
      %p151 = scmp.ne.s32.totalorder %s137, %s138
      %p152 = scmp.eq.s32.totalorder %s20, 1
      %p153 = por %p151, %p152
      %p155 = scmp.ne.s32.totalorder %s138, %s154
      %p156 = scmp.eq.s32.totalorder %s20, 0
      %p157 = por %p155, %p156
      %p158 = scmp.le.s32.totalorder 1, %s14
      %p159 = scmp.lt.s32.totalorder %s14, 3
      %p160 = pnand %p158, %p159
      %p161 = pneg %p160
      // Predicated region
      $region9: #{forward.9} parent=5 // pred_check
        _
      $region10: #{forward.9} parent=5 // pred_check_branch
        %163 = sbr.rel (%p160) target = $region12
      $region11: #{forward.9} parent=5 // pred_region
        %s164 = ssub.s32 %s14, 1
        // Predicated region
        $region13: #{forward.9} parent=11 // pred_check
          %p165 = pneg %p61
        $region14: #{forward.9} parent=11 // pred_check_branch
          %167 = sbr.rel (%p165) target = $region16
        $region15: #{forward.9} parent=11 // pred_region
          _
        $region16: #{forward.9} parent=11 // pred_fallthru
          _
        // Predicated region
        $region17: #{forward.9} parent=11 // pred_check
          %p168 = pneg %p82
        $region18: #{forward.9} parent=11 // pred_check_branch
          %170 = sbr.rel (%p168) target = $region20
        $region19: #{forward.9} parent=11 // pred_region
          _
        $region20: #{forward.9} parent=11 // pred_fallthru
          _
        // Predicated region
        $region21: #{forward.9} parent=11 // pred_check
          %p171 = pneg %p103
        $region22: #{forward.9} parent=11 // pred_check_branch
          %173 = sbr.rel (%p171) target = $region24
        $region23: #{forward.9} parent=11 // pred_region
          _
        $region24: #{forward.9} parent=11 // pred_fallthru
          _
        // Predicated region
        $region25: #{forward.9} parent=11 // pred_check
          %p174 = pneg %p124
        $region26: #{forward.9} parent=11 // pred_check_branch
          %176 = sbr.rel (%p174) target = $region28
        $region27: #{forward.9} parent=11 // pred_region
          _
        $region28: #{forward.9} parent=11 // pred_fallthru
          _
      $region12: #{forward.9} parent=5 // pred_fallthru
        _
      %p177 = scmp.lt.s32.totalorder %s14, 2
      // Predicated region
      $region29: #{forward.9} parent=5 // pred_check
        %p178 = pneg %p177
      $region30: #{forward.9} parent=5 // pred_check_branch
        %180 = sbr.rel (%p178) target = $region32
      $region31: #{forward.9} parent=5 // pred_region
        // Predicated region
        $region33: #{forward.9} parent=31 // pred_check
          %p181 = pneg %p34
        $region34: #{forward.9} parent=31 // pred_check_branch
          %183 = sbr.rel (%p181) target = $region36
        $region35: #{forward.9} parent=31 // pred_region
          %p184 = scmp.lt.s32.totalorder %s14, 1
          %s185 = scalar_select %p184, %s14, 1
          %s186 = smul.addr %s185, 4
          %s187 = smul.addr %s186, 4
          %s188 = scalar_lea.vmem %s0, %s187
        $region36: #{forward.9} parent=31 // pred_fallthru
          _
      $region32: #{forward.9} parent=5 // pred_fallthru
        _
      %p189 = scmp.le.s32.totalorder 1, %s14
      %p190 = scmp.lt.s32.totalorder %s14, 3
      %p191 = pnand %p189, %p190
      %p192 = pneg %p191
      // Predicated region
      $region37: #{forward.9} parent=5 // pred_check
        _
      $region38: #{forward.9} parent=5 // pred_check_branch
        %194 = sbr.rel (%p191) target = $region40
      $region39: #{forward.9} parent=5 // pred_region
        %s195 = ssub.s32 %s14, 1
        %p196 = scmp.lt.s32.totalorder %s19, 1
        %s197 = scalar_select %p196, %s19, 1
        %s198 = smul.addr %s197, 4
        %s199 = smul.addr %s198, 4
        %s200 = scalar_lea.vmem %s0, %s199
        %p201 = pneg %p40
        %p202 = pneg %p37
        %p203 = pneg %p61
        %p204 = pneg %p58
        %p205 = pneg %p82
        %p206 = pneg %p79
        %p207 = pneg %p103
        %p208 = pneg %p100
        %p209 = pneg %p124
        %p210 = pneg %p121
        %p211 = pneg %p150
        %p212 = pneg %p147
        %s213 = sand.u32 %s137, 1
        %s214 = scalar_lea.sflag [#allocation3], %s213
        %s215 = sand.u32 %s137, 1
        %s216 = scalar_lea.vmem [#allocation2], %s215
        %p217 = scmp.lt.s32.totalorder %s19, 1
        %s218 = scalar_select %p217, %s19, 1
        %s219 = smul.addr %s218, 4
        %s220 = smul.addr %s219, 4
        %s221 = scalar_lea.vmem %s0, %s220
        %v223 = vld [vmem:[%s221] sm:$0x11]
        %v224 = vld [vmem:[%s221 + $0x8] sm:$0x11]
        %v225 = vld [vmem:[%s1] sm:$0xf]
        %v226 = vld [vmem:[%s1 + $0x4] sm:$0xf]
        %v227 = vld [vmem:[%s1 + $0x8] sm:$0xf]
        %v228 = vld [vmem:[%s1 + $0xc] sm:$0xf]
        %v229 = vld [vmem:[%s1 + $0x10] sm:$0xf]
        %v230 = vld [vmem:[%s1 + $0x14] sm:$0xf]
        %v231 = vld [vmem:[%s1 + $0x18] sm:$0xf]
        %v232 = vld [vmem:[%s1 + $0x1c] sm:$0xf]
        %v233 = vld [vmem:[%s1 + $0x20] sm:$0xf]
        %v234 = vld [vmem:[%s1 + $0x24] sm:$0xf]
        %v235 = vld [vmem:[%s1 + $0x28] sm:$0xf]
        %v236 = vld [vmem:[%s1 + $0x2c] sm:$0xf]
        %v237 = vld [vmem:[%s1 + $0x30] sm:$0xf]
        %v238 = vld [vmem:[%s1 + $0x34] sm:$0xf]
        %v239 = vld [vmem:[%s1 + $0x38] sm:$0xf]
        %v240 = vld [vmem:[%s1 + $0x3c] sm:$0xf]
        %v241 = vld [vmem:[%s1 + $0x40] sm:$0xf]
        %v242 = vld [vmem:[%s1 + $0x44] sm:$0xf]
        %v243 = vld [vmem:[%s1 + $0x48] sm:$0xf]
        %v244 = vld [vmem:[%s1 + $0x4c] sm:$0xf]
        %v245 = vld [vmem:[%s1 + $0x50] sm:$0xf]
        %v246 = vld [vmem:[%s1 + $0x54] sm:$0xf]
        %v247 = vld [vmem:[%s1 + $0x58] sm:$0xf]
        %v248 = vld [vmem:[%s1 + $0x5c] sm:$0xf]
        %v249 = vld [vmem:[%s1 + $0x60] sm:$0xf]
        %v250 = vld [vmem:[%s1 + $0x64] sm:$0xf]
        %v251 = vld [vmem:[%s1 + $0x68] sm:$0xf]
        %v252 = vld [vmem:[%s1 + $0x6c] sm:$0xf]
        %v253 = vld [vmem:[%s1 + $0x70] sm:$0xf]
        %v254 = vld [vmem:[%s1 + $0x74] sm:$0xf]
        %v255 = vld [vmem:[%s1 + $0x78] sm:$0xf]
        %v256 = vld [vmem:[%s1 + $0x7c] sm:$0xf]
        %v257 = vld [vmem:[%s1 + $0x80] sm:$0xf]
        %v258 = vld [vmem:[%s1 + $0x84] sm:$0xf]
        %v259 = vld [vmem:[%s1 + $0x88] sm:$0xf]
        %v260 = vld [vmem:[%s1 + $0x8c] sm:$0xf]
        %v261 = vld [vmem:[%s1 + $0x90] sm:$0xf]
        %v262 = vld [vmem:[%s1 + $0x94] sm:$0xf]
        %v263 = vld [vmem:[%s1 + $0x98] sm:$0xf]
        %v264 = vld [vmem:[%s1 + $0x9c] sm:$0xf]
        %v265 = vld [vmem:[%s1 + $0xa0] sm:$0xf]
        %v266 = vld [vmem:[%s1 + $0xa4] sm:$0xf]
        %v267 = vld [vmem:[%s1 + $0xa8] sm:$0xf]
        %v268 = vld [vmem:[%s1 + $0xac] sm:$0xf]
        %v269 = vld [vmem:[%s1 + $0xb0] sm:$0xf]
        %v270 = vld [vmem:[%s1 + $0xb4] sm:$0xf]
        %v271 = vld [vmem:[%s1 + $0xb8] sm:$0xf]
        %v272 = vld [vmem:[%s1 + $0xbc] sm:$0xf]
        %v273 = vld [vmem:[%s1 + $0xc0] sm:$0xf]
        %v274 = vld [vmem:[%s1 + $0xc4] sm:$0xf]
        %v275 = vld [vmem:[%s1 + $0xc8] sm:$0xf]
        %v276 = vld [vmem:[%s1 + $0xcc] sm:$0xf]
        %v277 = vld [vmem:[%s1 + $0xd0] sm:$0xf]
        %v278 = vld [vmem:[%s1 + $0xd4] sm:$0xf]
        %v279 = vld [vmem:[%s1 + $0xd8] sm:$0xf]
        %v280 = vld [vmem:[%s1 + $0xdc] sm:$0xf]
        %v281 = vld [vmem:[%s1 + $0xe0] sm:$0xf]
        %v282 = vld [vmem:[%s1 + $0xe4] sm:$0xf]
        %v283 = vld [vmem:[%s1 + $0xe8] sm:$0xf]
        %v284 = vld [vmem:[%s1 + $0xec] sm:$0xf]
        %v285 = vld [vmem:[%s1 + $0xf0] sm:$0xf]
        %v286 = vld [vmem:[%s1 + $0xf4] sm:$0xf]
        %v287 = vld [vmem:[%s1 + $0xf8] sm:$0xf]
        %v288 = vld [vmem:[%s1 + $0xfc] sm:$0xf]
        %s289 = scalar_lea.vmem %s1, 256
        %v290 = vld [vmem:[%s289] sm:$0xf]
        %v291 = vld [vmem:[%s289 + $0x4] sm:$0xf]
        %v292 = vld [vmem:[%s289 + $0x8] sm:$0xf]
        %v293 = vld [vmem:[%s289 + $0xc] sm:$0xf]
        %v294 = vld [vmem:[%s289 + $0x10] sm:$0xf]
        %v295 = vld [vmem:[%s289 + $0x14] sm:$0xf]
        %v296 = vld [vmem:[%s289 + $0x18] sm:$0xf]
        %v297 = vld [vmem:[%s289 + $0x1c] sm:$0xf]
        %v298 = vld [vmem:[%s289 + $0x20] sm:$0xf]
        %v299 = vld [vmem:[%s289 + $0x24] sm:$0xf]
        %v300 = vld [vmem:[%s289 + $0x28] sm:$0xf]
        %v301 = vld [vmem:[%s289 + $0x2c] sm:$0xf]
        %v302 = vld [vmem:[%s289 + $0x30] sm:$0xf]
        %v303 = vld [vmem:[%s289 + $0x34] sm:$0xf]
        %v304 = vld [vmem:[%s289 + $0x38] sm:$0xf]
        %v305 = vld [vmem:[%s289 + $0x3c] sm:$0xf]
        %v306 = vld [vmem:[%s289 + $0x40] sm:$0xf]
        %v307 = vld [vmem:[%s289 + $0x44] sm:$0xf]
        %v308 = vld [vmem:[%s289 + $0x48] sm:$0xf]
        %v309 = vld [vmem:[%s289 + $0x4c] sm:$0xf]
        %v310 = vld [vmem:[%s289 + $0x50] sm:$0xf]
        %v311 = vld [vmem:[%s289 + $0x54] sm:$0xf]
        %v312 = vld [vmem:[%s289 + $0x58] sm:$0xf]
        %v313 = vld [vmem:[%s289 + $0x5c] sm:$0xf]
        %v314 = vld [vmem:[%s289 + $0x60] sm:$0xf]
        %v315 = vld [vmem:[%s289 + $0x64] sm:$0xf]
        %v316 = vld [vmem:[%s289 + $0x68] sm:$0xf]
        %v317 = vld [vmem:[%s289 + $0x6c] sm:$0xf]
        %v318 = vld [vmem:[%s289 + $0x70] sm:$0xf]
        %v319 = vld [vmem:[%s289 + $0x74] sm:$0xf]
        %v320 = vld [vmem:[%s289 + $0x78] sm:$0xf]
        %v321 = vld [vmem:[%s289 + $0x7c] sm:$0xf]
        %v322 = vld [vmem:[%s289 + $0x80] sm:$0xf]
        %v323 = vld [vmem:[%s289 + $0x84] sm:$0xf]
        %v324 = vld [vmem:[%s289 + $0x88] sm:$0xf]
        %v325 = vld [vmem:[%s289 + $0x8c] sm:$0xf]
        %v326 = vld [vmem:[%s289 + $0x90] sm:$0xf]
        %v327 = vld [vmem:[%s289 + $0x94] sm:$0xf]
        %v328 = vld [vmem:[%s289 + $0x98] sm:$0xf]
        %v329 = vld [vmem:[%s289 + $0x9c] sm:$0xf]
        %v330 = vld [vmem:[%s289 + $0xa0] sm:$0xf]
        %v331 = vld [vmem:[%s289 + $0xa4] sm:$0xf]
        %v332 = vld [vmem:[%s289 + $0xa8] sm:$0xf]
        %v333 = vld [vmem:[%s289 + $0xac] sm:$0xf]
        %v334 = vld [vmem:[%s289 + $0xb0] sm:$0xf]
        %v335 = vld [vmem:[%s289 + $0xb4] sm:$0xf]
        %v336 = vld [vmem:[%s289 + $0xb8] sm:$0xf]
        %v337 = vld [vmem:[%s289 + $0xbc] sm:$0xf]
        %v338 = vld [vmem:[%s289 + $0xc0] sm:$0xf]
        %v339 = vld [vmem:[%s289 + $0xc4] sm:$0xf]
        %v340 = vld [vmem:[%s289 + $0xc8] sm:$0xf]
        %v341 = vld [vmem:[%s289 + $0xcc] sm:$0xf]
        %v342 = vld [vmem:[%s289 + $0xd0] sm:$0xf]
        %v343 = vld [vmem:[%s289 + $0xd4] sm:$0xf]
        %v344 = vld [vmem:[%s289 + $0xd8] sm:$0xf]
        %v345 = vld [vmem:[%s289 + $0xdc] sm:$0xf]
        %v346 = vld [vmem:[%s289 + $0xe0] sm:$0xf]
        %v347 = vld [vmem:[%s289 + $0xe4] sm:$0xf]
        %v348 = vld [vmem:[%s289 + $0xe8] sm:$0xf]
        %v349 = vld [vmem:[%s289 + $0xec] sm:$0xf]
        %v350 = vld [vmem:[%s289 + $0xf0] sm:$0xf]
        %v351 = vld [vmem:[%s289 + $0xf4] sm:$0xf]
        %v352 = vld [vmem:[%s289 + $0xf8] sm:$0xf]
        %v353 = vld [vmem:[%s289 + $0xfc] sm:$0xf]
        %v356 = vunpack.c.l.b16 %v223
        %v357 = vunpack.c.h.b16 %v223
        %v358 = vunpack.c.l.b16 %v224
        %v359 = vunpack.c.h.b16 %v224
        %v360 = vpack.c.b16 %v356, %v356
        %v361 = vpack.c.b16 %v357, %v357
        %v362 = vpack.c.b16 %v358, %v358
        %v363 = vpack.c.b16 %v359, %v359
        %v365 = vshrl.u32 %v360, 16
        %v368 = vshrl.u32 %v361, 16
        %v371 = vshrl.u32 %v362, 16
        %v374 = vshrl.u32 %v363, 16
        %v444 = vunpack.c.l.b16 %v290
        %v445 = vunpack.c.l.b16 %v291
        %v446 = vunpack.c.l.b16 %v292
        %v447 = vunpack.c.l.b16 %v293
        %v448 = vunpack.c.l.b16 %v294
        %v449 = vunpack.c.l.b16 %v295
        %v450 = vunpack.c.l.b16 %v296
        %v451 = vunpack.c.l.b16 %v297
        %v452 = vunpack.c.l.b16 %v298
        %v453 = vunpack.c.l.b16 %v299
        %v454 = vunpack.c.l.b16 %v300
        %v455 = vunpack.c.l.b16 %v301
        %v456 = vunpack.c.l.b16 %v302
        %v457 = vunpack.c.l.b16 %v303
        %v458 = vunpack.c.l.b16 %v304
        %v459 = vunpack.c.l.b16 %v305
        %v460 = vunpack.c.l.b16 %v306
        %v461 = vunpack.c.l.b16 %v307
        %v462 = vunpack.c.l.b16 %v308
        %v463 = vunpack.c.l.b16 %v309
        %v464 = vunpack.c.l.b16 %v310
        %v465 = vunpack.c.l.b16 %v311
        %v466 = vunpack.c.l.b16 %v312
        %v467 = vunpack.c.l.b16 %v313
        %v468 = vunpack.c.l.b16 %v314
        %v469 = vunpack.c.l.b16 %v315
        %v470 = vunpack.c.l.b16 %v316
        %v471 = vunpack.c.l.b16 %v317
        %v472 = vunpack.c.l.b16 %v318
        %v473 = vunpack.c.l.b16 %v319
        %v474 = vunpack.c.l.b16 %v320
        %v475 = vunpack.c.l.b16 %v321
        %v476 = vunpack.c.l.b16 %v322
        %v477 = vunpack.c.l.b16 %v323
        %v478 = vunpack.c.l.b16 %v324
        %v479 = vunpack.c.l.b16 %v325
        %v480 = vunpack.c.l.b16 %v326
        %v481 = vunpack.c.l.b16 %v327
        %v482 = vunpack.c.l.b16 %v328
        %v483 = vunpack.c.l.b16 %v329
        %v484 = vunpack.c.l.b16 %v330
        %v485 = vunpack.c.l.b16 %v331
        %v486 = vunpack.c.l.b16 %v332
        %v487 = vunpack.c.l.b16 %v333
        %v488 = vunpack.c.l.b16 %v334
        %v489 = vunpack.c.l.b16 %v335
        %v490 = vunpack.c.l.b16 %v336
        %v491 = vunpack.c.l.b16 %v337
        %v492 = vunpack.c.l.b16 %v338
        %v493 = vunpack.c.l.b16 %v339
        %v494 = vunpack.c.l.b16 %v340
        %v495 = vunpack.c.l.b16 %v341
        %v496 = vunpack.c.l.b16 %v342
        %v497 = vunpack.c.l.b16 %v343
        %v498 = vunpack.c.l.b16 %v344
        %v499 = vunpack.c.l.b16 %v345
        %v500 = vunpack.c.l.b16 %v346
        %v501 = vunpack.c.l.b16 %v347
        %v502 = vunpack.c.l.b16 %v348
        %v503 = vunpack.c.l.b16 %v349
        %v504 = vunpack.c.l.b16 %v350
        %v505 = vunpack.c.l.b16 %v351
        %v506 = vunpack.c.l.b16 %v352
        %v507 = vunpack.c.l.b16 %v353
        %v508 = vpack.c.b16 %v445, %v444
        %v509 = vpack.c.b16 %v447, %v446
        %v510 = vpack.c.b16 %v449, %v448
        %v511 = vpack.c.b16 %v451, %v450
        %v512 = vpack.c.b16 %v453, %v452
        %v513 = vpack.c.b16 %v455, %v454
        %v514 = vpack.c.b16 %v457, %v456
        %v515 = vpack.c.b16 %v459, %v458
        %v516 = vpack.c.b16 %v461, %v460
        %v517 = vpack.c.b16 %v463, %v462
        %v518 = vpack.c.b16 %v465, %v464
        %v519 = vpack.c.b16 %v467, %v466
        %v520 = vpack.c.b16 %v469, %v468
        %v521 = vpack.c.b16 %v471, %v470
        %v522 = vpack.c.b16 %v473, %v472
        %v523 = vpack.c.b16 %v475, %v474
        %v524 = vpack.c.b16 %v477, %v476
        %v525 = vpack.c.b16 %v479, %v478
        %v526 = vpack.c.b16 %v481, %v480
        %v527 = vpack.c.b16 %v483, %v482
        %v528 = vpack.c.b16 %v485, %v484
        %v529 = vpack.c.b16 %v487, %v486
        %v530 = vpack.c.b16 %v489, %v488
        %v531 = vpack.c.b16 %v491, %v490
        %v532 = vpack.c.b16 %v493, %v492
        %v533 = vpack.c.b16 %v495, %v494
        %v534 = vpack.c.b16 %v497, %v496
        %v535 = vpack.c.b16 %v499, %v498
        %v536 = vpack.c.b16 %v501, %v500
        %v537 = vpack.c.b16 %v503, %v502
        %v538 = vpack.c.b16 %v505, %v504
        %v539 = vpack.c.b16 %v507, %v506
        %572 = vmatprep.subr.bf16.mxu0 0
        %573 = vmatpush1.bf16.msra.mxu0 %v515
        %574 = vmatprep.subr.bf16.mxu0 0
        %575 = vmatpush1.bf16.msra.mxu0 %v514
        %576 = vmatprep.subr.bf16.mxu0 0
        %577 = vmatpush1.bf16.msra.mxu0 %v513
        %578 = vmatprep.subr.bf16.mxu0 0
        %579 = vmatpush1.bf16.msra.mxu0 %v512
        %580 = vmatprep.subr.bf16.mxu0 0
        %581 = vmatpush1.bf16.msra.mxu0 %v511
        %582 = vmatprep.subr.bf16.mxu0 0
        %583 = vmatpush1.bf16.msra.mxu0 %v510
        %584 = vmatprep.subr.bf16.mxu0 0
        %585 = vmatpush1.bf16.msra.mxu0 %v509
        %586 = vmatprep.subr.bf16.mxu0 0
        %587 = vmatpush1.bf16.msra.mxu0 %v508
        %588 = vmatprep.subr.bf16.mxu0 0
        %589 = vmatpush2.bf16.msra.mxu0 %v523
        %590 = vmatprep.subr.bf16.mxu0 0
        %591 = vmatpush2.bf16.msra.mxu0 %v522
        %592 = vmatprep.subr.bf16.mxu0 0
        %593 = vmatpush2.bf16.msra.mxu0 %v521
        %594 = vmatprep.subr.bf16.mxu0 0
        %595 = vmatpush2.bf16.msra.mxu0 %v520
        %596 = vmatprep.subr.bf16.mxu0 0
        %597 = vmatpush2.bf16.msra.mxu0 %v519
        %598 = vmatprep.subr.bf16.mxu0 0
        %599 = vmatpush2.bf16.msra.mxu0 %v518
        %600 = vmatprep.subr.bf16.mxu0 0
        %601 = vmatpush2.bf16.msra.mxu0 %v517
        %602 = vmatprep.subr.bf16.mxu0 0
        %603 = vmatpush2.bf16.msra.mxu0 %v516
        %604 = vmatprep.mubr.bf16.mxu0 %v368
        %605 = vmatmul.mubr.bf16.gmra.mxu0 %v365
        %v606 = vpop.f32.mrf.mxu0
        %v607 = vadd.f32 0.0, %v606
        %v608 = vpop.f32.mrf.mxu0
        %v609 = vpop.f32.mrf.mxu0
        %v610 = vpop.f32.mrf.mxu0
        %611 = vdwg.mxu0
        %612 = vmatprep.subr.bf16.mxu0 0
        %613 = vmatpush1.bf16.msra.mxu0 %v531
        %614 = vmatprep.subr.bf16.mxu0 0
        %615 = vmatpush1.bf16.msra.mxu0 %v530
        %616 = vmatprep.subr.bf16.mxu0 0
        %617 = vmatpush1.bf16.msra.mxu0 %v529
        %618 = vmatprep.subr.bf16.mxu0 0
        %619 = vmatpush1.bf16.msra.mxu0 %v528
        %620 = vmatprep.subr.bf16.mxu0 0
        %621 = vmatpush1.bf16.msra.mxu0 %v527
        %622 = vmatprep.subr.bf16.mxu0 0
        %623 = vmatpush1.bf16.msra.mxu0 %v526
        %624 = vmatprep.subr.bf16.mxu0 0
        %625 = vmatpush1.bf16.msra.mxu0 %v525
        %626 = vmatprep.subr.bf16.mxu0 0
        %627 = vmatpush1.bf16.msra.mxu0 %v524
        %628 = vmatprep.subr.bf16.mxu0 0
        %629 = vmatpush2.bf16.msra.mxu0 %v539
        %630 = vmatprep.subr.bf16.mxu0 0
        %631 = vmatpush2.bf16.msra.mxu0 %v538
        %632 = vmatprep.subr.bf16.mxu0 0
        %633 = vmatpush2.bf16.msra.mxu0 %v537
        %634 = vmatprep.subr.bf16.mxu0 0
        %635 = vmatpush2.bf16.msra.mxu0 %v536
        %636 = vmatprep.subr.bf16.mxu0 0
        %637 = vmatpush2.bf16.msra.mxu0 %v535
        %638 = vmatprep.subr.bf16.mxu0 0
        %639 = vmatpush2.bf16.msra.mxu0 %v534
        %640 = vmatprep.subr.bf16.mxu0 0
        %641 = vmatpush2.bf16.msra.mxu0 %v533
        %642 = vmatprep.subr.bf16.mxu0 0
        %643 = vmatpush2.bf16.msra.mxu0 %v532
        %644 = vmatprep.mubr.bf16.mxu0 %v374
        %645 = vmatmul.mubr.bf16.gmra.mxu0 %v371
        %v646 = vpop.f32.mrf.mxu0
        %v647 = vadd.f32 %v607, %v646
        %v648 = vpop.f32.mrf.mxu0
        %v649 = vpop.f32.mrf.mxu0
        %v650 = vpop.f32.mrf.mxu0
        %651 = vdwg.mxu0
        %v720 = vunpack.c.l.b16 %v225
        %v721 = vunpack.c.l.b16 %v226
        %v722 = vunpack.c.l.b16 %v227
        %v723 = vunpack.c.l.b16 %v228
        %v724 = vunpack.c.l.b16 %v229
        %v725 = vunpack.c.l.b16 %v230
        %v726 = vunpack.c.l.b16 %v231
        %v727 = vunpack.c.l.b16 %v232
        %v728 = vunpack.c.l.b16 %v233
        %v729 = vunpack.c.l.b16 %v234
        %v730 = vunpack.c.l.b16 %v235
        %v731 = vunpack.c.l.b16 %v236
        %v732 = vunpack.c.l.b16 %v237
        %v733 = vunpack.c.l.b16 %v238
        %v734 = vunpack.c.l.b16 %v239
        %v735 = vunpack.c.l.b16 %v240
        %v736 = vunpack.c.l.b16 %v241
        %v737 = vunpack.c.l.b16 %v242
        %v738 = vunpack.c.l.b16 %v243
        %v739 = vunpack.c.l.b16 %v244
        %v740 = vunpack.c.l.b16 %v245
        %v741 = vunpack.c.l.b16 %v246
        %v742 = vunpack.c.l.b16 %v247
        %v743 = vunpack.c.l.b16 %v248
        %v744 = vunpack.c.l.b16 %v249
        %v745 = vunpack.c.l.b16 %v250
        %v746 = vunpack.c.l.b16 %v251
        %v747 = vunpack.c.l.b16 %v252
        %v748 = vunpack.c.l.b16 %v253
        %v749 = vunpack.c.l.b16 %v254
        %v750 = vunpack.c.l.b16 %v255
        %v751 = vunpack.c.l.b16 %v256
        %v752 = vunpack.c.l.b16 %v257
        %v753 = vunpack.c.l.b16 %v258
        %v754 = vunpack.c.l.b16 %v259
        %v755 = vunpack.c.l.b16 %v260
        %v756 = vunpack.c.l.b16 %v261
        %v757 = vunpack.c.l.b16 %v262
        %v758 = vunpack.c.l.b16 %v263
        %v759 = vunpack.c.l.b16 %v264
        %v760 = vunpack.c.l.b16 %v265
        %v761 = vunpack.c.l.b16 %v266
        %v762 = vunpack.c.l.b16 %v267
        %v763 = vunpack.c.l.b16 %v268
        %v764 = vunpack.c.l.b16 %v269
        %v765 = vunpack.c.l.b16 %v270
        %v766 = vunpack.c.l.b16 %v271
        %v767 = vunpack.c.l.b16 %v272
        %v768 = vunpack.c.l.b16 %v273
        %v769 = vunpack.c.l.b16 %v274
        %v770 = vunpack.c.l.b16 %v275
        %v771 = vunpack.c.l.b16 %v276
        %v772 = vunpack.c.l.b16 %v277
        %v773 = vunpack.c.l.b16 %v278
        %v774 = vunpack.c.l.b16 %v279
        %v775 = vunpack.c.l.b16 %v280
        %v776 = vunpack.c.l.b16 %v281
        %v777 = vunpack.c.l.b16 %v282
        %v778 = vunpack.c.l.b16 %v283
        %v779 = vunpack.c.l.b16 %v284
        %v780 = vunpack.c.l.b16 %v285
        %v781 = vunpack.c.l.b16 %v286
        %v782 = vunpack.c.l.b16 %v287
        %v783 = vunpack.c.l.b16 %v288
        %v784 = vpack.c.b16 %v721, %v720
        %v785 = vpack.c.b16 %v723, %v722
        %v786 = vpack.c.b16 %v725, %v724
        %v787 = vpack.c.b16 %v727, %v726
        %v788 = vpack.c.b16 %v729, %v728
        %v789 = vpack.c.b16 %v731, %v730
        %v790 = vpack.c.b16 %v733, %v732
        %v791 = vpack.c.b16 %v735, %v734
        %v792 = vpack.c.b16 %v737, %v736
        %v793 = vpack.c.b16 %v739, %v738
        %v794 = vpack.c.b16 %v741, %v740
        %v795 = vpack.c.b16 %v743, %v742
        %v796 = vpack.c.b16 %v745, %v744
        %v797 = vpack.c.b16 %v747, %v746
        %v798 = vpack.c.b16 %v749, %v748
        %v799 = vpack.c.b16 %v751, %v750
        %v800 = vpack.c.b16 %v753, %v752
        %v801 = vpack.c.b16 %v755, %v754
        %v802 = vpack.c.b16 %v757, %v756
        %v803 = vpack.c.b16 %v759, %v758
        %v804 = vpack.c.b16 %v761, %v760
        %v805 = vpack.c.b16 %v763, %v762
        %v806 = vpack.c.b16 %v765, %v764
        %v807 = vpack.c.b16 %v767, %v766
        %v808 = vpack.c.b16 %v769, %v768
        %v809 = vpack.c.b16 %v771, %v770
        %v810 = vpack.c.b16 %v773, %v772
        %v811 = vpack.c.b16 %v775, %v774
        %v812 = vpack.c.b16 %v777, %v776
        %v813 = vpack.c.b16 %v779, %v778
        %v814 = vpack.c.b16 %v781, %v780
        %v815 = vpack.c.b16 %v783, %v782
        %848 = vmatprep.subr.bf16.mxu0 0
        %849 = vmatpush1.bf16.msra.mxu0 %v791
        %850 = vmatprep.subr.bf16.mxu0 0
        %851 = vmatpush1.bf16.msra.mxu0 %v790
        %852 = vmatprep.subr.bf16.mxu0 0
        %853 = vmatpush1.bf16.msra.mxu0 %v789
        %854 = vmatprep.subr.bf16.mxu0 0
        %855 = vmatpush1.bf16.msra.mxu0 %v788
        %856 = vmatprep.subr.bf16.mxu0 0
        %857 = vmatpush1.bf16.msra.mxu0 %v787
        %858 = vmatprep.subr.bf16.mxu0 0
        %859 = vmatpush1.bf16.msra.mxu0 %v786
        %860 = vmatprep.subr.bf16.mxu0 0
        %861 = vmatpush1.bf16.msra.mxu0 %v785
        %862 = vmatprep.subr.bf16.mxu0 0
        %863 = vmatpush1.bf16.msra.mxu0 %v784
        %864 = vmatprep.subr.bf16.mxu0 0
        %865 = vmatpush2.bf16.msra.mxu0 %v799
        %866 = vmatprep.subr.bf16.mxu0 0
        %867 = vmatpush2.bf16.msra.mxu0 %v798
        %868 = vmatprep.subr.bf16.mxu0 0
        %869 = vmatpush2.bf16.msra.mxu0 %v797
        %870 = vmatprep.subr.bf16.mxu0 0
        %871 = vmatpush2.bf16.msra.mxu0 %v796
        %872 = vmatprep.subr.bf16.mxu0 0
        %873 = vmatpush2.bf16.msra.mxu0 %v795
        %874 = vmatprep.subr.bf16.mxu0 0
        %875 = vmatpush2.bf16.msra.mxu0 %v794
        %876 = vmatprep.subr.bf16.mxu0 0
        %877 = vmatpush2.bf16.msra.mxu0 %v793
        %878 = vmatprep.subr.bf16.mxu0 0
        %879 = vmatpush2.bf16.msra.mxu0 %v792
        %880 = vmatprep.mubr.bf16.mxu0 %v361
        %881 = vmatmul.mubr.bf16.gmra.mxu0 %v360
        %v882 = vpop.f32.mrf.mxu0
        %v883 = vadd.f32 %v647, %v882
        %v884 = vpop.f32.mrf.mxu0
        %v885 = vpop.f32.mrf.mxu0
        %v886 = vpop.f32.mrf.mxu0
        %887 = vdwg.mxu0
        %888 = vmatprep.subr.bf16.mxu0 0
        %889 = vmatpush1.bf16.msra.mxu0 %v807
        %890 = vmatprep.subr.bf16.mxu0 0
        %891 = vmatpush1.bf16.msra.mxu0 %v806
        %892 = vmatprep.subr.bf16.mxu0 0
        %893 = vmatpush1.bf16.msra.mxu0 %v805
        %894 = vmatprep.subr.bf16.mxu0 0
        %895 = vmatpush1.bf16.msra.mxu0 %v804
        %896 = vmatprep.subr.bf16.mxu0 0
        %897 = vmatpush1.bf16.msra.mxu0 %v803
        %898 = vmatprep.subr.bf16.mxu0 0
        %899 = vmatpush1.bf16.msra.mxu0 %v802
        %900 = vmatprep.subr.bf16.mxu0 0
        %901 = vmatpush1.bf16.msra.mxu0 %v801
        %902 = vmatprep.subr.bf16.mxu0 0
        %903 = vmatpush1.bf16.msra.mxu0 %v800
        %904 = vmatprep.subr.bf16.mxu0 0
        %905 = vmatpush2.bf16.msra.mxu0 %v815
        %906 = vmatprep.subr.bf16.mxu0 0
        %907 = vmatpush2.bf16.msra.mxu0 %v814
        %908 = vmatprep.subr.bf16.mxu0 0
        %909 = vmatpush2.bf16.msra.mxu0 %v813
        %910 = vmatprep.subr.bf16.mxu0 0
        %911 = vmatpush2.bf16.msra.mxu0 %v812
        %912 = vmatprep.subr.bf16.mxu0 0
        %913 = vmatpush2.bf16.msra.mxu0 %v811
        %914 = vmatprep.subr.bf16.mxu0 0
        %915 = vmatpush2.bf16.msra.mxu0 %v810
        %916 = vmatprep.subr.bf16.mxu0 0
        %917 = vmatpush2.bf16.msra.mxu0 %v809
        %918 = vmatprep.subr.bf16.mxu0 0
        %919 = vmatpush2.bf16.msra.mxu0 %v808
        %920 = vmatprep.mubr.bf16.mxu0 %v363
        %921 = vmatmul.mubr.bf16.gmra.mxu0 %v362
        %v922 = vpop.f32.mrf.mxu0
        %v923 = vadd.f32 %v883, %v922
        %v924 = vpop.f32.mrf.mxu0
        %v925 = vpop.f32.mrf.mxu0
        %v926 = vpop.f32.mrf.mxu0
        %927 = vdwg.mxu0
        %v928 = vld [vmem:[%s221] sm:$0x22]
        %v929 = vld [vmem:[%s221 + $0x8] sm:$0x22]
        %s930 = scalar_lea.vmem %s1, 512
        %v931 = vld [vmem:[%s930] sm:$0xf]
        %v932 = vld [vmem:[%s930 + $0x4] sm:$0xf]
        %v933 = vld [vmem:[%s930 + $0x8] sm:$0xf]
        %v934 = vld [vmem:[%s930 + $0xc] sm:$0xf]
        %v935 = vld [vmem:[%s930 + $0x10] sm:$0xf]
        %v936 = vld [vmem:[%s930 + $0x14] sm:$0xf]
        %v937 = vld [vmem:[%s930 + $0x18] sm:$0xf]
        %v938 = vld [vmem:[%s930 + $0x1c] sm:$0xf]
        %v939 = vld [vmem:[%s930 + $0x20] sm:$0xf]
        %v940 = vld [vmem:[%s930 + $0x24] sm:$0xf]
        %v941 = vld [vmem:[%s930 + $0x28] sm:$0xf]
        %v942 = vld [vmem:[%s930 + $0x2c] sm:$0xf]
        %v943 = vld [vmem:[%s930 + $0x30] sm:$0xf]
        %v944 = vld [vmem:[%s930 + $0x34] sm:$0xf]
        %v945 = vld [vmem:[%s930 + $0x38] sm:$0xf]
        %v946 = vld [vmem:[%s930 + $0x3c] sm:$0xf]
        %v947 = vld [vmem:[%s930 + $0x40] sm:$0xf]
        %v948 = vld [vmem:[%s930 + $0x44] sm:$0xf]
        %v949 = vld [vmem:[%s930 + $0x48] sm:$0xf]
        %v950 = vld [vmem:[%s930 + $0x4c] sm:$0xf]
        %v951 = vld [vmem:[%s930 + $0x50] sm:$0xf]
        %v952 = vld [vmem:[%s930 + $0x54] sm:$0xf]
        %v953 = vld [vmem:[%s930 + $0x58] sm:$0xf]
        %v954 = vld [vmem:[%s930 + $0x5c] sm:$0xf]
        %v955 = vld [vmem:[%s930 + $0x60] sm:$0xf]
        %v956 = vld [vmem:[%s930 + $0x64] sm:$0xf]
        %v957 = vld [vmem:[%s930 + $0x68] sm:$0xf]
        %v958 = vld [vmem:[%s930 + $0x6c] sm:$0xf]
        %v959 = vld [vmem:[%s930 + $0x70] sm:$0xf]
        %v960 = vld [vmem:[%s930 + $0x74] sm:$0xf]
        %v961 = vld [vmem:[%s930 + $0x78] sm:$0xf]
        %v962 = vld [vmem:[%s930 + $0x7c] sm:$0xf]
        %v963 = vld [vmem:[%s930 + $0x80] sm:$0xf]
        %v964 = vld [vmem:[%s930 + $0x84] sm:$0xf]
        %v965 = vld [vmem:[%s930 + $0x88] sm:$0xf]
        %v966 = vld [vmem:[%s930 + $0x8c] sm:$0xf]
        %v967 = vld [vmem:[%s930 + $0x90] sm:$0xf]
        %v968 = vld [vmem:[%s930 + $0x94] sm:$0xf]
        %v969 = vld [vmem:[%s930 + $0x98] sm:$0xf]
        %v970 = vld [vmem:[%s930 + $0x9c] sm:$0xf]
        %v971 = vld [vmem:[%s930 + $0xa0] sm:$0xf]
        %v972 = vld [vmem:[%s930 + $0xa4] sm:$0xf]
        %v973 = vld [vmem:[%s930 + $0xa8] sm:$0xf]
        %v974 = vld [vmem:[%s930 + $0xac] sm:$0xf]
        %v975 = vld [vmem:[%s930 + $0xb0] sm:$0xf]
        %v976 = vld [vmem:[%s930 + $0xb4] sm:$0xf]
        %v977 = vld [vmem:[%s930 + $0xb8] sm:$0xf]
        %v978 = vld [vmem:[%s930 + $0xbc] sm:$0xf]
        %v979 = vld [vmem:[%s930 + $0xc0] sm:$0xf]
        %v980 = vld [vmem:[%s930 + $0xc4] sm:$0xf]
        %v981 = vld [vmem:[%s930 + $0xc8] sm:$0xf]
        %v982 = vld [vmem:[%s930 + $0xcc] sm:$0xf]
        %v983 = vld [vmem:[%s930 + $0xd0] sm:$0xf]
        %v984 = vld [vmem:[%s930 + $0xd4] sm:$0xf]
        %v985 = vld [vmem:[%s930 + $0xd8] sm:$0xf]
        %v986 = vld [vmem:[%s930 + $0xdc] sm:$0xf]
        %v987 = vld [vmem:[%s930 + $0xe0] sm:$0xf]
        %v988 = vld [vmem:[%s930 + $0xe4] sm:$0xf]
        %v989 = vld [vmem:[%s930 + $0xe8] sm:$0xf]
        %v990 = vld [vmem:[%s930 + $0xec] sm:$0xf]
        %v991 = vld [vmem:[%s930 + $0xf0] sm:$0xf]
        %v992 = vld [vmem:[%s930 + $0xf4] sm:$0xf]
        %v993 = vld [vmem:[%s930 + $0xf8] sm:$0xf]
        %v994 = vld [vmem:[%s930 + $0xfc] sm:$0xf]
        %v997 = vunpack.c.l.b16 %v928
        %v998 = vunpack.c.h.b16 %v928
        %v999 = vunpack.c.l.b16 %v929
        %v1000 = vunpack.c.h.b16 %v929
        %v1001 = vpack.c.b16 %v997, %v997
        %v1002 = vpack.c.b16 %v998, %v998
        %v1003 = vpack.c.b16 %v999, %v999
        %v1004 = vpack.c.b16 %v1000, %v1000
        %v1005 = vrot.slane %v1001, 1
        %v1006 = vrot.slane %v1002, 1
        %v1007 = vrot.slane %v1003, 1
        %v1008 = vrot.slane %v1004, 1
        %v1077 = vunpack.c.l.b16 %v931
        %v1078 = vunpack.c.l.b16 %v932
        %v1079 = vunpack.c.l.b16 %v933
        %v1080 = vunpack.c.l.b16 %v934
        %v1081 = vunpack.c.l.b16 %v935
        %v1082 = vunpack.c.l.b16 %v936
        %v1083 = vunpack.c.l.b16 %v937
        %v1084 = vunpack.c.l.b16 %v938
        %v1085 = vunpack.c.l.b16 %v939
        %v1086 = vunpack.c.l.b16 %v940
        %v1087 = vunpack.c.l.b16 %v941
        %v1088 = vunpack.c.l.b16 %v942
        %v1089 = vunpack.c.l.b16 %v943
        %v1090 = vunpack.c.l.b16 %v944
        %v1091 = vunpack.c.l.b16 %v945
        %v1092 = vunpack.c.l.b16 %v946
        %v1093 = vunpack.c.l.b16 %v947
        %v1094 = vunpack.c.l.b16 %v948
        %v1095 = vunpack.c.l.b16 %v949
        %v1096 = vunpack.c.l.b16 %v950
        %v1097 = vunpack.c.l.b16 %v951
        %v1098 = vunpack.c.l.b16 %v952
        %v1099 = vunpack.c.l.b16 %v953
        %v1100 = vunpack.c.l.b16 %v954
        %v1101 = vunpack.c.l.b16 %v955
        %v1102 = vunpack.c.l.b16 %v956
        %v1103 = vunpack.c.l.b16 %v957
        %v1104 = vunpack.c.l.b16 %v958
        %v1105 = vunpack.c.l.b16 %v959
        %v1106 = vunpack.c.l.b16 %v960
        %v1107 = vunpack.c.l.b16 %v961
        %v1108 = vunpack.c.l.b16 %v962
        %v1109 = vunpack.c.l.b16 %v963
        %v1110 = vunpack.c.l.b16 %v964
        %v1111 = vunpack.c.l.b16 %v965
        %v1112 = vunpack.c.l.b16 %v966
        %v1113 = vunpack.c.l.b16 %v967
        %v1114 = vunpack.c.l.b16 %v968
        %v1115 = vunpack.c.l.b16 %v969
        %v1116 = vunpack.c.l.b16 %v970
        %v1117 = vunpack.c.l.b16 %v971
        %v1118 = vunpack.c.l.b16 %v972
        %v1119 = vunpack.c.l.b16 %v973
        %v1120 = vunpack.c.l.b16 %v974
        %v1121 = vunpack.c.l.b16 %v975
        %v1122 = vunpack.c.l.b16 %v976
        %v1123 = vunpack.c.l.b16 %v977
        %v1124 = vunpack.c.l.b16 %v978
        %v1125 = vunpack.c.l.b16 %v979
        %v1126 = vunpack.c.l.b16 %v980
        %v1127 = vunpack.c.l.b16 %v981
        %v1128 = vunpack.c.l.b16 %v982
        %v1129 = vunpack.c.l.b16 %v983
        %v1130 = vunpack.c.l.b16 %v984
        %v1131 = vunpack.c.l.b16 %v985
        %v1132 = vunpack.c.l.b16 %v986
        %v1133 = vunpack.c.l.b16 %v987
        %v1134 = vunpack.c.l.b16 %v988
        %v1135 = vunpack.c.l.b16 %v989
        %v1136 = vunpack.c.l.b16 %v990
        %v1137 = vunpack.c.l.b16 %v991
        %v1138 = vunpack.c.l.b16 %v992
        %v1139 = vunpack.c.l.b16 %v993
        %v1140 = vunpack.c.l.b16 %v994
        %v1141 = vpack.c.b16 %v1078, %v1077
        %v1142 = vpack.c.b16 %v1080, %v1079
        %v1143 = vpack.c.b16 %v1082, %v1081
        %v1144 = vpack.c.b16 %v1084, %v1083
        %v1145 = vpack.c.b16 %v1086, %v1085
        %v1146 = vpack.c.b16 %v1088, %v1087
        %v1147 = vpack.c.b16 %v1090, %v1089
        %v1148 = vpack.c.b16 %v1092, %v1091
        %v1149 = vpack.c.b16 %v1094, %v1093
        %v1150 = vpack.c.b16 %v1096, %v1095
        %v1151 = vpack.c.b16 %v1098, %v1097
        %v1152 = vpack.c.b16 %v1100, %v1099
        %v1153 = vpack.c.b16 %v1102, %v1101
        %v1154 = vpack.c.b16 %v1104, %v1103
        %v1155 = vpack.c.b16 %v1106, %v1105
        %v1156 = vpack.c.b16 %v1108, %v1107
        %v1157 = vpack.c.b16 %v1110, %v1109
        %v1158 = vpack.c.b16 %v1112, %v1111
        %v1159 = vpack.c.b16 %v1114, %v1113
        %v1160 = vpack.c.b16 %v1116, %v1115
        %v1161 = vpack.c.b16 %v1118, %v1117
        %v1162 = vpack.c.b16 %v1120, %v1119
        %v1163 = vpack.c.b16 %v1122, %v1121
        %v1164 = vpack.c.b16 %v1124, %v1123
        %v1165 = vpack.c.b16 %v1126, %v1125
        %v1166 = vpack.c.b16 %v1128, %v1127
        %v1167 = vpack.c.b16 %v1130, %v1129
        %v1168 = vpack.c.b16 %v1132, %v1131
        %v1169 = vpack.c.b16 %v1134, %v1133
        %v1170 = vpack.c.b16 %v1136, %v1135
        %v1171 = vpack.c.b16 %v1138, %v1137
        %v1172 = vpack.c.b16 %v1140, %v1139
        %1205 = vmatprep.subr.bf16.mxu0 0
        %1206 = vmatpush1.bf16.msra.mxu0 %v1148
        %1207 = vmatprep.subr.bf16.mxu0 0
        %1208 = vmatpush1.bf16.msra.mxu0 %v1147
        %1209 = vmatprep.subr.bf16.mxu0 0
        %1210 = vmatpush1.bf16.msra.mxu0 %v1146
        %1211 = vmatprep.subr.bf16.mxu0 0
        %1212 = vmatpush1.bf16.msra.mxu0 %v1145
        %1213 = vmatprep.subr.bf16.mxu0 0
        %1214 = vmatpush1.bf16.msra.mxu0 %v1144
        %1215 = vmatprep.subr.bf16.mxu0 0
        %1216 = vmatpush1.bf16.msra.mxu0 %v1143
        %1217 = vmatprep.subr.bf16.mxu0 0
        %1218 = vmatpush1.bf16.msra.mxu0 %v1142
        %1219 = vmatprep.subr.bf16.mxu0 0
        %1220 = vmatpush1.bf16.msra.mxu0 %v1141
        %1221 = vmatprep.subr.bf16.mxu0 0
        %1222 = vmatpush2.bf16.msra.mxu0 %v1156
        %1223 = vmatprep.subr.bf16.mxu0 0
        %1224 = vmatpush2.bf16.msra.mxu0 %v1155
        %1225 = vmatprep.subr.bf16.mxu0 0
        %1226 = vmatpush2.bf16.msra.mxu0 %v1154
        %1227 = vmatprep.subr.bf16.mxu0 0
        %1228 = vmatpush2.bf16.msra.mxu0 %v1153
        %1229 = vmatprep.subr.bf16.mxu0 0
        %1230 = vmatpush2.bf16.msra.mxu0 %v1152
        %1231 = vmatprep.subr.bf16.mxu0 0
        %1232 = vmatpush2.bf16.msra.mxu0 %v1151
        %1233 = vmatprep.subr.bf16.mxu0 0
        %1234 = vmatpush2.bf16.msra.mxu0 %v1150
        %1235 = vmatprep.subr.bf16.mxu0 0
        %1236 = vmatpush2.bf16.msra.mxu0 %v1149
        %1237 = vmatprep.mubr.bf16.mxu0 %v1006
        %1238 = vmatmul.mubr.bf16.gmra.mxu0 %v1005
        %v1239 = vpop.f32.mrf.mxu0
        %v1240 = vadd.f32 0.0, %v1239
        %v1241 = vpop.f32.mrf.mxu0
        %v1242 = vpop.f32.mrf.mxu0
        %v1243 = vpop.f32.mrf.mxu0
        %1244 = vdwg.mxu0
        %1245 = vmatprep.subr.bf16.mxu0 0
        %1246 = vmatpush1.bf16.msra.mxu0 %v1164
        %1247 = vmatprep.subr.bf16.mxu0 0
        %1248 = vmatpush1.bf16.msra.mxu0 %v1163
        %1249 = vmatprep.subr.bf16.mxu0 0
        %1250 = vmatpush1.bf16.msra.mxu0 %v1162
        %1251 = vmatprep.subr.bf16.mxu0 0
        %1252 = vmatpush1.bf16.msra.mxu0 %v1161
        %1253 = vmatprep.subr.bf16.mxu0 0
        %1254 = vmatpush1.bf16.msra.mxu0 %v1160
        %1255 = vmatprep.subr.bf16.mxu0 0
        %1256 = vmatpush1.bf16.msra.mxu0 %v1159
        %1257 = vmatprep.subr.bf16.mxu0 0
        %1258 = vmatpush1.bf16.msra.mxu0 %v1158
        %1259 = vmatprep.subr.bf16.mxu0 0
        %1260 = vmatpush1.bf16.msra.mxu0 %v1157
        %1261 = vmatprep.subr.bf16.mxu0 0
        %1262 = vmatpush2.bf16.msra.mxu0 %v1172
        %1263 = vmatprep.subr.bf16.mxu0 0
        %1264 = vmatpush2.bf16.msra.mxu0 %v1171
        %1265 = vmatprep.subr.bf16.mxu0 0
        %1266 = vmatpush2.bf16.msra.mxu0 %v1170
        %1267 = vmatprep.subr.bf16.mxu0 0
        %1268 = vmatpush2.bf16.msra.mxu0 %v1169
        %1269 = vmatprep.subr.bf16.mxu0 0
        %1270 = vmatpush2.bf16.msra.mxu0 %v1168
        %1271 = vmatprep.subr.bf16.mxu0 0
        %1272 = vmatpush2.bf16.msra.mxu0 %v1167
        %1273 = vmatprep.subr.bf16.mxu0 0
        %1274 = vmatpush2.bf16.msra.mxu0 %v1166
        %1275 = vmatprep.subr.bf16.mxu0 0
        %1276 = vmatpush2.bf16.msra.mxu0 %v1165
        %1277 = vmatprep.mubr.bf16.mxu0 %v1008
        %1278 = vmatmul.mubr.bf16.gmra.mxu0 %v1007
        %v1279 = vpop.f32.mrf.mxu0
        %v1280 = vadd.f32 %v1240, %v1279
        %v1281 = vpop.f32.mrf.mxu0
        %v1282 = vpop.f32.mrf.mxu0
        %v1283 = vpop.f32.mrf.mxu0
        %1284 = vdwg.mxu0
        %v1285 = vadd.f32 %v923, %v1280
        %s1286 = scalar_lea.vmem %s1, 768
        %v1287 = vld [vmem:[%s1286] sm:$0xf]
        %v1288 = vld [vmem:[%s1286 + $0x4] sm:$0xf]
        %v1289 = vld [vmem:[%s1286 + $0x8] sm:$0xf]
        %v1290 = vld [vmem:[%s1286 + $0xc] sm:$0xf]
        %v1291 = vld [vmem:[%s1286 + $0x10] sm:$0xf]
        %v1292 = vld [vmem:[%s1286 + $0x14] sm:$0xf]
        %v1293 = vld [vmem:[%s1286 + $0x18] sm:$0xf]
        %v1294 = vld [vmem:[%s1286 + $0x1c] sm:$0xf]
        %v1295 = vld [vmem:[%s1286 + $0x20] sm:$0xf]
        %v1296 = vld [vmem:[%s1286 + $0x24] sm:$0xf]
        %v1297 = vld [vmem:[%s1286 + $0x28] sm:$0xf]
        %v1298 = vld [vmem:[%s1286 + $0x2c] sm:$0xf]
        %v1299 = vld [vmem:[%s1286 + $0x30] sm:$0xf]
        %v1300 = vld [vmem:[%s1286 + $0x34] sm:$0xf]
        %v1301 = vld [vmem:[%s1286 + $0x38] sm:$0xf]
        %v1302 = vld [vmem:[%s1286 + $0x3c] sm:$0xf]
        %v1303 = vld [vmem:[%s1286 + $0x40] sm:$0xf]
        %v1304 = vld [vmem:[%s1286 + $0x44] sm:$0xf]
        %v1305 = vld [vmem:[%s1286 + $0x48] sm:$0xf]
        %v1306 = vld [vmem:[%s1286 + $0x4c] sm:$0xf]
        %v1307 = vld [vmem:[%s1286 + $0x50] sm:$0xf]
        %v1308 = vld [vmem:[%s1286 + $0x54] sm:$0xf]
        %v1309 = vld [vmem:[%s1286 + $0x58] sm:$0xf]
        %v1310 = vld [vmem:[%s1286 + $0x5c] sm:$0xf]
        %v1311 = vld [vmem:[%s1286 + $0x60] sm:$0xf]
        %v1312 = vld [vmem:[%s1286 + $0x64] sm:$0xf]
        %v1313 = vld [vmem:[%s1286 + $0x68] sm:$0xf]
        %v1314 = vld [vmem:[%s1286 + $0x6c] sm:$0xf]
        %v1315 = vld [vmem:[%s1286 + $0x70] sm:$0xf]
        %v1316 = vld [vmem:[%s1286 + $0x74] sm:$0xf]
        %v1317 = vld [vmem:[%s1286 + $0x78] sm:$0xf]
        %v1318 = vld [vmem:[%s1286 + $0x7c] sm:$0xf]
        %v1319 = vld [vmem:[%s1286 + $0x80] sm:$0xf]
        %v1320 = vld [vmem:[%s1286 + $0x84] sm:$0xf]
        %v1321 = vld [vmem:[%s1286 + $0x88] sm:$0xf]
        %v1322 = vld [vmem:[%s1286 + $0x8c] sm:$0xf]
        %v1323 = vld [vmem:[%s1286 + $0x90] sm:$0xf]
        %v1324 = vld [vmem:[%s1286 + $0x94] sm:$0xf]
        %v1325 = vld [vmem:[%s1286 + $0x98] sm:$0xf]
        %v1326 = vld [vmem:[%s1286 + $0x9c] sm:$0xf]
        %v1327 = vld [vmem:[%s1286 + $0xa0] sm:$0xf]
        %v1328 = vld [vmem:[%s1286 + $0xa4] sm:$0xf]
        %v1329 = vld [vmem:[%s1286 + $0xa8] sm:$0xf]
        %v1330 = vld [vmem:[%s1286 + $0xac] sm:$0xf]
        %v1331 = vld [vmem:[%s1286 + $0xb0] sm:$0xf]
        %v1332 = vld [vmem:[%s1286 + $0xb4] sm:$0xf]
        %v1333 = vld [vmem:[%s1286 + $0xb8] sm:$0xf]
        %v1334 = vld [vmem:[%s1286 + $0xbc] sm:$0xf]
        %v1335 = vld [vmem:[%s1286 + $0xc0] sm:$0xf]
        %v1336 = vld [vmem:[%s1286 + $0xc4] sm:$0xf]
        %v1337 = vld [vmem:[%s1286 + $0xc8] sm:$0xf]
        %v1338 = vld [vmem:[%s1286 + $0xcc] sm:$0xf]
        %v1339 = vld [vmem:[%s1286 + $0xd0] sm:$0xf]
        %v1340 = vld [vmem:[%s1286 + $0xd4] sm:$0xf]
        %v1341 = vld [vmem:[%s1286 + $0xd8] sm:$0xf]
        %v1342 = vld [vmem:[%s1286 + $0xdc] sm:$0xf]
        %v1343 = vld [vmem:[%s1286 + $0xe0] sm:$0xf]
        %v1344 = vld [vmem:[%s1286 + $0xe4] sm:$0xf]
        %v1345 = vld [vmem:[%s1286 + $0xe8] sm:$0xf]
        %v1346 = vld [vmem:[%s1286 + $0xec] sm:$0xf]
        %v1347 = vld [vmem:[%s1286 + $0xf0] sm:$0xf]
        %v1348 = vld [vmem:[%s1286 + $0xf4] sm:$0xf]
        %v1349 = vld [vmem:[%s1286 + $0xf8] sm:$0xf]
        %v1350 = vld [vmem:[%s1286 + $0xfc] sm:$0xf]
        %v1352 = vshrl.u32 %v1001, 16
        %v1354 = vrot.slane %v1352, 1
        %v1356 = vshrl.u32 %v1002, 16
        %v1358 = vrot.slane %v1356, 1
        %v1360 = vshrl.u32 %v1003, 16
        %v1362 = vrot.slane %v1360, 1
        %v1364 = vshrl.u32 %v1004, 16
        %v1366 = vrot.slane %v1364, 1
        %v1435 = vunpack.c.l.b16 %v1287
        %v1436 = vunpack.c.l.b16 %v1288
        %v1437 = vunpack.c.l.b16 %v1289
        %v1438 = vunpack.c.l.b16 %v1290
        %v1439 = vunpack.c.l.b16 %v1291
        %v1440 = vunpack.c.l.b16 %v1292
        %v1441 = vunpack.c.l.b16 %v1293
        %v1442 = vunpack.c.l.b16 %v1294
        %v1443 = vunpack.c.l.b16 %v1295
        %v1444 = vunpack.c.l.b16 %v1296
        %v1445 = vunpack.c.l.b16 %v1297
        %v1446 = vunpack.c.l.b16 %v1298
        %v1447 = vunpack.c.l.b16 %v1299
        %v1448 = vunpack.c.l.b16 %v1300
        %v1449 = vunpack.c.l.b16 %v1301
        %v1450 = vunpack.c.l.b16 %v1302
        %v1451 = vunpack.c.l.b16 %v1303
        %v1452 = vunpack.c.l.b16 %v1304
        %v1453 = vunpack.c.l.b16 %v1305
        %v1454 = vunpack.c.l.b16 %v1306
        %v1455 = vunpack.c.l.b16 %v1307
        %v1456 = vunpack.c.l.b16 %v1308
        %v1457 = vunpack.c.l.b16 %v1309
        %v1458 = vunpack.c.l.b16 %v1310
        %v1459 = vunpack.c.l.b16 %v1311
        %v1460 = vunpack.c.l.b16 %v1312
        %v1461 = vunpack.c.l.b16 %v1313
        %v1462 = vunpack.c.l.b16 %v1314
        %v1463 = vunpack.c.l.b16 %v1315
        %v1464 = vunpack.c.l.b16 %v1316
        %v1465 = vunpack.c.l.b16 %v1317
        %v1466 = vunpack.c.l.b16 %v1318
        %v1467 = vunpack.c.l.b16 %v1319
        %v1468 = vunpack.c.l.b16 %v1320
        %v1469 = vunpack.c.l.b16 %v1321
        %v1470 = vunpack.c.l.b16 %v1322
        %v1471 = vunpack.c.l.b16 %v1323
        %v1472 = vunpack.c.l.b16 %v1324
        %v1473 = vunpack.c.l.b16 %v1325
        %v1474 = vunpack.c.l.b16 %v1326
        %v1475 = vunpack.c.l.b16 %v1327
        %v1476 = vunpack.c.l.b16 %v1328
        %v1477 = vunpack.c.l.b16 %v1329
        %v1478 = vunpack.c.l.b16 %v1330
        %v1479 = vunpack.c.l.b16 %v1331
        %v1480 = vunpack.c.l.b16 %v1332
        %v1481 = vunpack.c.l.b16 %v1333
        %v1482 = vunpack.c.l.b16 %v1334
        %v1483 = vunpack.c.l.b16 %v1335
        %v1484 = vunpack.c.l.b16 %v1336
        %v1485 = vunpack.c.l.b16 %v1337
        %v1486 = vunpack.c.l.b16 %v1338
        %v1487 = vunpack.c.l.b16 %v1339
        %v1488 = vunpack.c.l.b16 %v1340
        %v1489 = vunpack.c.l.b16 %v1341
        %v1490 = vunpack.c.l.b16 %v1342
        %v1491 = vunpack.c.l.b16 %v1343
        %v1492 = vunpack.c.l.b16 %v1344
        %v1493 = vunpack.c.l.b16 %v1345
        %v1494 = vunpack.c.l.b16 %v1346
        %v1495 = vunpack.c.l.b16 %v1347
        %v1496 = vunpack.c.l.b16 %v1348
        %v1497 = vunpack.c.l.b16 %v1349
        %v1498 = vunpack.c.l.b16 %v1350
        %v1499 = vpack.c.b16 %v1436, %v1435
        %v1500 = vpack.c.b16 %v1438, %v1437
        %v1501 = vpack.c.b16 %v1440, %v1439
        %v1502 = vpack.c.b16 %v1442, %v1441
        %v1503 = vpack.c.b16 %v1444, %v1443
        %v1504 = vpack.c.b16 %v1446, %v1445
        %v1505 = vpack.c.b16 %v1448, %v1447
        %v1506 = vpack.c.b16 %v1450, %v1449
        %v1507 = vpack.c.b16 %v1452, %v1451
        %v1508 = vpack.c.b16 %v1454, %v1453
        %v1509 = vpack.c.b16 %v1456, %v1455
        %v1510 = vpack.c.b16 %v1458, %v1457
        %v1511 = vpack.c.b16 %v1460, %v1459
        %v1512 = vpack.c.b16 %v1462, %v1461
        %v1513 = vpack.c.b16 %v1464, %v1463
        %v1514 = vpack.c.b16 %v1466, %v1465
        %v1515 = vpack.c.b16 %v1468, %v1467
        %v1516 = vpack.c.b16 %v1470, %v1469
        %v1517 = vpack.c.b16 %v1472, %v1471
        %v1518 = vpack.c.b16 %v1474, %v1473
        %v1519 = vpack.c.b16 %v1476, %v1475
        %v1520 = vpack.c.b16 %v1478, %v1477
        %v1521 = vpack.c.b16 %v1480, %v1479
        %v1522 = vpack.c.b16 %v1482, %v1481
        %v1523 = vpack.c.b16 %v1484, %v1483
        %v1524 = vpack.c.b16 %v1486, %v1485
        %v1525 = vpack.c.b16 %v1488, %v1487
        %v1526 = vpack.c.b16 %v1490, %v1489
        %v1527 = vpack.c.b16 %v1492, %v1491
        %v1528 = vpack.c.b16 %v1494, %v1493
        %v1529 = vpack.c.b16 %v1496, %v1495
        %v1530 = vpack.c.b16 %v1498, %v1497
        %1563 = vmatprep.subr.bf16.mxu0 0
        %1564 = vmatpush1.bf16.msra.mxu0 %v1506
        %1565 = vmatprep.subr.bf16.mxu0 0
        %1566 = vmatpush1.bf16.msra.mxu0 %v1505
        %1567 = vmatprep.subr.bf16.mxu0 0
        %1568 = vmatpush1.bf16.msra.mxu0 %v1504
        %1569 = vmatprep.subr.bf16.mxu0 0
        %1570 = vmatpush1.bf16.msra.mxu0 %v1503
        %1571 = vmatprep.subr.bf16.mxu0 0
        %1572 = vmatpush1.bf16.msra.mxu0 %v1502
        %1573 = vmatprep.subr.bf16.mxu0 0
        %1574 = vmatpush1.bf16.msra.mxu0 %v1501
        %1575 = vmatprep.subr.bf16.mxu0 0
        %1576 = vmatpush1.bf16.msra.mxu0 %v1500
        %1577 = vmatprep.subr.bf16.mxu0 0
        %1578 = vmatpush1.bf16.msra.mxu0 %v1499
        %1579 = vmatprep.subr.bf16.mxu0 0
        %1580 = vmatpush2.bf16.msra.mxu0 %v1514
        %1581 = vmatprep.subr.bf16.mxu0 0
        %1582 = vmatpush2.bf16.msra.mxu0 %v1513
        %1583 = vmatprep.subr.bf16.mxu0 0
        %1584 = vmatpush2.bf16.msra.mxu0 %v1512
        %1585 = vmatprep.subr.bf16.mxu0 0
        %1586 = vmatpush2.bf16.msra.mxu0 %v1511
        %1587 = vmatprep.subr.bf16.mxu0 0
        %1588 = vmatpush2.bf16.msra.mxu0 %v1510
        %1589 = vmatprep.subr.bf16.mxu0 0
        %1590 = vmatpush2.bf16.msra.mxu0 %v1509
        %1591 = vmatprep.subr.bf16.mxu0 0
        %1592 = vmatpush2.bf16.msra.mxu0 %v1508
        %1593 = vmatprep.subr.bf16.mxu0 0
        %1594 = vmatpush2.bf16.msra.mxu0 %v1507
        %1595 = vmatprep.mubr.bf16.mxu0 %v1358
        %1596 = vmatmul.mubr.bf16.gmra.mxu0 %v1354
        %v1597 = vpop.f32.mrf.mxu0
        %v1598 = vadd.f32 0.0, %v1597
        %v1599 = vpop.f32.mrf.mxu0
        %v1600 = vpop.f32.mrf.mxu0
        %v1601 = vpop.f32.mrf.mxu0
        %1602 = vdwg.mxu0
        %1603 = vmatprep.subr.bf16.mxu0 0
        %1604 = vmatpush1.bf16.msra.mxu0 %v1522
        %1605 = vmatprep.subr.bf16.mxu0 0
        %1606 = vmatpush1.bf16.msra.mxu0 %v1521
        %1607 = vmatprep.subr.bf16.mxu0 0
        %1608 = vmatpush1.bf16.msra.mxu0 %v1520
        %1609 = vmatprep.subr.bf16.mxu0 0
        %1610 = vmatpush1.bf16.msra.mxu0 %v1519
        %1611 = vmatprep.subr.bf16.mxu0 0
        %1612 = vmatpush1.bf16.msra.mxu0 %v1518
        %1613 = vmatprep.subr.bf16.mxu0 0
        %1614 = vmatpush1.bf16.msra.mxu0 %v1517
        %1615 = vmatprep.subr.bf16.mxu0 0
        %1616 = vmatpush1.bf16.msra.mxu0 %v1516
        %1617 = vmatprep.subr.bf16.mxu0 0
        %1618 = vmatpush1.bf16.msra.mxu0 %v1515
        %1619 = vmatprep.subr.bf16.mxu0 0
        %1620 = vmatpush2.bf16.msra.mxu0 %v1530
        %1621 = vmatprep.subr.bf16.mxu0 0
        %1622 = vmatpush2.bf16.msra.mxu0 %v1529
        %1623 = vmatprep.subr.bf16.mxu0 0
        %1624 = vmatpush2.bf16.msra.mxu0 %v1528
        %1625 = vmatprep.subr.bf16.mxu0 0
        %1626 = vmatpush2.bf16.msra.mxu0 %v1527
        %1627 = vmatprep.subr.bf16.mxu0 0
        %1628 = vmatpush2.bf16.msra.mxu0 %v1526
        %1629 = vmatprep.subr.bf16.mxu0 0
        %1630 = vmatpush2.bf16.msra.mxu0 %v1525
        %1631 = vmatprep.subr.bf16.mxu0 0
        %1632 = vmatpush2.bf16.msra.mxu0 %v1524
        %1633 = vmatprep.subr.bf16.mxu0 0
        %1634 = vmatpush2.bf16.msra.mxu0 %v1523
        %1635 = vmatprep.mubr.bf16.mxu0 %v1366
        %1636 = vmatmul.mubr.bf16.gmra.mxu0 %v1362
        %v1637 = vpop.f32.mrf.mxu0
        %v1638 = vadd.f32 %v1598, %v1637
        %v1639 = vpop.f32.mrf.mxu0
        %v1640 = vpop.f32.mrf.mxu0
        %v1641 = vpop.f32.mrf.mxu0
        %1642 = vdwg.mxu0
        %v1643 = vadd.f32 %v1285, %v1638
        %v1644 = vld [vmem:[%s2] sm:$0x1]
        %v1645 = vadd.f32 %v1643, %v1644
        %v1646 = vmax.f32 %v1645, 0.0
        %v1647 = vpack.c.bf16 %v1646, %v1646
        %v1648 = vld [vmem:[%s3] sm:$0xf]
        %v1649 = vld [vmem:[%s3 + $0x4] sm:$0xf]
        %v1650 = vld [vmem:[%s3 + $0x8] sm:$0xf]
        %v1651 = vld [vmem:[%s3 + $0xc] sm:$0xf]
        %v1652 = vld [vmem:[%s3 + $0x10] sm:$0xf]
        %v1653 = vld [vmem:[%s3 + $0x14] sm:$0xf]
        %v1654 = vld [vmem:[%s3 + $0x18] sm:$0xf]
        %v1655 = vld [vmem:[%s3 + $0x1c] sm:$0xf]
        %v1656 = vld [vmem:[%s3 + $0x20] sm:$0xf]
        %v1657 = vld [vmem:[%s3 + $0x24] sm:$0xf]
        %v1658 = vld [vmem:[%s3 + $0x28] sm:$0xf]
        %v1659 = vld [vmem:[%s3 + $0x2c] sm:$0xf]
        %v1660 = vld [vmem:[%s3 + $0x30] sm:$0xf]
        %v1661 = vld [vmem:[%s3 + $0x34] sm:$0xf]
        %v1662 = vld [vmem:[%s3 + $0x38] sm:$0xf]
        %v1663 = vld [vmem:[%s3 + $0x3c] sm:$0xf]
        %v1664 = vld [vmem:[%s4] sm:$0x1]
        %v1681 = vunpack.c.l.b16 %v1648
        %v1682 = vunpack.c.l.b16 %v1649
        %v1683 = vunpack.c.l.b16 %v1650
        %v1684 = vunpack.c.l.b16 %v1651
        %v1685 = vunpack.c.l.b16 %v1652
        %v1686 = vunpack.c.l.b16 %v1653
        %v1687 = vunpack.c.l.b16 %v1654
        %v1688 = vunpack.c.l.b16 %v1655
        %v1689 = vunpack.c.l.b16 %v1656
        %v1690 = vunpack.c.l.b16 %v1657
        %v1691 = vunpack.c.l.b16 %v1658
        %v1692 = vunpack.c.l.b16 %v1659
        %v1693 = vunpack.c.l.b16 %v1660
        %v1694 = vunpack.c.l.b16 %v1661
        %v1695 = vunpack.c.l.b16 %v1662
        %v1696 = vunpack.c.l.b16 %v1663
        %v1697 = vpack.c.b16 %v1682, %v1681
        %v1698 = vpack.c.b16 %v1684, %v1683
        %v1699 = vpack.c.b16 %v1686, %v1685
        %v1700 = vpack.c.b16 %v1688, %v1687
        %v1701 = vpack.c.b16 %v1690, %v1689
        %v1702 = vpack.c.b16 %v1692, %v1691
        %v1703 = vpack.c.b16 %v1694, %v1693
        %v1704 = vpack.c.b16 %v1696, %v1695
        %1713 = vmatprep.subr.bf16.mxu0 0
        %1714 = vmatpush1.bf16.msra.mxu0 %v1704
        %1715 = vmatprep.subr.bf16.mxu0 0
        %1716 = vmatpush1.bf16.msra.mxu0 %v1703
        %1717 = vmatprep.subr.bf16.mxu0 0
        %1718 = vmatpush1.bf16.msra.mxu0 %v1702
        %1719 = vmatprep.subr.bf16.mxu0 0
        %1720 = vmatpush1.bf16.msra.mxu0 %v1701
        %1721 = vmatprep.subr.bf16.mxu0 0
        %1722 = vmatpush1.bf16.msra.mxu0 %v1700
        %1723 = vmatprep.subr.bf16.mxu0 0
        %1724 = vmatpush1.bf16.msra.mxu0 %v1699
        %1725 = vmatprep.subr.bf16.mxu0 0
        %1726 = vmatpush1.bf16.msra.mxu0 %v1698
        %1727 = vmatprep.subr.bf16.mxu0 0
        %1728 = vmatpush1.bf16.msra.mxu0 %v1697
        %1729 = vmatprep.subr.bf16.mxu0 0
        %1730 = vmatpush2.bf16.msra.mxu0 0
        %1731 = vmatprep.subr.bf16.mxu0 0
        %1732 = vmatpush2.bf16.msra.mxu0 0
        %1733 = vmatprep.subr.bf16.mxu0 0
        %1734 = vmatpush2.bf16.msra.mxu0 0
        %1735 = vmatprep.subr.bf16.mxu0 0
        %1736 = vmatpush2.bf16.msra.mxu0 0
        %1737 = vmatprep.subr.bf16.mxu0 0
        %1738 = vmatpush2.bf16.msra.mxu0 0
        %1739 = vmatprep.subr.bf16.mxu0 0
        %1740 = vmatpush2.bf16.msra.mxu0 0
        %1741 = vmatprep.subr.bf16.mxu0 0
        %1742 = vmatpush2.bf16.msra.mxu0 0
        %1743 = vmatprep.subr.bf16.mxu0 0
        %1744 = vmatpush2.bf16.msra.mxu0 0
        %1745 = vmatprep.mubr.bf16.mxu0 0
        %1746 = vmatmul.mubr.bf16.gmra.mxu0 %v1647
        %v1747 = vpop.f32.mrf.mxu0
        %v1748 = vadd.f32 %v1664, %v1747
        %v1749 = vpop.f32.mrf.mxu0
        %v1750 = vpop.f32.mrf.mxu0
        %v1751 = vpop.f32.mrf.mxu0
        %1752 = vdwg.mxu0
        %vm1753 = vcmask 8192
        %1754 = vst.msk [vmem:[%s216] sm:$0x1] %vm1753, %v1748
        %s1755 = sand.u32 %s137, 1
        %s1756 = scalar_lea.sflag [#allocation3], %s1755
        %s1757 = sand.u32 %s137, 1
        %s1758 = scalar_lea.vmem [#allocation2], %s1757
        // Predicated region
        $region41: #{forward.9} parent=39 // pred_check
          %p1759 = pneg %p147
        $region42: #{forward.9} parent=39 // pred_check_branch
          %1761 = sbr.rel (%p1759) target = $region44
        $region43: #{forward.9} parent=39 // pred_region
          %s1763 = ssub.s32 16, 16
          %1764 = vsyncadd %s1756, %s1763
          %s1765 = smul.addr %s19, 16
          %s1766 = scalar_lea.hbm %s5, %s1765
          %s1768 = sshll.u32 %s1758, 4
          %s1769 = int_to_ptr.vmem [resolvable:$true] %s1768
          %1771 = dma.vmem_to_hbm [thread:$0]  %s1769, 16, %s1766, %s1756
        $region44: #{forward.9} parent=39 // pred_fallthru
          _
      $region40: #{forward.9} parent=5 // pred_fallthru
        _
      %p1772 = scmp.le.s32.totalorder 2, %s14
      // Predicated region
      $region45: #{forward.9} parent=5 // pred_check
        %p1773 = pneg %p1772
      $region46: #{forward.9} parent=5 // pred_check_branch
        %1775 = sbr.rel (%p1773) target = $region48
      $region47: #{forward.9} parent=5 // pred_region
        %s1776 = ssub.s32 %s14, 2
        // Predicated region
        $region49: #{forward.9} parent=47 // pred_check
          %p1777 = pneg %p153
        $region50: #{forward.9} parent=47 // pred_check_branch
          %1779 = sbr.rel (%p1777) target = $region52
        $region51: #{forward.9} parent=47 // pred_region
          %s1780 = sand.u32 %s138, 1
          %s1781 = scalar_lea.sflag [#allocation3], %s1780
          %s1782 = sand.u32 %s138, 1
          %s1783 = scalar_lea.vmem [#allocation2], %s1782
          %1784 = dma.done %s1781, 16
        $region52: #{forward.9} parent=47 // pred_fallthru
          _
      $region48: #{forward.9} parent=5 // pred_fallthru
        _
    $region6: #{forward.9} parent=1 // loop_footer
      %s18 = sadd.s32 1, %s14
    $region7: #{forward.9} parent=1 // loop_footer_branch
      %13 = sbr.rel target = $region3
    $region8: #{forward.9} parent=1 // loop_exit
      _
    %1785 = vsyncpa [#allocation3], 1
    %s1786 = scalar_lea.sflag [#allocation3], 1
    %1787 = vsyncpa %s1786, 1

</llo_original>
